<compile_context>
chip_gen: v7x
topology: tpu7x:2x2x1
jax: 0.10.0
libtpu: 0.0.40
codegen_flags: <defaults>
</compile_context>

<pallas_src>
import jax
import jax.numpy as jnp
from jax.experimental import pallas as pl
from jax.experimental.pallas import tpu as pltpu

CHAR_TO_ID = {'<pad>': 0, '<eos>': 1, '(': 2, ')': 3, '*': 4, '+': 5, '-': 6,
              '0': 7, '1': 8, '2': 9, '3': 10, '4': 11, '5': 12, '6': 13,
              '7': 14, '8': 15, '9': 16, '=': 17}
VOCAB_SIZE = len(CHAR_TO_ID)   # 18
VP = 128                       # lane-padded vocab for the head output
MXU_DTYPE = jnp.bfloat16       # matmul operand dtype; accumulation/gates stay f32


# ----------------------------------------------------------------------------
# Fused kernel: for one batch block, run all T time steps of LSTM layer 1 and
# layer 2 (state carried as values, never leaving VMEM), then apply the MLP
# head once over all T*b_blk rows.  PyTorch gate order (i, f, g, o).
# ----------------------------------------------------------------------------
def _fused_lstm_head_kernel(xproj_ref, lens_ref, whh1_ref, w2_ref, b2_ref,
                            fc1w_ref, fc1b_ref, fc2w_ref, fc2b_ref,
                            out_ref, h2m_scr):
    T, b_blk, G = xproj_ref.shape
    H = G // 4
    Vp = out_ref.shape[-1]
    cdt = whh1_ref.dtype                       # bf16 MXU operand dtype

    def lstm_cell(gates, c_prev):
        i = jax.nn.sigmoid(gates[:, 0 * H:1 * H])
        f = jax.nn.sigmoid(gates[:, 1 * H:2 * H])
        g = jnp.tanh(gates[:, 2 * H:3 * H])
        o = jax.nn.sigmoid(gates[:, 3 * H:4 * H])
        c_new = f * c_prev + i * g
        h_new = o * jnp.tanh(c_new)
        return h_new, c_new

    # Hoist weight/bias loads (and the bias broadcast) out of the time loop.
    whh1 = whh1_ref[...]                       # (H, 4H)  bf16
    w2 = w2_ref[...]                           # (2H, 4H) bf16  [W_ih2; W_hh2]
    b2 = jnp.broadcast_to(b2_ref[...], (b_blk, G))      # f32
    lens = lens_ref[...]                       # (b_blk, 1) int32

    zero = jnp.zeros((b_blk, H), jnp.float32)
    h1, c1, h2, c2 = zero, zero, zero, zero

    # Whole (small, static) time axis unrolled inside a single grid step.
    for t in range(T):
        # ---- LSTM layer 1 (input proj + bias pre-folded into xproj) ----
        gates1 = xproj_ref[t] + jnp.dot(h1.astype(cdt), whh1,
                                        preferred_element_type=jnp.float32)
        h1, c1 = lstm_cell(gates1, c1)
        # pad_packed_sequence semantics: zero outputs at t >= length.
        maskf = jnp.broadcast_to((lens > t).astype(jnp.float32), (b_blk, H))
        h1m = h1 * maskf
        # ---- LSTM layer 2: single fused matmul on concat([h1m, h2_prev]) ----
        lhs2 = jnp.concatenate([h1m, h2], axis=1).astype(cdt)   # (b_blk, 2H)
        gates2 = jnp.dot(lhs2, w2, preferred_element_type=jnp.float32) + b2
        h2, c2 = lstm_cell(gates2, c2)
        h2m_scr[t] = h2 * maskf

    # ---- MLP head hoisted out of the recurrence: one (T*b_blk, H) chain ----
    h2m = h2m_scr[...].reshape(T * b_blk, H)
    z = jnp.dot(h2m.astype(cdt), fc1w_ref[...],
                preferred_element_type=jnp.float32) + fc1b_ref[...]
    z = jnp.maximum(z, 0.0)
    y = jnp.dot(z.astype(cdt), fc2w_ref[...],
                preferred_element_type=jnp.float32) + fc2b_ref[...]
    out_ref[...] = y.reshape(T, b_blk, Vp).astype(out_ref.dtype)


def fused_lstm_head(xproj_tbg, lens_b1, whh1_t, w2cat_t, b2,
                    fc1_w_t, fc1_b, fc2_w_t, fc2_b, *, b_blk=None):
    """xproj_tbg: (T, Bp, 4H) f32; lens_b1: (Bp, 1) i32.  Returns (T, Bp, VP) f32."""
    T, Bp, G = xproj_tbg.shape
    H = whh1_t.shape[0]
    Vp = fc2_w_t.shape[1]
    assert G == 4 * H and Bp % 8 == 0

    if b_blk is None:
        target = min(Bp, 256)                 # big MXU LHS when batch is large
        if Bp >= 16:
            target = min(target, Bp // 2)     # keep >= 2 batch blocks (v7x 2 TCs)
        b_blk = max(8, target - (target % 8))
        while Bp % b_blk:
            b_blk -= 8
    assert Bp % b_blk == 0

    return pl.pallas_call(
        _fused_lstm_head_kernel,
        out_shape=jax.ShapeDtypeStruct((T, Bp, Vp), jnp.float32),
        grid_spec=pltpu.PrefetchScalarGridSpec(
            num_scalar_prefetch=0,
            grid=(Bp // b_blk,),                                          # batch blocks only
            in_specs=[
                pl.BlockSpec((T, b_blk, G), lambda b: (0, b, 0)),         # fused xproj
                pl.BlockSpec((b_blk, 1), lambda b: (b, 0)),               # lengths
                pl.BlockSpec((H, G), lambda b: (0, 0)),                   # W_hh1^T (bf16)
                pl.BlockSpec((2 * H, G), lambda b: (0, 0)),               # [W_ih2;W_hh2]^T (bf16)
                pl.BlockSpec((1, G), lambda b: (0, 0)),                   # b_ih2 + b_hh2
                pl.BlockSpec((H, H), lambda b: (0, 0)),                   # fc1 W^T (bf16)
                pl.BlockSpec((1, H), lambda b: (0, 0)),                   # fc1 b
                pl.BlockSpec((H, Vp), lambda b: (0, 0)),                  # fc2 W^T (bf16, padded)
                pl.BlockSpec((1, Vp), lambda b: (0, 0)),                  # fc2 b  (padded)
            ],
            out_specs=pl.BlockSpec((T, b_blk, Vp), lambda b: (0, b, 0)),
            scratch_shapes=[
                pltpu.VMEM((T, b_blk, H), jnp.float32),   # staged h2m for the head
            ],
        ),
        compiler_params=pltpu.CompilerParams(
            dimension_semantics=("parallel",)),
    )(xproj_tbg, lens_b1, whh1_t, w2cat_t, b2, fc1_w_t, fc1_b, fc2_w_t, fc2_b)


# ----------------------------------------------------------------------------
# Parameters (deterministic synthetic init; shapes follow CharRNN.__init__ with
# lstm_layers=2: rnn_layer1 has 1 layer, rnn_layer2 has 1 layer).
# ----------------------------------------------------------------------------
def init_params(key, vocab, embed_dim, hidden_dim):
    ks = jax.random.split(key, 16)
    s = 1.0 / (hidden_dim ** 0.5)

    def u(k, shape):
        return jax.random.uniform(k, shape, jnp.float32, -s, s)

    emb = jax.random.normal(ks[0], (vocab, embed_dim), jnp.float32) * 0.1
    emb = emb.at[0].set(0.0)                      # padding_idx = 0

    p = {"embedding": emb}
    # LSTM layer 1: embed_dim -> hidden_dim (W^T layouts, combined bias)
    p["l1_wih_t"] = u(ks[1], (4 * hidden_dim, embed_dim)).T
    p["l1_whh_t"] = u(ks[2], (4 * hidden_dim, hidden_dim)).T
    p["l1_b"] = (u(ks[3], (4 * hidden_dim,)) + u(ks[4], (4 * hidden_dim,))).reshape(1, -1)
    # LSTM layer 2: hidden_dim -> hidden_dim
    p["l2_wih_t"] = u(ks[5], (4 * hidden_dim, hidden_dim)).T
    p["l2_whh_t"] = u(ks[6], (4 * hidden_dim, hidden_dim)).T
    p["l2_b"] = (u(ks[7], (4 * hidden_dim,)) + u(ks[8], (4 * hidden_dim,))).reshape(1, -1)
    # MLP head; fc2 is lane-padded (V -> VP) with zero columns, sliced in wrapper
    p["fc1_w_t"] = u(ks[9], (hidden_dim, hidden_dim)).T
    p["fc1_b"] = u(ks[10], (hidden_dim,)).reshape(1, -1)
    w2 = u(ks[11], (vocab, hidden_dim))
    b2 = u(ks[12], (vocab,))
    p["fc2_w_t"] = jnp.zeros((hidden_dim, VP), jnp.float32).at[:, :vocab].set(w2.T)
    p["fc2_b"] = jnp.zeros((1, VP), jnp.float32).at[:, :vocab].set(b2.reshape(1, -1))
    return p


# ----------------------------------------------------------------------------
# Full CharRNN forward.
# ----------------------------------------------------------------------------
def char_rnn_forward(params, batch_x, batch_x_lens):
    """batch_x: (B, T) int32; batch_x_lens: (B,) int32 with max == T.
    Returns logits (B, T, vocab)."""
    B, T = batch_x.shape
    V = params["embedding"].shape[0]
    H = params["l1_whh_t"].shape[0]

    # Pad batch to a multiple of 8 so all (B, .) tiles are full (8,128) slabs.
    # Padded rows use pad-id 0 and length 0; they are masked and sliced away.
    Bp = ((B + 7) // 8) * 8
    ids = jnp.zeros((Bp, T), jnp.int32).at[:B, :].set(batch_x.astype(jnp.int32))
    lens = jnp.zeros((Bp,), jnp.int32).at[:B].set(batch_x_lens.astype(jnp.int32))
    lens_b1 = lens.reshape(Bp, 1)

    # Fold Embedding + layer-1 input projection into one (V, 4H) table:
    # xtab[k] = embedding[k] @ W_ih1^T + (b_ih1 + b_hh1).  Row 0 == bias because
    # embedding row 0 (padding_idx) is zero.  xproj is then a pure row gather,
    # produced directly time-major (only the tiny (B,T) id matrix is transposed).
    xtab = jnp.dot(params["embedding"], params["l1_wih_t"],
                   preferred_element_type=jnp.float32) + params["l1_b"]   # (V, 4H)
    xproj_tbg = jnp.take(xtab, ids.T, axis=0)                              # (T, Bp, 4H) f32

    # bf16 MXU operands (weights); biases / xproj / gate math stay f32.
    whh1 = params["l1_whh_t"].astype(MXU_DTYPE)
    w2cat = jnp.concatenate([params["l2_wih_t"], params["l2_whh_t"]],
                            axis=0).astype(MXU_DTYPE)                      # (2H, 4H)
    fc1w = params["fc1_w_t"].astype(MXU_DTYPE)
    fc2w = params["fc2_w_t"].astype(MXU_DTYPE)

    # Single fused 2-layer LSTM + MLP head kernel; grid = (batch blocks,).
    logits_tbv = fused_lstm_head(
        xproj_tbg, lens_b1, whh1, w2cat, params["l2_b"],
        fc1w, params["fc1_b"], fc2w, params["fc2_b"])

    # Back to batch-first; drop batch padding and vocab lane padding.
    logits = jnp.transpose(logits_tbv, (1, 0, 2))[:B, :, :V]     # (B, T, V)
    return logits


if __name__ == "__main__":
    B, T = 2, 8
    embed_dim, hidden_dim = 256, 256    # module-level constants in the PyTorch spec

    key = jax.random.PRNGKey(0)
    pkey, xkey = jax.random.split(key)
    params = init_params(pkey, VOCAB_SIZE, embed_dim, hidden_dim)

    # Deterministic example batch: token ids in [2, vocab), right-padded with 0.
    lens = jnp.array([T, 5], dtype=jnp.int32)                    # max(lens) == T
    tokens = jax.random.randint(xkey, (B, T), 2, VOCAB_SIZE, dtype=jnp.int32)
    t_idx = jnp.arange(T)[None, :]
    batch_x = jnp.where(t_idx < lens[:, None], tokens, 0)        # pad id = 0

    logits = jax.jit(char_rnn_forward)(params, batch_x, lens)
    jax.block_until_ready(logits)
    assert logits.shape == (B, T, VOCAB_SIZE)
    # TODO(synk): pack_padded_sequence with max(lens) < T would trim the time
    # axis to max(lens); here we assume max(lens) == T.
    print("KERNEL_OK")
</pallas_src>

<mosaic_0001>
module attributes {stable_mosaic.version = 11 : i64} {
  func.func @_fused_lstm_head_kernel(%arg0: i32, %arg1: memref<8x8x1024xf32, #tpu.memory_space<vmem>>, %arg2: memref<8x1xi32, #tpu.memory_space<vmem>>, %arg3: memref<256x1024xbf16, #tpu.memory_space<vmem>>, %arg4: memref<512x1024xbf16, #tpu.memory_space<vmem>>, %arg5: memref<1x1024xf32, #tpu.memory_space<vmem>>, %arg6: memref<256x256xbf16, #tpu.memory_space<vmem>>, %arg7: memref<1x256xf32, #tpu.memory_space<vmem>>, %arg8: memref<256x128xbf16, #tpu.memory_space<vmem>>, %arg9: memref<1x128xf32, #tpu.memory_space<vmem>>, %arg10: memref<8x8x128xf32, #tpu.memory_space<vmem>>, %arg11: memref<8x8x256xf32, #tpu.memory_space<vmem>>) attributes {dimension_semantics = [#tpu.dimension_semantics<parallel>], iteration_bounds = array<i64: 1>, scalar_prefetch = 0 : i64, scratch_operands = 1 : i64, tpu.core_type = #tpu.core_type<tc>, window_params = [{transform_indices = @transform_0, window_bounds = array<i64: 8, 8, 1024>}, {transform_indices = @transform_1, window_bounds = array<i64: 8, 1>}, {pipeline_mode = #tpu.pipeline_mode<synchronous>, transform_indices = @transform_2, window_bounds = array<i64: 256, 1024>}, {pipeline_mode = #tpu.pipeline_mode<synchronous>, transform_indices = @transform_3, window_bounds = array<i64: 512, 1024>}, {pipeline_mode = #tpu.pipeline_mode<synchronous>, transform_indices = @transform_4, window_bounds = array<i64: 1, 1024>}, {pipeline_mode = #tpu.pipeline_mode<synchronous>, transform_indices = @transform_5, window_bounds = array<i64: 256, 256>}, {pipeline_mode = #tpu.pipeline_mode<synchronous>, transform_indices = @transform_6, window_bounds = array<i64: 1, 256>}, {pipeline_mode = #tpu.pipeline_mode<synchronous>, transform_indices = @transform_7, window_bounds = array<i64: 256, 128>}, {pipeline_mode = #tpu.pipeline_mode<synchronous>, transform_indices = @transform_8, window_bounds = array<i64: 1, 128>}, {transform_indices = @transform_9, window_bounds = array<i64: 8, 8, 128>}]} {
    %c0 = arith.constant 0 : index
    %c0_0 = arith.constant 0 : index
    %0 = vector.load %arg3[%c0, %c0_0] : memref<256x1024xbf16, #tpu.memory_space<vmem>>, vector<256x1024xbf16>
    %c0_1 = arith.constant 0 : index
    %c0_2 = arith.constant 0 : index
    %1 = vector.load %arg4[%c0_1, %c0_2] : memref<512x1024xbf16, #tpu.memory_space<vmem>>, vector<512x1024xbf16>
    %c0_3 = arith.constant 0 : index
    %c0_4 = arith.constant 0 : index
    %2 = vector.load %arg5[%c0_3, %c0_4] : memref<1x1024xf32, #tpu.memory_space<vmem>>, vector<1x1024xf32>
    %3 = vector.shape_cast %2 : vector<1x1024xf32> to vector<1x1024xf32>
    %4 = vector.broadcast %3 : vector<1x1024xf32> to vector<8x1024xf32>
    %c0_5 = arith.constant 0 : index
    %c0_6 = arith.constant 0 : index
    %5 = vector.load %arg2[%c0_5, %c0_6] : memref<8x1xi32, #tpu.memory_space<vmem>>, vector<8x1xi32>
    %cst = arith.constant 0.000000e+00 : f32
    %6 = vector.broadcast %cst : f32 to vector<8x256xf32>
    %c0_7 = arith.constant 0 : index
    %c0_8 = arith.constant 0 : index
    %c0_9 = arith.constant 0 : index
    %7 = vector.load %arg1[%c0_7, %c0_8, %c0_9] : memref<8x8x1024xf32, #tpu.memory_space<vmem>>, vector<1x8x1024xf32>
    %8 = vector.shape_cast %7 : vector<1x8x1024xf32> to vector<8x1024xf32>
    %9 = arith.truncf %6 : vector<8x256xf32> to vector<8x256xbf16>
    %cst_10 = arith.constant dense<0.000000e+00> : vector<8x1024xf32>
    %10 = tpu.matmul %9, %0, %cst_10 {dimension_numbers = #tpu.dot_dimension_numbers<[1], [0], [0], [1], [0, 0, 1, 1], [], []>} : vector<8x256xbf16>, vector<256x1024xbf16>, vector<8x1024xf32> -> vector<8x1024xf32>
    %11 = arith.addf %8, %10 : vector<8x1024xf32>
    %12 = vector.extract_strided_slice %11 {offsets = [0, 0], sizes = [8, 256], strides = [1, 1]} : vector<8x1024xf32> to vector<8x256xf32>
    %13 = arith.negf %12 : vector<8x256xf32>
    %14 = math.exp %13 : vector<8x256xf32>
    %cst_11 = arith.constant 1.000000e+00 : f32
    %15 = vector.broadcast %cst_11 : f32 to vector<8x256xf32>
    %16 = arith.addf %15, %14 : vector<8x256xf32>
    %17 = arith.divf %15, %16 : vector<8x256xf32>
    %18 = vector.extract_strided_slice %11 {offsets = [0, 256], sizes = [8, 256], strides = [1, 1]} : vector<8x1024xf32> to vector<8x256xf32>
    %19 = arith.negf %18 : vector<8x256xf32>
    %20 = math.exp %19 : vector<8x256xf32>
    %cst_12 = arith.constant 1.000000e+00 : f32
    %21 = vector.broadcast %cst_12 : f32 to vector<8x256xf32>
    %22 = arith.addf %21, %20 : vector<8x256xf32>
    %23 = arith.divf %21, %22 : vector<8x256xf32>
    %24 = vector.extract_strided_slice %11 {offsets = [0, 512], sizes = [8, 256], strides = [1, 1]} : vector<8x1024xf32> to vector<8x256xf32>
    %25 = math.tanh %24 : vector<8x256xf32>
    %26 = vector.extract_strided_slice %11 {offsets = [0, 768], sizes = [8, 256], strides = [1, 1]} : vector<8x1024xf32> to vector<8x256xf32>
    %27 = arith.negf %26 : vector<8x256xf32>
    %28 = math.exp %27 : vector<8x256xf32>
    %cst_13 = arith.constant 1.000000e+00 : f32
    %29 = vector.broadcast %cst_13 : f32 to vector<8x256xf32>
    %30 = arith.addf %29, %28 : vector<8x256xf32>
    %31 = arith.divf %29, %30 : vector<8x256xf32>
    %32 = arith.mulf %23, %6 : vector<8x256xf32>
    %33 = arith.mulf %17, %25 : vector<8x256xf32>
    %34 = arith.addf %32, %33 : vector<8x256xf32>
    %35 = math.tanh %34 : vector<8x256xf32>
    %36 = arith.mulf %31, %35 : vector<8x256xf32>
    %c0_i32 = arith.constant 0 : i32
    %37 = vector.broadcast %c0_i32 : i32 to vector<8x1xi32>
    %38 = arith.cmpi sgt, %5, %37 : vector<8x1xi32>
    %39 = arith.extui %38 : vector<8x1xi1> to vector<8x1xi32>
    %40 = arith.sitofp %39 : vector<8x1xi32> to vector<8x1xf32>
    %41 = vector.shape_cast %40 : vector<8x1xf32> to vector<8x1xf32>
    %42 = vector.broadcast %41 : vector<8x1xf32> to vector<8x256xf32>
    %43 = arith.mulf %36, %42 : vector<8x256xf32>
    %44 = tpu.concatenate %43, %6 in 1 : vector<8x256xf32>, vector<8x256xf32> -> vector<8x512xf32>
    %45 = arith.truncf %44 : vector<8x512xf32> to vector<8x512xbf16>
    %cst_14 = arith.constant dense<0.000000e+00> : vector<8x1024xf32>
    %46 = tpu.matmul %45, %1, %cst_14 {dimension_numbers = #tpu.dot_dimension_numbers<[1], [0], [0], [1], [0, 0, 1, 1], [], []>} : vector<8x512xbf16>, vector<512x1024xbf16>, vector<8x1024xf32> -> vector<8x1024xf32>
    %47 = arith.addf %46, %4 : vector<8x1024xf32>
    %48 = vector.extract_strided_slice %47 {offsets = [0, 0], sizes = [8, 256], strides = [1, 1]} : vector<8x1024xf32> to vector<8x256xf32>
    %49 = arith.negf %48 : vector<8x256xf32>
    %50 = math.exp %49 : vector<8x256xf32>
    %cst_15 = arith.constant 1.000000e+00 : f32
    %51 = vector.broadcast %cst_15 : f32 to vector<8x256xf32>
    %52 = arith.addf %51, %50 : vector<8x256xf32>
    %53 = arith.divf %51, %52 : vector<8x256xf32>
    %54 = vector.extract_strided_slice %47 {offsets = [0, 256], sizes = [8, 256], strides = [1, 1]} : vector<8x1024xf32> to vector<8x256xf32>
    %55 = arith.negf %54 : vector<8x256xf32>
    %56 = math.exp %55 : vector<8x256xf32>
    %cst_16 = arith.constant 1.000000e+00 : f32
    %57 = vector.broadcast %cst_16 : f32 to vector<8x256xf32>
    %58 = arith.addf %57, %56 : vector<8x256xf32>
    %59 = arith.divf %57, %58 : vector<8x256xf32>
    %60 = vector.extract_strided_slice %47 {offsets = [0, 512], sizes = [8, 256], strides = [1, 1]} : vector<8x1024xf32> to vector<8x256xf32>
    %61 = math.tanh %60 : vector<8x256xf32>
    %62 = vector.extract_strided_slice %47 {offsets = [0, 768], sizes = [8, 256], strides = [1, 1]} : vector<8x1024xf32> to vector<8x256xf32>
    %63 = arith.negf %62 : vector<8x256xf32>
    %64 = math.exp %63 : vector<8x256xf32>
    %cst_17 = arith.constant 1.000000e+00 : f32
    %65 = vector.broadcast %cst_17 : f32 to vector<8x256xf32>
    %66 = arith.addf %65, %64 : vector<8x256xf32>
    %67 = arith.divf %65, %66 : vector<8x256xf32>
    %68 = arith.mulf %59, %6 : vector<8x256xf32>
    %69 = arith.mulf %53, %61 : vector<8x256xf32>
    %70 = arith.addf %68, %69 : vector<8x256xf32>
    %71 = math.tanh %70 : vector<8x256xf32>
    %72 = arith.mulf %67, %71 : vector<8x256xf32>
    %73 = arith.mulf %72, %42 : vector<8x256xf32>
    %c0_18 = arith.constant 0 : index
    %c0_19 = arith.constant 0 : index
    %c0_20 = arith.constant 0 : index
    %74 = vector.load %arg11[%c0_18, %c0_19, %c0_20] : memref<8x8x256xf32, #tpu.memory_space<vmem>>, vector<1x8x256xf32>
    %75 = vector.shape_cast %74 : vector<1x8x256xf32> to vector<8x256xf32>
    %76 = vector.shape_cast %73 : vector<8x256xf32> to vector<1x8x256xf32>
    tpu.vector_store %arg11[%c0_18, %c0_19, %c0_20], %76 {strides = array<i32>} : memref<8x8x256xf32, #tpu.memory_space<vmem>>, vector<1x8x256xf32>,
    %c1 = arith.constant 1 : index
    %c0_21 = arith.constant 0 : index
    %c0_22 = arith.constant 0 : index
    %77 = vector.load %arg1[%c1, %c0_21, %c0_22] : memref<8x8x1024xf32, #tpu.memory_space<vmem>>, vector<1x8x1024xf32>
    %78 = vector.shape_cast %77 : vector<1x8x1024xf32> to vector<8x1024xf32>
    %79 = arith.truncf %36 : vector<8x256xf32> to vector<8x256xbf16>
    %cst_23 = arith.constant dense<0.000000e+00> : vector<8x1024xf32>
    %80 = tpu.matmul %79, %0, %cst_23 {dimension_numbers = #tpu.dot_dimension_numbers<[1], [0], [0], [1], [0, 0, 1, 1], [], []>} : vector<8x256xbf16>, vector<256x1024xbf16>, vector<8x1024xf32> -> vector<8x1024xf32>
    %81 = arith.addf %78, %80 : vector<8x1024xf32>
    %82 = vector.extract_strided_slice %81 {offsets = [0, 0], sizes = [8, 256], strides = [1, 1]} : vector<8x1024xf32> to vector<8x256xf32>
    %83 = arith.negf %82 : vector<8x256xf32>
    %84 = math.exp %83 : vector<8x256xf32>
    %cst_24 = arith.constant 1.000000e+00 : f32
    %85 = vector.broadcast %cst_24 : f32 to vector<8x256xf32>
    %86 = arith.addf %85, %84 : vector<8x256xf32>
    %87 = arith.divf %85, %86 : vector<8x256xf32>
    %88 = vector.extract_strided_slice %81 {offsets = [0, 256], sizes = [8, 256], strides = [1, 1]} : vector<8x1024xf32> to vector<8x256xf32>
    %89 = arith.negf %88 : vector<8x256xf32>
    %90 = math.exp %89 : vector<8x256xf32>
    %cst_25 = arith.constant 1.000000e+00 : f32
    %91 = vector.broadcast %cst_25 : f32 to vector<8x256xf32>
    %92 = arith.addf %91, %90 : vector<8x256xf32>
    %93 = arith.divf %91, %92 : vector<8x256xf32>
    %94 = vector.extract_strided_slice %81 {offsets = [0, 512], sizes = [8, 256], strides = [1, 1]} : vector<8x1024xf32> to vector<8x256xf32>
    %95 = math.tanh %94 : vector<8x256xf32>
    %96 = vector.extract_strided_slice %81 {offsets = [0, 768], sizes = [8, 256], strides = [1, 1]} : vector<8x1024xf32> to vector<8x256xf32>
    %97 = arith.negf %96 : vector<8x256xf32>
    %98 = math.exp %97 : vector<8x256xf32>
    %cst_26 = arith.constant 1.000000e+00 : f32
    %99 = vector.broadcast %cst_26 : f32 to vector<8x256xf32>
    %100 = arith.addf %99, %98 : vector<8x256xf32>
    %101 = arith.divf %99, %100 : vector<8x256xf32>
    %102 = arith.mulf %93, %34 : vector<8x256xf32>
    %103 = arith.mulf %87, %95 : vector<8x256xf32>
    %104 = arith.addf %102, %103 : vector<8x256xf32>
    %105 = math.tanh %104 : vector<8x256xf32>
    %106 = arith.mulf %101, %105 : vector<8x256xf32>
    %c1_i32 = arith.constant 1 : i32
    %107 = vector.broadcast %c1_i32 : i32 to vector<8x1xi32>
    %108 = arith.cmpi sgt, %5, %107 : vector<8x1xi32>
    %109 = arith.extui %108 : vector<8x1xi1> to vector<8x1xi32>
    %110 = arith.sitofp %109 : vector<8x1xi32> to vector<8x1xf32>
    %111 = vector.shape_cast %110 : vector<8x1xf32> to vector<8x1xf32>
    %112 = vector.broadcast %111 : vector<8x1xf32> to vector<8x256xf32>
    %113 = arith.mulf %106, %112 : vector<8x256xf32>
    %114 = tpu.concatenate %113, %72 in 1 : vector<8x256xf32>, vector<8x256xf32> -> vector<8x512xf32>
    %115 = arith.truncf %114 : vector<8x512xf32> to vector<8x512xbf16>
    %cst_27 = arith.constant dense<0.000000e+00> : vector<8x1024xf32>
    %116 = tpu.matmul %115, %1, %cst_27 {dimension_numbers = #tpu.dot_dimension_numbers<[1], [0], [0], [1], [0, 0, 1, 1], [], []>} : vector<8x512xbf16>, vector<512x1024xbf16>, vector<8x1024xf32> -> vector<8x1024xf32>
    %117 = arith.addf %116, %4 : vector<8x1024xf32>
    %118 = vector.extract_strided_slice %117 {offsets = [0, 0], sizes = [8, 256], strides = [1, 1]} : vector<8x1024xf32> to vector<8x256xf32>
    %119 = arith.negf %118 : vector<8x256xf32>
    %120 = math.exp %119 : vector<8x256xf32>
    %cst_28 = arith.constant 1.000000e+00 : f32
    %121 = vector.broadcast %cst_28 : f32 to vector<8x256xf32>
    %122 = arith.addf %121, %120 : vector<8x256xf32>
    %123 = arith.divf %121, %122 : vector<8x256xf32>
    %124 = vector.extract_strided_slice %117 {offsets = [0, 256], sizes = [8, 256], strides = [1, 1]} : vector<8x1024xf32> to vector<8x256xf32>
    %125 = arith.negf %124 : vector<8x256xf32>
    %126 = math.exp %125 : vector<8x256xf32>
    %cst_29 = arith.constant 1.000000e+00 : f32
    %127 = vector.broadcast %cst_29 : f32 to vector<8x256xf32>
    %128 = arith.addf %127, %126 : vector<8x256xf32>
    %129 = arith.divf %127, %128 : vector<8x256xf32>
    %130 = vector.extract_strided_slice %117 {offsets = [0, 512], sizes = [8, 256], strides = [1, 1]} : vector<8x1024xf32> to vector<8x256xf32>
    %131 = math.tanh %130 : vector<8x256xf32>
    %132 = vector.extract_strided_slice %117 {offsets = [0, 768], sizes = [8, 256], strides = [1, 1]} : vector<8x1024xf32> to vector<8x256xf32>
    %133 = arith.negf %132 : vector<8x256xf32>
    %134 = math.exp %133 : vector<8x256xf32>
    %cst_30 = arith.constant 1.000000e+00 : f32
    %135 = vector.broadcast %cst_30 : f32 to vector<8x256xf32>
    %136 = arith.addf %135, %134 : vector<8x256xf32>
    %137 = arith.divf %135, %136 : vector<8x256xf32>
    %138 = arith.mulf %129, %70 : vector<8x256xf32>
    %139 = arith.mulf %123, %131 : vector<8x256xf32>
    %140 = arith.addf %138, %139 : vector<8x256xf32>
    %141 = math.tanh %140 : vector<8x256xf32>
    %142 = arith.mulf %137, %141 : vector<8x256xf32>
    %143 = arith.mulf %142, %112 : vector<8x256xf32>
    %c1_31 = arith.constant 1 : index
    %c0_32 = arith.constant 0 : index
    %c0_33 = arith.constant 0 : index
    %144 = vector.load %arg11[%c1_31, %c0_32, %c0_33] : memref<8x8x256xf32, #tpu.memory_space<vmem>>, vector<1x8x256xf32>
    %145 = vector.shape_cast %144 : vector<1x8x256xf32> to vector<8x256xf32>
    %146 = vector.shape_cast %143 : vector<8x256xf32> to vector<1x8x256xf32>
    tpu.vector_store %arg11[%c1_31, %c0_32, %c0_33], %146 {strides = array<i32>} : memref<8x8x256xf32, #tpu.memory_space<vmem>>, vector<1x8x256xf32>,
    %c2 = arith.constant 2 : index
    %c0_34 = arith.constant 0 : index
    %c0_35 = arith.constant 0 : index
    %147 = vector.load %arg1[%c2, %c0_34, %c0_35] : memref<8x8x1024xf32, #tpu.memory_space<vmem>>, vector<1x8x1024xf32>
    %148 = vector.shape_cast %147 : vector<1x8x1024xf32> to vector<8x1024xf32>
    %149 = arith.truncf %106 : vector<8x256xf32> to vector<8x256xbf16>
    %cst_36 = arith.constant dense<0.000000e+00> : vector<8x1024xf32>
    %150 = tpu.matmul %149, %0, %cst_36 {dimension_numbers = #tpu.dot_dimension_numbers<[1], [0], [0], [1], [0, 0, 1, 1], [], []>} : vector<8x256xbf16>, vector<256x1024xbf16>, vector<8x1024xf32> -> vector<8x1024xf32>
    %151 = arith.addf %148, %150 : vector<8x1024xf32>
    %152 = vector.extract_strided_slice %151 {offsets = [0, 0], sizes = [8, 256], strides = [1, 1]} : vector<8x1024xf32> to vector<8x256xf32>
    %153 = arith.negf %152 : vector<8x256xf32>
    %154 = math.exp %153 : vector<8x256xf32>
    %cst_37 = arith.constant 1.000000e+00 : f32
    %155 = vector.broadcast %cst_37 : f32 to vector<8x256xf32>
    %156 = arith.addf %155, %154 : vector<8x256xf32>
    %157 = arith.divf %155, %156 : vector<8x256xf32>
    %158 = vector.extract_strided_slice %151 {offsets = [0, 256], sizes = [8, 256], strides = [1, 1]} : vector<8x1024xf32> to vector<8x256xf32>
    %159 = arith.negf %158 : vector<8x256xf32>
    %160 = math.exp %159 : vector<8x256xf32>
    %cst_38 = arith.constant 1.000000e+00 : f32
    %161 = vector.broadcast %cst_38 : f32 to vector<8x256xf32>
    %162 = arith.addf %161, %160 : vector<8x256xf32>
    %163 = arith.divf %161, %162 : vector<8x256xf32>
    %164 = vector.extract_strided_slice %151 {offsets = [0, 512], sizes = [8, 256], strides = [1, 1]} : vector<8x1024xf32> to vector<8x256xf32>
    %165 = math.tanh %164 : vector<8x256xf32>
    %166 = vector.extract_strided_slice %151 {offsets = [0, 768], sizes = [8, 256], strides = [1, 1]} : vector<8x1024xf32> to vector<8x256xf32>
    %167 = arith.negf %166 : vector<8x256xf32>
    %168 = math.exp %167 : vector<8x256xf32>
    %cst_39 = arith.constant 1.000000e+00 : f32
    %169 = vector.broadcast %cst_39 : f32 to vector<8x256xf32>
    %170 = arith.addf %169, %168 : vector<8x256xf32>
    %171 = arith.divf %169, %170 : vector<8x256xf32>
    %172 = arith.mulf %163, %104 : vector<8x256xf32>
    %173 = arith.mulf %157, %165 : vector<8x256xf32>
    %174 = arith.addf %172, %173 : vector<8x256xf32>
    %175 = math.tanh %174 : vector<8x256xf32>
    %176 = arith.mulf %171, %175 : vector<8x256xf32>
    %c2_i32 = arith.constant 2 : i32
    %177 = vector.broadcast %c2_i32 : i32 to vector<8x1xi32>
    %178 = arith.cmpi sgt, %5, %177 : vector<8x1xi32>
    %179 = arith.extui %178 : vector<8x1xi1> to vector<8x1xi32>
    %180 = arith.sitofp %179 : vector<8x1xi32> to vector<8x1xf32>
    %181 = vector.shape_cast %180 : vector<8x1xf32> to vector<8x1xf32>
    %182 = vector.broadcast %181 : vector<8x1xf32> to vector<8x256xf32>
    %183 = arith.mulf %176, %182 : vector<8x256xf32>
    %184 = tpu.concatenate %183, %142 in 1 : vector<8x256xf32>, vector<8x256xf32> -> vector<8x512xf32>
    %185 = arith.truncf %184 : vector<8x512xf32> to vector<8x512xbf16>
    %cst_40 = arith.constant dense<0.000000e+00> : vector<8x1024xf32>
    %186 = tpu.matmul %185, %1, %cst_40 {dimension_numbers = #tpu.dot_dimension_numbers<[1], [0], [0], [1], [0, 0, 1, 1], [], []>} : vector<8x512xbf16>, vector<512x1024xbf16>, vector<8x1024xf32> -> vector<8x1024xf32>
    %187 = arith.addf %186, %4 : vector<8x1024xf32>
    %188 = vector.extract_strided_slice %187 {offsets = [0, 0], sizes = [8, 256], strides = [1, 1]} : vector<8x1024xf32> to vector<8x256xf32>
    %189 = arith.negf %188 : vector<8x256xf32>
    %190 = math.exp %189 : vector<8x256xf32>
    %cst_41 = arith.constant 1.000000e+00 : f32
    %191 = vector.broadcast %cst_41 : f32 to vector<8x256xf32>
    %192 = arith.addf %191, %190 : vector<8x256xf32>
    %193 = arith.divf %191, %192 : vector<8x256xf32>
    %194 = vector.extract_strided_slice %187 {offsets = [0, 256], sizes = [8, 256], strides = [1, 1]} : vector<8x1024xf32> to vector<8x256xf32>
    %195 = arith.negf %194 : vector<8x256xf32>
    %196 = math.exp %195 : vector<8x256xf32>
    %cst_42 = arith.constant 1.000000e+00 : f32
    %197 = vector.broadcast %cst_42 : f32 to vector<8x256xf32>
    %198 = arith.addf %197, %196 : vector<8x256xf32>
    %199 = arith.divf %197, %198 : vector<8x256xf32>
    %200 = vector.extract_strided_slice %187 {offsets = [0, 512], sizes = [8, 256], strides = [1, 1]} : vector<8x1024xf32> to vector<8x256xf32>
    %201 = math.tanh %200 : vector<8x256xf32>
    %202 = vector.extract_strided_slice %187 {offsets = [0, 768], sizes = [8, 256], strides = [1, 1]} : vector<8x1024xf32> to vector<8x256xf32>
    %203 = arith.negf %202 : vector<8x256xf32>
    %204 = math.exp %203 : vector<8x256xf32>
    %cst_43 = arith.constant 1.000000e+00 : f32
    %205 = vector.broadcast %cst_43 : f32 to vector<8x256xf32>
    %206 = arith.addf %205, %204 : vector<8x256xf32>
    %207 = arith.divf %205, %206 : vector<8x256xf32>
    %208 = arith.mulf %199, %140 : vector<8x256xf32>
    %209 = arith.mulf %193, %201 : vector<8x256xf32>
    %210 = arith.addf %208, %209 : vector<8x256xf32>
    %211 = math.tanh %210 : vector<8x256xf32>
    %212 = arith.mulf %207, %211 : vector<8x256xf32>
    %213 = arith.mulf %212, %182 : vector<8x256xf32>
    %c2_44 = arith.constant 2 : index
    %c0_45 = arith.constant 0 : index
    %c0_46 = arith.constant 0 : index
    %214 = vector.load %arg11[%c2_44, %c0_45, %c0_46] : memref<8x8x256xf32, #tpu.memory_space<vmem>>, vector<1x8x256xf32>
    %215 = vector.shape_cast %214 : vector<1x8x256xf32> to vector<8x256xf32>
    %216 = vector.shape_cast %213 : vector<8x256xf32> to vector<1x8x256xf32>
    tpu.vector_store %arg11[%c2_44, %c0_45, %c0_46], %216 {strides = array<i32>} : memref<8x8x256xf32, #tpu.memory_space<vmem>>, vector<1x8x256xf32>,
    %c3 = arith.constant 3 : index
    %c0_47 = arith.constant 0 : index
    %c0_48 = arith.constant 0 : index
    %217 = vector.load %arg1[%c3, %c0_47, %c0_48] : memref<8x8x1024xf32, #tpu.memory_space<vmem>>, vector<1x8x1024xf32>
    %218 = vector.shape_cast %217 : vector<1x8x1024xf32> to vector<8x1024xf32>
    %219 = arith.truncf %176 : vector<8x256xf32> to vector<8x256xbf16>
    %cst_49 = arith.constant dense<0.000000e+00> : vector<8x1024xf32>
    %220 = tpu.matmul %219, %0, %cst_49 {dimension_numbers = #tpu.dot_dimension_numbers<[1], [0], [0], [1], [0, 0, 1, 1], [], []>} : vector<8x256xbf16>, vector<256x1024xbf16>, vector<8x1024xf32> -> vector<8x1024xf32>
    %221 = arith.addf %218, %220 : vector<8x1024xf32>
    %222 = vector.extract_strided_slice %221 {offsets = [0, 0], sizes = [8, 256], strides = [1, 1]} : vector<8x1024xf32> to vector<8x256xf32>
    %223 = arith.negf %222 : vector<8x256xf32>
    %224 = math.exp %223 : vector<8x256xf32>
    %cst_50 = arith.constant 1.000000e+00 : f32
    %225 = vector.broadcast %cst_50 : f32 to vector<8x256xf32>
    %226 = arith.addf %225, %224 : vector<8x256xf32>
    %227 = arith.divf %225, %226 : vector<8x256xf32>
    %228 = vector.extract_strided_slice %221 {offsets = [0, 256], sizes = [8, 256], strides = [1, 1]} : vector<8x1024xf32> to vector<8x256xf32>
    %229 = arith.negf %228 : vector<8x256xf32>
    %230 = math.exp %229 : vector<8x256xf32>
    %cst_51 = arith.constant 1.000000e+00 : f32
    %231 = vector.broadcast %cst_51 : f32 to vector<8x256xf32>
    %232 = arith.addf %231, %230 : vector<8x256xf32>
    %233 = arith.divf %231, %232 : vector<8x256xf32>
    %234 = vector.extract_strided_slice %221 {offsets = [0, 512], sizes = [8, 256], strides = [1, 1]} : vector<8x1024xf32> to vector<8x256xf32>
    %235 = math.tanh %234 : vector<8x256xf32>
    %236 = vector.extract_strided_slice %221 {offsets = [0, 768], sizes = [8, 256], strides = [1, 1]} : vector<8x1024xf32> to vector<8x256xf32>
    %237 = arith.negf %236 : vector<8x256xf32>
    %238 = math.exp %237 : vector<8x256xf32>
    %cst_52 = arith.constant 1.000000e+00 : f32
    %239 = vector.broadcast %cst_52 : f32 to vector<8x256xf32>
    %240 = arith.addf %239, %238 : vector<8x256xf32>
    %241 = arith.divf %239, %240 : vector<8x256xf32>
    %242 = arith.mulf %233, %174 : vector<8x256xf32>
    %243 = arith.mulf %227, %235 : vector<8x256xf32>
    %244 = arith.addf %242, %243 : vector<8x256xf32>
    %245 = math.tanh %244 : vector<8x256xf32>
    %246 = arith.mulf %241, %245 : vector<8x256xf32>
    %c3_i32 = arith.constant 3 : i32
    %247 = vector.broadcast %c3_i32 : i32 to vector<8x1xi32>
    %248 = arith.cmpi sgt, %5, %247 : vector<8x1xi32>
    %249 = arith.extui %248 : vector<8x1xi1> to vector<8x1xi32>
    %250 = arith.sitofp %249 : vector<8x1xi32> to vector<8x1xf32>
    %251 = vector.shape_cast %250 : vector<8x1xf32> to vector<8x1xf32>
    %252 = vector.broadcast %251 : vector<8x1xf32> to vector<8x256xf32>
    %253 = arith.mulf %246, %252 : vector<8x256xf32>
    %254 = tpu.concatenate %253, %212 in 1 : vector<8x256xf32>, vector<8x256xf32> -> vector<8x512xf32>
    %255 = arith.truncf %254 : vector<8x512xf32> to vector<8x512xbf16>
    %cst_53 = arith.constant dense<0.000000e+00> : vector<8x1024xf32>
    %256 = tpu.matmul %255, %1, %cst_53 {dimension_numbers = #tpu.dot_dimension_numbers<[1], [0], [0], [1], [0, 0, 1, 1], [], []>} : vector<8x512xbf16>, vector<512x1024xbf16>, vector<8x1024xf32> -> vector<8x1024xf32>
    %257 = arith.addf %256, %4 : vector<8x1024xf32>
    %258 = vector.extract_strided_slice %257 {offsets = [0, 0], sizes = [8, 256], strides = [1, 1]} : vector<8x1024xf32> to vector<8x256xf32>
    %259 = arith.negf %258 : vector<8x256xf32>
    %260 = math.exp %259 : vector<8x256xf32>
    %cst_54 = arith.constant 1.000000e+00 : f32
    %261 = vector.broadcast %cst_54 : f32 to vector<8x256xf32>
    %262 = arith.addf %261, %260 : vector<8x256xf32>
    %263 = arith.divf %261, %262 : vector<8x256xf32>
    %264 = vector.extract_strided_slice %257 {offsets = [0, 256], sizes = [8, 256], strides = [1, 1]} : vector<8x1024xf32> to vector<8x256xf32>
    %265 = arith.negf %264 : vector<8x256xf32>
    %266 = math.exp %265 : vector<8x256xf32>
    %cst_55 = arith.constant 1.000000e+00 : f32
    %267 = vector.broadcast %cst_55 : f32 to vector<8x256xf32>
    %268 = arith.addf %267, %266 : vector<8x256xf32>
    %269 = arith.divf %267, %268 : vector<8x256xf32>
    %270 = vector.extract_strided_slice %257 {offsets = [0, 512], sizes = [8, 256], strides = [1, 1]} : vector<8x1024xf32> to vector<8x256xf32>
    %271 = math.tanh %270 : vector<8x256xf32>
    %272 = vector.extract_strided_slice %257 {offsets = [0, 768], sizes = [8, 256], strides = [1, 1]} : vector<8x1024xf32> to vector<8x256xf32>
    %273 = arith.negf %272 : vector<8x256xf32>
    %274 = math.exp %273 : vector<8x256xf32>
    %cst_56 = arith.constant 1.000000e+00 : f32
    %275 = vector.broadcast %cst_56 : f32 to vector<8x256xf32>
    %276 = arith.addf %275, %274 : vector<8x256xf32>
    %277 = arith.divf %275, %276 : vector<8x256xf32>
    %278 = arith.mulf %269, %210 : vector<8x256xf32>
    %279 = arith.mulf %263, %271 : vector<8x256xf32>
    %280 = arith.addf %278, %279 : vector<8x256xf32>
    %281 = math.tanh %280 : vector<8x256xf32>
    %282 = arith.mulf %277, %281 : vector<8x256xf32>
    %283 = arith.mulf %282, %252 : vector<8x256xf32>
    %c3_57 = arith.constant 3 : index
    %c0_58 = arith.constant 0 : index
    %c0_59 = arith.constant 0 : index
    %284 = vector.load %arg11[%c3_57, %c0_58, %c0_59] : memref<8x8x256xf32, #tpu.memory_space<vmem>>, vector<1x8x256xf32>
    %285 = vector.shape_cast %284 : vector<1x8x256xf32> to vector<8x256xf32>
    %286 = vector.shape_cast %283 : vector<8x256xf32> to vector<1x8x256xf32>
    tpu.vector_store %arg11[%c3_57, %c0_58, %c0_59], %286 {strides = array<i32>} : memref<8x8x256xf32, #tpu.memory_space<vmem>>, vector<1x8x256xf32>,
    %c4 = arith.constant 4 : index
    %c0_60 = arith.constant 0 : index
    %c0_61 = arith.constant 0 : index
    %287 = vector.load %arg1[%c4, %c0_60, %c0_61] : memref<8x8x1024xf32, #tpu.memory_space<vmem>>, vector<1x8x1024xf32>
    %288 = vector.shape_cast %287 : vector<1x8x1024xf32> to vector<8x1024xf32>
    %289 = arith.truncf %246 : vector<8x256xf32> to vector<8x256xbf16>
    %cst_62 = arith.constant dense<0.000000e+00> : vector<8x1024xf32>
    %290 = tpu.matmul %289, %0, %cst_62 {dimension_numbers = #tpu.dot_dimension_numbers<[1], [0], [0], [1], [0, 0, 1, 1], [], []>} : vector<8x256xbf16>, vector<256x1024xbf16>, vector<8x1024xf32> -> vector<8x1024xf32>
    %291 = arith.addf %288, %290 : vector<8x1024xf32>
    %292 = vector.extract_strided_slice %291 {offsets = [0, 0], sizes = [8, 256], strides = [1, 1]} : vector<8x1024xf32> to vector<8x256xf32>
    %293 = arith.negf %292 : vector<8x256xf32>
    %294 = math.exp %293 : vector<8x256xf32>
    %cst_63 = arith.constant 1.000000e+00 : f32
    %295 = vector.broadcast %cst_63 : f32 to vector<8x256xf32>
    %296 = arith.addf %295, %294 : vector<8x256xf32>
    %297 = arith.divf %295, %296 : vector<8x256xf32>
    %298 = vector.extract_strided_slice %291 {offsets = [0, 256], sizes = [8, 256], strides = [1, 1]} : vector<8x1024xf32> to vector<8x256xf32>
    %299 = arith.negf %298 : vector<8x256xf32>
    %300 = math.exp %299 : vector<8x256xf32>
    %cst_64 = arith.constant 1.000000e+00 : f32
    %301 = vector.broadcast %cst_64 : f32 to vector<8x256xf32>
    %302 = arith.addf %301, %300 : vector<8x256xf32>
    %303 = arith.divf %301, %302 : vector<8x256xf32>
    %304 = vector.extract_strided_slice %291 {offsets = [0, 512], sizes = [8, 256], strides = [1, 1]} : vector<8x1024xf32> to vector<8x256xf32>
    %305 = math.tanh %304 : vector<8x256xf32>
    %306 = vector.extract_strided_slice %291 {offsets = [0, 768], sizes = [8, 256], strides = [1, 1]} : vector<8x1024xf32> to vector<8x256xf32>
    %307 = arith.negf %306 : vector<8x256xf32>
    %308 = math.exp %307 : vector<8x256xf32>
    %cst_65 = arith.constant 1.000000e+00 : f32
    %309 = vector.broadcast %cst_65 : f32 to vector<8x256xf32>
    %310 = arith.addf %309, %308 : vector<8x256xf32>
    %311 = arith.divf %309, %310 : vector<8x256xf32>
    %312 = arith.mulf %303, %244 : vector<8x256xf32>
    %313 = arith.mulf %297, %305 : vector<8x256xf32>
    %314 = arith.addf %312, %313 : vector<8x256xf32>
    %315 = math.tanh %314 : vector<8x256xf32>
    %316 = arith.mulf %311, %315 : vector<8x256xf32>
    %c4_i32 = arith.constant 4 : i32
    %317 = vector.broadcast %c4_i32 : i32 to vector<8x1xi32>
    %318 = arith.cmpi sgt, %5, %317 : vector<8x1xi32>
    %319 = arith.extui %318 : vector<8x1xi1> to vector<8x1xi32>
    %320 = arith.sitofp %319 : vector<8x1xi32> to vector<8x1xf32>
    %321 = vector.shape_cast %320 : vector<8x1xf32> to vector<8x1xf32>
    %322 = vector.broadcast %321 : vector<8x1xf32> to vector<8x256xf32>
    %323 = arith.mulf %316, %322 : vector<8x256xf32>
    %324 = tpu.concatenate %323, %282 in 1 : vector<8x256xf32>, vector<8x256xf32> -> vector<8x512xf32>
    %325 = arith.truncf %324 : vector<8x512xf32> to vector<8x512xbf16>
    %cst_66 = arith.constant dense<0.000000e+00> : vector<8x1024xf32>
    %326 = tpu.matmul %325, %1, %cst_66 {dimension_numbers = #tpu.dot_dimension_numbers<[1], [0], [0], [1], [0, 0, 1, 1], [], []>} : vector<8x512xbf16>, vector<512x1024xbf16>, vector<8x1024xf32> -> vector<8x1024xf32>
    %327 = arith.addf %326, %4 : vector<8x1024xf32>
    %328 = vector.extract_strided_slice %327 {offsets = [0, 0], sizes = [8, 256], strides = [1, 1]} : vector<8x1024xf32> to vector<8x256xf32>
    %329 = arith.negf %328 : vector<8x256xf32>
    %330 = math.exp %329 : vector<8x256xf32>
    %cst_67 = arith.constant 1.000000e+00 : f32
    %331 = vector.broadcast %cst_67 : f32 to vector<8x256xf32>
    %332 = arith.addf %331, %330 : vector<8x256xf32>
    %333 = arith.divf %331, %332 : vector<8x256xf32>
    %334 = vector.extract_strided_slice %327 {offsets = [0, 256], sizes = [8, 256], strides = [1, 1]} : vector<8x1024xf32> to vector<8x256xf32>
    %335 = arith.negf %334 : vector<8x256xf32>
    %336 = math.exp %335 : vector<8x256xf32>
    %cst_68 = arith.constant 1.000000e+00 : f32
    %337 = vector.broadcast %cst_68 : f32 to vector<8x256xf32>
    %338 = arith.addf %337, %336 : vector<8x256xf32>
    %339 = arith.divf %337, %338 : vector<8x256xf32>
    %340 = vector.extract_strided_slice %327 {offsets = [0, 512], sizes = [8, 256], strides = [1, 1]} : vector<8x1024xf32> to vector<8x256xf32>
    %341 = math.tanh %340 : vector<8x256xf32>
    %342 = vector.extract_strided_slice %327 {offsets = [0, 768], sizes = [8, 256], strides = [1, 1]} : vector<8x1024xf32> to vector<8x256xf32>
    %343 = arith.negf %342 : vector<8x256xf32>
    %344 = math.exp %343 : vector<8x256xf32>
    %cst_69 = arith.constant 1.000000e+00 : f32
    %345 = vector.broadcast %cst_69 : f32 to vector<8x256xf32>
    %346 = arith.addf %345, %344 : vector<8x256xf32>
    %347 = arith.divf %345, %346 : vector<8x256xf32>
    %348 = arith.mulf %339, %280 : vector<8x256xf32>
    %349 = arith.mulf %333, %341 : vector<8x256xf32>
    %350 = arith.addf %348, %349 : vector<8x256xf32>
    %351 = math.tanh %350 : vector<8x256xf32>
    %352 = arith.mulf %347, %351 : vector<8x256xf32>
    %353 = arith.mulf %352, %322 : vector<8x256xf32>
    %c4_70 = arith.constant 4 : index
    %c0_71 = arith.constant 0 : index
    %c0_72 = arith.constant 0 : index
    %354 = vector.load %arg11[%c4_70, %c0_71, %c0_72] : memref<8x8x256xf32, #tpu.memory_space<vmem>>, vector<1x8x256xf32>
    %355 = vector.shape_cast %354 : vector<1x8x256xf32> to vector<8x256xf32>
    %356 = vector.shape_cast %353 : vector<8x256xf32> to vector<1x8x256xf32>
    tpu.vector_store %arg11[%c4_70, %c0_71, %c0_72], %356 {strides = array<i32>} : memref<8x8x256xf32, #tpu.memory_space<vmem>>, vector<1x8x256xf32>,
    %c5 = arith.constant 5 : index
    %c0_73 = arith.constant 0 : index
    %c0_74 = arith.constant 0 : index
    %357 = vector.load %arg1[%c5, %c0_73, %c0_74] : memref<8x8x1024xf32, #tpu.memory_space<vmem>>, vector<1x8x1024xf32>
    %358 = vector.shape_cast %357 : vector<1x8x1024xf32> to vector<8x1024xf32>
    %359 = arith.truncf %316 : vector<8x256xf32> to vector<8x256xbf16>
    %cst_75 = arith.constant dense<0.000000e+00> : vector<8x1024xf32>
    %360 = tpu.matmul %359, %0, %cst_75 {dimension_numbers = #tpu.dot_dimension_numbers<[1], [0], [0], [1], [0, 0, 1, 1], [], []>} : vector<8x256xbf16>, vector<256x1024xbf16>, vector<8x1024xf32> -> vector<8x1024xf32>
    %361 = arith.addf %358, %360 : vector<8x1024xf32>
    %362 = vector.extract_strided_slice %361 {offsets = [0, 0], sizes = [8, 256], strides = [1, 1]} : vector<8x1024xf32> to vector<8x256xf32>
    %363 = arith.negf %362 : vector<8x256xf32>
    %364 = math.exp %363 : vector<8x256xf32>
    %cst_76 = arith.constant 1.000000e+00 : f32
    %365 = vector.broadcast %cst_76 : f32 to vector<8x256xf32>
    %366 = arith.addf %365, %364 : vector<8x256xf32>
    %367 = arith.divf %365, %366 : vector<8x256xf32>
    %368 = vector.extract_strided_slice %361 {offsets = [0, 256], sizes = [8, 256], strides = [1, 1]} : vector<8x1024xf32> to vector<8x256xf32>
    %369 = arith.negf %368 : vector<8x256xf32>
    %370 = math.exp %369 : vector<8x256xf32>
    %cst_77 = arith.constant 1.000000e+00 : f32
    %371 = vector.broadcast %cst_77 : f32 to vector<8x256xf32>
    %372 = arith.addf %371, %370 : vector<8x256xf32>
    %373 = arith.divf %371, %372 : vector<8x256xf32>
    %374 = vector.extract_strided_slice %361 {offsets = [0, 512], sizes = [8, 256], strides = [1, 1]} : vector<8x1024xf32> to vector<8x256xf32>
    %375 = math.tanh %374 : vector<8x256xf32>
    %376 = vector.extract_strided_slice %361 {offsets = [0, 768], sizes = [8, 256], strides = [1, 1]} : vector<8x1024xf32> to vector<8x256xf32>
    %377 = arith.negf %376 : vector<8x256xf32>
    %378 = math.exp %377 : vector<8x256xf32>
    %cst_78 = arith.constant 1.000000e+00 : f32
    %379 = vector.broadcast %cst_78 : f32 to vector<8x256xf32>
    %380 = arith.addf %379, %378 : vector<8x256xf32>
    %381 = arith.divf %379, %380 : vector<8x256xf32>
    %382 = arith.mulf %373, %314 : vector<8x256xf32>
    %383 = arith.mulf %367, %375 : vector<8x256xf32>
    %384 = arith.addf %382, %383 : vector<8x256xf32>
    %385 = math.tanh %384 : vector<8x256xf32>
    %386 = arith.mulf %381, %385 : vector<8x256xf32>
    %c5_i32 = arith.constant 5 : i32
    %387 = vector.broadcast %c5_i32 : i32 to vector<8x1xi32>
    %388 = arith.cmpi sgt, %5, %387 : vector<8x1xi32>
    %389 = arith.extui %388 : vector<8x1xi1> to vector<8x1xi32>
    %390 = arith.sitofp %389 : vector<8x1xi32> to vector<8x1xf32>
    %391 = vector.shape_cast %390 : vector<8x1xf32> to vector<8x1xf32>
    %392 = vector.broadcast %391 : vector<8x1xf32> to vector<8x256xf32>
    %393 = arith.mulf %386, %392 : vector<8x256xf32>
    %394 = tpu.concatenate %393, %352 in 1 : vector<8x256xf32>, vector<8x256xf32> -> vector<8x512xf32>
    %395 = arith.truncf %394 : vector<8x512xf32> to vector<8x512xbf16>
    %cst_79 = arith.constant dense<0.000000e+00> : vector<8x1024xf32>
    %396 = tpu.matmul %395, %1, %cst_79 {dimension_numbers = #tpu.dot_dimension_numbers<[1], [0], [0], [1], [0, 0, 1, 1], [], []>} : vector<8x512xbf16>, vector<512x1024xbf16>, vector<8x1024xf32> -> vector<8x1024xf32>
    %397 = arith.addf %396, %4 : vector<8x1024xf32>
    %398 = vector.extract_strided_slice %397 {offsets = [0, 0], sizes = [8, 256], strides = [1, 1]} : vector<8x1024xf32> to vector<8x256xf32>
    %399 = arith.negf %398 : vector<8x256xf32>
    %400 = math.exp %399 : vector<8x256xf32>
    %cst_80 = arith.constant 1.000000e+00 : f32
    %401 = vector.broadcast %cst_80 : f32 to vector<8x256xf32>
    %402 = arith.addf %401, %400 : vector<8x256xf32>
    %403 = arith.divf %401, %402 : vector<8x256xf32>
    %404 = vector.extract_strided_slice %397 {offsets = [0, 256], sizes = [8, 256], strides = [1, 1]} : vector<8x1024xf32> to vector<8x256xf32>
    %405 = arith.negf %404 : vector<8x256xf32>
    %406 = math.exp %405 : vector<8x256xf32>
    %cst_81 = arith.constant 1.000000e+00 : f32
    %407 = vector.broadcast %cst_81 : f32 to vector<8x256xf32>
    %408 = arith.addf %407, %406 : vector<8x256xf32>
    %409 = arith.divf %407, %408 : vector<8x256xf32>
    %410 = vector.extract_strided_slice %397 {offsets = [0, 512], sizes = [8, 256], strides = [1, 1]} : vector<8x1024xf32> to vector<8x256xf32>
    %411 = math.tanh %410 : vector<8x256xf32>
    %412 = vector.extract_strided_slice %397 {offsets = [0, 768], sizes = [8, 256], strides = [1, 1]} : vector<8x1024xf32> to vector<8x256xf32>
    %413 = arith.negf %412 : vector<8x256xf32>
    %414 = math.exp %413 : vector<8x256xf32>
    %cst_82 = arith.constant 1.000000e+00 : f32
    %415 = vector.broadcast %cst_82 : f32 to vector<8x256xf32>
    %416 = arith.addf %415, %414 : vector<8x256xf32>
    %417 = arith.divf %415, %416 : vector<8x256xf32>
    %418 = arith.mulf %409, %350 : vector<8x256xf32>
    %419 = arith.mulf %403, %411 : vector<8x256xf32>
    %420 = arith.addf %418, %419 : vector<8x256xf32>
    %421 = math.tanh %420 : vector<8x256xf32>
    %422 = arith.mulf %417, %421 : vector<8x256xf32>
    %423 = arith.mulf %422, %392 : vector<8x256xf32>
    %c5_83 = arith.constant 5 : index
    %c0_84 = arith.constant 0 : index
    %c0_85 = arith.constant 0 : index
    %424 = vector.load %arg11[%c5_83, %c0_84, %c0_85] : memref<8x8x256xf32, #tpu.memory_space<vmem>>, vector<1x8x256xf32>
    %425 = vector.shape_cast %424 : vector<1x8x256xf32> to vector<8x256xf32>
    %426 = vector.shape_cast %423 : vector<8x256xf32> to vector<1x8x256xf32>
    tpu.vector_store %arg11[%c5_83, %c0_84, %c0_85], %426 {strides = array<i32>} : memref<8x8x256xf32, #tpu.memory_space<vmem>>, vector<1x8x256xf32>,
    %c6 = arith.constant 6 : index
    %c0_86 = arith.constant 0 : index
    %c0_87 = arith.constant 0 : index
    %427 = vector.load %arg1[%c6, %c0_86, %c0_87] : memref<8x8x1024xf32, #tpu.memory_space<vmem>>, vector<1x8x1024xf32>
    %428 = vector.shape_cast %427 : vector<1x8x1024xf32> to vector<8x1024xf32>
    %429 = arith.truncf %386 : vector<8x256xf32> to vector<8x256xbf16>
    %cst_88 = arith.constant dense<0.000000e+00> : vector<8x1024xf32>
    %430 = tpu.matmul %429, %0, %cst_88 {dimension_numbers = #tpu.dot_dimension_numbers<[1], [0], [0], [1], [0, 0, 1, 1], [], []>} : vector<8x256xbf16>, vector<256x1024xbf16>, vector<8x1024xf32> -> vector<8x1024xf32>
    %431 = arith.addf %428, %430 : vector<8x1024xf32>
    %432 = vector.extract_strided_slice %431 {offsets = [0, 0], sizes = [8, 256], strides = [1, 1]} : vector<8x1024xf32> to vector<8x256xf32>
    %433 = arith.negf %432 : vector<8x256xf32>
    %434 = math.exp %433 : vector<8x256xf32>
    %cst_89 = arith.constant 1.000000e+00 : f32
    %435 = vector.broadcast %cst_89 : f32 to vector<8x256xf32>
    %436 = arith.addf %435, %434 : vector<8x256xf32>
    %437 = arith.divf %435, %436 : vector<8x256xf32>
    %438 = vector.extract_strided_slice %431 {offsets = [0, 256], sizes = [8, 256], strides = [1, 1]} : vector<8x1024xf32> to vector<8x256xf32>
    %439 = arith.negf %438 : vector<8x256xf32>
    %440 = math.exp %439 : vector<8x256xf32>
    %cst_90 = arith.constant 1.000000e+00 : f32
    %441 = vector.broadcast %cst_90 : f32 to vector<8x256xf32>
    %442 = arith.addf %441, %440 : vector<8x256xf32>
    %443 = arith.divf %441, %442 : vector<8x256xf32>
    %444 = vector.extract_strided_slice %431 {offsets = [0, 512], sizes = [8, 256], strides = [1, 1]} : vector<8x1024xf32> to vector<8x256xf32>
    %445 = math.tanh %444 : vector<8x256xf32>
    %446 = vector.extract_strided_slice %431 {offsets = [0, 768], sizes = [8, 256], strides = [1, 1]} : vector<8x1024xf32> to vector<8x256xf32>
    %447 = arith.negf %446 : vector<8x256xf32>
    %448 = math.exp %447 : vector<8x256xf32>
    %cst_91 = arith.constant 1.000000e+00 : f32
    %449 = vector.broadcast %cst_91 : f32 to vector<8x256xf32>
    %450 = arith.addf %449, %448 : vector<8x256xf32>
    %451 = arith.divf %449, %450 : vector<8x256xf32>
    %452 = arith.mulf %443, %384 : vector<8x256xf32>
    %453 = arith.mulf %437, %445 : vector<8x256xf32>
    %454 = arith.addf %452, %453 : vector<8x256xf32>
    %455 = math.tanh %454 : vector<8x256xf32>
    %456 = arith.mulf %451, %455 : vector<8x256xf32>
    %c6_i32 = arith.constant 6 : i32
    %457 = vector.broadcast %c6_i32 : i32 to vector<8x1xi32>
    %458 = arith.cmpi sgt, %5, %457 : vector<8x1xi32>
    %459 = arith.extui %458 : vector<8x1xi1> to vector<8x1xi32>
    %460 = arith.sitofp %459 : vector<8x1xi32> to vector<8x1xf32>
    %461 = vector.shape_cast %460 : vector<8x1xf32> to vector<8x1xf32>
    %462 = vector.broadcast %461 : vector<8x1xf32> to vector<8x256xf32>
    %463 = arith.mulf %456, %462 : vector<8x256xf32>
    %464 = tpu.concatenate %463, %422 in 1 : vector<8x256xf32>, vector<8x256xf32> -> vector<8x512xf32>
    %465 = arith.truncf %464 : vector<8x512xf32> to vector<8x512xbf16>
    %cst_92 = arith.constant dense<0.000000e+00> : vector<8x1024xf32>
    %466 = tpu.matmul %465, %1, %cst_92 {dimension_numbers = #tpu.dot_dimension_numbers<[1], [0], [0], [1], [0, 0, 1, 1], [], []>} : vector<8x512xbf16>, vector<512x1024xbf16>, vector<8x1024xf32> -> vector<8x1024xf32>
    %467 = arith.addf %466, %4 : vector<8x1024xf32>
    %468 = vector.extract_strided_slice %467 {offsets = [0, 0], sizes = [8, 256], strides = [1, 1]} : vector<8x1024xf32> to vector<8x256xf32>
    %469 = arith.negf %468 : vector<8x256xf32>
    %470 = math.exp %469 : vector<8x256xf32>
    %cst_93 = arith.constant 1.000000e+00 : f32
    %471 = vector.broadcast %cst_93 : f32 to vector<8x256xf32>
    %472 = arith.addf %471, %470 : vector<8x256xf32>
    %473 = arith.divf %471, %472 : vector<8x256xf32>
    %474 = vector.extract_strided_slice %467 {offsets = [0, 256], sizes = [8, 256], strides = [1, 1]} : vector<8x1024xf32> to vector<8x256xf32>
    %475 = arith.negf %474 : vector<8x256xf32>
    %476 = math.exp %475 : vector<8x256xf32>
    %cst_94 = arith.constant 1.000000e+00 : f32
    %477 = vector.broadcast %cst_94 : f32 to vector<8x256xf32>
    %478 = arith.addf %477, %476 : vector<8x256xf32>
    %479 = arith.divf %477, %478 : vector<8x256xf32>
    %480 = vector.extract_strided_slice %467 {offsets = [0, 512], sizes = [8, 256], strides = [1, 1]} : vector<8x1024xf32> to vector<8x256xf32>
    %481 = math.tanh %480 : vector<8x256xf32>
    %482 = vector.extract_strided_slice %467 {offsets = [0, 768], sizes = [8, 256], strides = [1, 1]} : vector<8x1024xf32> to vector<8x256xf32>
    %483 = arith.negf %482 : vector<8x256xf32>
    %484 = math.exp %483 : vector<8x256xf32>
    %cst_95 = arith.constant 1.000000e+00 : f32
    %485 = vector.broadcast %cst_95 : f32 to vector<8x256xf32>
    %486 = arith.addf %485, %484 : vector<8x256xf32>
    %487 = arith.divf %485, %486 : vector<8x256xf32>
    %488 = arith.mulf %479, %420 : vector<8x256xf32>
    %489 = arith.mulf %473, %481 : vector<8x256xf32>
    %490 = arith.addf %488, %489 : vector<8x256xf32>
    %491 = math.tanh %490 : vector<8x256xf32>
    %492 = arith.mulf %487, %491 : vector<8x256xf32>
    %493 = arith.mulf %492, %462 : vector<8x256xf32>
    %c6_96 = arith.constant 6 : index
    %c0_97 = arith.constant 0 : index
    %c0_98 = arith.constant 0 : index
    %494 = vector.load %arg11[%c6_96, %c0_97, %c0_98] : memref<8x8x256xf32, #tpu.memory_space<vmem>>, vector<1x8x256xf32>
    %495 = vector.shape_cast %494 : vector<1x8x256xf32> to vector<8x256xf32>
    %496 = vector.shape_cast %493 : vector<8x256xf32> to vector<1x8x256xf32>
    tpu.vector_store %arg11[%c6_96, %c0_97, %c0_98], %496 {strides = array<i32>} : memref<8x8x256xf32, #tpu.memory_space<vmem>>, vector<1x8x256xf32>,
    %c7 = arith.constant 7 : index
    %c0_99 = arith.constant 0 : index
    %c0_100 = arith.constant 0 : index
    %497 = vector.load %arg1[%c7, %c0_99, %c0_100] : memref<8x8x1024xf32, #tpu.memory_space<vmem>>, vector<1x8x1024xf32>
    %498 = vector.shape_cast %497 : vector<1x8x1024xf32> to vector<8x1024xf32>
    %499 = arith.truncf %456 : vector<8x256xf32> to vector<8x256xbf16>
    %cst_101 = arith.constant dense<0.000000e+00> : vector<8x1024xf32>
    %500 = tpu.matmul %499, %0, %cst_101 {dimension_numbers = #tpu.dot_dimension_numbers<[1], [0], [0], [1], [0, 0, 1, 1], [], []>} : vector<8x256xbf16>, vector<256x1024xbf16>, vector<8x1024xf32> -> vector<8x1024xf32>
    %501 = arith.addf %498, %500 : vector<8x1024xf32>
    %502 = vector.extract_strided_slice %501 {offsets = [0, 0], sizes = [8, 256], strides = [1, 1]} : vector<8x1024xf32> to vector<8x256xf32>
    %503 = arith.negf %502 : vector<8x256xf32>
    %504 = math.exp %503 : vector<8x256xf32>
    %cst_102 = arith.constant 1.000000e+00 : f32
    %505 = vector.broadcast %cst_102 : f32 to vector<8x256xf32>
    %506 = arith.addf %505, %504 : vector<8x256xf32>
    %507 = arith.divf %505, %506 : vector<8x256xf32>
    %508 = vector.extract_strided_slice %501 {offsets = [0, 256], sizes = [8, 256], strides = [1, 1]} : vector<8x1024xf32> to vector<8x256xf32>
    %509 = arith.negf %508 : vector<8x256xf32>
    %510 = math.exp %509 : vector<8x256xf32>
    %cst_103 = arith.constant 1.000000e+00 : f32
    %511 = vector.broadcast %cst_103 : f32 to vector<8x256xf32>
    %512 = arith.addf %511, %510 : vector<8x256xf32>
    %513 = arith.divf %511, %512 : vector<8x256xf32>
    %514 = vector.extract_strided_slice %501 {offsets = [0, 512], sizes = [8, 256], strides = [1, 1]} : vector<8x1024xf32> to vector<8x256xf32>
    %515 = math.tanh %514 : vector<8x256xf32>
    %516 = vector.extract_strided_slice %501 {offsets = [0, 768], sizes = [8, 256], strides = [1, 1]} : vector<8x1024xf32> to vector<8x256xf32>
    %517 = arith.negf %516 : vector<8x256xf32>
    %518 = math.exp %517 : vector<8x256xf32>
    %cst_104 = arith.constant 1.000000e+00 : f32
    %519 = vector.broadcast %cst_104 : f32 to vector<8x256xf32>
    %520 = arith.addf %519, %518 : vector<8x256xf32>
    %521 = arith.divf %519, %520 : vector<8x256xf32>
    %522 = arith.mulf %513, %454 : vector<8x256xf32>
    %523 = arith.mulf %507, %515 : vector<8x256xf32>
    %524 = arith.addf %522, %523 : vector<8x256xf32>
    %525 = math.tanh %524 : vector<8x256xf32>
    %526 = arith.mulf %521, %525 : vector<8x256xf32>
    %c7_i32 = arith.constant 7 : i32
    %527 = vector.broadcast %c7_i32 : i32 to vector<8x1xi32>
    %528 = arith.cmpi sgt, %5, %527 : vector<8x1xi32>
    %529 = arith.extui %528 : vector<8x1xi1> to vector<8x1xi32>
    %530 = arith.sitofp %529 : vector<8x1xi32> to vector<8x1xf32>
    %531 = vector.shape_cast %530 : vector<8x1xf32> to vector<8x1xf32>
    %532 = vector.broadcast %531 : vector<8x1xf32> to vector<8x256xf32>
    %533 = arith.mulf %526, %532 : vector<8x256xf32>
    %534 = tpu.concatenate %533, %492 in 1 : vector<8x256xf32>, vector<8x256xf32> -> vector<8x512xf32>
    %535 = arith.truncf %534 : vector<8x512xf32> to vector<8x512xbf16>
    %cst_105 = arith.constant dense<0.000000e+00> : vector<8x1024xf32>
    %536 = tpu.matmul %535, %1, %cst_105 {dimension_numbers = #tpu.dot_dimension_numbers<[1], [0], [0], [1], [0, 0, 1, 1], [], []>} : vector<8x512xbf16>, vector<512x1024xbf16>, vector<8x1024xf32> -> vector<8x1024xf32>
    %537 = arith.addf %536, %4 : vector<8x1024xf32>
    %538 = vector.extract_strided_slice %537 {offsets = [0, 0], sizes = [8, 256], strides = [1, 1]} : vector<8x1024xf32> to vector<8x256xf32>
    %539 = arith.negf %538 : vector<8x256xf32>
    %540 = math.exp %539 : vector<8x256xf32>
    %cst_106 = arith.constant 1.000000e+00 : f32
    %541 = vector.broadcast %cst_106 : f32 to vector<8x256xf32>
    %542 = arith.addf %541, %540 : vector<8x256xf32>
    %543 = arith.divf %541, %542 : vector<8x256xf32>
    %544 = vector.extract_strided_slice %537 {offsets = [0, 256], sizes = [8, 256], strides = [1, 1]} : vector<8x1024xf32> to vector<8x256xf32>
    %545 = arith.negf %544 : vector<8x256xf32>
    %546 = math.exp %545 : vector<8x256xf32>
    %cst_107 = arith.constant 1.000000e+00 : f32
    %547 = vector.broadcast %cst_107 : f32 to vector<8x256xf32>
    %548 = arith.addf %547, %546 : vector<8x256xf32>
    %549 = arith.divf %547, %548 : vector<8x256xf32>
    %550 = vector.extract_strided_slice %537 {offsets = [0, 512], sizes = [8, 256], strides = [1, 1]} : vector<8x1024xf32> to vector<8x256xf32>
    %551 = math.tanh %550 : vector<8x256xf32>
    %552 = vector.extract_strided_slice %537 {offsets = [0, 768], sizes = [8, 256], strides = [1, 1]} : vector<8x1024xf32> to vector<8x256xf32>
    %553 = arith.negf %552 : vector<8x256xf32>
    %554 = math.exp %553 : vector<8x256xf32>
    %cst_108 = arith.constant 1.000000e+00 : f32
    %555 = vector.broadcast %cst_108 : f32 to vector<8x256xf32>
    %556 = arith.addf %555, %554 : vector<8x256xf32>
    %557 = arith.divf %555, %556 : vector<8x256xf32>
    %558 = arith.mulf %549, %490 : vector<8x256xf32>
    %559 = arith.mulf %543, %551 : vector<8x256xf32>
    %560 = arith.addf %558, %559 : vector<8x256xf32>
    %561 = math.tanh %560 : vector<8x256xf32>
    %562 = arith.mulf %557, %561 : vector<8x256xf32>
    %563 = arith.mulf %562, %532 : vector<8x256xf32>
    %c7_109 = arith.constant 7 : index
    %c0_110 = arith.constant 0 : index
    %c0_111 = arith.constant 0 : index
    %564 = vector.load %arg11[%c7_109, %c0_110, %c0_111] : memref<8x8x256xf32, #tpu.memory_space<vmem>>, vector<1x8x256xf32>
    %565 = vector.shape_cast %564 : vector<1x8x256xf32> to vector<8x256xf32>
    %566 = vector.shape_cast %563 : vector<8x256xf32> to vector<1x8x256xf32>
    tpu.vector_store %arg11[%c7_109, %c0_110, %c0_111], %566 {strides = array<i32>} : memref<8x8x256xf32, #tpu.memory_space<vmem>>, vector<1x8x256xf32>,
    %c0_112 = arith.constant 0 : index
    %c0_113 = arith.constant 0 : index
    %c0_114 = arith.constant 0 : index
    %567 = vector.load %arg11[%c0_112, %c0_113, %c0_114] : memref<8x8x256xf32, #tpu.memory_space<vmem>>, vector<8x8x256xf32>
    %568 = vector.shape_cast %567 : vector<8x8x256xf32> to vector<64x256xf32>
    %569 = arith.truncf %568 : vector<64x256xf32> to vector<64x256xbf16>
    %c0_115 = arith.constant 0 : index
    %c0_116 = arith.constant 0 : index
    %570 = vector.load %arg6[%c0_115, %c0_116] : memref<256x256xbf16, #tpu.memory_space<vmem>>, vector<256x256xbf16>
    %cst_117 = arith.constant dense<0.000000e+00> : vector<64x256xf32>
    %571 = tpu.matmul %569, %570, %cst_117 {dimension_numbers = #tpu.dot_dimension_numbers<[1], [0], [0], [1], [0, 0, 1, 1], [], []>} : vector<64x256xbf16>, vector<256x256xbf16>, vector<64x256xf32> -> vector<64x256xf32>
    %c0_118 = arith.constant 0 : index
    %c0_119 = arith.constant 0 : index
    %572 = vector.load %arg7[%c0_118, %c0_119] : memref<1x256xf32, #tpu.memory_space<vmem>>, vector<1x256xf32>
    %573 = vector.broadcast %572 : vector<1x256xf32> to vector<64x256xf32>
    %574 = arith.addf %571, %573 : vector<64x256xf32>
    %cst_120 = arith.constant 0.000000e+00 : f32
    %575 = vector.broadcast %cst_120 : f32 to vector<64x256xf32>
    %576 = arith.maximumf %574, %575 : vector<64x256xf32>
    %577 = arith.truncf %576 : vector<64x256xf32> to vector<64x256xbf16>
    %c0_121 = arith.constant 0 : index
    %c0_122 = arith.constant 0 : index
    %578 = vector.load %arg8[%c0_121, %c0_122] : memref<256x128xbf16, #tpu.memory_space<vmem>>, vector<256x128xbf16>
    %cst_123 = arith.constant dense<0.000000e+00> : vector<64x128xf32>
    %579 = tpu.matmul %577, %578, %cst_123 {dimension_numbers = #tpu.dot_dimension_numbers<[1], [0], [0], [1], [0, 0, 1, 1], [], []>} : vector<64x256xbf16>, vector<256x128xbf16>, vector<64x128xf32> -> vector<64x128xf32>
    %c0_124 = arith.constant 0 : index
    %c0_125 = arith.constant 0 : index
    %580 = vector.load %arg9[%c0_124, %c0_125] : memref<1x128xf32, #tpu.memory_space<vmem>>, vector<1x128xf32>
    %581 = vector.broadcast %580 : vector<1x128xf32> to vector<64x128xf32>
    %582 = arith.addf %579, %581 : vector<64x128xf32>
    %583 = vector.shape_cast %582 : vector<64x128xf32> to vector<8x8x128xf32>
    %c0_126 = arith.constant 0 : index
    %c0_127 = arith.constant 0 : index
    %c0_128 = arith.constant 0 : index
    %584 = vector.load %arg10[%c0_126, %c0_127, %c0_128] : memref<8x8x128xf32, #tpu.memory_space<vmem>>, vector<8x8x128xf32>
    tpu.vector_store %arg10[%c0_126, %c0_127, %c0_128], %583 {strides = array<i32>} : memref<8x8x128xf32, #tpu.memory_space<vmem>>, vector<8x8x128xf32>,
    return
  }
  func.func @transform_0(%arg0: i32) -> (i32, i32, i32) {
    %c0_i32 = arith.constant 0 : i32
    %c0_i32_0 = arith.constant 0 : i32
    %c0_i32_1 = arith.constant 0 : i32
    return %c0_i32, %arg0, %c0_i32_0 : i32, i32, i32
  }
  func.func @transform_1(%arg0: i32) -> (i32, i32) {
    %c0_i32 = arith.constant 0 : i32
    %c0_i32_0 = arith.constant 0 : i32
    return %arg0, %c0_i32 : i32, i32
  }
  func.func @transform_2(%arg0: i32) -> (i32, i32) {
    %c0_i32 = arith.constant 0 : i32
    %c0_i32_0 = arith.constant 0 : i32
    %c0_i32_1 = arith.constant 0 : i32
    return %c0_i32, %c0_i32_0 : i32, i32
  }
  func.func @transform_3(%arg0: i32) -> (i32, i32) {
    %c0_i32 = arith.constant 0 : i32
    %c0_i32_0 = arith.constant 0 : i32
    %c0_i32_1 = arith.constant 0 : i32
    return %c0_i32, %c0_i32_0 : i32, i32
  }
  func.func @transform_4(%arg0: i32) -> (i32, i32) {
    %c0_i32 = arith.constant 0 : i32
    %c0_i32_0 = arith.constant 0 : i32
    %c0_i32_1 = arith.constant 0 : i32
    return %c0_i32, %c0_i32_0 : i32, i32
  }
  func.func @transform_5(%arg0: i32) -> (i32, i32) {
    %c0_i32 = arith.constant 0 : i32
    %c0_i32_0 = arith.constant 0 : i32
    %c0_i32_1 = arith.constant 0 : i32
    return %c0_i32, %c0_i32_0 : i32, i32
  }
  func.func @transform_6(%arg0: i32) -> (i32, i32) {
    %c0_i32 = arith.constant 0 : i32
    %c0_i32_0 = arith.constant 0 : i32
    %c0_i32_1 = arith.constant 0 : i32
    return %c0_i32, %c0_i32_0 : i32, i32
  }
  func.func @transform_7(%arg0: i32) -> (i32, i32) {
    %c0_i32 = arith.constant 0 : i32
    %c0_i32_0 = arith.constant 0 : i32
    %c0_i32_1 = arith.constant 0 : i32
    return %c0_i32, %c0_i32_0 : i32, i32
  }
  func.func @transform_8(%arg0: i32) -> (i32, i32) {
    %c0_i32 = arith.constant 0 : i32
    %c0_i32_0 = arith.constant 0 : i32
    %c0_i32_1 = arith.constant 0 : i32
    return %c0_i32, %c0_i32_0 : i32, i32
  }
  func.func @transform_9(%arg0: i32) -> (i32, i32, i32) {
    %c0_i32 = arith.constant 0 : i32
    %c0_i32_0 = arith.constant 0 : i32
    %c0_i32_1 = arith.constant 0 : i32
    return %c0_i32, %arg0, %c0_i32_0 : i32, i32, i32
  }
}

</mosaic_0001>

<llo_original>
// kernel: char_rnn_forward.1
$region0: #{char_rnn_forward.1}
  #allocation0 [shape = 'u32[]', space=smem, size = 0x4, offset = 0x4, fixed_abs, tag = 'smem constant byte address 0x4 - core index']
  #allocation1 [shape = 'u32[144,128]{1,0:T(1,128)}', space=vmem, size = 0x12000, scoped, tag = 'internal scratch']
  #allocation2 [shape = 'f32[8,8,256]{2,1,0:T(8,128)}', space=vmem, size = 0x10000, scoped, tag = 'scratch operand']
  %s0 = inlined_call_operand.vmem [shape: f32[8,8,1024], index: 0, kind: input, shape index: {}]
  %s1 = inlined_call_operand.vmem [shape: s32[8,1], index: 1, kind: input, shape index: {}]
  %s2 = inlined_call_operand.vmem [shape: bf16[256,1024], index: 2, kind: input, shape index: {}]
  %s3 = inlined_call_operand.vmem [shape: bf16[512,1024], index: 3, kind: input, shape index: {}]
  %s4 = inlined_call_operand.vmem [shape: f32[1,1024], index: 4, kind: input, shape index: {}]
  %s5 = inlined_call_operand.vmem [shape: bf16[256,256], index: 5, kind: input, shape index: {}]
  %s6 = inlined_call_operand.vmem [shape: f32[1,256], index: 6, kind: input, shape index: {}]
  %s7 = inlined_call_operand.vmem [shape: bf16[256,128], index: 7, kind: input, shape index: {}]
  %s8 = inlined_call_operand.vmem [shape: f32[1,128], index: 8, kind: input, shape index: {}]
  %s9 = inlined_call_operand.vmem [shape: f32[8,8,128], index: 9, kind: output, shape index: {}]
  %s10 = sld [smem:[#allocation0]]
  $region46: #{char_rnn_forward.1} parent=0
    _
  %s12 = ssub.s32 1, %s10
  %s13 = scalar_select 0, %s12, %s10
  // Predicated region
  $region2: #{char_rnn_forward.1} parent=0 // pred_check
    _
  $region3: #{char_rnn_forward.1} parent=0 // pred_check_branch
    %15 = sbr.rel (0) target = $region5
  $region4: #{char_rnn_forward.1} parent=0 // pred_region
    _
  $region5: #{char_rnn_forward.1} parent=0 // pred_fallthru
    _
  // Predicated region
  $region6: #{char_rnn_forward.1} parent=0 // pred_check
    _
  $region7: #{char_rnn_forward.1} parent=0 // pred_check_branch
    %17 = sbr.rel (0) target = $region9
  $region8: #{char_rnn_forward.1} parent=0 // pred_region
    _
  $region9: #{char_rnn_forward.1} parent=0 // pred_fallthru
    _
  // Predicated region
  $region10: #{char_rnn_forward.1} parent=0 // pred_check
    _
  $region11: #{char_rnn_forward.1} parent=0 // pred_check_branch
    %19 = sbr.rel (0) target = $region13
  $region12: #{char_rnn_forward.1} parent=0 // pred_region
    _
  $region13: #{char_rnn_forward.1} parent=0 // pred_fallthru
    _
  // Predicated region
  $region14: #{char_rnn_forward.1} parent=0 // pred_check
    _
  $region15: #{char_rnn_forward.1} parent=0 // pred_check_branch
    %21 = sbr.rel (0) target = $region17
  $region16: #{char_rnn_forward.1} parent=0 // pred_region
    _
  $region17: #{char_rnn_forward.1} parent=0 // pred_fallthru
    _
  // Predicated region
  $region18: #{char_rnn_forward.1} parent=0 // pred_check
    _
  $region19: #{char_rnn_forward.1} parent=0 // pred_check_branch
    %23 = sbr.rel (0) target = $region21
  $region20: #{char_rnn_forward.1} parent=0 // pred_region
    _
  $region21: #{char_rnn_forward.1} parent=0 // pred_fallthru
    _
  // Predicated region
  $region22: #{char_rnn_forward.1} parent=0 // pred_check
    _
  $region23: #{char_rnn_forward.1} parent=0 // pred_check_branch
    %25 = sbr.rel (0) target = $region25
  $region24: #{char_rnn_forward.1} parent=0 // pred_region
    _
  $region25: #{char_rnn_forward.1} parent=0 // pred_fallthru
    _
  // Predicated region
  $region26: #{char_rnn_forward.1} parent=0 // pred_check
    _
  $region27: #{char_rnn_forward.1} parent=0 // pred_check_branch
    %27 = sbr.rel (0) target = $region29
  $region28: #{char_rnn_forward.1} parent=0 // pred_region
    _
  $region29: #{char_rnn_forward.1} parent=0 // pred_fallthru
    _
  // Predicated region
  $region30: #{char_rnn_forward.1} parent=0 // pred_check
    _
  $region31: #{char_rnn_forward.1} parent=0 // pred_check_branch
    %29 = sbr.rel (0) target = $region33
  $region32: #{char_rnn_forward.1} parent=0 // pred_region
    _
  $region33: #{char_rnn_forward.1} parent=0 // pred_fallthru
    _
  // Predicated region
  $region34: #{char_rnn_forward.1} parent=0 // pred_check
    _
  $region35: #{char_rnn_forward.1} parent=0 // pred_check_branch
    %31 = sbr.rel (0) target = $region37
  $region36: #{char_rnn_forward.1} parent=0 // pred_region
    _
  $region37: #{char_rnn_forward.1} parent=0 // pred_fallthru
    _
  %v33 = vld [vmem:[%s2] sm:$0xff]
  %v34 = vld [vmem:[%s2 + $0x8] sm:$0xff]
  %v35 = vld [vmem:[%s2 + $0x10] sm:$0xff]
  %v36 = vld [vmem:[%s2 + $0x18] sm:$0xff]
  %v37 = vld [vmem:[%s2 + $0x20] sm:$0xff]
  %v38 = vld [vmem:[%s2 + $0x28] sm:$0xff]
  %v39 = vld [vmem:[%s2 + $0x30] sm:$0xff]
  %v40 = vld [vmem:[%s2 + $0x38] sm:$0xff]
  %v41 = vld [vmem:[%s2 + $0x40] sm:$0xff]
  %v42 = vld [vmem:[%s2 + $0x48] sm:$0xff]
  %v43 = vld [vmem:[%s2 + $0x50] sm:$0xff]
  %v44 = vld [vmem:[%s2 + $0x58] sm:$0xff]
  %v45 = vld [vmem:[%s2 + $0x60] sm:$0xff]
  %v46 = vld [vmem:[%s2 + $0x68] sm:$0xff]
  %v47 = vld [vmem:[%s2 + $0x70] sm:$0xff]
  %v48 = vld [vmem:[%s2 + $0x78] sm:$0xff]
  %v49 = vld [vmem:[%s2 + $0x80] sm:$0xff]
  %v50 = vld [vmem:[%s2 + $0x88] sm:$0xff]
  %v51 = vld [vmem:[%s2 + $0x90] sm:$0xff]
  %v52 = vld [vmem:[%s2 + $0x98] sm:$0xff]
  %v53 = vld [vmem:[%s2 + $0xa0] sm:$0xff]
  %v54 = vld [vmem:[%s2 + $0xa8] sm:$0xff]
  %v55 = vld [vmem:[%s2 + $0xb0] sm:$0xff]
  %v56 = vld [vmem:[%s2 + $0xb8] sm:$0xff]
  %v57 = vld [vmem:[%s2 + $0xc0] sm:$0xff]
  %v58 = vld [vmem:[%s2 + $0xc8] sm:$0xff]
  %v59 = vld [vmem:[%s2 + $0xd0] sm:$0xff]
  %v60 = vld [vmem:[%s2 + $0xd8] sm:$0xff]
  %v61 = vld [vmem:[%s2 + $0xe0] sm:$0xff]
  %v62 = vld [vmem:[%s2 + $0xe8] sm:$0xff]
  %v63 = vld [vmem:[%s2 + $0xf0] sm:$0xff]
  %v64 = vld [vmem:[%s2 + $0xf8] sm:$0xff]
  %v65 = vld [vmem:[%s2 + $0x100] sm:$0xff]
  %v66 = vld [vmem:[%s2 + $0x108] sm:$0xff]
  %v67 = vld [vmem:[%s2 + $0x110] sm:$0xff]
  %v68 = vld [vmem:[%s2 + $0x118] sm:$0xff]
  %v69 = vld [vmem:[%s2 + $0x120] sm:$0xff]
  %v70 = vld [vmem:[%s2 + $0x128] sm:$0xff]
  %v71 = vld [vmem:[%s2 + $0x130] sm:$0xff]
  %v72 = vld [vmem:[%s2 + $0x138] sm:$0xff]
  %v73 = vld [vmem:[%s2 + $0x140] sm:$0xff]
  %v74 = vld [vmem:[%s2 + $0x148] sm:$0xff]
  %v75 = vld [vmem:[%s2 + $0x150] sm:$0xff]
  %v76 = vld [vmem:[%s2 + $0x158] sm:$0xff]
  %v77 = vld [vmem:[%s2 + $0x160] sm:$0xff]
  %v78 = vld [vmem:[%s2 + $0x168] sm:$0xff]
  %v79 = vld [vmem:[%s2 + $0x170] sm:$0xff]
  %v80 = vld [vmem:[%s2 + $0x178] sm:$0xff]
  %v81 = vld [vmem:[%s2 + $0x180] sm:$0xff]
  %v82 = vld [vmem:[%s2 + $0x188] sm:$0xff]
  %v83 = vld [vmem:[%s2 + $0x190] sm:$0xff]
  %v84 = vld [vmem:[%s2 + $0x198] sm:$0xff]
  %v85 = vld [vmem:[%s2 + $0x1a0] sm:$0xff]
  %v86 = vld [vmem:[%s2 + $0x1a8] sm:$0xff]
  %v87 = vld [vmem:[%s2 + $0x1b0] sm:$0xff]
  %v88 = vld [vmem:[%s2 + $0x1b8] sm:$0xff]
  %v89 = vld [vmem:[%s2 + $0x1c0] sm:$0xff]
  %v90 = vld [vmem:[%s2 + $0x1c8] sm:$0xff]
  %v91 = vld [vmem:[%s2 + $0x1d0] sm:$0xff]
  %v92 = vld [vmem:[%s2 + $0x1d8] sm:$0xff]
  %v93 = vld [vmem:[%s2 + $0x1e0] sm:$0xff]
  %v94 = vld [vmem:[%s2 + $0x1e8] sm:$0xff]
  %v95 = vld [vmem:[%s2 + $0x1f0] sm:$0xff]
  %v96 = vld [vmem:[%s2 + $0x1f8] sm:$0xff]
  %v97 = vld [vmem:[%s2 + $0x200] sm:$0xff]
  %v98 = vld [vmem:[%s2 + $0x208] sm:$0xff]
  %v99 = vld [vmem:[%s2 + $0x210] sm:$0xff]
  %v100 = vld [vmem:[%s2 + $0x218] sm:$0xff]
  %v101 = vld [vmem:[%s2 + $0x220] sm:$0xff]
  %v102 = vld [vmem:[%s2 + $0x228] sm:$0xff]
  %v103 = vld [vmem:[%s2 + $0x230] sm:$0xff]
  %v104 = vld [vmem:[%s2 + $0x238] sm:$0xff]
  %v105 = vld [vmem:[%s2 + $0x240] sm:$0xff]
  %v106 = vld [vmem:[%s2 + $0x248] sm:$0xff]
  %v107 = vld [vmem:[%s2 + $0x250] sm:$0xff]
  %v108 = vld [vmem:[%s2 + $0x258] sm:$0xff]
  %v109 = vld [vmem:[%s2 + $0x260] sm:$0xff]
  %v110 = vld [vmem:[%s2 + $0x268] sm:$0xff]
  %v111 = vld [vmem:[%s2 + $0x270] sm:$0xff]
  %v112 = vld [vmem:[%s2 + $0x278] sm:$0xff]
  %v113 = vld [vmem:[%s2 + $0x280] sm:$0xff]
  %v114 = vld [vmem:[%s2 + $0x288] sm:$0xff]
  %v115 = vld [vmem:[%s2 + $0x290] sm:$0xff]
  %v116 = vld [vmem:[%s2 + $0x298] sm:$0xff]
  %v117 = vld [vmem:[%s2 + $0x2a0] sm:$0xff]
  %v118 = vld [vmem:[%s2 + $0x2a8] sm:$0xff]
  %v119 = vld [vmem:[%s2 + $0x2b0] sm:$0xff]
  %v120 = vld [vmem:[%s2 + $0x2b8] sm:$0xff]
  %v121 = vld [vmem:[%s2 + $0x2c0] sm:$0xff]
  %v122 = vld [vmem:[%s2 + $0x2c8] sm:$0xff]
  %v123 = vld [vmem:[%s2 + $0x2d0] sm:$0xff]
  %v124 = vld [vmem:[%s2 + $0x2d8] sm:$0xff]
  %v125 = vld [vmem:[%s2 + $0x2e0] sm:$0xff]
  %v126 = vld [vmem:[%s2 + $0x2e8] sm:$0xff]
  %v127 = vld [vmem:[%s2 + $0x2f0] sm:$0xff]
  %v128 = vld [vmem:[%s2 + $0x2f8] sm:$0xff]
  %v129 = vld [vmem:[%s2 + $0x300] sm:$0xff]
  %v130 = vld [vmem:[%s2 + $0x308] sm:$0xff]
  %v131 = vld [vmem:[%s2 + $0x310] sm:$0xff]
  %v132 = vld [vmem:[%s2 + $0x318] sm:$0xff]
  %v133 = vld [vmem:[%s2 + $0x320] sm:$0xff]
  %v134 = vld [vmem:[%s2 + $0x328] sm:$0xff]
  %v135 = vld [vmem:[%s2 + $0x330] sm:$0xff]
  %v136 = vld [vmem:[%s2 + $0x338] sm:$0xff]
  %v137 = vld [vmem:[%s2 + $0x340] sm:$0xff]
  %v138 = vld [vmem:[%s2 + $0x348] sm:$0xff]
  %v139 = vld [vmem:[%s2 + $0x350] sm:$0xff]
  %v140 = vld [vmem:[%s2 + $0x358] sm:$0xff]
  %v141 = vld [vmem:[%s2 + $0x360] sm:$0xff]
  %v142 = vld [vmem:[%s2 + $0x368] sm:$0xff]
  %v143 = vld [vmem:[%s2 + $0x370] sm:$0xff]
  %v144 = vld [vmem:[%s2 + $0x378] sm:$0xff]
  %v145 = vld [vmem:[%s2 + $0x380] sm:$0xff]
  %v146 = vld [vmem:[%s2 + $0x388] sm:$0xff]
  %v147 = vld [vmem:[%s2 + $0x390] sm:$0xff]
  %v148 = vld [vmem:[%s2 + $0x398] sm:$0xff]
  %v149 = vld [vmem:[%s2 + $0x3a0] sm:$0xff]
  %v150 = vld [vmem:[%s2 + $0x3a8] sm:$0xff]
  %v151 = vld [vmem:[%s2 + $0x3b0] sm:$0xff]
  %v152 = vld [vmem:[%s2 + $0x3b8] sm:$0xff]
  %v153 = vld [vmem:[%s2 + $0x3c0] sm:$0xff]
  %v154 = vld [vmem:[%s2 + $0x3c8] sm:$0xff]
  %v155 = vld [vmem:[%s2 + $0x3d0] sm:$0xff]
  %v156 = vld [vmem:[%s2 + $0x3d8] sm:$0xff]
  %v157 = vld [vmem:[%s2 + $0x3e0] sm:$0xff]
  %v158 = vld [vmem:[%s2 + $0x3e8] sm:$0xff]
  %v159 = vld [vmem:[%s2 + $0x3f0] sm:$0xff]
  %v160 = vld [vmem:[%s2 + $0x3f8] sm:$0xff]
  %v161 = vld [vmem:[%s3] sm:$0xff]
  %v162 = vld [vmem:[%s3 + $0x8] sm:$0xff]
  %v163 = vld [vmem:[%s3 + $0x10] sm:$0xff]
  %v164 = vld [vmem:[%s3 + $0x18] sm:$0xff]
  %v165 = vld [vmem:[%s3 + $0x20] sm:$0xff]
  %v166 = vld [vmem:[%s3 + $0x28] sm:$0xff]
  %v167 = vld [vmem:[%s3 + $0x30] sm:$0xff]
  %v168 = vld [vmem:[%s3 + $0x38] sm:$0xff]
  %v169 = vld [vmem:[%s3 + $0x40] sm:$0xff]
  %v170 = vld [vmem:[%s3 + $0x48] sm:$0xff]
  %v171 = vld [vmem:[%s3 + $0x50] sm:$0xff]
  %v172 = vld [vmem:[%s3 + $0x58] sm:$0xff]
  %v173 = vld [vmem:[%s3 + $0x60] sm:$0xff]
  %v174 = vld [vmem:[%s3 + $0x68] sm:$0xff]
  %v175 = vld [vmem:[%s3 + $0x70] sm:$0xff]
  %v176 = vld [vmem:[%s3 + $0x78] sm:$0xff]
  %v177 = vld [vmem:[%s3 + $0x80] sm:$0xff]
  %v178 = vld [vmem:[%s3 + $0x88] sm:$0xff]
  %v179 = vld [vmem:[%s3 + $0x90] sm:$0xff]
  %v180 = vld [vmem:[%s3 + $0x98] sm:$0xff]
  %v181 = vld [vmem:[%s3 + $0xa0] sm:$0xff]
  %v182 = vld [vmem:[%s3 + $0xa8] sm:$0xff]
  %v183 = vld [vmem:[%s3 + $0xb0] sm:$0xff]
  %v184 = vld [vmem:[%s3 + $0xb8] sm:$0xff]
  %v185 = vld [vmem:[%s3 + $0xc0] sm:$0xff]
  %v186 = vld [vmem:[%s3 + $0xc8] sm:$0xff]
  %v187 = vld [vmem:[%s3 + $0xd0] sm:$0xff]
  %v188 = vld [vmem:[%s3 + $0xd8] sm:$0xff]
  %v189 = vld [vmem:[%s3 + $0xe0] sm:$0xff]
  %v190 = vld [vmem:[%s3 + $0xe8] sm:$0xff]
  %v191 = vld [vmem:[%s3 + $0xf0] sm:$0xff]
  %v192 = vld [vmem:[%s3 + $0xf8] sm:$0xff]
  %v193 = vld [vmem:[%s3 + $0x100] sm:$0xff]
  %v194 = vld [vmem:[%s3 + $0x108] sm:$0xff]
  %v195 = vld [vmem:[%s3 + $0x110] sm:$0xff]
  %v196 = vld [vmem:[%s3 + $0x118] sm:$0xff]
  %v197 = vld [vmem:[%s3 + $0x120] sm:$0xff]
  %v198 = vld [vmem:[%s3 + $0x128] sm:$0xff]
  %v199 = vld [vmem:[%s3 + $0x130] sm:$0xff]
  %v200 = vld [vmem:[%s3 + $0x138] sm:$0xff]
  %v201 = vld [vmem:[%s3 + $0x140] sm:$0xff]
  %v202 = vld [vmem:[%s3 + $0x148] sm:$0xff]
  %v203 = vld [vmem:[%s3 + $0x150] sm:$0xff]
  %v204 = vld [vmem:[%s3 + $0x158] sm:$0xff]
  %v205 = vld [vmem:[%s3 + $0x160] sm:$0xff]
  %v206 = vld [vmem:[%s3 + $0x168] sm:$0xff]
  %v207 = vld [vmem:[%s3 + $0x170] sm:$0xff]
  %v208 = vld [vmem:[%s3 + $0x178] sm:$0xff]
  %v209 = vld [vmem:[%s3 + $0x180] sm:$0xff]
  %v210 = vld [vmem:[%s3 + $0x188] sm:$0xff]
  %v211 = vld [vmem:[%s3 + $0x190] sm:$0xff]
  %v212 = vld [vmem:[%s3 + $0x198] sm:$0xff]
  %v213 = vld [vmem:[%s3 + $0x1a0] sm:$0xff]
  %v214 = vld [vmem:[%s3 + $0x1a8] sm:$0xff]
  %v215 = vld [vmem:[%s3 + $0x1b0] sm:$0xff]
  %v216 = vld [vmem:[%s3 + $0x1b8] sm:$0xff]
  %v217 = vld [vmem:[%s3 + $0x1c0] sm:$0xff]
  %v218 = vld [vmem:[%s3 + $0x1c8] sm:$0xff]
  %v219 = vld [vmem:[%s3 + $0x1d0] sm:$0xff]
  %v220 = vld [vmem:[%s3 + $0x1d8] sm:$0xff]
  %v221 = vld [vmem:[%s3 + $0x1e0] sm:$0xff]
  %v222 = vld [vmem:[%s3 + $0x1e8] sm:$0xff]
  %v223 = vld [vmem:[%s3 + $0x1f0] sm:$0xff]
  %v224 = vld [vmem:[%s3 + $0x1f8] sm:$0xff]
  %v225 = vld [vmem:[%s3 + $0x200] sm:$0xff]
  %v226 = vld [vmem:[%s3 + $0x208] sm:$0xff]
  %v227 = vld [vmem:[%s3 + $0x210] sm:$0xff]
  %v228 = vld [vmem:[%s3 + $0x218] sm:$0xff]
  %v229 = vld [vmem:[%s3 + $0x220] sm:$0xff]
  %v230 = vld [vmem:[%s3 + $0x228] sm:$0xff]
  %v231 = vld [vmem:[%s3 + $0x230] sm:$0xff]
  %v232 = vld [vmem:[%s3 + $0x238] sm:$0xff]
  %v233 = vld [vmem:[%s3 + $0x240] sm:$0xff]
  %v234 = vld [vmem:[%s3 + $0x248] sm:$0xff]
  %v235 = vld [vmem:[%s3 + $0x250] sm:$0xff]
  %v236 = vld [vmem:[%s3 + $0x258] sm:$0xff]
  %v237 = vld [vmem:[%s3 + $0x260] sm:$0xff]
  %v238 = vld [vmem:[%s3 + $0x268] sm:$0xff]
  %v239 = vld [vmem:[%s3 + $0x270] sm:$0xff]
  %v240 = vld [vmem:[%s3 + $0x278] sm:$0xff]
  %v241 = vld [vmem:[%s3 + $0x280] sm:$0xff]
  %v242 = vld [vmem:[%s3 + $0x288] sm:$0xff]
  %v243 = vld [vmem:[%s3 + $0x290] sm:$0xff]
  %v244 = vld [vmem:[%s3 + $0x298] sm:$0xff]
  %v245 = vld [vmem:[%s3 + $0x2a0] sm:$0xff]
  %v246 = vld [vmem:[%s3 + $0x2a8] sm:$0xff]
  %v247 = vld [vmem:[%s3 + $0x2b0] sm:$0xff]
  %v248 = vld [vmem:[%s3 + $0x2b8] sm:$0xff]
  %v249 = vld [vmem:[%s3 + $0x2c0] sm:$0xff]
  %v250 = vld [vmem:[%s3 + $0x2c8] sm:$0xff]
  %v251 = vld [vmem:[%s3 + $0x2d0] sm:$0xff]
  %v252 = vld [vmem:[%s3 + $0x2d8] sm:$0xff]
  %v253 = vld [vmem:[%s3 + $0x2e0] sm:$0xff]
  %v254 = vld [vmem:[%s3 + $0x2e8] sm:$0xff]
  %v255 = vld [vmem:[%s3 + $0x2f0] sm:$0xff]
  %v256 = vld [vmem:[%s3 + $0x2f8] sm:$0xff]
  %v257 = vld [vmem:[%s3 + $0x300] sm:$0xff]
  %v258 = vld [vmem:[%s3 + $0x308] sm:$0xff]
  %v259 = vld [vmem:[%s3 + $0x310] sm:$0xff]
  %v260 = vld [vmem:[%s3 + $0x318] sm:$0xff]
  %v261 = vld [vmem:[%s3 + $0x320] sm:$0xff]
  %v262 = vld [vmem:[%s3 + $0x328] sm:$0xff]
  %v263 = vld [vmem:[%s3 + $0x330] sm:$0xff]
  %v264 = vld [vmem:[%s3 + $0x338] sm:$0xff]
  %v265 = vld [vmem:[%s3 + $0x340] sm:$0xff]
  %v266 = vld [vmem:[%s3 + $0x348] sm:$0xff]
  %v267 = vld [vmem:[%s3 + $0x350] sm:$0xff]
  %v268 = vld [vmem:[%s3 + $0x358] sm:$0xff]
  %v269 = vld [vmem:[%s3 + $0x360] sm:$0xff]
  %v270 = vld [vmem:[%s3 + $0x368] sm:$0xff]
  %v271 = vld [vmem:[%s3 + $0x370] sm:$0xff]
  %v272 = vld [vmem:[%s3 + $0x378] sm:$0xff]
  %v273 = vld [vmem:[%s3 + $0x380] sm:$0xff]
  %v274 = vld [vmem:[%s3 + $0x388] sm:$0xff]
  %v275 = vld [vmem:[%s3 + $0x390] sm:$0xff]
  %v276 = vld [vmem:[%s3 + $0x398] sm:$0xff]
  %v277 = vld [vmem:[%s3 + $0x3a0] sm:$0xff]
  %v278 = vld [vmem:[%s3 + $0x3a8] sm:$0xff]
  %v279 = vld [vmem:[%s3 + $0x3b0] sm:$0xff]
  %v280 = vld [vmem:[%s3 + $0x3b8] sm:$0xff]
  %v281 = vld [vmem:[%s3 + $0x3c0] sm:$0xff]
  %v282 = vld [vmem:[%s3 + $0x3c8] sm:$0xff]
  %v283 = vld [vmem:[%s3 + $0x3d0] sm:$0xff]
  %v284 = vld [vmem:[%s3 + $0x3d8] sm:$0xff]
  %v285 = vld [vmem:[%s3 + $0x3e0] sm:$0xff]
  %v286 = vld [vmem:[%s3 + $0x3e8] sm:$0xff]
  %v287 = vld [vmem:[%s3 + $0x3f0] sm:$0xff]
  %v288 = vld [vmem:[%s3 + $0x3f8] sm:$0xff]
  %v289 = vld [vmem:[%s3 + $0x400] sm:$0xff]
  %v290 = vld [vmem:[%s3 + $0x408] sm:$0xff]
  %v291 = vld [vmem:[%s3 + $0x410] sm:$0xff]
  %v292 = vld [vmem:[%s3 + $0x418] sm:$0xff]
  %v293 = vld [vmem:[%s3 + $0x420] sm:$0xff]
  %v294 = vld [vmem:[%s3 + $0x428] sm:$0xff]
  %v295 = vld [vmem:[%s3 + $0x430] sm:$0xff]
  %v296 = vld [vmem:[%s3 + $0x438] sm:$0xff]
  %v297 = vld [vmem:[%s3 + $0x440] sm:$0xff]
  %v298 = vld [vmem:[%s3 + $0x448] sm:$0xff]
  %v299 = vld [vmem:[%s3 + $0x450] sm:$0xff]
  %v300 = vld [vmem:[%s3 + $0x458] sm:$0xff]
  %v301 = vld [vmem:[%s3 + $0x460] sm:$0xff]
  %v302 = vld [vmem:[%s3 + $0x468] sm:$0xff]
  %v303 = vld [vmem:[%s3 + $0x470] sm:$0xff]
  %v304 = vld [vmem:[%s3 + $0x478] sm:$0xff]
  %v305 = vld [vmem:[%s3 + $0x480] sm:$0xff]
  %v306 = vld [vmem:[%s3 + $0x488] sm:$0xff]
  %v307 = vld [vmem:[%s3 + $0x490] sm:$0xff]
  %v308 = vld [vmem:[%s3 + $0x498] sm:$0xff]
  %v309 = vld [vmem:[%s3 + $0x4a0] sm:$0xff]
  %v310 = vld [vmem:[%s3 + $0x4a8] sm:$0xff]
  %v311 = vld [vmem:[%s3 + $0x4b0] sm:$0xff]
  %v312 = vld [vmem:[%s3 + $0x4b8] sm:$0xff]
  %v313 = vld [vmem:[%s3 + $0x4c0] sm:$0xff]
  %v314 = vld [vmem:[%s3 + $0x4c8] sm:$0xff]
  %v315 = vld [vmem:[%s3 + $0x4d0] sm:$0xff]
  %v316 = vld [vmem:[%s3 + $0x4d8] sm:$0xff]
  %v317 = vld [vmem:[%s3 + $0x4e0] sm:$0xff]
  %v318 = vld [vmem:[%s3 + $0x4e8] sm:$0xff]
  %v319 = vld [vmem:[%s3 + $0x4f0] sm:$0xff]
  %v320 = vld [vmem:[%s3 + $0x4f8] sm:$0xff]
  %v321 = vld [vmem:[%s3 + $0x500] sm:$0xff]
  %v322 = vld [vmem:[%s3 + $0x508] sm:$0xff]
  %v323 = vld [vmem:[%s3 + $0x510] sm:$0xff]
  %v324 = vld [vmem:[%s3 + $0x518] sm:$0xff]
  %v325 = vld [vmem:[%s3 + $0x520] sm:$0xff]
  %v326 = vld [vmem:[%s3 + $0x528] sm:$0xff]
  %v327 = vld [vmem:[%s3 + $0x530] sm:$0xff]
  %v328 = vld [vmem:[%s3 + $0x538] sm:$0xff]
  %v329 = vld [vmem:[%s3 + $0x540] sm:$0xff]
  %v330 = vld [vmem:[%s3 + $0x548] sm:$0xff]
  %v331 = vld [vmem:[%s3 + $0x550] sm:$0xff]
  %v332 = vld [vmem:[%s3 + $0x558] sm:$0xff]
  %v333 = vld [vmem:[%s3 + $0x560] sm:$0xff]
  %v334 = vld [vmem:[%s3 + $0x568] sm:$0xff]
  %v335 = vld [vmem:[%s3 + $0x570] sm:$0xff]
  %v336 = vld [vmem:[%s3 + $0x578] sm:$0xff]
  %v337 = vld [vmem:[%s3 + $0x580] sm:$0xff]
  %v338 = vld [vmem:[%s3 + $0x588] sm:$0xff]
  %v339 = vld [vmem:[%s3 + $0x590] sm:$0xff]
  %v340 = vld [vmem:[%s3 + $0x598] sm:$0xff]
  %v341 = vld [vmem:[%s3 + $0x5a0] sm:$0xff]
  %v342 = vld [vmem:[%s3 + $0x5a8] sm:$0xff]
  %v343 = vld [vmem:[%s3 + $0x5b0] sm:$0xff]
  %v344 = vld [vmem:[%s3 + $0x5b8] sm:$0xff]
  %v345 = vld [vmem:[%s3 + $0x5c0] sm:$0xff]
  %v346 = vld [vmem:[%s3 + $0x5c8] sm:$0xff]
  %v347 = vld [vmem:[%s3 + $0x5d0] sm:$0xff]
  %v348 = vld [vmem:[%s3 + $0x5d8] sm:$0xff]
  %v349 = vld [vmem:[%s3 + $0x5e0] sm:$0xff]
  %v350 = vld [vmem:[%s3 + $0x5e8] sm:$0xff]
  %v351 = vld [vmem:[%s3 + $0x5f0] sm:$0xff]
  %v352 = vld [vmem:[%s3 + $0x5f8] sm:$0xff]
  %v353 = vld [vmem:[%s3 + $0x600] sm:$0xff]
  %v354 = vld [vmem:[%s3 + $0x608] sm:$0xff]
  %v355 = vld [vmem:[%s3 + $0x610] sm:$0xff]
  %v356 = vld [vmem:[%s3 + $0x618] sm:$0xff]
  %v357 = vld [vmem:[%s3 + $0x620] sm:$0xff]
  %v358 = vld [vmem:[%s3 + $0x628] sm:$0xff]
  %v359 = vld [vmem:[%s3 + $0x630] sm:$0xff]
  %v360 = vld [vmem:[%s3 + $0x638] sm:$0xff]
  %v361 = vld [vmem:[%s3 + $0x640] sm:$0xff]
  %v362 = vld [vmem:[%s3 + $0x648] sm:$0xff]
  %v363 = vld [vmem:[%s3 + $0x650] sm:$0xff]
  %v364 = vld [vmem:[%s3 + $0x658] sm:$0xff]
  %v365 = vld [vmem:[%s3 + $0x660] sm:$0xff]
  %v366 = vld [vmem:[%s3 + $0x668] sm:$0xff]
  %v367 = vld [vmem:[%s3 + $0x670] sm:$0xff]
  %v368 = vld [vmem:[%s3 + $0x678] sm:$0xff]
  %v369 = vld [vmem:[%s3 + $0x680] sm:$0xff]
  %v370 = vld [vmem:[%s3 + $0x688] sm:$0xff]
  %v371 = vld [vmem:[%s3 + $0x690] sm:$0xff]
  %v372 = vld [vmem:[%s3 + $0x698] sm:$0xff]
  %v373 = vld [vmem:[%s3 + $0x6a0] sm:$0xff]
  %v374 = vld [vmem:[%s3 + $0x6a8] sm:$0xff]
  %v375 = vld [vmem:[%s3 + $0x6b0] sm:$0xff]
  %v376 = vld [vmem:[%s3 + $0x6b8] sm:$0xff]
  %v377 = vld [vmem:[%s3 + $0x6c0] sm:$0xff]
  %v378 = vld [vmem:[%s3 + $0x6c8] sm:$0xff]
  %v379 = vld [vmem:[%s3 + $0x6d0] sm:$0xff]
  %v380 = vld [vmem:[%s3 + $0x6d8] sm:$0xff]
  %v381 = vld [vmem:[%s3 + $0x6e0] sm:$0xff]
  %v382 = vld [vmem:[%s3 + $0x6e8] sm:$0xff]
  %v383 = vld [vmem:[%s3 + $0x6f0] sm:$0xff]
  %v384 = vld [vmem:[%s3 + $0x6f8] sm:$0xff]
  %v385 = vld [vmem:[%s3 + $0x700] sm:$0xff]
  %v386 = vld [vmem:[%s3 + $0x708] sm:$0xff]
  %v387 = vld [vmem:[%s3 + $0x710] sm:$0xff]
  %v388 = vld [vmem:[%s3 + $0x718] sm:$0xff]
  %v389 = vld [vmem:[%s3 + $0x720] sm:$0xff]
  %v390 = vld [vmem:[%s3 + $0x728] sm:$0xff]
  %v391 = vld [vmem:[%s3 + $0x730] sm:$0xff]
  %v392 = vld [vmem:[%s3 + $0x738] sm:$0xff]
  %v393 = vld [vmem:[%s3 + $0x740] sm:$0xff]
  %v394 = vld [vmem:[%s3 + $0x748] sm:$0xff]
  %v395 = vld [vmem:[%s3 + $0x750] sm:$0xff]
  %v396 = vld [vmem:[%s3 + $0x758] sm:$0xff]
  %v397 = vld [vmem:[%s3 + $0x760] sm:$0xff]
  %v398 = vld [vmem:[%s3 + $0x768] sm:$0xff]
  %v399 = vld [vmem:[%s3 + $0x770] sm:$0xff]
  %v400 = vld [vmem:[%s3 + $0x778] sm:$0xff]
  %v401 = vld [vmem:[%s3 + $0x780] sm:$0xff]
  %v402 = vld [vmem:[%s3 + $0x788] sm:$0xff]
  %v403 = vld [vmem:[%s3 + $0x790] sm:$0xff]
  %v404 = vld [vmem:[%s3 + $0x798] sm:$0xff]
  %v405 = vld [vmem:[%s3 + $0x7a0] sm:$0xff]
  %v406 = vld [vmem:[%s3 + $0x7a8] sm:$0xff]
  %v407 = vld [vmem:[%s3 + $0x7b0] sm:$0xff]
  %v408 = vld [vmem:[%s3 + $0x7b8] sm:$0xff]
  %v409 = vld [vmem:[%s3 + $0x7c0] sm:$0xff]
  %v410 = vld [vmem:[%s3 + $0x7c8] sm:$0xff]
  %v411 = vld [vmem:[%s3 + $0x7d0] sm:$0xff]
  %v412 = vld [vmem:[%s3 + $0x7d8] sm:$0xff]
  %v413 = vld [vmem:[%s3 + $0x7e0] sm:$0xff]
  %v414 = vld [vmem:[%s3 + $0x7e8] sm:$0xff]
  %v415 = vld [vmem:[%s3 + $0x7f0] sm:$0xff]
  %v416 = vld [vmem:[%s3 + $0x7f8] sm:$0xff]
  %v417 = vld [vmem:[%s4] sm:$0xff]
  %v419 = vlaneseq
  %v420 = vshrl.u32 %v419, 7
  %v421 = vsub.s32 0, %v420
  %v422 = vrot.slane %v417, %v421
  %v423 = vlaneseq
  %v424 = vshrl.u32 %v423, 7
  %v425 = vsub.s32 1, %v424
  %v426 = vrot.slane %v417, %v425
  %v427 = vlaneseq
  %v428 = vshrl.u32 %v427, 7
  %v429 = vsub.s32 2, %v428
  %v430 = vrot.slane %v417, %v429
  %v431 = vlaneseq
  %v432 = vshrl.u32 %v431, 7
  %v433 = vsub.s32 3, %v432
  %v434 = vrot.slane %v417, %v433
  %v435 = vlaneseq
  %v436 = vshrl.u32 %v435, 7
  %v437 = vsub.s32 4, %v436
  %v438 = vrot.slane %v417, %v437
  %v439 = vlaneseq
  %v440 = vshrl.u32 %v439, 7
  %v441 = vsub.s32 5, %v440
  %v442 = vrot.slane %v417, %v441
  %v443 = vlaneseq
  %v444 = vshrl.u32 %v443, 7
  %v445 = vsub.s32 6, %v444
  %v446 = vrot.slane %v417, %v445
  %v447 = vlaneseq
  %v448 = vshrl.u32 %v447, 7
  %v449 = vsub.s32 7, %v448
  %v450 = vrot.slane %v417, %v449
  %v459 = vld [vmem:[%s1] sm:$0xff]
  %v460 = vld [vmem:[%s0] sm:$0xff]
  %v461 = vld [vmem:[%s0 + $0x8] sm:$0xff]
  %v462 = vld [vmem:[%s0 + $0x10] sm:$0xff]
  %v463 = vld [vmem:[%s0 + $0x18] sm:$0xff]
  %v464 = vld [vmem:[%s0 + $0x20] sm:$0xff]
  %v465 = vld [vmem:[%s0 + $0x28] sm:$0xff]
  %v466 = vld [vmem:[%s0 + $0x30] sm:$0xff]
  %v467 = vld [vmem:[%s0 + $0x38] sm:$0xff]
  %v596 = vunpack.c.l.b16 %v33
  %v597 = vunpack.c.h.b16 %v33
  %v598 = vunpack.c.l.b16 %v34
  %v599 = vunpack.c.h.b16 %v34
  %v600 = vunpack.c.l.b16 %v35
  %v601 = vunpack.c.h.b16 %v35
  %v602 = vunpack.c.l.b16 %v36
  %v603 = vunpack.c.h.b16 %v36
  %v604 = vunpack.c.l.b16 %v37
  %v605 = vunpack.c.h.b16 %v37
  %v606 = vunpack.c.l.b16 %v38
  %v607 = vunpack.c.h.b16 %v38
  %v608 = vunpack.c.l.b16 %v39
  %v609 = vunpack.c.h.b16 %v39
  %v610 = vunpack.c.l.b16 %v40
  %v611 = vunpack.c.h.b16 %v40
  %v612 = vunpack.c.l.b16 %v41
  %v613 = vunpack.c.h.b16 %v41
  %v614 = vunpack.c.l.b16 %v42
  %v615 = vunpack.c.h.b16 %v42
  %v616 = vunpack.c.l.b16 %v43
  %v617 = vunpack.c.h.b16 %v43
  %v618 = vunpack.c.l.b16 %v44
  %v619 = vunpack.c.h.b16 %v44
  %v620 = vunpack.c.l.b16 %v45
  %v621 = vunpack.c.h.b16 %v45
  %v622 = vunpack.c.l.b16 %v46
  %v623 = vunpack.c.h.b16 %v46
  %v624 = vunpack.c.l.b16 %v47
  %v625 = vunpack.c.h.b16 %v47
  %v626 = vunpack.c.l.b16 %v48
  %v627 = vunpack.c.h.b16 %v48
  %v628 = vunpack.c.l.b16 %v49
  %v629 = vunpack.c.h.b16 %v49
  %v630 = vunpack.c.l.b16 %v50
  %v631 = vunpack.c.h.b16 %v50
  %v632 = vunpack.c.l.b16 %v51
  %v633 = vunpack.c.h.b16 %v51
  %v634 = vunpack.c.l.b16 %v52
  %v635 = vunpack.c.h.b16 %v52
  %v636 = vunpack.c.l.b16 %v53
  %v637 = vunpack.c.h.b16 %v53
  %v638 = vunpack.c.l.b16 %v54
  %v639 = vunpack.c.h.b16 %v54
  %v640 = vunpack.c.l.b16 %v55
  %v641 = vunpack.c.h.b16 %v55
  %v642 = vunpack.c.l.b16 %v56
  %v643 = vunpack.c.h.b16 %v56
  %v644 = vunpack.c.l.b16 %v57
  %v645 = vunpack.c.h.b16 %v57
  %v646 = vunpack.c.l.b16 %v58
  %v647 = vunpack.c.h.b16 %v58
  %v648 = vunpack.c.l.b16 %v59
  %v649 = vunpack.c.h.b16 %v59
  %v650 = vunpack.c.l.b16 %v60
  %v651 = vunpack.c.h.b16 %v60
  %v652 = vunpack.c.l.b16 %v61
  %v653 = vunpack.c.h.b16 %v61
  %v654 = vunpack.c.l.b16 %v62
  %v655 = vunpack.c.h.b16 %v62
  %v656 = vunpack.c.l.b16 %v63
  %v657 = vunpack.c.h.b16 %v63
  %v658 = vunpack.c.l.b16 %v64
  %v659 = vunpack.c.h.b16 %v64
  %v660 = vunpack.c.l.b16 %v65
  %v661 = vunpack.c.h.b16 %v65
  %v662 = vunpack.c.l.b16 %v66
  %v663 = vunpack.c.h.b16 %v66
  %v664 = vunpack.c.l.b16 %v67
  %v665 = vunpack.c.h.b16 %v67
  %v666 = vunpack.c.l.b16 %v68
  %v667 = vunpack.c.h.b16 %v68
  %v668 = vunpack.c.l.b16 %v69
  %v669 = vunpack.c.h.b16 %v69
  %v670 = vunpack.c.l.b16 %v70
  %v671 = vunpack.c.h.b16 %v70
  %v672 = vunpack.c.l.b16 %v71
  %v673 = vunpack.c.h.b16 %v71
  %v674 = vunpack.c.l.b16 %v72
  %v675 = vunpack.c.h.b16 %v72
  %v676 = vunpack.c.l.b16 %v73
  %v677 = vunpack.c.h.b16 %v73
  %v678 = vunpack.c.l.b16 %v74
  %v679 = vunpack.c.h.b16 %v74
  %v680 = vunpack.c.l.b16 %v75
  %v681 = vunpack.c.h.b16 %v75
  %v682 = vunpack.c.l.b16 %v76
  %v683 = vunpack.c.h.b16 %v76
  %v684 = vunpack.c.l.b16 %v77
  %v685 = vunpack.c.h.b16 %v77
  %v686 = vunpack.c.l.b16 %v78
  %v687 = vunpack.c.h.b16 %v78
  %v688 = vunpack.c.l.b16 %v79
  %v689 = vunpack.c.h.b16 %v79
  %v690 = vunpack.c.l.b16 %v80
  %v691 = vunpack.c.h.b16 %v80
  %v692 = vunpack.c.l.b16 %v81
  %v693 = vunpack.c.h.b16 %v81
  %v694 = vunpack.c.l.b16 %v82
  %v695 = vunpack.c.h.b16 %v82
  %v696 = vunpack.c.l.b16 %v83
  %v697 = vunpack.c.h.b16 %v83
  %v698 = vunpack.c.l.b16 %v84
  %v699 = vunpack.c.h.b16 %v84
  %v700 = vunpack.c.l.b16 %v85
  %v701 = vunpack.c.h.b16 %v85
  %v702 = vunpack.c.l.b16 %v86
  %v703 = vunpack.c.h.b16 %v86
  %v704 = vunpack.c.l.b16 %v87
  %v705 = vunpack.c.h.b16 %v87
  %v706 = vunpack.c.l.b16 %v88
  %v707 = vunpack.c.h.b16 %v88
  %v708 = vunpack.c.l.b16 %v89
  %v709 = vunpack.c.h.b16 %v89
  %v710 = vunpack.c.l.b16 %v90
  %v711 = vunpack.c.h.b16 %v90
  %v712 = vunpack.c.l.b16 %v91
  %v713 = vunpack.c.h.b16 %v91
  %v714 = vunpack.c.l.b16 %v92
  %v715 = vunpack.c.h.b16 %v92
  %v716 = vunpack.c.l.b16 %v93
  %v717 = vunpack.c.h.b16 %v93
  %v718 = vunpack.c.l.b16 %v94
  %v719 = vunpack.c.h.b16 %v94
  %v720 = vunpack.c.l.b16 %v95
  %v721 = vunpack.c.h.b16 %v95
  %v722 = vunpack.c.l.b16 %v96
  %v723 = vunpack.c.h.b16 %v96
  %v724 = vunpack.c.l.b16 %v97
  %v725 = vunpack.c.h.b16 %v97
  %v726 = vunpack.c.l.b16 %v98
  %v727 = vunpack.c.h.b16 %v98
  %v728 = vunpack.c.l.b16 %v99
  %v729 = vunpack.c.h.b16 %v99
  %v730 = vunpack.c.l.b16 %v100
  %v731 = vunpack.c.h.b16 %v100
  %v732 = vunpack.c.l.b16 %v101
  %v733 = vunpack.c.h.b16 %v101
  %v734 = vunpack.c.l.b16 %v102
  %v735 = vunpack.c.h.b16 %v102
  %v736 = vunpack.c.l.b16 %v103
  %v737 = vunpack.c.h.b16 %v103
  %v738 = vunpack.c.l.b16 %v104
  %v739 = vunpack.c.h.b16 %v104
  %v740 = vunpack.c.l.b16 %v105
  %v741 = vunpack.c.h.b16 %v105
  %v742 = vunpack.c.l.b16 %v106
  %v743 = vunpack.c.h.b16 %v106
  %v744 = vunpack.c.l.b16 %v107
  %v745 = vunpack.c.h.b16 %v107
  %v746 = vunpack.c.l.b16 %v108
  %v747 = vunpack.c.h.b16 %v108
  %v748 = vunpack.c.l.b16 %v109
  %v749 = vunpack.c.h.b16 %v109
  %v750 = vunpack.c.l.b16 %v110
  %v751 = vunpack.c.h.b16 %v110
  %v752 = vunpack.c.l.b16 %v111
  %v753 = vunpack.c.h.b16 %v111
  %v754 = vunpack.c.l.b16 %v112
  %v755 = vunpack.c.h.b16 %v112
  %v756 = vunpack.c.l.b16 %v113
  %v757 = vunpack.c.h.b16 %v113
  %v758 = vunpack.c.l.b16 %v114
  %v759 = vunpack.c.h.b16 %v114
  %v760 = vunpack.c.l.b16 %v115
  %v761 = vunpack.c.h.b16 %v115
  %v762 = vunpack.c.l.b16 %v116
  %v763 = vunpack.c.h.b16 %v116
  %v764 = vunpack.c.l.b16 %v117
  %v765 = vunpack.c.h.b16 %v117
  %v766 = vunpack.c.l.b16 %v118
  %v767 = vunpack.c.h.b16 %v118
  %v768 = vunpack.c.l.b16 %v119
  %v769 = vunpack.c.h.b16 %v119
  %v770 = vunpack.c.l.b16 %v120
  %v771 = vunpack.c.h.b16 %v120
  %v772 = vunpack.c.l.b16 %v121
  %v773 = vunpack.c.h.b16 %v121
  %v774 = vunpack.c.l.b16 %v122
  %v775 = vunpack.c.h.b16 %v122
  %v776 = vunpack.c.l.b16 %v123
  %v777 = vunpack.c.h.b16 %v123
  %v778 = vunpack.c.l.b16 %v124
  %v779 = vunpack.c.h.b16 %v124
  %v780 = vunpack.c.l.b16 %v125
  %v781 = vunpack.c.h.b16 %v125
  %v782 = vunpack.c.l.b16 %v126
  %v783 = vunpack.c.h.b16 %v126
  %v784 = vunpack.c.l.b16 %v127
  %v785 = vunpack.c.h.b16 %v127
  %v786 = vunpack.c.l.b16 %v128
  %v787 = vunpack.c.h.b16 %v128
  %v788 = vunpack.c.l.b16 %v129
  %v789 = vunpack.c.h.b16 %v129
  %v790 = vunpack.c.l.b16 %v130
  %v791 = vunpack.c.h.b16 %v130
  %v792 = vunpack.c.l.b16 %v131
  %v793 = vunpack.c.h.b16 %v131
  %v794 = vunpack.c.l.b16 %v132
  %v795 = vunpack.c.h.b16 %v132
  %v796 = vunpack.c.l.b16 %v133
  %v797 = vunpack.c.h.b16 %v133
  %v798 = vunpack.c.l.b16 %v134
  %v799 = vunpack.c.h.b16 %v134
  %v800 = vunpack.c.l.b16 %v135
  %v801 = vunpack.c.h.b16 %v135
  %v802 = vunpack.c.l.b16 %v136
  %v803 = vunpack.c.h.b16 %v136
  %v804 = vunpack.c.l.b16 %v137
  %v805 = vunpack.c.h.b16 %v137
  %v806 = vunpack.c.l.b16 %v138
  %v807 = vunpack.c.h.b16 %v138
  %v808 = vunpack.c.l.b16 %v139
  %v809 = vunpack.c.h.b16 %v139
  %v810 = vunpack.c.l.b16 %v140
  %v811 = vunpack.c.h.b16 %v140
  %v812 = vunpack.c.l.b16 %v141
  %v813 = vunpack.c.h.b16 %v141
  %v814 = vunpack.c.l.b16 %v142
  %v815 = vunpack.c.h.b16 %v142
  %v816 = vunpack.c.l.b16 %v143
  %v817 = vunpack.c.h.b16 %v143
  %v818 = vunpack.c.l.b16 %v144
  %v819 = vunpack.c.h.b16 %v144
  %v820 = vunpack.c.l.b16 %v145
  %v821 = vunpack.c.h.b16 %v145
  %v822 = vunpack.c.l.b16 %v146
  %v823 = vunpack.c.h.b16 %v146
  %v824 = vunpack.c.l.b16 %v147
  %v825 = vunpack.c.h.b16 %v147
  %v826 = vunpack.c.l.b16 %v148
  %v827 = vunpack.c.h.b16 %v148
  %v828 = vunpack.c.l.b16 %v149
  %v829 = vunpack.c.h.b16 %v149
  %v830 = vunpack.c.l.b16 %v150
  %v831 = vunpack.c.h.b16 %v150
  %v832 = vunpack.c.l.b16 %v151
  %v833 = vunpack.c.h.b16 %v151
  %v834 = vunpack.c.l.b16 %v152
  %v835 = vunpack.c.h.b16 %v152
  %v836 = vunpack.c.l.b16 %v153
  %v837 = vunpack.c.h.b16 %v153
  %v838 = vunpack.c.l.b16 %v154
  %v839 = vunpack.c.h.b16 %v154
  %v840 = vunpack.c.l.b16 %v155
  %v841 = vunpack.c.h.b16 %v155
  %v842 = vunpack.c.l.b16 %v156
  %v843 = vunpack.c.h.b16 %v156
  %v844 = vunpack.c.l.b16 %v157
  %v845 = vunpack.c.h.b16 %v157
  %v846 = vunpack.c.l.b16 %v158
  %v847 = vunpack.c.h.b16 %v158
  %v848 = vunpack.c.l.b16 %v159
  %v849 = vunpack.c.h.b16 %v159
  %v850 = vunpack.c.l.b16 %v160
  %v851 = vunpack.c.h.b16 %v160
  %v852 = vpack.c.b16 %v604, %v596
  %v853 = vpack.c.b16 %v605, %v597
  %v854 = vpack.c.b16 %v606, %v598
  %v855 = vpack.c.b16 %v607, %v599
  %v856 = vpack.c.b16 %v608, %v600
  %v857 = vpack.c.b16 %v609, %v601
  %v858 = vpack.c.b16 %v610, %v602
  %v859 = vpack.c.b16 %v611, %v603
  %v860 = vpack.c.b16 %v620, %v612
  %v861 = vpack.c.b16 %v621, %v613
  %v862 = vpack.c.b16 %v622, %v614
  %v863 = vpack.c.b16 %v623, %v615
  %v864 = vpack.c.b16 %v624, %v616
  %v865 = vpack.c.b16 %v625, %v617
  %v866 = vpack.c.b16 %v626, %v618
  %v867 = vpack.c.b16 %v627, %v619
  %v868 = vpack.c.b16 %v636, %v628
  %v869 = vpack.c.b16 %v637, %v629
  %v870 = vpack.c.b16 %v638, %v630
  %v871 = vpack.c.b16 %v639, %v631
  %v872 = vpack.c.b16 %v640, %v632
  %v873 = vpack.c.b16 %v641, %v633
  %v874 = vpack.c.b16 %v642, %v634
  %v875 = vpack.c.b16 %v643, %v635
  %v876 = vpack.c.b16 %v652, %v644
  %v877 = vpack.c.b16 %v653, %v645
  %v878 = vpack.c.b16 %v654, %v646
  %v879 = vpack.c.b16 %v655, %v647
  %v880 = vpack.c.b16 %v656, %v648
  %v881 = vpack.c.b16 %v657, %v649
  %v882 = vpack.c.b16 %v658, %v650
  %v883 = vpack.c.b16 %v659, %v651
  %v884 = vpack.c.b16 %v668, %v660
  %v885 = vpack.c.b16 %v669, %v661
  %v886 = vpack.c.b16 %v670, %v662
  %v887 = vpack.c.b16 %v671, %v663
  %v888 = vpack.c.b16 %v672, %v664
  %v889 = vpack.c.b16 %v673, %v665
  %v890 = vpack.c.b16 %v674, %v666
  %v891 = vpack.c.b16 %v675, %v667
  %v892 = vpack.c.b16 %v684, %v676
  %v893 = vpack.c.b16 %v685, %v677
  %v894 = vpack.c.b16 %v686, %v678
  %v895 = vpack.c.b16 %v687, %v679
  %v896 = vpack.c.b16 %v688, %v680
  %v897 = vpack.c.b16 %v689, %v681
  %v898 = vpack.c.b16 %v690, %v682
  %v899 = vpack.c.b16 %v691, %v683
  %v900 = vpack.c.b16 %v700, %v692
  %v901 = vpack.c.b16 %v701, %v693
  %v902 = vpack.c.b16 %v702, %v694
  %v903 = vpack.c.b16 %v703, %v695
  %v904 = vpack.c.b16 %v704, %v696
  %v905 = vpack.c.b16 %v705, %v697
  %v906 = vpack.c.b16 %v706, %v698
  %v907 = vpack.c.b16 %v707, %v699
  %v908 = vpack.c.b16 %v716, %v708
  %v909 = vpack.c.b16 %v717, %v709
  %v910 = vpack.c.b16 %v718, %v710
  %v911 = vpack.c.b16 %v719, %v711
  %v912 = vpack.c.b16 %v720, %v712
  %v913 = vpack.c.b16 %v721, %v713
  %v914 = vpack.c.b16 %v722, %v714
  %v915 = vpack.c.b16 %v723, %v715
  %v916 = vpack.c.b16 %v732, %v724
  %v917 = vpack.c.b16 %v733, %v725
  %v918 = vpack.c.b16 %v734, %v726
  %v919 = vpack.c.b16 %v735, %v727
  %v920 = vpack.c.b16 %v736, %v728
  %v921 = vpack.c.b16 %v737, %v729
  %v922 = vpack.c.b16 %v738, %v730
  %v923 = vpack.c.b16 %v739, %v731
  %v924 = vpack.c.b16 %v748, %v740
  %v925 = vpack.c.b16 %v749, %v741
  %v926 = vpack.c.b16 %v750, %v742
  %v927 = vpack.c.b16 %v751, %v743
  %v928 = vpack.c.b16 %v752, %v744
  %v929 = vpack.c.b16 %v753, %v745
  %v930 = vpack.c.b16 %v754, %v746
  %v931 = vpack.c.b16 %v755, %v747
  %v932 = vpack.c.b16 %v764, %v756
  %v933 = vpack.c.b16 %v765, %v757
  %v934 = vpack.c.b16 %v766, %v758
  %v935 = vpack.c.b16 %v767, %v759
  %v936 = vpack.c.b16 %v768, %v760
  %v937 = vpack.c.b16 %v769, %v761
  %v938 = vpack.c.b16 %v770, %v762
  %v939 = vpack.c.b16 %v771, %v763
  %v940 = vpack.c.b16 %v780, %v772
  %v941 = vpack.c.b16 %v781, %v773
  %v942 = vpack.c.b16 %v782, %v774
  %v943 = vpack.c.b16 %v783, %v775
  %v944 = vpack.c.b16 %v784, %v776
  %v945 = vpack.c.b16 %v785, %v777
  %v946 = vpack.c.b16 %v786, %v778
  %v947 = vpack.c.b16 %v787, %v779
  %v948 = vpack.c.b16 %v796, %v788
  %v949 = vpack.c.b16 %v797, %v789
  %v950 = vpack.c.b16 %v798, %v790
  %v951 = vpack.c.b16 %v799, %v791
  %v952 = vpack.c.b16 %v800, %v792
  %v953 = vpack.c.b16 %v801, %v793
  %v954 = vpack.c.b16 %v802, %v794
  %v955 = vpack.c.b16 %v803, %v795
  %v956 = vpack.c.b16 %v812, %v804
  %v957 = vpack.c.b16 %v813, %v805
  %v958 = vpack.c.b16 %v814, %v806
  %v959 = vpack.c.b16 %v815, %v807
  %v960 = vpack.c.b16 %v816, %v808
  %v961 = vpack.c.b16 %v817, %v809
  %v962 = vpack.c.b16 %v818, %v810
  %v963 = vpack.c.b16 %v819, %v811
  %v964 = vpack.c.b16 %v828, %v820
  %v965 = vpack.c.b16 %v829, %v821
  %v966 = vpack.c.b16 %v830, %v822
  %v967 = vpack.c.b16 %v831, %v823
  %v968 = vpack.c.b16 %v832, %v824
  %v969 = vpack.c.b16 %v833, %v825
  %v970 = vpack.c.b16 %v834, %v826
  %v971 = vpack.c.b16 %v835, %v827
  %v972 = vpack.c.b16 %v844, %v836
  %v973 = vpack.c.b16 %v845, %v837
  %v974 = vpack.c.b16 %v846, %v838
  %v975 = vpack.c.b16 %v847, %v839
  %v976 = vpack.c.b16 %v848, %v840
  %v977 = vpack.c.b16 %v849, %v841
  %v978 = vpack.c.b16 %v850, %v842
  %v979 = vpack.c.b16 %v851, %v843
  %1108 = vmatprep.subr.bf16.mxu0 %v853
  %1109 = vmatpush1.bf16.msra.mxu0 %v852
  %1110 = vmatprep.subr.bf16.mxu0 %v861
  %1111 = vmatpush1.bf16.msra.mxu0 %v860
  %1112 = vmatprep.subr.bf16.mxu0 %v869
  %1113 = vmatpush1.bf16.msra.mxu0 %v868
  %1114 = vmatprep.subr.bf16.mxu0 %v877
  %1115 = vmatpush1.bf16.msra.mxu0 %v876
  %1116 = vmatprep.subr.bf16.mxu0 %v885
  %1117 = vmatpush1.bf16.msra.mxu0 %v884
  %1118 = vmatprep.subr.bf16.mxu0 %v893
  %1119 = vmatpush1.bf16.msra.mxu0 %v892
  %1120 = vmatprep.subr.bf16.mxu0 %v901
  %1121 = vmatpush1.bf16.msra.mxu0 %v900
  %1122 = vmatprep.subr.bf16.mxu0 %v909
  %1123 = vmatpush1.bf16.msra.mxu0 %v908
  %1124 = vmatprep.subr.bf16.mxu0 %v917
  %1125 = vmatpush1.bf16.msra.mxu0 %v916
  %1126 = vmatprep.subr.bf16.mxu0 %v925
  %1127 = vmatpush1.bf16.msra.mxu0 %v924
  %1128 = vmatprep.subr.bf16.mxu0 %v933
  %1129 = vmatpush1.bf16.msra.mxu0 %v932
  %1130 = vmatprep.subr.bf16.mxu0 %v941
  %1131 = vmatpush1.bf16.msra.mxu0 %v940
  %1132 = vmatprep.subr.bf16.mxu0 %v949
  %1133 = vmatpush1.bf16.msra.mxu0 %v948
  %1134 = vmatprep.subr.bf16.mxu0 %v957
  %1135 = vmatpush1.bf16.msra.mxu0 %v956
  %1136 = vmatprep.subr.bf16.mxu0 %v965
  %1137 = vmatpush1.bf16.msra.mxu0 %v964
  %1138 = vmatprep.subr.bf16.mxu0 %v973
  %1139 = vmatpush1.bf16.msra.mxu0 %v972
  %1140 = vmatprep.mubr.bf16.mxu0 0
  %1141 = vmatmul.mubr.bf16.gmra.mrb[0].mxu0 0
  %v1142 = vpop.f32.mrb[0].mxu0
  %v1143 = vadd.f32 0.0, %v1142
  %v1144 = vpop.f32.mrb[0].mxu0
  %v1145 = vadd.f32 0.0, %v1144
  %v1146 = vpop.f32.mrb[0].mxu0
  %v1147 = vpop.f32.mrb[0].mxu0
  %1148 = vdwg.mxu0
  %1149 = vmatprep.subr.bf16.mxu0 %v855
  %1150 = vmatpush1.bf16.msra.mxu0 %v854
  %1151 = vmatprep.subr.bf16.mxu0 %v863
  %1152 = vmatpush1.bf16.msra.mxu0 %v862
  %1153 = vmatprep.subr.bf16.mxu0 %v871
  %1154 = vmatpush1.bf16.msra.mxu0 %v870
  %1155 = vmatprep.subr.bf16.mxu0 %v879
  %1156 = vmatpush1.bf16.msra.mxu0 %v878
  %1157 = vmatprep.subr.bf16.mxu0 %v887
  %1158 = vmatpush1.bf16.msra.mxu0 %v886
  %1159 = vmatprep.subr.bf16.mxu0 %v895
  %1160 = vmatpush1.bf16.msra.mxu0 %v894
  %1161 = vmatprep.subr.bf16.mxu0 %v903
  %1162 = vmatpush1.bf16.msra.mxu0 %v902
  %1163 = vmatprep.subr.bf16.mxu0 %v911
  %1164 = vmatpush1.bf16.msra.mxu0 %v910
  %1165 = vmatprep.subr.bf16.mxu0 %v919
  %1166 = vmatpush1.bf16.msra.mxu0 %v918
  %1167 = vmatprep.subr.bf16.mxu0 %v927
  %1168 = vmatpush1.bf16.msra.mxu0 %v926
  %1169 = vmatprep.subr.bf16.mxu0 %v935
  %1170 = vmatpush1.bf16.msra.mxu0 %v934
  %1171 = vmatprep.subr.bf16.mxu0 %v943
  %1172 = vmatpush1.bf16.msra.mxu0 %v942
  %1173 = vmatprep.subr.bf16.mxu0 %v951
  %1174 = vmatpush1.bf16.msra.mxu0 %v950
  %1175 = vmatprep.subr.bf16.mxu0 %v959
  %1176 = vmatpush1.bf16.msra.mxu0 %v958
  %1177 = vmatprep.subr.bf16.mxu0 %v967
  %1178 = vmatpush1.bf16.msra.mxu0 %v966
  %1179 = vmatprep.subr.bf16.mxu0 %v975
  %1180 = vmatpush1.bf16.msra.mxu0 %v974
  %1181 = vmatprep.mubr.bf16.mxu0 0
  %1182 = vmatmul.mubr.bf16.gmra.mrb[0].mxu0 0
  %v1183 = vpop.f32.mrb[0].mxu0
  %v1184 = vadd.f32 0.0, %v1183
  %v1185 = vpop.f32.mrb[0].mxu0
  %v1186 = vadd.f32 0.0, %v1185
  %v1187 = vpop.f32.mrb[0].mxu0
  %v1188 = vpop.f32.mrb[0].mxu0
  %1189 = vdwg.mxu0
  %1190 = vmatprep.subr.bf16.mxu0 %v857
  %1191 = vmatpush1.bf16.msra.mxu0 %v856
  %1192 = vmatprep.subr.bf16.mxu0 %v865
  %1193 = vmatpush1.bf16.msra.mxu0 %v864
  %1194 = vmatprep.subr.bf16.mxu0 %v873
  %1195 = vmatpush1.bf16.msra.mxu0 %v872
  %1196 = vmatprep.subr.bf16.mxu0 %v881
  %1197 = vmatpush1.bf16.msra.mxu0 %v880
  %1198 = vmatprep.subr.bf16.mxu0 %v889
  %1199 = vmatpush1.bf16.msra.mxu0 %v888
  %1200 = vmatprep.subr.bf16.mxu0 %v897
  %1201 = vmatpush1.bf16.msra.mxu0 %v896
  %1202 = vmatprep.subr.bf16.mxu0 %v905
  %1203 = vmatpush1.bf16.msra.mxu0 %v904
  %1204 = vmatprep.subr.bf16.mxu0 %v913
  %1205 = vmatpush1.bf16.msra.mxu0 %v912
  %1206 = vmatprep.subr.bf16.mxu0 %v921
  %1207 = vmatpush1.bf16.msra.mxu0 %v920
  %1208 = vmatprep.subr.bf16.mxu0 %v929
  %1209 = vmatpush1.bf16.msra.mxu0 %v928
  %1210 = vmatprep.subr.bf16.mxu0 %v937
  %1211 = vmatpush1.bf16.msra.mxu0 %v936
  %1212 = vmatprep.subr.bf16.mxu0 %v945
  %1213 = vmatpush1.bf16.msra.mxu0 %v944
  %1214 = vmatprep.subr.bf16.mxu0 %v953
  %1215 = vmatpush1.bf16.msra.mxu0 %v952
  %1216 = vmatprep.subr.bf16.mxu0 %v961
  %1217 = vmatpush1.bf16.msra.mxu0 %v960
  %1218 = vmatprep.subr.bf16.mxu0 %v969
  %1219 = vmatpush1.bf16.msra.mxu0 %v968
  %1220 = vmatprep.subr.bf16.mxu0 %v977
  %1221 = vmatpush1.bf16.msra.mxu0 %v976
  %1222 = vmatprep.mubr.bf16.mxu0 0
  %1223 = vmatmul.mubr.bf16.gmra.mrb[0].mxu0 0
  %v1224 = vpop.f32.mrb[0].mxu0
  %v1225 = vadd.f32 0.0, %v1224
  %v1226 = vpop.f32.mrb[0].mxu0
  %v1227 = vadd.f32 0.0, %v1226
  %v1228 = vpop.f32.mrb[0].mxu0
  %v1229 = vpop.f32.mrb[0].mxu0
  %1230 = vdwg.mxu0
  %1231 = vmatprep.subr.bf16.mxu0 %v859
  %1232 = vmatpush1.bf16.msra.mxu0 %v858
  %1233 = vmatprep.subr.bf16.mxu0 %v867
  %1234 = vmatpush1.bf16.msra.mxu0 %v866
  %1235 = vmatprep.subr.bf16.mxu0 %v875
  %1236 = vmatpush1.bf16.msra.mxu0 %v874
  %1237 = vmatprep.subr.bf16.mxu0 %v883
  %1238 = vmatpush1.bf16.msra.mxu0 %v882
  %1239 = vmatprep.subr.bf16.mxu0 %v891
  %1240 = vmatpush1.bf16.msra.mxu0 %v890
  %1241 = vmatprep.subr.bf16.mxu0 %v899
  %1242 = vmatpush1.bf16.msra.mxu0 %v898
  %1243 = vmatprep.subr.bf16.mxu0 %v907
  %1244 = vmatpush1.bf16.msra.mxu0 %v906
  %1245 = vmatprep.subr.bf16.mxu0 %v915
  %1246 = vmatpush1.bf16.msra.mxu0 %v914
  %1247 = vmatprep.subr.bf16.mxu0 %v923
  %1248 = vmatpush1.bf16.msra.mxu0 %v922
  %1249 = vmatprep.subr.bf16.mxu0 %v931
  %1250 = vmatpush1.bf16.msra.mxu0 %v930
  %1251 = vmatprep.subr.bf16.mxu0 %v939
  %1252 = vmatpush1.bf16.msra.mxu0 %v938
  %1253 = vmatprep.subr.bf16.mxu0 %v947
  %1254 = vmatpush1.bf16.msra.mxu0 %v946
  %1255 = vmatprep.subr.bf16.mxu0 %v955
  %1256 = vmatpush1.bf16.msra.mxu0 %v954
  %1257 = vmatprep.subr.bf16.mxu0 %v963
  %1258 = vmatpush1.bf16.msra.mxu0 %v962
  %1259 = vmatprep.subr.bf16.mxu0 %v971
  %1260 = vmatpush1.bf16.msra.mxu0 %v970
  %1261 = vmatprep.subr.bf16.mxu0 %v979
  %1262 = vmatpush1.bf16.msra.mxu0 %v978
  %1263 = vmatprep.mubr.bf16.mxu0 0
  %1264 = vmatmul.mubr.bf16.gmra.mrb[0].mxu0 0
  %v1265 = vpop.f32.mrb[0].mxu0
  %v1266 = vadd.f32 0.0, %v1265
  %v1267 = vpop.f32.mrb[0].mxu0
  %v1268 = vadd.f32 0.0, %v1267
  %v1269 = vpop.f32.mrb[0].mxu0
  %v1270 = vpop.f32.mrb[0].mxu0
  %1271 = vdwg.mxu0
  %v1272 = vadd.f32 %v460, %v1143
  %v1273 = vadd.f32 %v461, %v1145
  %v1274 = vadd.f32 %v462, %v1184
  %v1275 = vadd.f32 %v463, %v1186
  %v1276 = vadd.f32 %v464, %v1225
  %v1277 = vadd.f32 %v465, %v1227
  %v1278 = vadd.f32 %v466, %v1266
  %v1279 = vadd.f32 %v467, %v1268
  %v1280 = vxor.u32 %v1272, 2147483648
  %v1281 = vxor.u32 %v1273, 2147483648
  %v1282 = vmul.f32 %v1280, 1.442695
  %v1283 = vpow.pop %v1282
  %v1284 = vmul.f32 %v1281, 1.442695
  %v1285 = vpow.pop %v1284
  %v1286 = vadd.f32 %v1283, 1.0
  %v1287 = vadd.f32 %v1285, 1.0
  %v1288 = vrcp.pop %v1286
  %v1289 = vmul.f32 1.0, %v1288
  %v1290 = vrcp.pop %v1287
  %v1291 = vmul.f32 1.0, %v1290
  %v1292 = vxor.u32 %v1274, 2147483648
  %v1293 = vxor.u32 %v1275, 2147483648
  %v1294 = vmul.f32 %v1292, 1.442695
  %v1295 = vpow.pop %v1294
  %v1296 = vmul.f32 %v1293, 1.442695
  %v1297 = vpow.pop %v1296
  %v1298 = vadd.f32 %v1295, 1.0
  %v1299 = vadd.f32 %v1297, 1.0
  %v1300 = vrcp.pop %v1298
  %v1301 = vmul.f32 1.0, %v1300
  %v1302 = vrcp.pop %v1299
  %v1303 = vmul.f32 1.0, %v1302
  %v1304 = vtanh.pop %v1276
  %v1305 = vtanh.pop %v1277
  %v1306 = vxor.u32 %v1278, 2147483648
  %v1307 = vxor.u32 %v1279, 2147483648
  %v1308 = vmul.f32 %v1306, 1.442695
  %v1309 = vpow.pop %v1308
  %v1310 = vmul.f32 %v1307, 1.442695
  %v1311 = vpow.pop %v1310
  %v1312 = vadd.f32 %v1309, 1.0
  %v1313 = vadd.f32 %v1311, 1.0
  %v1314 = vrcp.pop %v1312
  %v1315 = vmul.f32 1.0, %v1314
  %v1316 = vrcp.pop %v1313
  %v1317 = vmul.f32 1.0, %v1316
  %v1318 = vmul.f32 %v1301, 0.0
  %v1319 = vmul.f32 %v1303, 0.0
  %v1320 = vmul.f32 %v1289, %v1304
  %v1321 = vmul.f32 %v1291, %v1305
  %v1322 = vadd.f32 %v1318, %v1320
  %v1323 = vadd.f32 %v1319, %v1321
  %v1324 = vtanh.pop %v1322
  %v1325 = vtanh.pop %v1323
  %v1326 = vmul.f32 %v1315, %v1324
  %v1327 = vmul.f32 %v1317, %v1325
  %vm1328 = vcmp.gt.s32.totalorder %v459, 0
  %v1329 = vsel %vm1328, 1, 0
  %v1330 = vcvt.s32.f32 %v1329
  %1332 = vset.pattern.permute.xlu0 0
  %1333 = vperm.xlu0 %1332, %v1330
  %v1334 = vpop.permute.xlu0 %1333
  %v1336 = vmul.f32 %v1326, %v1334
  %v1337 = vmul.f32 %v1327, %v1334
  %v1338 = vpack.c.bf16 %v1336, %v1336
  %v1339 = vpack.c.bf16 %v1337, %v1337
  %v1340 = vpack.c.bf16 0.0, 0.0
  %v1597 = vunpack.c.l.b16 %v161
  %v1598 = vunpack.c.h.b16 %v161
  %v1599 = vunpack.c.l.b16 %v162
  %v1600 = vunpack.c.h.b16 %v162
  %v1601 = vunpack.c.l.b16 %v163
  %v1602 = vunpack.c.h.b16 %v163
  %v1603 = vunpack.c.l.b16 %v164
  %v1604 = vunpack.c.h.b16 %v164
  %v1605 = vunpack.c.l.b16 %v165
  %v1606 = vunpack.c.h.b16 %v165
  %v1607 = vunpack.c.l.b16 %v166
  %v1608 = vunpack.c.h.b16 %v166
  %v1609 = vunpack.c.l.b16 %v167
  %v1610 = vunpack.c.h.b16 %v167
  %v1611 = vunpack.c.l.b16 %v168
  %v1612 = vunpack.c.h.b16 %v168
  %v1613 = vunpack.c.l.b16 %v169
  %v1614 = vunpack.c.h.b16 %v169
  %v1615 = vunpack.c.l.b16 %v170
  %v1616 = vunpack.c.h.b16 %v170
  %v1617 = vunpack.c.l.b16 %v171
  %v1618 = vunpack.c.h.b16 %v171
  %v1619 = vunpack.c.l.b16 %v172
  %v1620 = vunpack.c.h.b16 %v172
  %v1621 = vunpack.c.l.b16 %v173
  %v1622 = vunpack.c.h.b16 %v173
  %v1623 = vunpack.c.l.b16 %v174
  %v1624 = vunpack.c.h.b16 %v174
  %v1625 = vunpack.c.l.b16 %v175
  %v1626 = vunpack.c.h.b16 %v175
  %v1627 = vunpack.c.l.b16 %v176
  %v1628 = vunpack.c.h.b16 %v176
  %v1629 = vunpack.c.l.b16 %v177
  %v1630 = vunpack.c.h.b16 %v177
  %v1631 = vunpack.c.l.b16 %v178
  %v1632 = vunpack.c.h.b16 %v178
  %v1633 = vunpack.c.l.b16 %v179
  %v1634 = vunpack.c.h.b16 %v179
  %v1635 = vunpack.c.l.b16 %v180
  %v1636 = vunpack.c.h.b16 %v180
  %v1637 = vunpack.c.l.b16 %v181
  %v1638 = vunpack.c.h.b16 %v181
  %v1639 = vunpack.c.l.b16 %v182
  %v1640 = vunpack.c.h.b16 %v182
  %v1641 = vunpack.c.l.b16 %v183
  %v1642 = vunpack.c.h.b16 %v183
  %v1643 = vunpack.c.l.b16 %v184
  %v1644 = vunpack.c.h.b16 %v184
  %v1645 = vunpack.c.l.b16 %v185
  %v1646 = vunpack.c.h.b16 %v185
  %v1647 = vunpack.c.l.b16 %v186
  %v1648 = vunpack.c.h.b16 %v186
  %v1649 = vunpack.c.l.b16 %v187
  %v1650 = vunpack.c.h.b16 %v187
  %v1651 = vunpack.c.l.b16 %v188
  %v1652 = vunpack.c.h.b16 %v188
  %v1653 = vunpack.c.l.b16 %v189
  %v1654 = vunpack.c.h.b16 %v189
  %v1655 = vunpack.c.l.b16 %v190
  %v1656 = vunpack.c.h.b16 %v190
  %v1657 = vunpack.c.l.b16 %v191
  %v1658 = vunpack.c.h.b16 %v191
  %v1659 = vunpack.c.l.b16 %v192
  %v1660 = vunpack.c.h.b16 %v192
  %v1661 = vunpack.c.l.b16 %v193
  %v1662 = vunpack.c.h.b16 %v193
  %v1663 = vunpack.c.l.b16 %v194
  %v1664 = vunpack.c.h.b16 %v194
  %v1665 = vunpack.c.l.b16 %v195
  %v1666 = vunpack.c.h.b16 %v195
  %v1667 = vunpack.c.l.b16 %v196
  %v1668 = vunpack.c.h.b16 %v196
  %v1669 = vunpack.c.l.b16 %v197
  %v1670 = vunpack.c.h.b16 %v197
  %v1671 = vunpack.c.l.b16 %v198
  %v1672 = vunpack.c.h.b16 %v198
  %v1673 = vunpack.c.l.b16 %v199
  %v1674 = vunpack.c.h.b16 %v199
  %v1675 = vunpack.c.l.b16 %v200
  %v1676 = vunpack.c.h.b16 %v200
  %v1677 = vunpack.c.l.b16 %v201
  %v1678 = vunpack.c.h.b16 %v201
  %v1679 = vunpack.c.l.b16 %v202
  %v1680 = vunpack.c.h.b16 %v202
  %v1681 = vunpack.c.l.b16 %v203
  %v1682 = vunpack.c.h.b16 %v203
  %v1683 = vunpack.c.l.b16 %v204
  %v1684 = vunpack.c.h.b16 %v204
  %v1685 = vunpack.c.l.b16 %v205
  %v1686 = vunpack.c.h.b16 %v205
  %v1687 = vunpack.c.l.b16 %v206
  %v1688 = vunpack.c.h.b16 %v206
  %v1689 = vunpack.c.l.b16 %v207
  %v1690 = vunpack.c.h.b16 %v207
  %v1691 = vunpack.c.l.b16 %v208
  %v1692 = vunpack.c.h.b16 %v208
  %v1693 = vunpack.c.l.b16 %v209
  %v1694 = vunpack.c.h.b16 %v209
  %v1695 = vunpack.c.l.b16 %v210
  %v1696 = vunpack.c.h.b16 %v210
  %v1697 = vunpack.c.l.b16 %v211
  %v1698 = vunpack.c.h.b16 %v211
  %v1699 = vunpack.c.l.b16 %v212
  %v1700 = vunpack.c.h.b16 %v212
  %v1701 = vunpack.c.l.b16 %v213
  %v1702 = vunpack.c.h.b16 %v213
  %v1703 = vunpack.c.l.b16 %v214
  %v1704 = vunpack.c.h.b16 %v214
  %v1705 = vunpack.c.l.b16 %v215
  %v1706 = vunpack.c.h.b16 %v215
  %v1707 = vunpack.c.l.b16 %v216
  %v1708 = vunpack.c.h.b16 %v216
  %v1709 = vunpack.c.l.b16 %v217
  %v1710 = vunpack.c.h.b16 %v217
  %v1711 = vunpack.c.l.b16 %v218
  %v1712 = vunpack.c.h.b16 %v218
  %v1713 = vunpack.c.l.b16 %v219
  %v1714 = vunpack.c.h.b16 %v219
  %v1715 = vunpack.c.l.b16 %v220
  %v1716 = vunpack.c.h.b16 %v220
  %v1717 = vunpack.c.l.b16 %v221
  %v1718 = vunpack.c.h.b16 %v221
  %v1719 = vunpack.c.l.b16 %v222
  %v1720 = vunpack.c.h.b16 %v222
  %v1721 = vunpack.c.l.b16 %v223
  %v1722 = vunpack.c.h.b16 %v223
  %v1723 = vunpack.c.l.b16 %v224
  %v1724 = vunpack.c.h.b16 %v224
  %v1725 = vunpack.c.l.b16 %v225
  %v1726 = vunpack.c.h.b16 %v225
  %v1727 = vunpack.c.l.b16 %v226
  %v1728 = vunpack.c.h.b16 %v226
  %v1729 = vunpack.c.l.b16 %v227
  %v1730 = vunpack.c.h.b16 %v227
  %v1731 = vunpack.c.l.b16 %v228
  %v1732 = vunpack.c.h.b16 %v228
  %v1733 = vunpack.c.l.b16 %v229
  %v1734 = vunpack.c.h.b16 %v229
  %v1735 = vunpack.c.l.b16 %v230
  %v1736 = vunpack.c.h.b16 %v230
  %v1737 = vunpack.c.l.b16 %v231
  %v1738 = vunpack.c.h.b16 %v231
  %v1739 = vunpack.c.l.b16 %v232
  %v1740 = vunpack.c.h.b16 %v232
  %v1741 = vunpack.c.l.b16 %v233
  %v1742 = vunpack.c.h.b16 %v233
  %v1743 = vunpack.c.l.b16 %v234
  %v1744 = vunpack.c.h.b16 %v234
  %v1745 = vunpack.c.l.b16 %v235
  %v1746 = vunpack.c.h.b16 %v235
  %v1747 = vunpack.c.l.b16 %v236
  %v1748 = vunpack.c.h.b16 %v236
  %v1749 = vunpack.c.l.b16 %v237
  %v1750 = vunpack.c.h.b16 %v237
  %v1751 = vunpack.c.l.b16 %v238
  %v1752 = vunpack.c.h.b16 %v238
  %v1753 = vunpack.c.l.b16 %v239
  %v1754 = vunpack.c.h.b16 %v239
  %v1755 = vunpack.c.l.b16 %v240
  %v1756 = vunpack.c.h.b16 %v240
  %v1757 = vunpack.c.l.b16 %v241
  %v1758 = vunpack.c.h.b16 %v241
  %v1759 = vunpack.c.l.b16 %v242
  %v1760 = vunpack.c.h.b16 %v242
  %v1761 = vunpack.c.l.b16 %v243
  %v1762 = vunpack.c.h.b16 %v243
  %v1763 = vunpack.c.l.b16 %v244
  %v1764 = vunpack.c.h.b16 %v244
  %v1765 = vunpack.c.l.b16 %v245
  %v1766 = vunpack.c.h.b16 %v245
  %v1767 = vunpack.c.l.b16 %v246
  %v1768 = vunpack.c.h.b16 %v246
  %v1769 = vunpack.c.l.b16 %v247
  %v1770 = vunpack.c.h.b16 %v247
  %v1771 = vunpack.c.l.b16 %v248
  %v1772 = vunpack.c.h.b16 %v248
  %v1773 = vunpack.c.l.b16 %v249
  %v1774 = vunpack.c.h.b16 %v249
  %v1775 = vunpack.c.l.b16 %v250
  %v1776 = vunpack.c.h.b16 %v250
  %v1777 = vunpack.c.l.b16 %v251
  %v1778 = vunpack.c.h.b16 %v251
  %v1779 = vunpack.c.l.b16 %v252
  %v1780 = vunpack.c.h.b16 %v252
  %v1781 = vunpack.c.l.b16 %v253
  %v1782 = vunpack.c.h.b16 %v253
  %v1783 = vunpack.c.l.b16 %v254
  %v1784 = vunpack.c.h.b16 %v254
  %v1785 = vunpack.c.l.b16 %v255
  %v1786 = vunpack.c.h.b16 %v255
  %v1787 = vunpack.c.l.b16 %v256
  %v1788 = vunpack.c.h.b16 %v256
  %v1789 = vunpack.c.l.b16 %v257
  %v1790 = vunpack.c.h.b16 %v257
  %v1791 = vunpack.c.l.b16 %v258
  %v1792 = vunpack.c.h.b16 %v258
  %v1793 = vunpack.c.l.b16 %v259
  %v1794 = vunpack.c.h.b16 %v259
  %v1795 = vunpack.c.l.b16 %v260
  %v1796 = vunpack.c.h.b16 %v260
  %v1797 = vunpack.c.l.b16 %v261
  %v1798 = vunpack.c.h.b16 %v261
  %v1799 = vunpack.c.l.b16 %v262
  %v1800 = vunpack.c.h.b16 %v262
  %v1801 = vunpack.c.l.b16 %v263
  %v1802 = vunpack.c.h.b16 %v263
  %v1803 = vunpack.c.l.b16 %v264
  %v1804 = vunpack.c.h.b16 %v264
  %v1805 = vunpack.c.l.b16 %v265
  %v1806 = vunpack.c.h.b16 %v265
  %v1807 = vunpack.c.l.b16 %v266
  %v1808 = vunpack.c.h.b16 %v266
  %v1809 = vunpack.c.l.b16 %v267
  %v1810 = vunpack.c.h.b16 %v267
  %v1811 = vunpack.c.l.b16 %v268
  %v1812 = vunpack.c.h.b16 %v268
  %v1813 = vunpack.c.l.b16 %v269
  %v1814 = vunpack.c.h.b16 %v269
  %v1815 = vunpack.c.l.b16 %v270
  %v1816 = vunpack.c.h.b16 %v270
  %v1817 = vunpack.c.l.b16 %v271
  %v1818 = vunpack.c.h.b16 %v271
  %v1819 = vunpack.c.l.b16 %v272
  %v1820 = vunpack.c.h.b16 %v272
  %v1821 = vunpack.c.l.b16 %v273
  %v1822 = vunpack.c.h.b16 %v273
  %v1823 = vunpack.c.l.b16 %v274
  %v1824 = vunpack.c.h.b16 %v274
  %v1825 = vunpack.c.l.b16 %v275
  %v1826 = vunpack.c.h.b16 %v275
  %v1827 = vunpack.c.l.b16 %v276
  %v1828 = vunpack.c.h.b16 %v276
  %v1829 = vunpack.c.l.b16 %v277
  %v1830 = vunpack.c.h.b16 %v277
  %v1831 = vunpack.c.l.b16 %v278
  %v1832 = vunpack.c.h.b16 %v278
  %v1833 = vunpack.c.l.b16 %v279
  %v1834 = vunpack.c.h.b16 %v279
  %v1835 = vunpack.c.l.b16 %v280
  %v1836 = vunpack.c.h.b16 %v280
  %v1837 = vunpack.c.l.b16 %v281
  %v1838 = vunpack.c.h.b16 %v281
  %v1839 = vunpack.c.l.b16 %v282
  %v1840 = vunpack.c.h.b16 %v282
  %v1841 = vunpack.c.l.b16 %v283
  %v1842 = vunpack.c.h.b16 %v283
  %v1843 = vunpack.c.l.b16 %v284
  %v1844 = vunpack.c.h.b16 %v284
  %v1845 = vunpack.c.l.b16 %v285
  %v1846 = vunpack.c.h.b16 %v285
  %v1847 = vunpack.c.l.b16 %v286
  %v1848 = vunpack.c.h.b16 %v286
  %v1849 = vunpack.c.l.b16 %v287
  %v1850 = vunpack.c.h.b16 %v287
  %v1851 = vunpack.c.l.b16 %v288
  %v1852 = vunpack.c.h.b16 %v288
  %v1853 = vunpack.c.l.b16 %v289
  %v1854 = vunpack.c.h.b16 %v289
  %v1855 = vunpack.c.l.b16 %v290
  %v1856 = vunpack.c.h.b16 %v290
  %v1857 = vunpack.c.l.b16 %v291
  %v1858 = vunpack.c.h.b16 %v291
  %v1859 = vunpack.c.l.b16 %v292
  %v1860 = vunpack.c.h.b16 %v292
  %v1861 = vunpack.c.l.b16 %v293
  %v1862 = vunpack.c.h.b16 %v293
  %v1863 = vunpack.c.l.b16 %v294
  %v1864 = vunpack.c.h.b16 %v294
  %v1865 = vunpack.c.l.b16 %v295
  %v1866 = vunpack.c.h.b16 %v295
  %v1867 = vunpack.c.l.b16 %v296
  %v1868 = vunpack.c.h.b16 %v296
  %v1869 = vunpack.c.l.b16 %v297
  %v1870 = vunpack.c.h.b16 %v297
  %v1871 = vunpack.c.l.b16 %v298
  %v1872 = vunpack.c.h.b16 %v298
  %v1873 = vunpack.c.l.b16 %v299
  %v1874 = vunpack.c.h.b16 %v299
  %v1875 = vunpack.c.l.b16 %v300
  %v1876 = vunpack.c.h.b16 %v300
  %v1877 = vunpack.c.l.b16 %v301
  %v1878 = vunpack.c.h.b16 %v301
  %v1879 = vunpack.c.l.b16 %v302
  %v1880 = vunpack.c.h.b16 %v302
  %v1881 = vunpack.c.l.b16 %v303
  %v1882 = vunpack.c.h.b16 %v303
  %v1883 = vunpack.c.l.b16 %v304
  %v1884 = vunpack.c.h.b16 %v304
  %v1885 = vunpack.c.l.b16 %v305
  %v1886 = vunpack.c.h.b16 %v305
  %v1887 = vunpack.c.l.b16 %v306
  %v1888 = vunpack.c.h.b16 %v306
  %v1889 = vunpack.c.l.b16 %v307
  %v1890 = vunpack.c.h.b16 %v307
  %v1891 = vunpack.c.l.b16 %v308
  %v1892 = vunpack.c.h.b16 %v308
  %v1893 = vunpack.c.l.b16 %v309
  %v1894 = vunpack.c.h.b16 %v309
  %v1895 = vunpack.c.l.b16 %v310
  %v1896 = vunpack.c.h.b16 %v310
  %v1897 = vunpack.c.l.b16 %v311
  %v1898 = vunpack.c.h.b16 %v311
  %v1899 = vunpack.c.l.b16 %v312
  %v1900 = vunpack.c.h.b16 %v312
  %v1901 = vunpack.c.l.b16 %v313
  %v1902 = vunpack.c.h.b16 %v313
  %v1903 = vunpack.c.l.b16 %v314
  %v1904 = vunpack.c.h.b16 %v314
  %v1905 = vunpack.c.l.b16 %v315
  %v1906 = vunpack.c.h.b16 %v315
  %v1907 = vunpack.c.l.b16 %v316
  %v1908 = vunpack.c.h.b16 %v316
  %v1909 = vunpack.c.l.b16 %v317
  %v1910 = vunpack.c.h.b16 %v317
  %v1911 = vunpack.c.l.b16 %v318
  %v1912 = vunpack.c.h.b16 %v318
  %v1913 = vunpack.c.l.b16 %v319
  %v1914 = vunpack.c.h.b16 %v319
  %v1915 = vunpack.c.l.b16 %v320
  %v1916 = vunpack.c.h.b16 %v320
  %v1917 = vunpack.c.l.b16 %v321
  %v1918 = vunpack.c.h.b16 %v321
  %v1919 = vunpack.c.l.b16 %v322
  %v1920 = vunpack.c.h.b16 %v322
  %v1921 = vunpack.c.l.b16 %v323
  %v1922 = vunpack.c.h.b16 %v323
  %v1923 = vunpack.c.l.b16 %v324
  %v1924 = vunpack.c.h.b16 %v324
  %v1925 = vunpack.c.l.b16 %v325
  %v1926 = vunpack.c.h.b16 %v325
  %v1927 = vunpack.c.l.b16 %v326
  %v1928 = vunpack.c.h.b16 %v326
  %v1929 = vunpack.c.l.b16 %v327
  %v1930 = vunpack.c.h.b16 %v327
  %v1931 = vunpack.c.l.b16 %v328
  %v1932 = vunpack.c.h.b16 %v328
  %v1933 = vunpack.c.l.b16 %v329
  %v1934 = vunpack.c.h.b16 %v329
  %v1935 = vunpack.c.l.b16 %v330
  %v1936 = vunpack.c.h.b16 %v330
  %v1937 = vunpack.c.l.b16 %v331
  %v1938 = vunpack.c.h.b16 %v331
  %v1939 = vunpack.c.l.b16 %v332
  %v1940 = vunpack.c.h.b16 %v332
  %v1941 = vunpack.c.l.b16 %v333
  %v1942 = vunpack.c.h.b16 %v333
  %v1943 = vunpack.c.l.b16 %v334
  %v1944 = vunpack.c.h.b16 %v334
  %v1945 = vunpack.c.l.b16 %v335
  %v1946 = vunpack.c.h.b16 %v335
  %v1947 = vunpack.c.l.b16 %v336
  %v1948 = vunpack.c.h.b16 %v336
  %v1949 = vunpack.c.l.b16 %v337
  %v1950 = vunpack.c.h.b16 %v337
  %v1951 = vunpack.c.l.b16 %v338
  %v1952 = vunpack.c.h.b16 %v338
  %v1953 = vunpack.c.l.b16 %v339
  %v1954 = vunpack.c.h.b16 %v339
  %v1955 = vunpack.c.l.b16 %v340
  %v1956 = vunpack.c.h.b16 %v340
  %v1957 = vunpack.c.l.b16 %v341
  %v1958 = vunpack.c.h.b16 %v341
  %v1959 = vunpack.c.l.b16 %v342
  %v1960 = vunpack.c.h.b16 %v342
  %v1961 = vunpack.c.l.b16 %v343
  %v1962 = vunpack.c.h.b16 %v343
  %v1963 = vunpack.c.l.b16 %v344
  %v1964 = vunpack.c.h.b16 %v344
  %v1965 = vunpack.c.l.b16 %v345
  %v1966 = vunpack.c.h.b16 %v345
  %v1967 = vunpack.c.l.b16 %v346
  %v1968 = vunpack.c.h.b16 %v346
  %v1969 = vunpack.c.l.b16 %v347
  %v1970 = vunpack.c.h.b16 %v347
  %v1971 = vunpack.c.l.b16 %v348
  %v1972 = vunpack.c.h.b16 %v348
  %v1973 = vunpack.c.l.b16 %v349
  %v1974 = vunpack.c.h.b16 %v349
  %v1975 = vunpack.c.l.b16 %v350
  %v1976 = vunpack.c.h.b16 %v350
  %v1977 = vunpack.c.l.b16 %v351
  %v1978 = vunpack.c.h.b16 %v351
  %v1979 = vunpack.c.l.b16 %v352
  %v1980 = vunpack.c.h.b16 %v352
  %v1981 = vunpack.c.l.b16 %v353
  %v1982 = vunpack.c.h.b16 %v353
  %v1983 = vunpack.c.l.b16 %v354
  %v1984 = vunpack.c.h.b16 %v354
  %v1985 = vunpack.c.l.b16 %v355
  %v1986 = vunpack.c.h.b16 %v355
  %v1987 = vunpack.c.l.b16 %v356
  %v1988 = vunpack.c.h.b16 %v356
  %v1989 = vunpack.c.l.b16 %v357
  %v1990 = vunpack.c.h.b16 %v357
  %v1991 = vunpack.c.l.b16 %v358
  %v1992 = vunpack.c.h.b16 %v358
  %v1993 = vunpack.c.l.b16 %v359
  %v1994 = vunpack.c.h.b16 %v359
  %v1995 = vunpack.c.l.b16 %v360
  %v1996 = vunpack.c.h.b16 %v360
  %v1997 = vunpack.c.l.b16 %v361
  %v1998 = vunpack.c.h.b16 %v361
  %v1999 = vunpack.c.l.b16 %v362
  %v2000 = vunpack.c.h.b16 %v362
  %v2001 = vunpack.c.l.b16 %v363
  %v2002 = vunpack.c.h.b16 %v363
  %v2003 = vunpack.c.l.b16 %v364
  %v2004 = vunpack.c.h.b16 %v364
  %v2005 = vunpack.c.l.b16 %v365
  %v2006 = vunpack.c.h.b16 %v365
  %v2007 = vunpack.c.l.b16 %v366
  %v2008 = vunpack.c.h.b16 %v366
  %v2009 = vunpack.c.l.b16 %v367
  %v2010 = vunpack.c.h.b16 %v367
  %v2011 = vunpack.c.l.b16 %v368
  %v2012 = vunpack.c.h.b16 %v368
  %v2013 = vunpack.c.l.b16 %v369
  %v2014 = vunpack.c.h.b16 %v369
  %v2015 = vunpack.c.l.b16 %v370
  %v2016 = vunpack.c.h.b16 %v370
  %v2017 = vunpack.c.l.b16 %v371
  %v2018 = vunpack.c.h.b16 %v371
  %v2019 = vunpack.c.l.b16 %v372
  %v2020 = vunpack.c.h.b16 %v372
  %v2021 = vunpack.c.l.b16 %v373
  %v2022 = vunpack.c.h.b16 %v373
  %v2023 = vunpack.c.l.b16 %v374
  %v2024 = vunpack.c.h.b16 %v374
  %v2025 = vunpack.c.l.b16 %v375
  %v2026 = vunpack.c.h.b16 %v375
  %v2027 = vunpack.c.l.b16 %v376
  %v2028 = vunpack.c.h.b16 %v376
  %v2029 = vunpack.c.l.b16 %v377
  %v2030 = vunpack.c.h.b16 %v377
  %v2031 = vunpack.c.l.b16 %v378
  %v2032 = vunpack.c.h.b16 %v378
  %v2033 = vunpack.c.l.b16 %v379
  %v2034 = vunpack.c.h.b16 %v379
  %v2035 = vunpack.c.l.b16 %v380
  %v2036 = vunpack.c.h.b16 %v380
  %v2037 = vunpack.c.l.b16 %v381
  %v2038 = vunpack.c.h.b16 %v381
  %v2039 = vunpack.c.l.b16 %v382
  %v2040 = vunpack.c.h.b16 %v382
  %v2041 = vunpack.c.l.b16 %v383
  %v2042 = vunpack.c.h.b16 %v383
  %v2043 = vunpack.c.l.b16 %v384
  %v2044 = vunpack.c.h.b16 %v384
  %v2045 = vunpack.c.l.b16 %v385
  %v2046 = vunpack.c.h.b16 %v385
  %v2047 = vunpack.c.l.b16 %v386
  %v2048 = vunpack.c.h.b16 %v386
  %v2049 = vunpack.c.l.b16 %v387
  %v2050 = vunpack.c.h.b16 %v387
  %v2051 = vunpack.c.l.b16 %v388
  %v2052 = vunpack.c.h.b16 %v388
  %v2053 = vunpack.c.l.b16 %v389
  %v2054 = vunpack.c.h.b16 %v389
  %v2055 = vunpack.c.l.b16 %v390
  %v2056 = vunpack.c.h.b16 %v390
  %v2057 = vunpack.c.l.b16 %v391
  %v2058 = vunpack.c.h.b16 %v391
  %v2059 = vunpack.c.l.b16 %v392
  %v2060 = vunpack.c.h.b16 %v392
  %v2061 = vunpack.c.l.b16 %v393
  %v2062 = vunpack.c.h.b16 %v393
  %v2063 = vunpack.c.l.b16 %v394
  %v2064 = vunpack.c.h.b16 %v394
  %v2065 = vunpack.c.l.b16 %v395
  %v2066 = vunpack.c.h.b16 %v395
  %v2067 = vunpack.c.l.b16 %v396
  %v2068 = vunpack.c.h.b16 %v396
  %v2069 = vunpack.c.l.b16 %v397
  %v2070 = vunpack.c.h.b16 %v397
  %v2071 = vunpack.c.l.b16 %v398
  %v2072 = vunpack.c.h.b16 %v398
  %v2073 = vunpack.c.l.b16 %v399
  %v2074 = vunpack.c.h.b16 %v399
  %v2075 = vunpack.c.l.b16 %v400
  %v2076 = vunpack.c.h.b16 %v400
  %v2077 = vunpack.c.l.b16 %v401
  %v2078 = vunpack.c.h.b16 %v401
  %v2079 = vunpack.c.l.b16 %v402
  %v2080 = vunpack.c.h.b16 %v402
  %v2081 = vunpack.c.l.b16 %v403
  %v2082 = vunpack.c.h.b16 %v403
  %v2083 = vunpack.c.l.b16 %v404
  %v2084 = vunpack.c.h.b16 %v404
  %v2085 = vunpack.c.l.b16 %v405
  %v2086 = vunpack.c.h.b16 %v405
  %v2087 = vunpack.c.l.b16 %v406
  %v2088 = vunpack.c.h.b16 %v406
  %v2089 = vunpack.c.l.b16 %v407
  %v2090 = vunpack.c.h.b16 %v407
  %v2091 = vunpack.c.l.b16 %v408
  %v2092 = vunpack.c.h.b16 %v408
  %v2093 = vunpack.c.l.b16 %v409
  %v2094 = vunpack.c.h.b16 %v409
  %v2095 = vunpack.c.l.b16 %v410
  %v2096 = vunpack.c.h.b16 %v410
  %v2097 = vunpack.c.l.b16 %v411
  %v2098 = vunpack.c.h.b16 %v411
  %v2099 = vunpack.c.l.b16 %v412
  %v2100 = vunpack.c.h.b16 %v412
  %v2101 = vunpack.c.l.b16 %v413
  %v2102 = vunpack.c.h.b16 %v413
  %v2103 = vunpack.c.l.b16 %v414
  %v2104 = vunpack.c.h.b16 %v414
  %v2105 = vunpack.c.l.b16 %v415
  %v2106 = vunpack.c.h.b16 %v415
  %v2107 = vunpack.c.l.b16 %v416
  %v2108 = vunpack.c.h.b16 %v416
  %v2109 = vpack.c.b16 %v1605, %v1597
  %v2110 = vpack.c.b16 %v1606, %v1598
  %v2111 = vpack.c.b16 %v1607, %v1599
  %v2112 = vpack.c.b16 %v1608, %v1600
  %v2113 = vpack.c.b16 %v1609, %v1601
  %v2114 = vpack.c.b16 %v1610, %v1602
  %v2115 = vpack.c.b16 %v1611, %v1603
  %v2116 = vpack.c.b16 %v1612, %v1604
  %v2117 = vpack.c.b16 %v1621, %v1613
  %v2118 = vpack.c.b16 %v1622, %v1614
  %v2119 = vpack.c.b16 %v1623, %v1615
  %v2120 = vpack.c.b16 %v1624, %v1616
  %v2121 = vpack.c.b16 %v1625, %v1617
  %v2122 = vpack.c.b16 %v1626, %v1618
  %v2123 = vpack.c.b16 %v1627, %v1619
  %v2124 = vpack.c.b16 %v1628, %v1620
  %v2125 = vpack.c.b16 %v1637, %v1629
  %v2126 = vpack.c.b16 %v1638, %v1630
  %v2127 = vpack.c.b16 %v1639, %v1631
  %v2128 = vpack.c.b16 %v1640, %v1632
  %v2129 = vpack.c.b16 %v1641, %v1633
  %v2130 = vpack.c.b16 %v1642, %v1634
  %v2131 = vpack.c.b16 %v1643, %v1635
  %v2132 = vpack.c.b16 %v1644, %v1636
  %v2133 = vpack.c.b16 %v1653, %v1645
  %v2134 = vpack.c.b16 %v1654, %v1646
  %v2135 = vpack.c.b16 %v1655, %v1647
  %v2136 = vpack.c.b16 %v1656, %v1648
  %v2137 = vpack.c.b16 %v1657, %v1649
  %v2138 = vpack.c.b16 %v1658, %v1650
  %v2139 = vpack.c.b16 %v1659, %v1651
  %v2140 = vpack.c.b16 %v1660, %v1652
  %v2141 = vpack.c.b16 %v1669, %v1661
  %v2142 = vpack.c.b16 %v1670, %v1662
  %v2143 = vpack.c.b16 %v1671, %v1663
  %v2144 = vpack.c.b16 %v1672, %v1664
  %v2145 = vpack.c.b16 %v1673, %v1665
  %v2146 = vpack.c.b16 %v1674, %v1666
  %v2147 = vpack.c.b16 %v1675, %v1667
  %v2148 = vpack.c.b16 %v1676, %v1668
  %v2149 = vpack.c.b16 %v1685, %v1677
  %v2150 = vpack.c.b16 %v1686, %v1678
  %v2151 = vpack.c.b16 %v1687, %v1679
  %v2152 = vpack.c.b16 %v1688, %v1680
  %v2153 = vpack.c.b16 %v1689, %v1681
  %v2154 = vpack.c.b16 %v1690, %v1682
  %v2155 = vpack.c.b16 %v1691, %v1683
  %v2156 = vpack.c.b16 %v1692, %v1684
  %v2157 = vpack.c.b16 %v1701, %v1693
  %v2158 = vpack.c.b16 %v1702, %v1694
  %v2159 = vpack.c.b16 %v1703, %v1695
  %v2160 = vpack.c.b16 %v1704, %v1696
  %v2161 = vpack.c.b16 %v1705, %v1697
  %v2162 = vpack.c.b16 %v1706, %v1698
  %v2163 = vpack.c.b16 %v1707, %v1699
  %v2164 = vpack.c.b16 %v1708, %v1700
  %v2165 = vpack.c.b16 %v1717, %v1709
  %v2166 = vpack.c.b16 %v1718, %v1710
  %v2167 = vpack.c.b16 %v1719, %v1711
  %v2168 = vpack.c.b16 %v1720, %v1712
  %v2169 = vpack.c.b16 %v1721, %v1713
  %v2170 = vpack.c.b16 %v1722, %v1714
  %v2171 = vpack.c.b16 %v1723, %v1715
  %v2172 = vpack.c.b16 %v1724, %v1716
  %v2173 = vpack.c.b16 %v1733, %v1725
  %v2174 = vpack.c.b16 %v1734, %v1726
  %v2175 = vpack.c.b16 %v1735, %v1727
  %v2176 = vpack.c.b16 %v1736, %v1728
  %v2177 = vpack.c.b16 %v1737, %v1729
  %v2178 = vpack.c.b16 %v1738, %v1730
  %v2179 = vpack.c.b16 %v1739, %v1731
  %v2180 = vpack.c.b16 %v1740, %v1732
  %v2181 = vpack.c.b16 %v1749, %v1741
  %v2182 = vpack.c.b16 %v1750, %v1742
  %v2183 = vpack.c.b16 %v1751, %v1743
  %v2184 = vpack.c.b16 %v1752, %v1744
  %v2185 = vpack.c.b16 %v1753, %v1745
  %v2186 = vpack.c.b16 %v1754, %v1746
  %v2187 = vpack.c.b16 %v1755, %v1747
  %v2188 = vpack.c.b16 %v1756, %v1748
  %v2189 = vpack.c.b16 %v1765, %v1757
  %v2190 = vpack.c.b16 %v1766, %v1758
  %v2191 = vpack.c.b16 %v1767, %v1759
  %v2192 = vpack.c.b16 %v1768, %v1760
  %v2193 = vpack.c.b16 %v1769, %v1761
  %v2194 = vpack.c.b16 %v1770, %v1762
  %v2195 = vpack.c.b16 %v1771, %v1763
  %v2196 = vpack.c.b16 %v1772, %v1764
  %v2197 = vpack.c.b16 %v1781, %v1773
  %v2198 = vpack.c.b16 %v1782, %v1774
  %v2199 = vpack.c.b16 %v1783, %v1775
  %v2200 = vpack.c.b16 %v1784, %v1776
  %v2201 = vpack.c.b16 %v1785, %v1777
  %v2202 = vpack.c.b16 %v1786, %v1778
  %v2203 = vpack.c.b16 %v1787, %v1779
  %v2204 = vpack.c.b16 %v1788, %v1780
  %v2205 = vpack.c.b16 %v1797, %v1789
  %v2206 = vpack.c.b16 %v1798, %v1790
  %v2207 = vpack.c.b16 %v1799, %v1791
  %v2208 = vpack.c.b16 %v1800, %v1792
  %v2209 = vpack.c.b16 %v1801, %v1793
  %v2210 = vpack.c.b16 %v1802, %v1794
  %v2211 = vpack.c.b16 %v1803, %v1795
  %v2212 = vpack.c.b16 %v1804, %v1796
  %v2213 = vpack.c.b16 %v1813, %v1805
  %v2214 = vpack.c.b16 %v1814, %v1806
  %v2215 = vpack.c.b16 %v1815, %v1807
  %v2216 = vpack.c.b16 %v1816, %v1808
  %v2217 = vpack.c.b16 %v1817, %v1809
  %v2218 = vpack.c.b16 %v1818, %v1810
  %v2219 = vpack.c.b16 %v1819, %v1811
  %v2220 = vpack.c.b16 %v1820, %v1812
  %v2221 = vpack.c.b16 %v1829, %v1821
  %v2222 = vpack.c.b16 %v1830, %v1822
  %v2223 = vpack.c.b16 %v1831, %v1823
  %v2224 = vpack.c.b16 %v1832, %v1824
  %v2225 = vpack.c.b16 %v1833, %v1825
  %v2226 = vpack.c.b16 %v1834, %v1826
  %v2227 = vpack.c.b16 %v1835, %v1827
  %v2228 = vpack.c.b16 %v1836, %v1828
  %v2229 = vpack.c.b16 %v1845, %v1837
  %v2230 = vpack.c.b16 %v1846, %v1838
  %v2231 = vpack.c.b16 %v1847, %v1839
  %v2232 = vpack.c.b16 %v1848, %v1840
  %v2233 = vpack.c.b16 %v1849, %v1841
  %v2234 = vpack.c.b16 %v1850, %v1842
  %v2235 = vpack.c.b16 %v1851, %v1843
  %v2236 = vpack.c.b16 %v1852, %v1844
  %v2237 = vpack.c.b16 %v1861, %v1853
  %v2238 = vpack.c.b16 %v1862, %v1854
  %v2239 = vpack.c.b16 %v1863, %v1855
  %v2240 = vpack.c.b16 %v1864, %v1856
  %v2241 = vpack.c.b16 %v1865, %v1857
  %v2242 = vpack.c.b16 %v1866, %v1858
  %v2243 = vpack.c.b16 %v1867, %v1859
  %v2244 = vpack.c.b16 %v1868, %v1860
  %v2245 = vpack.c.b16 %v1877, %v1869
  %v2246 = vpack.c.b16 %v1878, %v1870
  %v2247 = vpack.c.b16 %v1879, %v1871
  %v2248 = vpack.c.b16 %v1880, %v1872
  %v2249 = vpack.c.b16 %v1881, %v1873
  %v2250 = vpack.c.b16 %v1882, %v1874
  %v2251 = vpack.c.b16 %v1883, %v1875
  %v2252 = vpack.c.b16 %v1884, %v1876
  %v2253 = vpack.c.b16 %v1893, %v1885
  %v2254 = vpack.c.b16 %v1894, %v1886
  %v2255 = vpack.c.b16 %v1895, %v1887
  %v2256 = vpack.c.b16 %v1896, %v1888
  %v2257 = vpack.c.b16 %v1897, %v1889
  %v2258 = vpack.c.b16 %v1898, %v1890
  %v2259 = vpack.c.b16 %v1899, %v1891
  %v2260 = vpack.c.b16 %v1900, %v1892
  %v2261 = vpack.c.b16 %v1909, %v1901
  %v2262 = vpack.c.b16 %v1910, %v1902
  %v2263 = vpack.c.b16 %v1911, %v1903
  %v2264 = vpack.c.b16 %v1912, %v1904
  %v2265 = vpack.c.b16 %v1913, %v1905
  %v2266 = vpack.c.b16 %v1914, %v1906
  %v2267 = vpack.c.b16 %v1915, %v1907
  %v2268 = vpack.c.b16 %v1916, %v1908
  %v2269 = vpack.c.b16 %v1925, %v1917
  %v2270 = vpack.c.b16 %v1926, %v1918
  %v2271 = vpack.c.b16 %v1927, %v1919
  %v2272 = vpack.c.b16 %v1928, %v1920
  %v2273 = vpack.c.b16 %v1929, %v1921
  %v2274 = vpack.c.b16 %v1930, %v1922
  %v2275 = vpack.c.b16 %v1931, %v1923
  %v2276 = vpack.c.b16 %v1932, %v1924
  %v2277 = vpack.c.b16 %v1941, %v1933
  %v2278 = vpack.c.b16 %v1942, %v1934
  %v2279 = vpack.c.b16 %v1943, %v1935
  %v2280 = vpack.c.b16 %v1944, %v1936
  %v2281 = vpack.c.b16 %v1945, %v1937
  %v2282 = vpack.c.b16 %v1946, %v1938
  %v2283 = vpack.c.b16 %v1947, %v1939
  %v2284 = vpack.c.b16 %v1948, %v1940
  %v2285 = vpack.c.b16 %v1957, %v1949
  %v2286 = vpack.c.b16 %v1958, %v1950
  %v2287 = vpack.c.b16 %v1959, %v1951
  %v2288 = vpack.c.b16 %v1960, %v1952
  %v2289 = vpack.c.b16 %v1961, %v1953
  %v2290 = vpack.c.b16 %v1962, %v1954
  %v2291 = vpack.c.b16 %v1963, %v1955
  %v2292 = vpack.c.b16 %v1964, %v1956
  %v2293 = vpack.c.b16 %v1973, %v1965
  %v2294 = vpack.c.b16 %v1974, %v1966
  %v2295 = vpack.c.b16 %v1975, %v1967
  %v2296 = vpack.c.b16 %v1976, %v1968
  %v2297 = vpack.c.b16 %v1977, %v1969
  %v2298 = vpack.c.b16 %v1978, %v1970
  %v2299 = vpack.c.b16 %v1979, %v1971
  %v2300 = vpack.c.b16 %v1980, %v1972
  %v2301 = vpack.c.b16 %v1989, %v1981
  %v2302 = vpack.c.b16 %v1990, %v1982
  %v2303 = vpack.c.b16 %v1991, %v1983
  %v2304 = vpack.c.b16 %v1992, %v1984
  %v2305 = vpack.c.b16 %v1993, %v1985
  %v2306 = vpack.c.b16 %v1994, %v1986
  %v2307 = vpack.c.b16 %v1995, %v1987
  %v2308 = vpack.c.b16 %v1996, %v1988
  %v2309 = vpack.c.b16 %v2005, %v1997
  %v2310 = vpack.c.b16 %v2006, %v1998
  %v2311 = vpack.c.b16 %v2007, %v1999
  %v2312 = vpack.c.b16 %v2008, %v2000
  %v2313 = vpack.c.b16 %v2009, %v2001
  %v2314 = vpack.c.b16 %v2010, %v2002
  %v2315 = vpack.c.b16 %v2011, %v2003
  %v2316 = vpack.c.b16 %v2012, %v2004
  %v2317 = vpack.c.b16 %v2021, %v2013
  %v2318 = vpack.c.b16 %v2022, %v2014
  %v2319 = vpack.c.b16 %v2023, %v2015
  %v2320 = vpack.c.b16 %v2024, %v2016
  %v2321 = vpack.c.b16 %v2025, %v2017
  %v2322 = vpack.c.b16 %v2026, %v2018
  %v2323 = vpack.c.b16 %v2027, %v2019
  %v2324 = vpack.c.b16 %v2028, %v2020
  %v2325 = vpack.c.b16 %v2037, %v2029
  %v2326 = vpack.c.b16 %v2038, %v2030
  %v2327 = vpack.c.b16 %v2039, %v2031
  %v2328 = vpack.c.b16 %v2040, %v2032
  %v2329 = vpack.c.b16 %v2041, %v2033
  %v2330 = vpack.c.b16 %v2042, %v2034
  %v2331 = vpack.c.b16 %v2043, %v2035
  %v2332 = vpack.c.b16 %v2044, %v2036
  %v2333 = vpack.c.b16 %v2053, %v2045
  %v2334 = vpack.c.b16 %v2054, %v2046
  %v2335 = vpack.c.b16 %v2055, %v2047
  %v2336 = vpack.c.b16 %v2056, %v2048
  %v2337 = vpack.c.b16 %v2057, %v2049
  %v2338 = vpack.c.b16 %v2058, %v2050
  %v2339 = vpack.c.b16 %v2059, %v2051
  %v2340 = vpack.c.b16 %v2060, %v2052
  %v2341 = vpack.c.b16 %v2069, %v2061
  %v2342 = vpack.c.b16 %v2070, %v2062
  %v2343 = vpack.c.b16 %v2071, %v2063
  %v2344 = vpack.c.b16 %v2072, %v2064
  %v2345 = vpack.c.b16 %v2073, %v2065
  %v2346 = vpack.c.b16 %v2074, %v2066
  %v2347 = vpack.c.b16 %v2075, %v2067
  %v2348 = vpack.c.b16 %v2076, %v2068
  %v2349 = vpack.c.b16 %v2085, %v2077
  %v2350 = vpack.c.b16 %v2086, %v2078
  %v2351 = vpack.c.b16 %v2087, %v2079
  %v2352 = vpack.c.b16 %v2088, %v2080
  %v2353 = vpack.c.b16 %v2089, %v2081
  %v2354 = vpack.c.b16 %v2090, %v2082
  %v2355 = vpack.c.b16 %v2091, %v2083
  %v2356 = vpack.c.b16 %v2092, %v2084
  %v2357 = vpack.c.b16 %v2101, %v2093
  %v2358 = vpack.c.b16 %v2102, %v2094
  %v2359 = vpack.c.b16 %v2103, %v2095
  %v2360 = vpack.c.b16 %v2104, %v2096
  %v2361 = vpack.c.b16 %v2105, %v2097
  %v2362 = vpack.c.b16 %v2106, %v2098
  %v2363 = vpack.c.b16 %v2107, %v2099
  %v2364 = vpack.c.b16 %v2108, %v2100
  %2621 = vmatprep.subr.bf16.mxu0 %v2110
  %2622 = vmatpush1.bf16.msra.mxu0 %v2109
  %2623 = vmatprep.subr.bf16.mxu0 %v2118
  %2624 = vmatpush1.bf16.msra.mxu0 %v2117
  %2625 = vmatprep.subr.bf16.mxu0 %v2126
  %2626 = vmatpush1.bf16.msra.mxu0 %v2125
  %2627 = vmatprep.subr.bf16.mxu0 %v2134
  %2628 = vmatpush1.bf16.msra.mxu0 %v2133
  %2629 = vmatprep.subr.bf16.mxu0 %v2142
  %2630 = vmatpush1.bf16.msra.mxu0 %v2141
  %2631 = vmatprep.subr.bf16.mxu0 %v2150
  %2632 = vmatpush1.bf16.msra.mxu0 %v2149
  %2633 = vmatprep.subr.bf16.mxu0 %v2158
  %2634 = vmatpush1.bf16.msra.mxu0 %v2157
  %2635 = vmatprep.subr.bf16.mxu0 %v2166
  %2636 = vmatpush1.bf16.msra.mxu0 %v2165
  %2637 = vmatprep.subr.bf16.mxu0 %v2174
  %2638 = vmatpush1.bf16.msra.mxu0 %v2173
  %2639 = vmatprep.subr.bf16.mxu0 %v2182
  %2640 = vmatpush1.bf16.msra.mxu0 %v2181
  %2641 = vmatprep.subr.bf16.mxu0 %v2190
  %2642 = vmatpush1.bf16.msra.mxu0 %v2189
  %2643 = vmatprep.subr.bf16.mxu0 %v2198
  %2644 = vmatpush1.bf16.msra.mxu0 %v2197
  %2645 = vmatprep.subr.bf16.mxu0 %v2206
  %2646 = vmatpush1.bf16.msra.mxu0 %v2205
  %2647 = vmatprep.subr.bf16.mxu0 %v2214
  %2648 = vmatpush1.bf16.msra.mxu0 %v2213
  %2649 = vmatprep.subr.bf16.mxu0 %v2222
  %2650 = vmatpush1.bf16.msra.mxu0 %v2221
  %2651 = vmatprep.subr.bf16.mxu0 %v2230
  %2652 = vmatpush1.bf16.msra.mxu0 %v2229
  %2653 = vmatprep.mubr.bf16.mxu0 %v1339
  %2654 = vmatmul.mubr.bf16.gmra.mrb[0].mxu0 %v1338
  %v2655 = vpop.f32.mrb[0].mxu0
  %v2656 = vadd.f32 %v422, %v2655
  %v2657 = vpop.f32.mrb[0].mxu0
  %v2658 = vadd.f32 %v426, %v2657
  %v2659 = vpop.f32.mrb[0].mxu0
  %v2660 = vpop.f32.mrb[0].mxu0
  %2661 = vdwg.mxu0
  %2662 = vmatprep.subr.bf16.mxu0 %v2238
  %2663 = vmatpush1.bf16.msra.mxu0 %v2237
  %2664 = vmatprep.subr.bf16.mxu0 %v2246
  %2665 = vmatpush1.bf16.msra.mxu0 %v2245
  %2666 = vmatprep.subr.bf16.mxu0 %v2254
  %2667 = vmatpush1.bf16.msra.mxu0 %v2253
  %2668 = vmatprep.subr.bf16.mxu0 %v2262
  %2669 = vmatpush1.bf16.msra.mxu0 %v2261
  %2670 = vmatprep.subr.bf16.mxu0 %v2270
  %2671 = vmatpush1.bf16.msra.mxu0 %v2269
  %2672 = vmatprep.subr.bf16.mxu0 %v2278
  %2673 = vmatpush1.bf16.msra.mxu0 %v2277
  %2674 = vmatprep.subr.bf16.mxu0 %v2286
  %2675 = vmatpush1.bf16.msra.mxu0 %v2285
  %2676 = vmatprep.subr.bf16.mxu0 %v2294
  %2677 = vmatpush1.bf16.msra.mxu0 %v2293
  %2678 = vmatprep.subr.bf16.mxu0 %v2302
  %2679 = vmatpush1.bf16.msra.mxu0 %v2301
  %2680 = vmatprep.subr.bf16.mxu0 %v2310
  %2681 = vmatpush1.bf16.msra.mxu0 %v2309
  %2682 = vmatprep.subr.bf16.mxu0 %v2318
  %2683 = vmatpush1.bf16.msra.mxu0 %v2317
  %2684 = vmatprep.subr.bf16.mxu0 %v2326
  %2685 = vmatpush1.bf16.msra.mxu0 %v2325
  %2686 = vmatprep.subr.bf16.mxu0 %v2334
  %2687 = vmatpush1.bf16.msra.mxu0 %v2333
  %2688 = vmatprep.subr.bf16.mxu0 %v2342
  %2689 = vmatpush1.bf16.msra.mxu0 %v2341
  %2690 = vmatprep.subr.bf16.mxu0 %v2350
  %2691 = vmatpush1.bf16.msra.mxu0 %v2349
  %2692 = vmatprep.subr.bf16.mxu0 %v2358
  %2693 = vmatpush1.bf16.msra.mxu0 %v2357
  %2694 = vmatprep.mubr.bf16.mxu0 %v1340
  %2695 = vmatmul.mubr.bf16.gmra.mrb[0].mxu0 %v1340
  %v2696 = vpop.f32.mrb[0].mxu0
  %v2697 = vadd.f32 %v2656, %v2696
  %v2698 = vpop.f32.mrb[0].mxu0
  %v2699 = vadd.f32 %v2658, %v2698
  %v2700 = vpop.f32.mrb[0].mxu0
  %v2701 = vpop.f32.mrb[0].mxu0
  %2702 = vdwg.mxu0
  %2703 = vmatprep.subr.bf16.mxu0 %v2112
  %2704 = vmatpush1.bf16.msra.mxu0 %v2111
  %2705 = vmatprep.subr.bf16.mxu0 %v2120
  %2706 = vmatpush1.bf16.msra.mxu0 %v2119
  %2707 = vmatprep.subr.bf16.mxu0 %v2128
  %2708 = vmatpush1.bf16.msra.mxu0 %v2127
  %2709 = vmatprep.subr.bf16.mxu0 %v2136
  %2710 = vmatpush1.bf16.msra.mxu0 %v2135
  %2711 = vmatprep.subr.bf16.mxu0 %v2144
  %2712 = vmatpush1.bf16.msra.mxu0 %v2143
  %2713 = vmatprep.subr.bf16.mxu0 %v2152
  %2714 = vmatpush1.bf16.msra.mxu0 %v2151
  %2715 = vmatprep.subr.bf16.mxu0 %v2160
  %2716 = vmatpush1.bf16.msra.mxu0 %v2159
  %2717 = vmatprep.subr.bf16.mxu0 %v2168
  %2718 = vmatpush1.bf16.msra.mxu0 %v2167
  %2719 = vmatprep.subr.bf16.mxu0 %v2176
  %2720 = vmatpush1.bf16.msra.mxu0 %v2175
  %2721 = vmatprep.subr.bf16.mxu0 %v2184
  %2722 = vmatpush1.bf16.msra.mxu0 %v2183
  %2723 = vmatprep.subr.bf16.mxu0 %v2192
  %2724 = vmatpush1.bf16.msra.mxu0 %v2191
  %2725 = vmatprep.subr.bf16.mxu0 %v2200
  %2726 = vmatpush1.bf16.msra.mxu0 %v2199
  %2727 = vmatprep.subr.bf16.mxu0 %v2208
  %2728 = vmatpush1.bf16.msra.mxu0 %v2207
  %2729 = vmatprep.subr.bf16.mxu0 %v2216
  %2730 = vmatpush1.bf16.msra.mxu0 %v2215
  %2731 = vmatprep.subr.bf16.mxu0 %v2224
  %2732 = vmatpush1.bf16.msra.mxu0 %v2223
  %2733 = vmatprep.subr.bf16.mxu0 %v2232
  %2734 = vmatpush1.bf16.msra.mxu0 %v2231
  %2735 = vmatprep.mubr.bf16.mxu0 %v1339
  %2736 = vmatmul.mubr.bf16.gmra.mrb[0].mxu0 %v1338
  %v2737 = vpop.f32.mrb[0].mxu0
  %v2738 = vadd.f32 %v430, %v2737
  %v2739 = vpop.f32.mrb[0].mxu0
  %v2740 = vadd.f32 %v434, %v2739
  %v2741 = vpop.f32.mrb[0].mxu0
  %v2742 = vpop.f32.mrb[0].mxu0
  %2743 = vdwg.mxu0
  %2744 = vmatprep.subr.bf16.mxu0 %v2240
  %2745 = vmatpush1.bf16.msra.mxu0 %v2239
  %2746 = vmatprep.subr.bf16.mxu0 %v2248
  %2747 = vmatpush1.bf16.msra.mxu0 %v2247
  %2748 = vmatprep.subr.bf16.mxu0 %v2256
  %2749 = vmatpush1.bf16.msra.mxu0 %v2255
  %2750 = vmatprep.subr.bf16.mxu0 %v2264
  %2751 = vmatpush1.bf16.msra.mxu0 %v2263
  %2752 = vmatprep.subr.bf16.mxu0 %v2272
  %2753 = vmatpush1.bf16.msra.mxu0 %v2271
  %2754 = vmatprep.subr.bf16.mxu0 %v2280
  %2755 = vmatpush1.bf16.msra.mxu0 %v2279
  %2756 = vmatprep.subr.bf16.mxu0 %v2288
  %2757 = vmatpush1.bf16.msra.mxu0 %v2287
  %2758 = vmatprep.subr.bf16.mxu0 %v2296
  %2759 = vmatpush1.bf16.msra.mxu0 %v2295
  %2760 = vmatprep.subr.bf16.mxu0 %v2304
  %2761 = vmatpush1.bf16.msra.mxu0 %v2303
  %2762 = vmatprep.subr.bf16.mxu0 %v2312
  %2763 = vmatpush1.bf16.msra.mxu0 %v2311
  %2764 = vmatprep.subr.bf16.mxu0 %v2320
  %2765 = vmatpush1.bf16.msra.mxu0 %v2319
  %2766 = vmatprep.subr.bf16.mxu0 %v2328
  %2767 = vmatpush1.bf16.msra.mxu0 %v2327
  %2768 = vmatprep.subr.bf16.mxu0 %v2336
  %2769 = vmatpush1.bf16.msra.mxu0 %v2335
  %2770 = vmatprep.subr.bf16.mxu0 %v2344
  %2771 = vmatpush1.bf16.msra.mxu0 %v2343
  %2772 = vmatprep.subr.bf16.mxu0 %v2352
  %2773 = vmatpush1.bf16.msra.mxu0 %v2351
  %2774 = vmatprep.subr.bf16.mxu0 %v2360
  %2775 = vmatpush1.bf16.msra.mxu0 %v2359
  %2776 = vmatprep.mubr.bf16.mxu0 %v1340
  %2777 = vmatmul.mubr.bf16.gmra.mrb[0].mxu0 %v1340
  %v2778 = vpop.f32.mrb[0].mxu0
  %v2779 = vadd.f32 %v2738, %v2778
  %v2780 = vpop.f32.mrb[0].mxu0
  %v2781 = vadd.f32 %v2740, %v2780
  %v2782 = vpop.f32.mrb[0].mxu0
  %v2783 = vpop.f32.mrb[0].mxu0
  %2784 = vdwg.mxu0
  %2785 = vmatprep.subr.bf16.mxu0 %v2114
  %2786 = vmatpush1.bf16.msra.mxu0 %v2113
  %2787 = vmatprep.subr.bf16.mxu0 %v2122
  %2788 = vmatpush1.bf16.msra.mxu0 %v2121
  %2789 = vmatprep.subr.bf16.mxu0 %v2130
  %2790 = vmatpush1.bf16.msra.mxu0 %v2129
  %2791 = vmatprep.subr.bf16.mxu0 %v2138
  %2792 = vmatpush1.bf16.msra.mxu0 %v2137
  %2793 = vmatprep.subr.bf16.mxu0 %v2146
  %2794 = vmatpush1.bf16.msra.mxu0 %v2145
  %2795 = vmatprep.subr.bf16.mxu0 %v2154
  %2796 = vmatpush1.bf16.msra.mxu0 %v2153
  %2797 = vmatprep.subr.bf16.mxu0 %v2162
  %2798 = vmatpush1.bf16.msra.mxu0 %v2161
  %2799 = vmatprep.subr.bf16.mxu0 %v2170
  %2800 = vmatpush1.bf16.msra.mxu0 %v2169
  %2801 = vmatprep.subr.bf16.mxu0 %v2178
  %2802 = vmatpush1.bf16.msra.mxu0 %v2177
  %2803 = vmatprep.subr.bf16.mxu0 %v2186
  %2804 = vmatpush1.bf16.msra.mxu0 %v2185
  %2805 = vmatprep.subr.bf16.mxu0 %v2194
  %2806 = vmatpush1.bf16.msra.mxu0 %v2193
  %2807 = vmatprep.subr.bf16.mxu0 %v2202
  %2808 = vmatpush1.bf16.msra.mxu0 %v2201
  %2809 = vmatprep.subr.bf16.mxu0 %v2210
  %2810 = vmatpush1.bf16.msra.mxu0 %v2209
  %2811 = vmatprep.subr.bf16.mxu0 %v2218
  %2812 = vmatpush1.bf16.msra.mxu0 %v2217
  %2813 = vmatprep.subr.bf16.mxu0 %v2226
  %2814 = vmatpush1.bf16.msra.mxu0 %v2225
  %2815 = vmatprep.subr.bf16.mxu0 %v2234
  %2816 = vmatpush1.bf16.msra.mxu0 %v2233
  %2817 = vmatprep.mubr.bf16.mxu0 %v1339
  %2818 = vmatmul.mubr.bf16.gmra.mrb[0].mxu0 %v1338
  %v2819 = vpop.f32.mrb[0].mxu0
  %v2820 = vadd.f32 %v438, %v2819
  %v2821 = vpop.f32.mrb[0].mxu0
  %v2822 = vadd.f32 %v442, %v2821
  %v2823 = vpop.f32.mrb[0].mxu0
  %v2824 = vpop.f32.mrb[0].mxu0
  %2825 = vdwg.mxu0
  %2826 = vmatprep.subr.bf16.mxu0 %v2242
  %2827 = vmatpush1.bf16.msra.mxu0 %v2241
  %2828 = vmatprep.subr.bf16.mxu0 %v2250
  %2829 = vmatpush1.bf16.msra.mxu0 %v2249
  %2830 = vmatprep.subr.bf16.mxu0 %v2258
  %2831 = vmatpush1.bf16.msra.mxu0 %v2257
  %2832 = vmatprep.subr.bf16.mxu0 %v2266
  %2833 = vmatpush1.bf16.msra.mxu0 %v2265
  %2834 = vmatprep.subr.bf16.mxu0 %v2274
  %2835 = vmatpush1.bf16.msra.mxu0 %v2273
  %2836 = vmatprep.subr.bf16.mxu0 %v2282
  %2837 = vmatpush1.bf16.msra.mxu0 %v2281
  %2838 = vmatprep.subr.bf16.mxu0 %v2290
  %2839 = vmatpush1.bf16.msra.mxu0 %v2289
  %2840 = vmatprep.subr.bf16.mxu0 %v2298
  %2841 = vmatpush1.bf16.msra.mxu0 %v2297
  %2842 = vmatprep.subr.bf16.mxu0 %v2306
  %2843 = vmatpush1.bf16.msra.mxu0 %v2305
  %2844 = vmatprep.subr.bf16.mxu0 %v2314
  %2845 = vmatpush1.bf16.msra.mxu0 %v2313
  %2846 = vmatprep.subr.bf16.mxu0 %v2322
  %2847 = vmatpush1.bf16.msra.mxu0 %v2321
  %2848 = vmatprep.subr.bf16.mxu0 %v2330
  %2849 = vmatpush1.bf16.msra.mxu0 %v2329
  %2850 = vmatprep.subr.bf16.mxu0 %v2338
  %2851 = vmatpush1.bf16.msra.mxu0 %v2337
  %2852 = vmatprep.subr.bf16.mxu0 %v2346
  %2853 = vmatpush1.bf16.msra.mxu0 %v2345
  %2854 = vmatprep.subr.bf16.mxu0 %v2354
  %2855 = vmatpush1.bf16.msra.mxu0 %v2353
  %2856 = vmatprep.subr.bf16.mxu0 %v2362
  %2857 = vmatpush1.bf16.msra.mxu0 %v2361
  %2858 = vmatprep.mubr.bf16.mxu0 %v1340
  %2859 = vmatmul.mubr.bf16.gmra.mrb[0].mxu0 %v1340
  %v2860 = vpop.f32.mrb[0].mxu0
  %v2861 = vadd.f32 %v2820, %v2860
  %v2862 = vpop.f32.mrb[0].mxu0
  %v2863 = vadd.f32 %v2822, %v2862
  %v2864 = vpop.f32.mrb[0].mxu0
  %v2865 = vpop.f32.mrb[0].mxu0
  %2866 = vdwg.mxu0
  %2867 = vmatprep.subr.bf16.mxu0 %v2116
  %2868 = vmatpush1.bf16.msra.mxu0 %v2115
  %2869 = vmatprep.subr.bf16.mxu0 %v2124
  %2870 = vmatpush1.bf16.msra.mxu0 %v2123
  %2871 = vmatprep.subr.bf16.mxu0 %v2132
  %2872 = vmatpush1.bf16.msra.mxu0 %v2131
  %2873 = vmatprep.subr.bf16.mxu0 %v2140
  %2874 = vmatpush1.bf16.msra.mxu0 %v2139
  %2875 = vmatprep.subr.bf16.mxu0 %v2148
  %2876 = vmatpush1.bf16.msra.mxu0 %v2147
  %2877 = vmatprep.subr.bf16.mxu0 %v2156
  %2878 = vmatpush1.bf16.msra.mxu0 %v2155
  %2879 = vmatprep.subr.bf16.mxu0 %v2164
  %2880 = vmatpush1.bf16.msra.mxu0 %v2163
  %2881 = vmatprep.subr.bf16.mxu0 %v2172
  %2882 = vmatpush1.bf16.msra.mxu0 %v2171
  %2883 = vmatprep.subr.bf16.mxu0 %v2180
  %2884 = vmatpush1.bf16.msra.mxu0 %v2179
  %2885 = vmatprep.subr.bf16.mxu0 %v2188
  %2886 = vmatpush1.bf16.msra.mxu0 %v2187
  %2887 = vmatprep.subr.bf16.mxu0 %v2196
  %2888 = vmatpush1.bf16.msra.mxu0 %v2195
  %2889 = vmatprep.subr.bf16.mxu0 %v2204
  %2890 = vmatpush1.bf16.msra.mxu0 %v2203
  %2891 = vmatprep.subr.bf16.mxu0 %v2212
  %2892 = vmatpush1.bf16.msra.mxu0 %v2211
  %2893 = vmatprep.subr.bf16.mxu0 %v2220
  %2894 = vmatpush1.bf16.msra.mxu0 %v2219
  %2895 = vmatprep.subr.bf16.mxu0 %v2228
  %2896 = vmatpush1.bf16.msra.mxu0 %v2227
  %2897 = vmatprep.subr.bf16.mxu0 %v2236
  %2898 = vmatpush1.bf16.msra.mxu0 %v2235
  %2899 = vmatprep.mubr.bf16.mxu0 %v1339
  %2900 = vmatmul.mubr.bf16.gmra.mrb[0].mxu0 %v1338
  %v2901 = vpop.f32.mrb[0].mxu0
  %v2902 = vadd.f32 %v446, %v2901
  %v2903 = vpop.f32.mrb[0].mxu0
  %v2904 = vadd.f32 %v450, %v2903
  %v2905 = vpop.f32.mrb[0].mxu0
  %v2906 = vpop.f32.mrb[0].mxu0
  %2907 = vdwg.mxu0
  %2908 = vmatprep.subr.bf16.mxu0 %v2244
  %2909 = vmatpush1.bf16.msra.mxu0 %v2243
  %2910 = vmatprep.subr.bf16.mxu0 %v2252
  %2911 = vmatpush1.bf16.msra.mxu0 %v2251
  %2912 = vmatprep.subr.bf16.mxu0 %v2260
  %2913 = vmatpush1.bf16.msra.mxu0 %v2259
  %2914 = vmatprep.subr.bf16.mxu0 %v2268
  %2915 = vmatpush1.bf16.msra.mxu0 %v2267
  %2916 = vmatprep.subr.bf16.mxu0 %v2276
  %2917 = vmatpush1.bf16.msra.mxu0 %v2275
  %2918 = vmatprep.subr.bf16.mxu0 %v2284
  %2919 = vmatpush1.bf16.msra.mxu0 %v2283
  %2920 = vmatprep.subr.bf16.mxu0 %v2292
  %2921 = vmatpush1.bf16.msra.mxu0 %v2291
  %2922 = vmatprep.subr.bf16.mxu0 %v2300
  %2923 = vmatpush1.bf16.msra.mxu0 %v2299
  %2924 = vmatprep.subr.bf16.mxu0 %v2308
  %2925 = vmatpush1.bf16.msra.mxu0 %v2307
  %2926 = vmatprep.subr.bf16.mxu0 %v2316
  %2927 = vmatpush1.bf16.msra.mxu0 %v2315
  %2928 = vmatprep.subr.bf16.mxu0 %v2324
  %2929 = vmatpush1.bf16.msra.mxu0 %v2323
  %2930 = vmatprep.subr.bf16.mxu0 %v2332
  %2931 = vmatpush1.bf16.msra.mxu0 %v2331
  %2932 = vmatprep.subr.bf16.mxu0 %v2340
  %2933 = vmatpush1.bf16.msra.mxu0 %v2339
  %2934 = vmatprep.subr.bf16.mxu0 %v2348
  %2935 = vmatpush1.bf16.msra.mxu0 %v2347
  %2936 = vmatprep.subr.bf16.mxu0 %v2356
  %2937 = vmatpush1.bf16.msra.mxu0 %v2355
  %2938 = vmatprep.subr.bf16.mxu0 %v2364
  %2939 = vmatpush1.bf16.msra.mxu0 %v2363
  %2940 = vmatprep.mubr.bf16.mxu0 %v1340
  %2941 = vmatmul.mubr.bf16.gmra.mrb[0].mxu0 %v1340
  %v2942 = vpop.f32.mrb[0].mxu0
  %v2943 = vadd.f32 %v2902, %v2942
  %v2944 = vpop.f32.mrb[0].mxu0
  %v2945 = vadd.f32 %v2904, %v2944
  %v2946 = vpop.f32.mrb[0].mxu0
  %v2947 = vpop.f32.mrb[0].mxu0
  %2948 = vdwg.mxu0
  %v2949 = vxor.u32 %v2697, 2147483648
  %v2950 = vxor.u32 %v2699, 2147483648
  %v2951 = vmul.f32 %v2949, 1.442695
  %v2952 = vpow.pop %v2951
  %v2953 = vmul.f32 %v2950, 1.442695
  %v2954 = vpow.pop %v2953
  %v2955 = vadd.f32 %v2952, 1.0
  %v2956 = vadd.f32 %v2954, 1.0
  %v2957 = vrcp.pop %v2955
  %v2958 = vmul.f32 1.0, %v2957
  %v2959 = vrcp.pop %v2956
  %v2960 = vmul.f32 1.0, %v2959
  %v2961 = vxor.u32 %v2779, 2147483648
  %v2962 = vxor.u32 %v2781, 2147483648
  %v2963 = vmul.f32 %v2961, 1.442695
  %v2964 = vpow.pop %v2963
  %v2965 = vmul.f32 %v2962, 1.442695
  %v2966 = vpow.pop %v2965
  %v2967 = vadd.f32 %v2964, 1.0
  %v2968 = vadd.f32 %v2966, 1.0
  %v2969 = vrcp.pop %v2967
  %v2970 = vmul.f32 1.0, %v2969
  %v2971 = vrcp.pop %v2968
  %v2972 = vmul.f32 1.0, %v2971
  %v2973 = vtanh.pop %v2861
  %v2974 = vtanh.pop %v2863
  %v2975 = vxor.u32 %v2943, 2147483648
  %v2976 = vxor.u32 %v2945, 2147483648
  %v2977 = vmul.f32 %v2975, 1.442695
  %v2978 = vpow.pop %v2977
  %v2979 = vmul.f32 %v2976, 1.442695
  %v2980 = vpow.pop %v2979
  %v2981 = vadd.f32 %v2978, 1.0
  %v2982 = vadd.f32 %v2980, 1.0
  %v2983 = vrcp.pop %v2981
  %v2984 = vmul.f32 1.0, %v2983
  %v2985 = vrcp.pop %v2982
  %v2986 = vmul.f32 1.0, %v2985
  %v2987 = vmul.f32 %v2970, 0.0
  %v2988 = vmul.f32 %v2972, 0.0
  %v2989 = vmul.f32 %v2958, %v2973
  %v2990 = vmul.f32 %v2960, %v2974
  %v2991 = vadd.f32 %v2987, %v2989
  %v2992 = vadd.f32 %v2988, %v2990
  %v2993 = vtanh.pop %v2991
  %v2994 = vtanh.pop %v2992
  %v2995 = vmul.f32 %v2984, %v2993
  %v2996 = vmul.f32 %v2986, %v2994
  %v2997 = vmul.f32 %v2995, %v1334
  %v2998 = vmul.f32 %v2996, %v1334
  %2999 = vst [vmem:[#allocation2] sm:$0xff] %v2997
  %3000 = vst [vmem:[#allocation2 + $0x8] sm:$0xff] %v2998
  %s3001 = scalar_lea.vmem %s0, 64
  %v3002 = vld [vmem:[%s3001] sm:$0xff]
  %v3003 = vld [vmem:[%s3001 + $0x8] sm:$0xff]
  %v3004 = vld [vmem:[%s3001 + $0x10] sm:$0xff]
  %v3005 = vld [vmem:[%s3001 + $0x18] sm:$0xff]
  %v3006 = vld [vmem:[%s3001 + $0x20] sm:$0xff]
  %v3007 = vld [vmem:[%s3001 + $0x28] sm:$0xff]
  %v3008 = vld [vmem:[%s3001 + $0x30] sm:$0xff]
  %v3009 = vld [vmem:[%s3001 + $0x38] sm:$0xff]
  %v3010 = vpack.c.bf16 %v1326, %v1326
  %v3011 = vpack.c.bf16 %v1327, %v1327
  %3012 = vmatprep.subr.bf16.mxu0 %v853
  %3013 = vmatpush1.bf16.msra.mxu0 %v852
  %3014 = vmatprep.subr.bf16.mxu0 %v861
  %3015 = vmatpush1.bf16.msra.mxu0 %v860
  %3016 = vmatprep.subr.bf16.mxu0 %v869
  %3017 = vmatpush1.bf16.msra.mxu0 %v868
  %3018 = vmatprep.subr.bf16.mxu0 %v877
  %3019 = vmatpush1.bf16.msra.mxu0 %v876
  %3020 = vmatprep.subr.bf16.mxu0 %v885
  %3021 = vmatpush1.bf16.msra.mxu0 %v884
  %3022 = vmatprep.subr.bf16.mxu0 %v893
  %3023 = vmatpush1.bf16.msra.mxu0 %v892
  %3024 = vmatprep.subr.bf16.mxu0 %v901
  %3025 = vmatpush1.bf16.msra.mxu0 %v900
  %3026 = vmatprep.subr.bf16.mxu0 %v909
  %3027 = vmatpush1.bf16.msra.mxu0 %v908
  %3028 = vmatprep.subr.bf16.mxu0 %v917
  %3029 = vmatpush1.bf16.msra.mxu0 %v916
  %3030 = vmatprep.subr.bf16.mxu0 %v925
  %3031 = vmatpush1.bf16.msra.mxu0 %v924
  %3032 = vmatprep.subr.bf16.mxu0 %v933
  %3033 = vmatpush1.bf16.msra.mxu0 %v932
  %3034 = vmatprep.subr.bf16.mxu0 %v941
  %3035 = vmatpush1.bf16.msra.mxu0 %v940
  %3036 = vmatprep.subr.bf16.mxu0 %v949
  %3037 = vmatpush1.bf16.msra.mxu0 %v948
  %3038 = vmatprep.subr.bf16.mxu0 %v957
  %3039 = vmatpush1.bf16.msra.mxu0 %v956
  %3040 = vmatprep.subr.bf16.mxu0 %v965
  %3041 = vmatpush1.bf16.msra.mxu0 %v964
  %3042 = vmatprep.subr.bf16.mxu0 %v973
  %3043 = vmatpush1.bf16.msra.mxu0 %v972
  %3044 = vmatprep.mubr.bf16.mxu0 %v3011
  %3045 = vmatmul.mubr.bf16.gmra.mrb[0].mxu0 %v3010
  %v3046 = vpop.f32.mrb[0].mxu0
  %v3047 = vadd.f32 0.0, %v3046
  %v3048 = vpop.f32.mrb[0].mxu0
  %v3049 = vadd.f32 0.0, %v3048
  %v3050 = vpop.f32.mrb[0].mxu0
  %v3051 = vpop.f32.mrb[0].mxu0
  %3052 = vdwg.mxu0
  %3053 = vmatprep.subr.bf16.mxu0 %v855
  %3054 = vmatpush1.bf16.msra.mxu0 %v854
  %3055 = vmatprep.subr.bf16.mxu0 %v863
  %3056 = vmatpush1.bf16.msra.mxu0 %v862
  %3057 = vmatprep.subr.bf16.mxu0 %v871
  %3058 = vmatpush1.bf16.msra.mxu0 %v870
  %3059 = vmatprep.subr.bf16.mxu0 %v879
  %3060 = vmatpush1.bf16.msra.mxu0 %v878
  %3061 = vmatprep.subr.bf16.mxu0 %v887
  %3062 = vmatpush1.bf16.msra.mxu0 %v886
  %3063 = vmatprep.subr.bf16.mxu0 %v895
  %3064 = vmatpush1.bf16.msra.mxu0 %v894
  %3065 = vmatprep.subr.bf16.mxu0 %v903
  %3066 = vmatpush1.bf16.msra.mxu0 %v902
  %3067 = vmatprep.subr.bf16.mxu0 %v911
  %3068 = vmatpush1.bf16.msra.mxu0 %v910
  %3069 = vmatprep.subr.bf16.mxu0 %v919
  %3070 = vmatpush1.bf16.msra.mxu0 %v918
  %3071 = vmatprep.subr.bf16.mxu0 %v927
  %3072 = vmatpush1.bf16.msra.mxu0 %v926
  %3073 = vmatprep.subr.bf16.mxu0 %v935
  %3074 = vmatpush1.bf16.msra.mxu0 %v934
  %3075 = vmatprep.subr.bf16.mxu0 %v943
  %3076 = vmatpush1.bf16.msra.mxu0 %v942
  %3077 = vmatprep.subr.bf16.mxu0 %v951
  %3078 = vmatpush1.bf16.msra.mxu0 %v950
  %3079 = vmatprep.subr.bf16.mxu0 %v959
  %3080 = vmatpush1.bf16.msra.mxu0 %v958
  %3081 = vmatprep.subr.bf16.mxu0 %v967
  %3082 = vmatpush1.bf16.msra.mxu0 %v966
  %3083 = vmatprep.subr.bf16.mxu0 %v975
  %3084 = vmatpush1.bf16.msra.mxu0 %v974
  %3085 = vmatprep.mubr.bf16.mxu0 %v3011
  %3086 = vmatmul.mubr.bf16.gmra.mrb[0].mxu0 %v3010
  %v3087 = vpop.f32.mrb[0].mxu0
  %v3088 = vadd.f32 0.0, %v3087
  %v3089 = vpop.f32.mrb[0].mxu0
  %v3090 = vadd.f32 0.0, %v3089
  %v3091 = vpop.f32.mrb[0].mxu0
  %v3092 = vpop.f32.mrb[0].mxu0
  %3093 = vdwg.mxu0
  %3094 = vmatprep.subr.bf16.mxu0 %v857
  %3095 = vmatpush1.bf16.msra.mxu0 %v856
  %3096 = vmatprep.subr.bf16.mxu0 %v865
  %3097 = vmatpush1.bf16.msra.mxu0 %v864
  %3098 = vmatprep.subr.bf16.mxu0 %v873
  %3099 = vmatpush1.bf16.msra.mxu0 %v872
  %3100 = vmatprep.subr.bf16.mxu0 %v881
  %3101 = vmatpush1.bf16.msra.mxu0 %v880
  %3102 = vmatprep.subr.bf16.mxu0 %v889
  %3103 = vmatpush1.bf16.msra.mxu0 %v888
  %3104 = vmatprep.subr.bf16.mxu0 %v897
  %3105 = vmatpush1.bf16.msra.mxu0 %v896
  %3106 = vmatprep.subr.bf16.mxu0 %v905
  %3107 = vmatpush1.bf16.msra.mxu0 %v904
  %3108 = vmatprep.subr.bf16.mxu0 %v913
  %3109 = vmatpush1.bf16.msra.mxu0 %v912
  %3110 = vmatprep.subr.bf16.mxu0 %v921
  %3111 = vmatpush1.bf16.msra.mxu0 %v920
  %3112 = vmatprep.subr.bf16.mxu0 %v929
  %3113 = vmatpush1.bf16.msra.mxu0 %v928
  %3114 = vmatprep.subr.bf16.mxu0 %v937
  %3115 = vmatpush1.bf16.msra.mxu0 %v936
  %3116 = vmatprep.subr.bf16.mxu0 %v945
  %3117 = vmatpush1.bf16.msra.mxu0 %v944
  %3118 = vmatprep.subr.bf16.mxu0 %v953
  %3119 = vmatpush1.bf16.msra.mxu0 %v952
  %3120 = vmatprep.subr.bf16.mxu0 %v961
  %3121 = vmatpush1.bf16.msra.mxu0 %v960
  %3122 = vmatprep.subr.bf16.mxu0 %v969
  %3123 = vmatpush1.bf16.msra.mxu0 %v968
  %3124 = vmatprep.subr.bf16.mxu0 %v977
  %3125 = vmatpush1.bf16.msra.mxu0 %v976
  %3126 = vmatprep.mubr.bf16.mxu0 %v3011
  %3127 = vmatmul.mubr.bf16.gmra.mrb[0].mxu0 %v3010
  %v3128 = vpop.f32.mrb[0].mxu0
  %v3129 = vadd.f32 0.0, %v3128
  %v3130 = vpop.f32.mrb[0].mxu0
  %v3131 = vadd.f32 0.0, %v3130
  %v3132 = vpop.f32.mrb[0].mxu0
  %v3133 = vpop.f32.mrb[0].mxu0
  %3134 = vdwg.mxu0
  %3135 = vmatprep.subr.bf16.mxu0 %v859
  %3136 = vmatpush1.bf16.msra.mxu0 %v858
  %3137 = vmatprep.subr.bf16.mxu0 %v867
  %3138 = vmatpush1.bf16.msra.mxu0 %v866
  %3139 = vmatprep.subr.bf16.mxu0 %v875
  %3140 = vmatpush1.bf16.msra.mxu0 %v874
  %3141 = vmatprep.subr.bf16.mxu0 %v883
  %3142 = vmatpush1.bf16.msra.mxu0 %v882
  %3143 = vmatprep.subr.bf16.mxu0 %v891
  %3144 = vmatpush1.bf16.msra.mxu0 %v890
  %3145 = vmatprep.subr.bf16.mxu0 %v899
  %3146 = vmatpush1.bf16.msra.mxu0 %v898
  %3147 = vmatprep.subr.bf16.mxu0 %v907
  %3148 = vmatpush1.bf16.msra.mxu0 %v906
  %3149 = vmatprep.subr.bf16.mxu0 %v915
  %3150 = vmatpush1.bf16.msra.mxu0 %v914
  %3151 = vmatprep.subr.bf16.mxu0 %v923
  %3152 = vmatpush1.bf16.msra.mxu0 %v922
  %3153 = vmatprep.subr.bf16.mxu0 %v931
  %3154 = vmatpush1.bf16.msra.mxu0 %v930
  %3155 = vmatprep.subr.bf16.mxu0 %v939
  %3156 = vmatpush1.bf16.msra.mxu0 %v938
  %3157 = vmatprep.subr.bf16.mxu0 %v947
  %3158 = vmatpush1.bf16.msra.mxu0 %v946
  %3159 = vmatprep.subr.bf16.mxu0 %v955
  %3160 = vmatpush1.bf16.msra.mxu0 %v954
  %3161 = vmatprep.subr.bf16.mxu0 %v963
  %3162 = vmatpush1.bf16.msra.mxu0 %v962
  %3163 = vmatprep.subr.bf16.mxu0 %v971
  %3164 = vmatpush1.bf16.msra.mxu0 %v970
  %3165 = vmatprep.subr.bf16.mxu0 %v979
  %3166 = vmatpush1.bf16.msra.mxu0 %v978
  %3167 = vmatprep.mubr.bf16.mxu0 %v3011
  %3168 = vmatmul.mubr.bf16.gmra.mrb[0].mxu0 %v3010
  %v3169 = vpop.f32.mrb[0].mxu0
  %v3170 = vadd.f32 0.0, %v3169
  %v3171 = vpop.f32.mrb[0].mxu0
  %v3172 = vadd.f32 0.0, %v3171
  %v3173 = vpop.f32.mrb[0].mxu0
  %v3174 = vpop.f32.mrb[0].mxu0
  %3175 = vdwg.mxu0
  %v3176 = vadd.f32 %v3002, %v3047
  %v3177 = vadd.f32 %v3003, %v3049
  %v3178 = vadd.f32 %v3004, %v3088
  %v3179 = vadd.f32 %v3005, %v3090
  %v3180 = vadd.f32 %v3006, %v3129
  %v3181 = vadd.f32 %v3007, %v3131
  %v3182 = vadd.f32 %v3008, %v3170
  %v3183 = vadd.f32 %v3009, %v3172
  %v3184 = vxor.u32 %v3176, 2147483648
  %v3185 = vxor.u32 %v3177, 2147483648
  %v3186 = vmul.f32 %v3184, 1.442695
  %v3187 = vpow.pop %v3186
  %v3188 = vmul.f32 %v3185, 1.442695
  %v3189 = vpow.pop %v3188
  %v3190 = vadd.f32 %v3187, 1.0
  %v3191 = vadd.f32 %v3189, 1.0
  %v3192 = vrcp.pop %v3190
  %v3193 = vmul.f32 1.0, %v3192
  %v3194 = vrcp.pop %v3191
  %v3195 = vmul.f32 1.0, %v3194
  %v3196 = vxor.u32 %v3178, 2147483648
  %v3197 = vxor.u32 %v3179, 2147483648
  %v3198 = vmul.f32 %v3196, 1.442695
  %v3199 = vpow.pop %v3198
  %v3200 = vmul.f32 %v3197, 1.442695
  %v3201 = vpow.pop %v3200
  %v3202 = vadd.f32 %v3199, 1.0
  %v3203 = vadd.f32 %v3201, 1.0
  %v3204 = vrcp.pop %v3202
  %v3205 = vmul.f32 1.0, %v3204
  %v3206 = vrcp.pop %v3203
  %v3207 = vmul.f32 1.0, %v3206
  %v3208 = vtanh.pop %v3180
  %v3209 = vtanh.pop %v3181
  %v3210 = vxor.u32 %v3182, 2147483648
  %v3211 = vxor.u32 %v3183, 2147483648
  %v3212 = vmul.f32 %v3210, 1.442695
  %v3213 = vpow.pop %v3212
  %v3214 = vmul.f32 %v3211, 1.442695
  %v3215 = vpow.pop %v3214
  %v3216 = vadd.f32 %v3213, 1.0
  %v3217 = vadd.f32 %v3215, 1.0
  %v3218 = vrcp.pop %v3216
  %v3219 = vmul.f32 1.0, %v3218
  %v3220 = vrcp.pop %v3217
  %v3221 = vmul.f32 1.0, %v3220
  %v3222 = vmul.f32 %v3205, %v1322
  %v3223 = vmul.f32 %v3207, %v1323
  %v3224 = vmul.f32 %v3193, %v3208
  %v3225 = vmul.f32 %v3195, %v3209
  %v3226 = vadd.f32 %v3222, %v3224
  %v3227 = vadd.f32 %v3223, %v3225
  %v3228 = vtanh.pop %v3226
  %v3229 = vtanh.pop %v3227
  %v3230 = vmul.f32 %v3219, %v3228
  %v3231 = vmul.f32 %v3221, %v3229
  %vm3232 = vcmp.gt.s32.totalorder %v459, 1
  %v3233 = vsel %vm3232, 1, 0
  %v3234 = vcvt.s32.f32 %v3233
  %3236 = vset.pattern.permute.xlu0 0
  %3237 = vperm.xlu0 %3236, %v3234
  %v3238 = vpop.permute.xlu0 %3237
  %v3240 = vmul.f32 %v3230, %v3238
  %v3241 = vmul.f32 %v3231, %v3238
  %v3242 = vpack.c.bf16 %v3240, %v3240
  %v3243 = vpack.c.bf16 %v3241, %v3241
  %v3244 = vpack.c.bf16 %v2995, %v2995
  %v3245 = vpack.c.bf16 %v2996, %v2996
  %3246 = vmatprep.subr.bf16.mxu0 %v2110
  %3247 = vmatpush1.bf16.msra.mxu0 %v2109
  %3248 = vmatprep.subr.bf16.mxu0 %v2118
  %3249 = vmatpush1.bf16.msra.mxu0 %v2117
  %3250 = vmatprep.subr.bf16.mxu0 %v2126
  %3251 = vmatpush1.bf16.msra.mxu0 %v2125
  %3252 = vmatprep.subr.bf16.mxu0 %v2134
  %3253 = vmatpush1.bf16.msra.mxu0 %v2133
  %3254 = vmatprep.subr.bf16.mxu0 %v2142
  %3255 = vmatpush1.bf16.msra.mxu0 %v2141
  %3256 = vmatprep.subr.bf16.mxu0 %v2150
  %3257 = vmatpush1.bf16.msra.mxu0 %v2149
  %3258 = vmatprep.subr.bf16.mxu0 %v2158
  %3259 = vmatpush1.bf16.msra.mxu0 %v2157
  %3260 = vmatprep.subr.bf16.mxu0 %v2166
  %3261 = vmatpush1.bf16.msra.mxu0 %v2165
  %3262 = vmatprep.subr.bf16.mxu0 %v2174
  %3263 = vmatpush1.bf16.msra.mxu0 %v2173
  %3264 = vmatprep.subr.bf16.mxu0 %v2182
  %3265 = vmatpush1.bf16.msra.mxu0 %v2181
  %3266 = vmatprep.subr.bf16.mxu0 %v2190
  %3267 = vmatpush1.bf16.msra.mxu0 %v2189
  %3268 = vmatprep.subr.bf16.mxu0 %v2198
  %3269 = vmatpush1.bf16.msra.mxu0 %v2197
  %3270 = vmatprep.subr.bf16.mxu0 %v2206
  %3271 = vmatpush1.bf16.msra.mxu0 %v2205
  %3272 = vmatprep.subr.bf16.mxu0 %v2214
  %3273 = vmatpush1.bf16.msra.mxu0 %v2213
  %3274 = vmatprep.subr.bf16.mxu0 %v2222
  %3275 = vmatpush1.bf16.msra.mxu0 %v2221
  %3276 = vmatprep.subr.bf16.mxu0 %v2230
  %3277 = vmatpush1.bf16.msra.mxu0 %v2229
  %3278 = vmatprep.mubr.bf16.mxu0 %v3243
  %3279 = vmatmul.mubr.bf16.gmra.mrb[0].mxu0 %v3242
  %v3280 = vpop.f32.mrb[0].mxu0
  %v3281 = vadd.f32 %v422, %v3280
  %v3282 = vpop.f32.mrb[0].mxu0
  %v3283 = vadd.f32 %v426, %v3282
  %v3284 = vpop.f32.mrb[0].mxu0
  %v3285 = vpop.f32.mrb[0].mxu0
  %3286 = vdwg.mxu0
  %3287 = vmatprep.subr.bf16.mxu0 %v2238
  %3288 = vmatpush1.bf16.msra.mxu0 %v2237
  %3289 = vmatprep.subr.bf16.mxu0 %v2246
  %3290 = vmatpush1.bf16.msra.mxu0 %v2245
  %3291 = vmatprep.subr.bf16.mxu0 %v2254
  %3292 = vmatpush1.bf16.msra.mxu0 %v2253
  %3293 = vmatprep.subr.bf16.mxu0 %v2262
  %3294 = vmatpush1.bf16.msra.mxu0 %v2261
  %3295 = vmatprep.subr.bf16.mxu0 %v2270
  %3296 = vmatpush1.bf16.msra.mxu0 %v2269
  %3297 = vmatprep.subr.bf16.mxu0 %v2278
  %3298 = vmatpush1.bf16.msra.mxu0 %v2277
  %3299 = vmatprep.subr.bf16.mxu0 %v2286
  %3300 = vmatpush1.bf16.msra.mxu0 %v2285
  %3301 = vmatprep.subr.bf16.mxu0 %v2294
  %3302 = vmatpush1.bf16.msra.mxu0 %v2293
  %3303 = vmatprep.subr.bf16.mxu0 %v2302
  %3304 = vmatpush1.bf16.msra.mxu0 %v2301
  %3305 = vmatprep.subr.bf16.mxu0 %v2310
  %3306 = vmatpush1.bf16.msra.mxu0 %v2309
  %3307 = vmatprep.subr.bf16.mxu0 %v2318
  %3308 = vmatpush1.bf16.msra.mxu0 %v2317
  %3309 = vmatprep.subr.bf16.mxu0 %v2326
  %3310 = vmatpush1.bf16.msra.mxu0 %v2325
  %3311 = vmatprep.subr.bf16.mxu0 %v2334
  %3312 = vmatpush1.bf16.msra.mxu0 %v2333
  %3313 = vmatprep.subr.bf16.mxu0 %v2342
  %3314 = vmatpush1.bf16.msra.mxu0 %v2341
  %3315 = vmatprep.subr.bf16.mxu0 %v2350
  %3316 = vmatpush1.bf16.msra.mxu0 %v2349
  %3317 = vmatprep.subr.bf16.mxu0 %v2358
  %3318 = vmatpush1.bf16.msra.mxu0 %v2357
  %3319 = vmatprep.mubr.bf16.mxu0 %v3245
  %3320 = vmatmul.mubr.bf16.gmra.mrb[0].mxu0 %v3244
  %v3321 = vpop.f32.mrb[0].mxu0
  %v3322 = vadd.f32 %v3281, %v3321
  %v3323 = vpop.f32.mrb[0].mxu0
  %v3324 = vadd.f32 %v3283, %v3323
  %v3325 = vpop.f32.mrb[0].mxu0
  %v3326 = vpop.f32.mrb[0].mxu0
  %3327 = vdwg.mxu0
  %3328 = vmatprep.subr.bf16.mxu0 %v2112
  %3329 = vmatpush1.bf16.msra.mxu0 %v2111
  %3330 = vmatprep.subr.bf16.mxu0 %v2120
  %3331 = vmatpush1.bf16.msra.mxu0 %v2119
  %3332 = vmatprep.subr.bf16.mxu0 %v2128
  %3333 = vmatpush1.bf16.msra.mxu0 %v2127
  %3334 = vmatprep.subr.bf16.mxu0 %v2136
  %3335 = vmatpush1.bf16.msra.mxu0 %v2135
  %3336 = vmatprep.subr.bf16.mxu0 %v2144
  %3337 = vmatpush1.bf16.msra.mxu0 %v2143
  %3338 = vmatprep.subr.bf16.mxu0 %v2152
  %3339 = vmatpush1.bf16.msra.mxu0 %v2151
  %3340 = vmatprep.subr.bf16.mxu0 %v2160
  %3341 = vmatpush1.bf16.msra.mxu0 %v2159
  %3342 = vmatprep.subr.bf16.mxu0 %v2168
  %3343 = vmatpush1.bf16.msra.mxu0 %v2167
  %3344 = vmatprep.subr.bf16.mxu0 %v2176
  %3345 = vmatpush1.bf16.msra.mxu0 %v2175
  %3346 = vmatprep.subr.bf16.mxu0 %v2184
  %3347 = vmatpush1.bf16.msra.mxu0 %v2183
  %3348 = vmatprep.subr.bf16.mxu0 %v2192
  %3349 = vmatpush1.bf16.msra.mxu0 %v2191
  %3350 = vmatprep.subr.bf16.mxu0 %v2200
  %3351 = vmatpush1.bf16.msra.mxu0 %v2199
  %3352 = vmatprep.subr.bf16.mxu0 %v2208
  %3353 = vmatpush1.bf16.msra.mxu0 %v2207
  %3354 = vmatprep.subr.bf16.mxu0 %v2216
  %3355 = vmatpush1.bf16.msra.mxu0 %v2215
  %3356 = vmatprep.subr.bf16.mxu0 %v2224
  %3357 = vmatpush1.bf16.msra.mxu0 %v2223
  %3358 = vmatprep.subr.bf16.mxu0 %v2232
  %3359 = vmatpush1.bf16.msra.mxu0 %v2231
  %3360 = vmatprep.mubr.bf16.mxu0 %v3243
  %3361 = vmatmul.mubr.bf16.gmra.mrb[0].mxu0 %v3242
  %v3362 = vpop.f32.mrb[0].mxu0
  %v3363 = vadd.f32 %v430, %v3362
  %v3364 = vpop.f32.mrb[0].mxu0
  %v3365 = vadd.f32 %v434, %v3364
  %v3366 = vpop.f32.mrb[0].mxu0
  %v3367 = vpop.f32.mrb[0].mxu0
  %3368 = vdwg.mxu0
  %3369 = vmatprep.subr.bf16.mxu0 %v2240
  %3370 = vmatpush1.bf16.msra.mxu0 %v2239
  %3371 = vmatprep.subr.bf16.mxu0 %v2248
  %3372 = vmatpush1.bf16.msra.mxu0 %v2247
  %3373 = vmatprep.subr.bf16.mxu0 %v2256
  %3374 = vmatpush1.bf16.msra.mxu0 %v2255
  %3375 = vmatprep.subr.bf16.mxu0 %v2264
  %3376 = vmatpush1.bf16.msra.mxu0 %v2263
  %3377 = vmatprep.subr.bf16.mxu0 %v2272
  %3378 = vmatpush1.bf16.msra.mxu0 %v2271
  %3379 = vmatprep.subr.bf16.mxu0 %v2280
  %3380 = vmatpush1.bf16.msra.mxu0 %v2279
  %3381 = vmatprep.subr.bf16.mxu0 %v2288
  %3382 = vmatpush1.bf16.msra.mxu0 %v2287
  %3383 = vmatprep.subr.bf16.mxu0 %v2296
  %3384 = vmatpush1.bf16.msra.mxu0 %v2295
  %3385 = vmatprep.subr.bf16.mxu0 %v2304
  %3386 = vmatpush1.bf16.msra.mxu0 %v2303
  %3387 = vmatprep.subr.bf16.mxu0 %v2312
  %3388 = vmatpush1.bf16.msra.mxu0 %v2311
  %3389 = vmatprep.subr.bf16.mxu0 %v2320
  %3390 = vmatpush1.bf16.msra.mxu0 %v2319
  %3391 = vmatprep.subr.bf16.mxu0 %v2328
  %3392 = vmatpush1.bf16.msra.mxu0 %v2327
  %3393 = vmatprep.subr.bf16.mxu0 %v2336
  %3394 = vmatpush1.bf16.msra.mxu0 %v2335
  %3395 = vmatprep.subr.bf16.mxu0 %v2344
  %3396 = vmatpush1.bf16.msra.mxu0 %v2343
  %3397 = vmatprep.subr.bf16.mxu0 %v2352
  %3398 = vmatpush1.bf16.msra.mxu0 %v2351
  %3399 = vmatprep.subr.bf16.mxu0 %v2360
  %3400 = vmatpush1.bf16.msra.mxu0 %v2359
  %3401 = vmatprep.mubr.bf16.mxu0 %v3245
  %3402 = vmatmul.mubr.bf16.gmra.mrb[0].mxu0 %v3244
  %v3403 = vpop.f32.mrb[0].mxu0
  %v3404 = vadd.f32 %v3363, %v3403
  %v3405 = vpop.f32.mrb[0].mxu0
  %v3406 = vadd.f32 %v3365, %v3405
  %v3407 = vpop.f32.mrb[0].mxu0
  %v3408 = vpop.f32.mrb[0].mxu0
  %3409 = vdwg.mxu0
  %3410 = vmatprep.subr.bf16.mxu0 %v2114
  %3411 = vmatpush1.bf16.msra.mxu0 %v2113
  %3412 = vmatprep.subr.bf16.mxu0 %v2122
  %3413 = vmatpush1.bf16.msra.mxu0 %v2121
  %3414 = vmatprep.subr.bf16.mxu0 %v2130
  %3415 = vmatpush1.bf16.msra.mxu0 %v2129
  %3416 = vmatprep.subr.bf16.mxu0 %v2138
  %3417 = vmatpush1.bf16.msra.mxu0 %v2137
  %3418 = vmatprep.subr.bf16.mxu0 %v2146
  %3419 = vmatpush1.bf16.msra.mxu0 %v2145
  %3420 = vmatprep.subr.bf16.mxu0 %v2154
  %3421 = vmatpush1.bf16.msra.mxu0 %v2153
  %3422 = vmatprep.subr.bf16.mxu0 %v2162
  %3423 = vmatpush1.bf16.msra.mxu0 %v2161
  %3424 = vmatprep.subr.bf16.mxu0 %v2170
  %3425 = vmatpush1.bf16.msra.mxu0 %v2169
  %3426 = vmatprep.subr.bf16.mxu0 %v2178
  %3427 = vmatpush1.bf16.msra.mxu0 %v2177
  %3428 = vmatprep.subr.bf16.mxu0 %v2186
  %3429 = vmatpush1.bf16.msra.mxu0 %v2185
  %3430 = vmatprep.subr.bf16.mxu0 %v2194
  %3431 = vmatpush1.bf16.msra.mxu0 %v2193
  %3432 = vmatprep.subr.bf16.mxu0 %v2202
  %3433 = vmatpush1.bf16.msra.mxu0 %v2201
  %3434 = vmatprep.subr.bf16.mxu0 %v2210
  %3435 = vmatpush1.bf16.msra.mxu0 %v2209
  %3436 = vmatprep.subr.bf16.mxu0 %v2218
  %3437 = vmatpush1.bf16.msra.mxu0 %v2217
  %3438 = vmatprep.subr.bf16.mxu0 %v2226
  %3439 = vmatpush1.bf16.msra.mxu0 %v2225
  %3440 = vmatprep.subr.bf16.mxu0 %v2234
  %3441 = vmatpush1.bf16.msra.mxu0 %v2233
  %3442 = vmatprep.mubr.bf16.mxu0 %v3243
  %3443 = vmatmul.mubr.bf16.gmra.mrb[0].mxu0 %v3242
  %v3444 = vpop.f32.mrb[0].mxu0
  %v3445 = vadd.f32 %v438, %v3444
  %v3446 = vpop.f32.mrb[0].mxu0
  %v3447 = vadd.f32 %v442, %v3446
  %v3448 = vpop.f32.mrb[0].mxu0
  %v3449 = vpop.f32.mrb[0].mxu0
  %3450 = vdwg.mxu0
  %3451 = vmatprep.subr.bf16.mxu0 %v2242
  %3452 = vmatpush1.bf16.msra.mxu0 %v2241
  %3453 = vmatprep.subr.bf16.mxu0 %v2250
  %3454 = vmatpush1.bf16.msra.mxu0 %v2249
  %3455 = vmatprep.subr.bf16.mxu0 %v2258
  %3456 = vmatpush1.bf16.msra.mxu0 %v2257
  %3457 = vmatprep.subr.bf16.mxu0 %v2266
  %3458 = vmatpush1.bf16.msra.mxu0 %v2265
  %3459 = vmatprep.subr.bf16.mxu0 %v2274
  %3460 = vmatpush1.bf16.msra.mxu0 %v2273
  %3461 = vmatprep.subr.bf16.mxu0 %v2282
  %3462 = vmatpush1.bf16.msra.mxu0 %v2281
  %3463 = vmatprep.subr.bf16.mxu0 %v2290
  %3464 = vmatpush1.bf16.msra.mxu0 %v2289
  %3465 = vmatprep.subr.bf16.mxu0 %v2298
  %3466 = vmatpush1.bf16.msra.mxu0 %v2297
  %3467 = vmatprep.subr.bf16.mxu0 %v2306
  %3468 = vmatpush1.bf16.msra.mxu0 %v2305
  %3469 = vmatprep.subr.bf16.mxu0 %v2314
  %3470 = vmatpush1.bf16.msra.mxu0 %v2313
  %3471 = vmatprep.subr.bf16.mxu0 %v2322
  %3472 = vmatpush1.bf16.msra.mxu0 %v2321
  %3473 = vmatprep.subr.bf16.mxu0 %v2330
  %3474 = vmatpush1.bf16.msra.mxu0 %v2329
  %3475 = vmatprep.subr.bf16.mxu0 %v2338
  %3476 = vmatpush1.bf16.msra.mxu0 %v2337
  %3477 = vmatprep.subr.bf16.mxu0 %v2346
  %3478 = vmatpush1.bf16.msra.mxu0 %v2345
  %3479 = vmatprep.subr.bf16.mxu0 %v2354
  %3480 = vmatpush1.bf16.msra.mxu0 %v2353
  %3481 = vmatprep.subr.bf16.mxu0 %v2362
  %3482 = vmatpush1.bf16.msra.mxu0 %v2361
  %3483 = vmatprep.mubr.bf16.mxu0 %v3245
  %3484 = vmatmul.mubr.bf16.gmra.mrb[0].mxu0 %v3244
  %v3485 = vpop.f32.mrb[0].mxu0
  %v3486 = vadd.f32 %v3445, %v3485
  %v3487 = vpop.f32.mrb[0].mxu0
  %v3488 = vadd.f32 %v3447, %v3487
  %v3489 = vpop.f32.mrb[0].mxu0
  %v3490 = vpop.f32.mrb[0].mxu0
  %3491 = vdwg.mxu0
  %3492 = vmatprep.subr.bf16.mxu0 %v2116
  %3493 = vmatpush1.bf16.msra.mxu0 %v2115
  %3494 = vmatprep.subr.bf16.mxu0 %v2124
  %3495 = vmatpush1.bf16.msra.mxu0 %v2123
  %3496 = vmatprep.subr.bf16.mxu0 %v2132
  %3497 = vmatpush1.bf16.msra.mxu0 %v2131
  %3498 = vmatprep.subr.bf16.mxu0 %v2140
  %3499 = vmatpush1.bf16.msra.mxu0 %v2139
  %3500 = vmatprep.subr.bf16.mxu0 %v2148
  %3501 = vmatpush1.bf16.msra.mxu0 %v2147
  %3502 = vmatprep.subr.bf16.mxu0 %v2156
  %3503 = vmatpush1.bf16.msra.mxu0 %v2155
  %3504 = vmatprep.subr.bf16.mxu0 %v2164
  %3505 = vmatpush1.bf16.msra.mxu0 %v2163
  %3506 = vmatprep.subr.bf16.mxu0 %v2172
  %3507 = vmatpush1.bf16.msra.mxu0 %v2171
  %3508 = vmatprep.subr.bf16.mxu0 %v2180
  %3509 = vmatpush1.bf16.msra.mxu0 %v2179
  %3510 = vmatprep.subr.bf16.mxu0 %v2188
  %3511 = vmatpush1.bf16.msra.mxu0 %v2187
  %3512 = vmatprep.subr.bf16.mxu0 %v2196
  %3513 = vmatpush1.bf16.msra.mxu0 %v2195
  %3514 = vmatprep.subr.bf16.mxu0 %v2204
  %3515 = vmatpush1.bf16.msra.mxu0 %v2203
  %3516 = vmatprep.subr.bf16.mxu0 %v2212
  %3517 = vmatpush1.bf16.msra.mxu0 %v2211
  %3518 = vmatprep.subr.bf16.mxu0 %v2220
  %3519 = vmatpush1.bf16.msra.mxu0 %v2219
  %3520 = vmatprep.subr.bf16.mxu0 %v2228
  %3521 = vmatpush1.bf16.msra.mxu0 %v2227
  %3522 = vmatprep.subr.bf16.mxu0 %v2236
  %3523 = vmatpush1.bf16.msra.mxu0 %v2235
  %3524 = vmatprep.mubr.bf16.mxu0 %v3243
  %3525 = vmatmul.mubr.bf16.gmra.mrb[0].mxu0 %v3242
  %v3526 = vpop.f32.mrb[0].mxu0
  %v3527 = vadd.f32 %v446, %v3526
  %v3528 = vpop.f32.mrb[0].mxu0
  %v3529 = vadd.f32 %v450, %v3528
  %v3530 = vpop.f32.mrb[0].mxu0
  %v3531 = vpop.f32.mrb[0].mxu0
  %3532 = vdwg.mxu0
  %3533 = vmatprep.subr.bf16.mxu0 %v2244
  %3534 = vmatpush1.bf16.msra.mxu0 %v2243
  %3535 = vmatprep.subr.bf16.mxu0 %v2252
  %3536 = vmatpush1.bf16.msra.mxu0 %v2251
  %3537 = vmatprep.subr.bf16.mxu0 %v2260
  %3538 = vmatpush1.bf16.msra.mxu0 %v2259
  %3539 = vmatprep.subr.bf16.mxu0 %v2268
  %3540 = vmatpush1.bf16.msra.mxu0 %v2267
  %3541 = vmatprep.subr.bf16.mxu0 %v2276
  %3542 = vmatpush1.bf16.msra.mxu0 %v2275
  %3543 = vmatprep.subr.bf16.mxu0 %v2284
  %3544 = vmatpush1.bf16.msra.mxu0 %v2283
  %3545 = vmatprep.subr.bf16.mxu0 %v2292
  %3546 = vmatpush1.bf16.msra.mxu0 %v2291
  %3547 = vmatprep.subr.bf16.mxu0 %v2300
  %3548 = vmatpush1.bf16.msra.mxu0 %v2299
  %3549 = vmatprep.subr.bf16.mxu0 %v2308
  %3550 = vmatpush1.bf16.msra.mxu0 %v2307
  %3551 = vmatprep.subr.bf16.mxu0 %v2316
  %3552 = vmatpush1.bf16.msra.mxu0 %v2315
  %3553 = vmatprep.subr.bf16.mxu0 %v2324
  %3554 = vmatpush1.bf16.msra.mxu0 %v2323
  %3555 = vmatprep.subr.bf16.mxu0 %v2332
  %3556 = vmatpush1.bf16.msra.mxu0 %v2331
  %3557 = vmatprep.subr.bf16.mxu0 %v2340
  %3558 = vmatpush1.bf16.msra.mxu0 %v2339
  %3559 = vmatprep.subr.bf16.mxu0 %v2348
  %3560 = vmatpush1.bf16.msra.mxu0 %v2347
  %3561 = vmatprep.subr.bf16.mxu0 %v2356
  %3562 = vmatpush1.bf16.msra.mxu0 %v2355
  %3563 = vmatprep.subr.bf16.mxu0 %v2364
  %3564 = vmatpush1.bf16.msra.mxu0 %v2363
  %3565 = vmatprep.mubr.bf16.mxu0 %v3245
  %3566 = vmatmul.mubr.bf16.gmra.mrb[0].mxu0 %v3244
  %v3567 = vpop.f32.mrb[0].mxu0
  %v3568 = vadd.f32 %v3527, %v3567
  %v3569 = vpop.f32.mrb[0].mxu0
  %v3570 = vadd.f32 %v3529, %v3569
  %v3571 = vpop.f32.mrb[0].mxu0
  %v3572 = vpop.f32.mrb[0].mxu0
  %3573 = vdwg.mxu0
  %v3574 = vxor.u32 %v3322, 2147483648
  %v3575 = vxor.u32 %v3324, 2147483648
  %v3576 = vmul.f32 %v3574, 1.442695
  %v3577 = vpow.pop %v3576
  %v3578 = vmul.f32 %v3575, 1.442695
  %v3579 = vpow.pop %v3578
  %v3580 = vadd.f32 %v3577, 1.0
  %v3581 = vadd.f32 %v3579, 1.0
  %v3582 = vrcp.pop %v3580
  %v3583 = vmul.f32 1.0, %v3582
  %v3584 = vrcp.pop %v3581
  %v3585 = vmul.f32 1.0, %v3584
  %v3586 = vxor.u32 %v3404, 2147483648
  %v3587 = vxor.u32 %v3406, 2147483648
  %v3588 = vmul.f32 %v3586, 1.442695
  %v3589 = vpow.pop %v3588
  %v3590 = vmul.f32 %v3587, 1.442695
  %v3591 = vpow.pop %v3590
  %v3592 = vadd.f32 %v3589, 1.0
  %v3593 = vadd.f32 %v3591, 1.0
  %v3594 = vrcp.pop %v3592
  %v3595 = vmul.f32 1.0, %v3594
  %v3596 = vrcp.pop %v3593
  %v3597 = vmul.f32 1.0, %v3596
  %v3598 = vtanh.pop %v3486
  %v3599 = vtanh.pop %v3488
  %v3600 = vxor.u32 %v3568, 2147483648
  %v3601 = vxor.u32 %v3570, 2147483648
  %v3602 = vmul.f32 %v3600, 1.442695
  %v3603 = vpow.pop %v3602
  %v3604 = vmul.f32 %v3601, 1.442695
  %v3605 = vpow.pop %v3604
  %v3606 = vadd.f32 %v3603, 1.0
  %v3607 = vadd.f32 %v3605, 1.0
  %v3608 = vrcp.pop %v3606
  %v3609 = vmul.f32 1.0, %v3608
  %v3610 = vrcp.pop %v3607
  %v3611 = vmul.f32 1.0, %v3610
  %v3612 = vmul.f32 %v3595, %v2991
  %v3613 = vmul.f32 %v3597, %v2992
  %v3614 = vmul.f32 %v3583, %v3598
  %v3615 = vmul.f32 %v3585, %v3599
  %v3616 = vadd.f32 %v3612, %v3614
  %v3617 = vadd.f32 %v3613, %v3615
  %v3618 = vtanh.pop %v3616
  %v3619 = vtanh.pop %v3617
  %v3620 = vmul.f32 %v3609, %v3618
  %v3621 = vmul.f32 %v3611, %v3619
  %v3622 = vmul.f32 %v3620, %v3238
  %v3623 = vmul.f32 %v3621, %v3238
  %s3624 = scalar_lea.vmem [#allocation2], 16
  %3625 = vst [vmem:[%s3624] sm:$0xff] %v3622
  %3626 = vst [vmem:[%s3624 + $0x8] sm:$0xff] %v3623
  %s3627 = scalar_lea.vmem %s0, 128
  %v3628 = vld [vmem:[%s3627] sm:$0xff]
  %v3629 = vld [vmem:[%s3627 + $0x8] sm:$0xff]
  %v3630 = vld [vmem:[%s3627 + $0x10] sm:$0xff]
  %v3631 = vld [vmem:[%s3627 + $0x18] sm:$0xff]
  %v3632 = vld [vmem:[%s3627 + $0x20] sm:$0xff]
  %v3633 = vld [vmem:[%s3627 + $0x28] sm:$0xff]
  %v3634 = vld [vmem:[%s3627 + $0x30] sm:$0xff]
  %v3635 = vld [vmem:[%s3627 + $0x38] sm:$0xff]
  %v3636 = vpack.c.bf16 %v3230, %v3230
  %v3637 = vpack.c.bf16 %v3231, %v3231
  %3638 = vmatprep.subr.bf16.mxu0 %v853
  %3639 = vmatpush1.bf16.msra.mxu0 %v852
  %3640 = vmatprep.subr.bf16.mxu0 %v861
  %3641 = vmatpush1.bf16.msra.mxu0 %v860
  %3642 = vmatprep.subr.bf16.mxu0 %v869
  %3643 = vmatpush1.bf16.msra.mxu0 %v868
  %3644 = vmatprep.subr.bf16.mxu0 %v877
  %3645 = vmatpush1.bf16.msra.mxu0 %v876
  %3646 = vmatprep.subr.bf16.mxu0 %v885
  %3647 = vmatpush1.bf16.msra.mxu0 %v884
  %3648 = vmatprep.subr.bf16.mxu0 %v893
  %3649 = vmatpush1.bf16.msra.mxu0 %v892
  %3650 = vmatprep.subr.bf16.mxu0 %v901
  %3651 = vmatpush1.bf16.msra.mxu0 %v900
  %3652 = vmatprep.subr.bf16.mxu0 %v909
  %3653 = vmatpush1.bf16.msra.mxu0 %v908
  %3654 = vmatprep.subr.bf16.mxu0 %v917
  %3655 = vmatpush1.bf16.msra.mxu0 %v916
  %3656 = vmatprep.subr.bf16.mxu0 %v925
  %3657 = vmatpush1.bf16.msra.mxu0 %v924
  %3658 = vmatprep.subr.bf16.mxu0 %v933
  %3659 = vmatpush1.bf16.msra.mxu0 %v932
  %3660 = vmatprep.subr.bf16.mxu0 %v941
  %3661 = vmatpush1.bf16.msra.mxu0 %v940
  %3662 = vmatprep.subr.bf16.mxu0 %v949
  %3663 = vmatpush1.bf16.msra.mxu0 %v948
  %3664 = vmatprep.subr.bf16.mxu0 %v957
  %3665 = vmatpush1.bf16.msra.mxu0 %v956
  %3666 = vmatprep.subr.bf16.mxu0 %v965
  %3667 = vmatpush1.bf16.msra.mxu0 %v964
  %3668 = vmatprep.subr.bf16.mxu0 %v973
  %3669 = vmatpush1.bf16.msra.mxu0 %v972
  %3670 = vmatprep.mubr.bf16.mxu0 %v3637
  %3671 = vmatmul.mubr.bf16.gmra.mrb[0].mxu0 %v3636
  %v3672 = vpop.f32.mrb[0].mxu0
  %v3673 = vadd.f32 0.0, %v3672
  %v3674 = vpop.f32.mrb[0].mxu0
  %v3675 = vadd.f32 0.0, %v3674
  %v3676 = vpop.f32.mrb[0].mxu0
  %v3677 = vpop.f32.mrb[0].mxu0
  %3678 = vdwg.mxu0
  %3679 = vmatprep.subr.bf16.mxu0 %v855
  %3680 = vmatpush1.bf16.msra.mxu0 %v854
  %3681 = vmatprep.subr.bf16.mxu0 %v863
  %3682 = vmatpush1.bf16.msra.mxu0 %v862
  %3683 = vmatprep.subr.bf16.mxu0 %v871
  %3684 = vmatpush1.bf16.msra.mxu0 %v870
  %3685 = vmatprep.subr.bf16.mxu0 %v879
  %3686 = vmatpush1.bf16.msra.mxu0 %v878
  %3687 = vmatprep.subr.bf16.mxu0 %v887
  %3688 = vmatpush1.bf16.msra.mxu0 %v886
  %3689 = vmatprep.subr.bf16.mxu0 %v895
  %3690 = vmatpush1.bf16.msra.mxu0 %v894
  %3691 = vmatprep.subr.bf16.mxu0 %v903
  %3692 = vmatpush1.bf16.msra.mxu0 %v902
  %3693 = vmatprep.subr.bf16.mxu0 %v911
  %3694 = vmatpush1.bf16.msra.mxu0 %v910
  %3695 = vmatprep.subr.bf16.mxu0 %v919
  %3696 = vmatpush1.bf16.msra.mxu0 %v918
  %3697 = vmatprep.subr.bf16.mxu0 %v927
  %3698 = vmatpush1.bf16.msra.mxu0 %v926
  %3699 = vmatprep.subr.bf16.mxu0 %v935
  %3700 = vmatpush1.bf16.msra.mxu0 %v934
  %3701 = vmatprep.subr.bf16.mxu0 %v943
  %3702 = vmatpush1.bf16.msra.mxu0 %v942
  %3703 = vmatprep.subr.bf16.mxu0 %v951
  %3704 = vmatpush1.bf16.msra.mxu0 %v950
  %3705 = vmatprep.subr.bf16.mxu0 %v959
  %3706 = vmatpush1.bf16.msra.mxu0 %v958
  %3707 = vmatprep.subr.bf16.mxu0 %v967
  %3708 = vmatpush1.bf16.msra.mxu0 %v966
  %3709 = vmatprep.subr.bf16.mxu0 %v975
  %3710 = vmatpush1.bf16.msra.mxu0 %v974
  %3711 = vmatprep.mubr.bf16.mxu0 %v3637
  %3712 = vmatmul.mubr.bf16.gmra.mrb[0].mxu0 %v3636
  %v3713 = vpop.f32.mrb[0].mxu0
  %v3714 = vadd.f32 0.0, %v3713
  %v3715 = vpop.f32.mrb[0].mxu0
  %v3716 = vadd.f32 0.0, %v3715
  %v3717 = vpop.f32.mrb[0].mxu0
  %v3718 = vpop.f32.mrb[0].mxu0
  %3719 = vdwg.mxu0
  %3720 = vmatprep.subr.bf16.mxu0 %v857
  %3721 = vmatpush1.bf16.msra.mxu0 %v856
  %3722 = vmatprep.subr.bf16.mxu0 %v865
  %3723 = vmatpush1.bf16.msra.mxu0 %v864
  %3724 = vmatprep.subr.bf16.mxu0 %v873
  %3725 = vmatpush1.bf16.msra.mxu0 %v872
  %3726 = vmatprep.subr.bf16.mxu0 %v881
  %3727 = vmatpush1.bf16.msra.mxu0 %v880
  %3728 = vmatprep.subr.bf16.mxu0 %v889
  %3729 = vmatpush1.bf16.msra.mxu0 %v888
  %3730 = vmatprep.subr.bf16.mxu0 %v897
  %3731 = vmatpush1.bf16.msra.mxu0 %v896
  %3732 = vmatprep.subr.bf16.mxu0 %v905
  %3733 = vmatpush1.bf16.msra.mxu0 %v904
  %3734 = vmatprep.subr.bf16.mxu0 %v913
  %3735 = vmatpush1.bf16.msra.mxu0 %v912
  %3736 = vmatprep.subr.bf16.mxu0 %v921
  %3737 = vmatpush1.bf16.msra.mxu0 %v920
  %3738 = vmatprep.subr.bf16.mxu0 %v929
  %3739 = vmatpush1.bf16.msra.mxu0 %v928
  %3740 = vmatprep.subr.bf16.mxu0 %v937
  %3741 = vmatpush1.bf16.msra.mxu0 %v936
  %3742 = vmatprep.subr.bf16.mxu0 %v945
  %3743 = vmatpush1.bf16.msra.mxu0 %v944
  %3744 = vmatprep.subr.bf16.mxu0 %v953
  %3745 = vmatpush1.bf16.msra.mxu0 %v952
  %3746 = vmatprep.subr.bf16.mxu0 %v961
  %3747 = vmatpush1.bf16.msra.mxu0 %v960
  %3748 = vmatprep.subr.bf16.mxu0 %v969
  %3749 = vmatpush1.bf16.msra.mxu0 %v968
  %3750 = vmatprep.subr.bf16.mxu0 %v977
  %3751 = vmatpush1.bf16.msra.mxu0 %v976
  %3752 = vmatprep.mubr.bf16.mxu0 %v3637
  %3753 = vmatmul.mubr.bf16.gmra.mrb[0].mxu0 %v3636
  %v3754 = vpop.f32.mrb[0].mxu0
  %v3755 = vadd.f32 0.0, %v3754
  %v3756 = vpop.f32.mrb[0].mxu0
  %v3757 = vadd.f32 0.0, %v3756
  %v3758 = vpop.f32.mrb[0].mxu0
  %v3759 = vpop.f32.mrb[0].mxu0
  %3760 = vdwg.mxu0
  %3761 = vmatprep.subr.bf16.mxu0 %v859
  %3762 = vmatpush1.bf16.msra.mxu0 %v858
  %3763 = vmatprep.subr.bf16.mxu0 %v867
  %3764 = vmatpush1.bf16.msra.mxu0 %v866
  %3765 = vmatprep.subr.bf16.mxu0 %v875
  %3766 = vmatpush1.bf16.msra.mxu0 %v874
  %3767 = vmatprep.subr.bf16.mxu0 %v883
  %3768 = vmatpush1.bf16.msra.mxu0 %v882
  %3769 = vmatprep.subr.bf16.mxu0 %v891
  %3770 = vmatpush1.bf16.msra.mxu0 %v890
  %3771 = vmatprep.subr.bf16.mxu0 %v899
  %3772 = vmatpush1.bf16.msra.mxu0 %v898
  %3773 = vmatprep.subr.bf16.mxu0 %v907
  %3774 = vmatpush1.bf16.msra.mxu0 %v906
  %3775 = vmatprep.subr.bf16.mxu0 %v915
  %3776 = vmatpush1.bf16.msra.mxu0 %v914
  %3777 = vmatprep.subr.bf16.mxu0 %v923
  %3778 = vmatpush1.bf16.msra.mxu0 %v922
  %3779 = vmatprep.subr.bf16.mxu0 %v931
  %3780 = vmatpush1.bf16.msra.mxu0 %v930
  %3781 = vmatprep.subr.bf16.mxu0 %v939
  %3782 = vmatpush1.bf16.msra.mxu0 %v938
  %3783 = vmatprep.subr.bf16.mxu0 %v947
  %3784 = vmatpush1.bf16.msra.mxu0 %v946
  %3785 = vmatprep.subr.bf16.mxu0 %v955
  %3786 = vmatpush1.bf16.msra.mxu0 %v954
  %3787 = vmatprep.subr.bf16.mxu0 %v963
  %3788 = vmatpush1.bf16.msra.mxu0 %v962
  %3789 = vmatprep.subr.bf16.mxu0 %v971
  %3790 = vmatpush1.bf16.msra.mxu0 %v970
  %3791 = vmatprep.subr.bf16.mxu0 %v979
  %3792 = vmatpush1.bf16.msra.mxu0 %v978
  %3793 = vmatprep.mubr.bf16.mxu0 %v3637
  %3794 = vmatmul.mubr.bf16.gmra.mrb[0].mxu0 %v3636
  %v3795 = vpop.f32.mrb[0].mxu0
  %v3796 = vadd.f32 0.0, %v3795
  %v3797 = vpop.f32.mrb[0].mxu0
  %v3798 = vadd.f32 0.0, %v3797
  %v3799 = vpop.f32.mrb[0].mxu0
  %v3800 = vpop.f32.mrb[0].mxu0
  %3801 = vdwg.mxu0
  %v3802 = vadd.f32 %v3628, %v3673
  %v3803 = vadd.f32 %v3629, %v3675
  %v3804 = vadd.f32 %v3630, %v3714
  %v3805 = vadd.f32 %v3631, %v3716
  %v3806 = vadd.f32 %v3632, %v3755
  %v3807 = vadd.f32 %v3633, %v3757
  %v3808 = vadd.f32 %v3634, %v3796
  %v3809 = vadd.f32 %v3635, %v3798
  %v3810 = vxor.u32 %v3802, 2147483648
  %v3811 = vxor.u32 %v3803, 2147483648
  %v3812 = vmul.f32 %v3810, 1.442695
  %v3813 = vpow.pop %v3812
  %v3814 = vmul.f32 %v3811, 1.442695
  %v3815 = vpow.pop %v3814
  %v3816 = vadd.f32 %v3813, 1.0
  %v3817 = vadd.f32 %v3815, 1.0
  %v3818 = vrcp.pop %v3816
  %v3819 = vmul.f32 1.0, %v3818
  %v3820 = vrcp.pop %v3817
  %v3821 = vmul.f32 1.0, %v3820
  %v3822 = vxor.u32 %v3804, 2147483648
  %v3823 = vxor.u32 %v3805, 2147483648
  %v3824 = vmul.f32 %v3822, 1.442695
  %v3825 = vpow.pop %v3824
  %v3826 = vmul.f32 %v3823, 1.442695
  %v3827 = vpow.pop %v3826
  %v3828 = vadd.f32 %v3825, 1.0
  %v3829 = vadd.f32 %v3827, 1.0
  %v3830 = vrcp.pop %v3828
  %v3831 = vmul.f32 1.0, %v3830
  %v3832 = vrcp.pop %v3829
  %v3833 = vmul.f32 1.0, %v3832
  %v3834 = vtanh.pop %v3806
  %v3835 = vtanh.pop %v3807
  %v3836 = vxor.u32 %v3808, 2147483648
  %v3837 = vxor.u32 %v3809, 2147483648
  %v3838 = vmul.f32 %v3836, 1.442695
  %v3839 = vpow.pop %v3838
  %v3840 = vmul.f32 %v3837, 1.442695
  %v3841 = vpow.pop %v3840
  %v3842 = vadd.f32 %v3839, 1.0
  %v3843 = vadd.f32 %v3841, 1.0
  %v3844 = vrcp.pop %v3842
  %v3845 = vmul.f32 1.0, %v3844
  %v3846 = vrcp.pop %v3843
  %v3847 = vmul.f32 1.0, %v3846
  %v3848 = vmul.f32 %v3831, %v3226
  %v3849 = vmul.f32 %v3833, %v3227
  %v3850 = vmul.f32 %v3819, %v3834
  %v3851 = vmul.f32 %v3821, %v3835
  %v3852 = vadd.f32 %v3848, %v3850
  %v3853 = vadd.f32 %v3849, %v3851
  %v3854 = vtanh.pop %v3852
  %v3855 = vtanh.pop %v3853
  %v3856 = vmul.f32 %v3845, %v3854
  %v3857 = vmul.f32 %v3847, %v3855
  %vm3858 = vcmp.gt.s32.totalorder %v459, 2
  %v3859 = vsel %vm3858, 1, 0
  %v3860 = vcvt.s32.f32 %v3859
  %3862 = vset.pattern.permute.xlu0 0
  %3863 = vperm.xlu0 %3862, %v3860
  %v3864 = vpop.permute.xlu0 %3863
  %v3866 = vmul.f32 %v3856, %v3864
  %v3867 = vmul.f32 %v3857, %v3864
  %v3868 = vpack.c.bf16 %v3866, %v3866
  %v3869 = vpack.c.bf16 %v3867, %v3867
  %v3870 = vpack.c.bf16 %v3620, %v3620
  %v3871 = vpack.c.bf16 %v3621, %v3621
  %3872 = vmatprep.subr.bf16.mxu0 %v2110
  %3873 = vmatpush1.bf16.msra.mxu0 %v2109
  %3874 = vmatprep.subr.bf16.mxu0 %v2118
  %3875 = vmatpush1.bf16.msra.mxu0 %v2117
  %3876 = vmatprep.subr.bf16.mxu0 %v2126
  %3877 = vmatpush1.bf16.msra.mxu0 %v2125
  %3878 = vmatprep.subr.bf16.mxu0 %v2134
  %3879 = vmatpush1.bf16.msra.mxu0 %v2133
  %3880 = vmatprep.subr.bf16.mxu0 %v2142
  %3881 = vmatpush1.bf16.msra.mxu0 %v2141
  %3882 = vmatprep.subr.bf16.mxu0 %v2150
  %3883 = vmatpush1.bf16.msra.mxu0 %v2149
  %3884 = vmatprep.subr.bf16.mxu0 %v2158
  %3885 = vmatpush1.bf16.msra.mxu0 %v2157
  %3886 = vmatprep.subr.bf16.mxu0 %v2166
  %3887 = vmatpush1.bf16.msra.mxu0 %v2165
  %3888 = vmatprep.subr.bf16.mxu0 %v2174
  %3889 = vmatpush1.bf16.msra.mxu0 %v2173
  %3890 = vmatprep.subr.bf16.mxu0 %v2182
  %3891 = vmatpush1.bf16.msra.mxu0 %v2181
  %3892 = vmatprep.subr.bf16.mxu0 %v2190
  %3893 = vmatpush1.bf16.msra.mxu0 %v2189
  %3894 = vmatprep.subr.bf16.mxu0 %v2198
  %3895 = vmatpush1.bf16.msra.mxu0 %v2197
  %3896 = vmatprep.subr.bf16.mxu0 %v2206
  %3897 = vmatpush1.bf16.msra.mxu0 %v2205
  %3898 = vmatprep.subr.bf16.mxu0 %v2214
  %3899 = vmatpush1.bf16.msra.mxu0 %v2213
  %3900 = vmatprep.subr.bf16.mxu0 %v2222
  %3901 = vmatpush1.bf16.msra.mxu0 %v2221
  %3902 = vmatprep.subr.bf16.mxu0 %v2230
  %3903 = vmatpush1.bf16.msra.mxu0 %v2229
  %3904 = vmatprep.mubr.bf16.mxu0 %v3869
  %3905 = vmatmul.mubr.bf16.gmra.mrb[0].mxu0 %v3868
  %v3906 = vpop.f32.mrb[0].mxu0
  %v3907 = vadd.f32 %v422, %v3906
  %v3908 = vpop.f32.mrb[0].mxu0
  %v3909 = vadd.f32 %v426, %v3908
  %v3910 = vpop.f32.mrb[0].mxu0
  %v3911 = vpop.f32.mrb[0].mxu0
  %3912 = vdwg.mxu0
  %3913 = vmatprep.subr.bf16.mxu0 %v2238
  %3914 = vmatpush1.bf16.msra.mxu0 %v2237
  %3915 = vmatprep.subr.bf16.mxu0 %v2246
  %3916 = vmatpush1.bf16.msra.mxu0 %v2245
  %3917 = vmatprep.subr.bf16.mxu0 %v2254
  %3918 = vmatpush1.bf16.msra.mxu0 %v2253
  %3919 = vmatprep.subr.bf16.mxu0 %v2262
  %3920 = vmatpush1.bf16.msra.mxu0 %v2261
  %3921 = vmatprep.subr.bf16.mxu0 %v2270
  %3922 = vmatpush1.bf16.msra.mxu0 %v2269
  %3923 = vmatprep.subr.bf16.mxu0 %v2278
  %3924 = vmatpush1.bf16.msra.mxu0 %v2277
  %3925 = vmatprep.subr.bf16.mxu0 %v2286
  %3926 = vmatpush1.bf16.msra.mxu0 %v2285
  %3927 = vmatprep.subr.bf16.mxu0 %v2294
  %3928 = vmatpush1.bf16.msra.mxu0 %v2293
  %3929 = vmatprep.subr.bf16.mxu0 %v2302
  %3930 = vmatpush1.bf16.msra.mxu0 %v2301
  %3931 = vmatprep.subr.bf16.mxu0 %v2310
  %3932 = vmatpush1.bf16.msra.mxu0 %v2309
  %3933 = vmatprep.subr.bf16.mxu0 %v2318
  %3934 = vmatpush1.bf16.msra.mxu0 %v2317
  %3935 = vmatprep.subr.bf16.mxu0 %v2326
  %3936 = vmatpush1.bf16.msra.mxu0 %v2325
  %3937 = vmatprep.subr.bf16.mxu0 %v2334
  %3938 = vmatpush1.bf16.msra.mxu0 %v2333
  %3939 = vmatprep.subr.bf16.mxu0 %v2342
  %3940 = vmatpush1.bf16.msra.mxu0 %v2341
  %3941 = vmatprep.subr.bf16.mxu0 %v2350
  %3942 = vmatpush1.bf16.msra.mxu0 %v2349
  %3943 = vmatprep.subr.bf16.mxu0 %v2358
  %3944 = vmatpush1.bf16.msra.mxu0 %v2357
  %3945 = vmatprep.mubr.bf16.mxu0 %v3871
  %3946 = vmatmul.mubr.bf16.gmra.mrb[0].mxu0 %v3870
  %v3947 = vpop.f32.mrb[0].mxu0
  %v3948 = vadd.f32 %v3907, %v3947
  %v3949 = vpop.f32.mrb[0].mxu0
  %v3950 = vadd.f32 %v3909, %v3949
  %v3951 = vpop.f32.mrb[0].mxu0
  %v3952 = vpop.f32.mrb[0].mxu0
  %3953 = vdwg.mxu0
  %3954 = vmatprep.subr.bf16.mxu0 %v2112
  %3955 = vmatpush1.bf16.msra.mxu0 %v2111
  %3956 = vmatprep.subr.bf16.mxu0 %v2120
  %3957 = vmatpush1.bf16.msra.mxu0 %v2119
  %3958 = vmatprep.subr.bf16.mxu0 %v2128
  %3959 = vmatpush1.bf16.msra.mxu0 %v2127
  %3960 = vmatprep.subr.bf16.mxu0 %v2136
  %3961 = vmatpush1.bf16.msra.mxu0 %v2135
  %3962 = vmatprep.subr.bf16.mxu0 %v2144
  %3963 = vmatpush1.bf16.msra.mxu0 %v2143
  %3964 = vmatprep.subr.bf16.mxu0 %v2152
  %3965 = vmatpush1.bf16.msra.mxu0 %v2151
  %3966 = vmatprep.subr.bf16.mxu0 %v2160
  %3967 = vmatpush1.bf16.msra.mxu0 %v2159
  %3968 = vmatprep.subr.bf16.mxu0 %v2168
  %3969 = vmatpush1.bf16.msra.mxu0 %v2167
  %3970 = vmatprep.subr.bf16.mxu0 %v2176
  %3971 = vmatpush1.bf16.msra.mxu0 %v2175
  %3972 = vmatprep.subr.bf16.mxu0 %v2184
  %3973 = vmatpush1.bf16.msra.mxu0 %v2183
  %3974 = vmatprep.subr.bf16.mxu0 %v2192
  %3975 = vmatpush1.bf16.msra.mxu0 %v2191
  %3976 = vmatprep.subr.bf16.mxu0 %v2200
  %3977 = vmatpush1.bf16.msra.mxu0 %v2199
  %3978 = vmatprep.subr.bf16.mxu0 %v2208
  %3979 = vmatpush1.bf16.msra.mxu0 %v2207
  %3980 = vmatprep.subr.bf16.mxu0 %v2216
  %3981 = vmatpush1.bf16.msra.mxu0 %v2215
  %3982 = vmatprep.subr.bf16.mxu0 %v2224
  %3983 = vmatpush1.bf16.msra.mxu0 %v2223
  %3984 = vmatprep.subr.bf16.mxu0 %v2232
  %3985 = vmatpush1.bf16.msra.mxu0 %v2231
  %3986 = vmatprep.mubr.bf16.mxu0 %v3869
  %3987 = vmatmul.mubr.bf16.gmra.mrb[0].mxu0 %v3868
  %v3988 = vpop.f32.mrb[0].mxu0
  %v3989 = vadd.f32 %v430, %v3988
  %v3990 = vpop.f32.mrb[0].mxu0
  %v3991 = vadd.f32 %v434, %v3990
  %v3992 = vpop.f32.mrb[0].mxu0
  %v3993 = vpop.f32.mrb[0].mxu0
  %3994 = vdwg.mxu0
  %3995 = vmatprep.subr.bf16.mxu0 %v2240
  %3996 = vmatpush1.bf16.msra.mxu0 %v2239
  %3997 = vmatprep.subr.bf16.mxu0 %v2248
  %3998 = vmatpush1.bf16.msra.mxu0 %v2247
  %3999 = vmatprep.subr.bf16.mxu0 %v2256
  %4000 = vmatpush1.bf16.msra.mxu0 %v2255
  %4001 = vmatprep.subr.bf16.mxu0 %v2264
  %4002 = vmatpush1.bf16.msra.mxu0 %v2263
  %4003 = vmatprep.subr.bf16.mxu0 %v2272
  %4004 = vmatpush1.bf16.msra.mxu0 %v2271
  %4005 = vmatprep.subr.bf16.mxu0 %v2280
  %4006 = vmatpush1.bf16.msra.mxu0 %v2279
  %4007 = vmatprep.subr.bf16.mxu0 %v2288
  %4008 = vmatpush1.bf16.msra.mxu0 %v2287
  %4009 = vmatprep.subr.bf16.mxu0 %v2296
  %4010 = vmatpush1.bf16.msra.mxu0 %v2295
  %4011 = vmatprep.subr.bf16.mxu0 %v2304
  %4012 = vmatpush1.bf16.msra.mxu0 %v2303
  %4013 = vmatprep.subr.bf16.mxu0 %v2312
  %4014 = vmatpush1.bf16.msra.mxu0 %v2311
  %4015 = vmatprep.subr.bf16.mxu0 %v2320
  %4016 = vmatpush1.bf16.msra.mxu0 %v2319
  %4017 = vmatprep.subr.bf16.mxu0 %v2328
  %4018 = vmatpush1.bf16.msra.mxu0 %v2327
  %4019 = vmatprep.subr.bf16.mxu0 %v2336
  %4020 = vmatpush1.bf16.msra.mxu0 %v2335
  %4021 = vmatprep.subr.bf16.mxu0 %v2344
  %4022 = vmatpush1.bf16.msra.mxu0 %v2343
  %4023 = vmatprep.subr.bf16.mxu0 %v2352
  %4024 = vmatpush1.bf16.msra.mxu0 %v2351
  %4025 = vmatprep.subr.bf16.mxu0 %v2360
  %4026 = vmatpush1.bf16.msra.mxu0 %v2359
  %4027 = vmatprep.mubr.bf16.mxu0 %v3871
  %4028 = vmatmul.mubr.bf16.gmra.mrb[0].mxu0 %v3870
  %v4029 = vpop.f32.mrb[0].mxu0
  %v4030 = vadd.f32 %v3989, %v4029
  %v4031 = vpop.f32.mrb[0].mxu0
  %v4032 = vadd.f32 %v3991, %v4031
  %v4033 = vpop.f32.mrb[0].mxu0
  %v4034 = vpop.f32.mrb[0].mxu0
  %4035 = vdwg.mxu0
  %4036 = vmatprep.subr.bf16.mxu0 %v2114
  %4037 = vmatpush1.bf16.msra.mxu0 %v2113
  %4038 = vmatprep.subr.bf16.mxu0 %v2122
  %4039 = vmatpush1.bf16.msra.mxu0 %v2121
  %4040 = vmatprep.subr.bf16.mxu0 %v2130
  %4041 = vmatpush1.bf16.msra.mxu0 %v2129
  %4042 = vmatprep.subr.bf16.mxu0 %v2138
  %4043 = vmatpush1.bf16.msra.mxu0 %v2137
  %4044 = vmatprep.subr.bf16.mxu0 %v2146
  %4045 = vmatpush1.bf16.msra.mxu0 %v2145
  %4046 = vmatprep.subr.bf16.mxu0 %v2154
  %4047 = vmatpush1.bf16.msra.mxu0 %v2153
  %4048 = vmatprep.subr.bf16.mxu0 %v2162
  %4049 = vmatpush1.bf16.msra.mxu0 %v2161
  %4050 = vmatprep.subr.bf16.mxu0 %v2170
  %4051 = vmatpush1.bf16.msra.mxu0 %v2169
  %4052 = vmatprep.subr.bf16.mxu0 %v2178
  %4053 = vmatpush1.bf16.msra.mxu0 %v2177
  %4054 = vmatprep.subr.bf16.mxu0 %v2186
  %4055 = vmatpush1.bf16.msra.mxu0 %v2185
  %4056 = vmatprep.subr.bf16.mxu0 %v2194
  %4057 = vmatpush1.bf16.msra.mxu0 %v2193
  %4058 = vmatprep.subr.bf16.mxu0 %v2202
  %4059 = vmatpush1.bf16.msra.mxu0 %v2201
  %4060 = vmatprep.subr.bf16.mxu0 %v2210
  %4061 = vmatpush1.bf16.msra.mxu0 %v2209
  %4062 = vmatprep.subr.bf16.mxu0 %v2218
  %4063 = vmatpush1.bf16.msra.mxu0 %v2217
  %4064 = vmatprep.subr.bf16.mxu0 %v2226
  %4065 = vmatpush1.bf16.msra.mxu0 %v2225
  %4066 = vmatprep.subr.bf16.mxu0 %v2234
  %4067 = vmatpush1.bf16.msra.mxu0 %v2233
  %4068 = vmatprep.mubr.bf16.mxu0 %v3869
  %4069 = vmatmul.mubr.bf16.gmra.mrb[0].mxu0 %v3868
  %v4070 = vpop.f32.mrb[0].mxu0
  %v4071 = vadd.f32 %v438, %v4070
  %v4072 = vpop.f32.mrb[0].mxu0
  %v4073 = vadd.f32 %v442, %v4072
  %v4074 = vpop.f32.mrb[0].mxu0
  %v4075 = vpop.f32.mrb[0].mxu0
  %4076 = vdwg.mxu0
  %4077 = vmatprep.subr.bf16.mxu0 %v2242
  %4078 = vmatpush1.bf16.msra.mxu0 %v2241
  %4079 = vmatprep.subr.bf16.mxu0 %v2250
  %4080 = vmatpush1.bf16.msra.mxu0 %v2249
  %4081 = vmatprep.subr.bf16.mxu0 %v2258
  %4082 = vmatpush1.bf16.msra.mxu0 %v2257
  %4083 = vmatprep.subr.bf16.mxu0 %v2266
  %4084 = vmatpush1.bf16.msra.mxu0 %v2265
  %4085 = vmatprep.subr.bf16.mxu0 %v2274
  %4086 = vmatpush1.bf16.msra.mxu0 %v2273
  %4087 = vmatprep.subr.bf16.mxu0 %v2282
  %4088 = vmatpush1.bf16.msra.mxu0 %v2281
  %4089 = vmatprep.subr.bf16.mxu0 %v2290
  %4090 = vmatpush1.bf16.msra.mxu0 %v2289
  %4091 = vmatprep.subr.bf16.mxu0 %v2298
  %4092 = vmatpush1.bf16.msra.mxu0 %v2297
  %4093 = vmatprep.subr.bf16.mxu0 %v2306
  %4094 = vmatpush1.bf16.msra.mxu0 %v2305
  %4095 = vmatprep.subr.bf16.mxu0 %v2314
  %4096 = vmatpush1.bf16.msra.mxu0 %v2313
  %4097 = vmatprep.subr.bf16.mxu0 %v2322
  %4098 = vmatpush1.bf16.msra.mxu0 %v2321
  %4099 = vmatprep.subr.bf16.mxu0 %v2330
  %4100 = vmatpush1.bf16.msra.mxu0 %v2329
  %4101 = vmatprep.subr.bf16.mxu0 %v2338
  %4102 = vmatpush1.bf16.msra.mxu0 %v2337
  %4103 = vmatprep.subr.bf16.mxu0 %v2346
  %4104 = vmatpush1.bf16.msra.mxu0 %v2345
  %4105 = vmatprep.subr.bf16.mxu0 %v2354
  %4106 = vmatpush1.bf16.msra.mxu0 %v2353
  %4107 = vmatprep.subr.bf16.mxu0 %v2362
  %4108 = vmatpush1.bf16.msra.mxu0 %v2361
  %4109 = vmatprep.mubr.bf16.mxu0 %v3871
  %4110 = vmatmul.mubr.bf16.gmra.mrb[0].mxu0 %v3870
  %v4111 = vpop.f32.mrb[0].mxu0
  %v4112 = vadd.f32 %v4071, %v4111
  %v4113 = vpop.f32.mrb[0].mxu0
  %v4114 = vadd.f32 %v4073, %v4113
  %v4115 = vpop.f32.mrb[0].mxu0
  %v4116 = vpop.f32.mrb[0].mxu0
  %4117 = vdwg.mxu0
  %4118 = vmatprep.subr.bf16.mxu0 %v2116
  %4119 = vmatpush1.bf16.msra.mxu0 %v2115
  %4120 = vmatprep.subr.bf16.mxu0 %v2124
  %4121 = vmatpush1.bf16.msra.mxu0 %v2123
  %4122 = vmatprep.subr.bf16.mxu0 %v2132
  %4123 = vmatpush1.bf16.msra.mxu0 %v2131
  %4124 = vmatprep.subr.bf16.mxu0 %v2140
  %4125 = vmatpush1.bf16.msra.mxu0 %v2139
  %4126 = vmatprep.subr.bf16.mxu0 %v2148
  %4127 = vmatpush1.bf16.msra.mxu0 %v2147
  %4128 = vmatprep.subr.bf16.mxu0 %v2156
  %4129 = vmatpush1.bf16.msra.mxu0 %v2155
  %4130 = vmatprep.subr.bf16.mxu0 %v2164
  %4131 = vmatpush1.bf16.msra.mxu0 %v2163
  %4132 = vmatprep.subr.bf16.mxu0 %v2172
  %4133 = vmatpush1.bf16.msra.mxu0 %v2171
  %4134 = vmatprep.subr.bf16.mxu0 %v2180
  %4135 = vmatpush1.bf16.msra.mxu0 %v2179
  %4136 = vmatprep.subr.bf16.mxu0 %v2188
  %4137 = vmatpush1.bf16.msra.mxu0 %v2187
  %4138 = vmatprep.subr.bf16.mxu0 %v2196
  %4139 = vmatpush1.bf16.msra.mxu0 %v2195
  %4140 = vmatprep.subr.bf16.mxu0 %v2204
  %4141 = vmatpush1.bf16.msra.mxu0 %v2203
  %4142 = vmatprep.subr.bf16.mxu0 %v2212
  %4143 = vmatpush1.bf16.msra.mxu0 %v2211
  %4144 = vmatprep.subr.bf16.mxu0 %v2220
  %4145 = vmatpush1.bf16.msra.mxu0 %v2219
  %4146 = vmatprep.subr.bf16.mxu0 %v2228
  %4147 = vmatpush1.bf16.msra.mxu0 %v2227
  %4148 = vmatprep.subr.bf16.mxu0 %v2236
  %4149 = vmatpush1.bf16.msra.mxu0 %v2235
  %4150 = vmatprep.mubr.bf16.mxu0 %v3869
  %4151 = vmatmul.mubr.bf16.gmra.mrb[0].mxu0 %v3868
  %v4152 = vpop.f32.mrb[0].mxu0
  %v4153 = vadd.f32 %v446, %v4152
  %v4154 = vpop.f32.mrb[0].mxu0
  %v4155 = vadd.f32 %v450, %v4154
  %v4156 = vpop.f32.mrb[0].mxu0
  %v4157 = vpop.f32.mrb[0].mxu0
  %4158 = vdwg.mxu0
  %4159 = vmatprep.subr.bf16.mxu0 %v2244
  %4160 = vmatpush1.bf16.msra.mxu0 %v2243
  %4161 = vmatprep.subr.bf16.mxu0 %v2252
  %4162 = vmatpush1.bf16.msra.mxu0 %v2251
  %4163 = vmatprep.subr.bf16.mxu0 %v2260
  %4164 = vmatpush1.bf16.msra.mxu0 %v2259
  %4165 = vmatprep.subr.bf16.mxu0 %v2268
  %4166 = vmatpush1.bf16.msra.mxu0 %v2267
  %4167 = vmatprep.subr.bf16.mxu0 %v2276
  %4168 = vmatpush1.bf16.msra.mxu0 %v2275
  %4169 = vmatprep.subr.bf16.mxu0 %v2284
  %4170 = vmatpush1.bf16.msra.mxu0 %v2283
  %4171 = vmatprep.subr.bf16.mxu0 %v2292
  %4172 = vmatpush1.bf16.msra.mxu0 %v2291
  %4173 = vmatprep.subr.bf16.mxu0 %v2300
  %4174 = vmatpush1.bf16.msra.mxu0 %v2299
  %4175 = vmatprep.subr.bf16.mxu0 %v2308
  %4176 = vmatpush1.bf16.msra.mxu0 %v2307
  %4177 = vmatprep.subr.bf16.mxu0 %v2316
  %4178 = vmatpush1.bf16.msra.mxu0 %v2315
  %4179 = vmatprep.subr.bf16.mxu0 %v2324
  %4180 = vmatpush1.bf16.msra.mxu0 %v2323
  %4181 = vmatprep.subr.bf16.mxu0 %v2332
  %4182 = vmatpush1.bf16.msra.mxu0 %v2331
  %4183 = vmatprep.subr.bf16.mxu0 %v2340
  %4184 = vmatpush1.bf16.msra.mxu0 %v2339
  %4185 = vmatprep.subr.bf16.mxu0 %v2348
  %4186 = vmatpush1.bf16.msra.mxu0 %v2347
  %4187 = vmatprep.subr.bf16.mxu0 %v2356
  %4188 = vmatpush1.bf16.msra.mxu0 %v2355
  %4189 = vmatprep.subr.bf16.mxu0 %v2364
  %4190 = vmatpush1.bf16.msra.mxu0 %v2363
  %4191 = vmatprep.mubr.bf16.mxu0 %v3871
  %4192 = vmatmul.mubr.bf16.gmra.mrb[0].mxu0 %v3870
  %v4193 = vpop.f32.mrb[0].mxu0
  %v4194 = vadd.f32 %v4153, %v4193
  %v4195 = vpop.f32.mrb[0].mxu0
  %v4196 = vadd.f32 %v4155, %v4195
  %v4197 = vpop.f32.mrb[0].mxu0
  %v4198 = vpop.f32.mrb[0].mxu0
  %4199 = vdwg.mxu0
  %v4200 = vxor.u32 %v3948, 2147483648
  %v4201 = vxor.u32 %v3950, 2147483648
  %v4202 = vmul.f32 %v4200, 1.442695
  %v4203 = vpow.pop %v4202
  %v4204 = vmul.f32 %v4201, 1.442695
  %v4205 = vpow.pop %v4204
  %v4206 = vadd.f32 %v4203, 1.0
  %v4207 = vadd.f32 %v4205, 1.0
  %v4208 = vrcp.pop %v4206
  %v4209 = vmul.f32 1.0, %v4208
  %v4210 = vrcp.pop %v4207
  %v4211 = vmul.f32 1.0, %v4210
  %v4212 = vxor.u32 %v4030, 2147483648
  %v4213 = vxor.u32 %v4032, 2147483648
  %v4214 = vmul.f32 %v4212, 1.442695
  %v4215 = vpow.pop %v4214
  %v4216 = vmul.f32 %v4213, 1.442695
  %v4217 = vpow.pop %v4216
  %v4218 = vadd.f32 %v4215, 1.0
  %v4219 = vadd.f32 %v4217, 1.0
  %v4220 = vrcp.pop %v4218
  %v4221 = vmul.f32 1.0, %v4220
  %v4222 = vrcp.pop %v4219
  %v4223 = vmul.f32 1.0, %v4222
  %v4224 = vtanh.pop %v4112
  %v4225 = vtanh.pop %v4114
  %v4226 = vxor.u32 %v4194, 2147483648
  %v4227 = vxor.u32 %v4196, 2147483648
  %v4228 = vmul.f32 %v4226, 1.442695
  %v4229 = vpow.pop %v4228
  %v4230 = vmul.f32 %v4227, 1.442695
  %v4231 = vpow.pop %v4230
  %v4232 = vadd.f32 %v4229, 1.0
  %v4233 = vadd.f32 %v4231, 1.0
  %v4234 = vrcp.pop %v4232
  %v4235 = vmul.f32 1.0, %v4234
  %v4236 = vrcp.pop %v4233
  %v4237 = vmul.f32 1.0, %v4236
  %v4238 = vmul.f32 %v4221, %v3616
  %v4239 = vmul.f32 %v4223, %v3617
  %v4240 = vmul.f32 %v4209, %v4224
  %v4241 = vmul.f32 %v4211, %v4225
  %v4242 = vadd.f32 %v4238, %v4240
  %v4243 = vadd.f32 %v4239, %v4241
  %v4244 = vtanh.pop %v4242
  %v4245 = vtanh.pop %v4243
  %v4246 = vmul.f32 %v4235, %v4244
  %v4247 = vmul.f32 %v4237, %v4245
  %v4248 = vmul.f32 %v4246, %v3864
  %v4249 = vmul.f32 %v4247, %v3864
  %s4250 = scalar_lea.vmem [#allocation2], 32
  %4251 = vst [vmem:[%s4250] sm:$0xff] %v4248
  %4252 = vst [vmem:[%s4250 + $0x8] sm:$0xff] %v4249
  %s4253 = scalar_lea.vmem %s0, 192
  %v4254 = vld [vmem:[%s4253] sm:$0xff]
  %v4255 = vld [vmem:[%s4253 + $0x8] sm:$0xff]
  %v4256 = vld [vmem:[%s4253 + $0x10] sm:$0xff]
  %v4257 = vld [vmem:[%s4253 + $0x18] sm:$0xff]
  %v4258 = vld [vmem:[%s4253 + $0x20] sm:$0xff]
  %v4259 = vld [vmem:[%s4253 + $0x28] sm:$0xff]
  %v4260 = vld [vmem:[%s4253 + $0x30] sm:$0xff]
  %v4261 = vld [vmem:[%s4253 + $0x38] sm:$0xff]
  %v4262 = vpack.c.bf16 %v3856, %v3856
  %v4263 = vpack.c.bf16 %v3857, %v3857
  %4264 = vmatprep.subr.bf16.mxu0 %v853
  %4265 = vmatpush1.bf16.msra.mxu0 %v852
  %4266 = vmatprep.subr.bf16.mxu0 %v861
  %4267 = vmatpush1.bf16.msra.mxu0 %v860
  %4268 = vmatprep.subr.bf16.mxu0 %v869
  %4269 = vmatpush1.bf16.msra.mxu0 %v868
  %4270 = vmatprep.subr.bf16.mxu0 %v877
  %4271 = vmatpush1.bf16.msra.mxu0 %v876
  %4272 = vmatprep.subr.bf16.mxu0 %v885
  %4273 = vmatpush1.bf16.msra.mxu0 %v884
  %4274 = vmatprep.subr.bf16.mxu0 %v893
  %4275 = vmatpush1.bf16.msra.mxu0 %v892
  %4276 = vmatprep.subr.bf16.mxu0 %v901
  %4277 = vmatpush1.bf16.msra.mxu0 %v900
  %4278 = vmatprep.subr.bf16.mxu0 %v909
  %4279 = vmatpush1.bf16.msra.mxu0 %v908
  %4280 = vmatprep.subr.bf16.mxu0 %v917
  %4281 = vmatpush1.bf16.msra.mxu0 %v916
  %4282 = vmatprep.subr.bf16.mxu0 %v925
  %4283 = vmatpush1.bf16.msra.mxu0 %v924
  %4284 = vmatprep.subr.bf16.mxu0 %v933
  %4285 = vmatpush1.bf16.msra.mxu0 %v932
  %4286 = vmatprep.subr.bf16.mxu0 %v941
  %4287 = vmatpush1.bf16.msra.mxu0 %v940
  %4288 = vmatprep.subr.bf16.mxu0 %v949
  %4289 = vmatpush1.bf16.msra.mxu0 %v948
  %4290 = vmatprep.subr.bf16.mxu0 %v957
  %4291 = vmatpush1.bf16.msra.mxu0 %v956
  %4292 = vmatprep.subr.bf16.mxu0 %v965
  %4293 = vmatpush1.bf16.msra.mxu0 %v964
  %4294 = vmatprep.subr.bf16.mxu0 %v973
  %4295 = vmatpush1.bf16.msra.mxu0 %v972
  %4296 = vmatprep.mubr.bf16.mxu0 %v4263
  %4297 = vmatmul.mubr.bf16.gmra.mrb[0].mxu0 %v4262
  %v4298 = vpop.f32.mrb[0].mxu0
  %v4299 = vadd.f32 0.0, %v4298
  %v4300 = vpop.f32.mrb[0].mxu0
  %v4301 = vadd.f32 0.0, %v4300
  %v4302 = vpop.f32.mrb[0].mxu0
  %v4303 = vpop.f32.mrb[0].mxu0
  %4304 = vdwg.mxu0
  %4305 = vmatprep.subr.bf16.mxu0 %v855
  %4306 = vmatpush1.bf16.msra.mxu0 %v854
  %4307 = vmatprep.subr.bf16.mxu0 %v863
  %4308 = vmatpush1.bf16.msra.mxu0 %v862
  %4309 = vmatprep.subr.bf16.mxu0 %v871
  %4310 = vmatpush1.bf16.msra.mxu0 %v870
  %4311 = vmatprep.subr.bf16.mxu0 %v879
  %4312 = vmatpush1.bf16.msra.mxu0 %v878
  %4313 = vmatprep.subr.bf16.mxu0 %v887
  %4314 = vmatpush1.bf16.msra.mxu0 %v886
  %4315 = vmatprep.subr.bf16.mxu0 %v895
  %4316 = vmatpush1.bf16.msra.mxu0 %v894
  %4317 = vmatprep.subr.bf16.mxu0 %v903
  %4318 = vmatpush1.bf16.msra.mxu0 %v902
  %4319 = vmatprep.subr.bf16.mxu0 %v911
  %4320 = vmatpush1.bf16.msra.mxu0 %v910
  %4321 = vmatprep.subr.bf16.mxu0 %v919
  %4322 = vmatpush1.bf16.msra.mxu0 %v918
  %4323 = vmatprep.subr.bf16.mxu0 %v927
  %4324 = vmatpush1.bf16.msra.mxu0 %v926
  %4325 = vmatprep.subr.bf16.mxu0 %v935
  %4326 = vmatpush1.bf16.msra.mxu0 %v934
  %4327 = vmatprep.subr.bf16.mxu0 %v943
  %4328 = vmatpush1.bf16.msra.mxu0 %v942
  %4329 = vmatprep.subr.bf16.mxu0 %v951
  %4330 = vmatpush1.bf16.msra.mxu0 %v950
  %4331 = vmatprep.subr.bf16.mxu0 %v959
  %4332 = vmatpush1.bf16.msra.mxu0 %v958
  %4333 = vmatprep.subr.bf16.mxu0 %v967
  %4334 = vmatpush1.bf16.msra.mxu0 %v966
  %4335 = vmatprep.subr.bf16.mxu0 %v975
  %4336 = vmatpush1.bf16.msra.mxu0 %v974
  %4337 = vmatprep.mubr.bf16.mxu0 %v4263
  %4338 = vmatmul.mubr.bf16.gmra.mrb[0].mxu0 %v4262
  %v4339 = vpop.f32.mrb[0].mxu0
  %v4340 = vadd.f32 0.0, %v4339
  %v4341 = vpop.f32.mrb[0].mxu0
  %v4342 = vadd.f32 0.0, %v4341
  %v4343 = vpop.f32.mrb[0].mxu0
  %v4344 = vpop.f32.mrb[0].mxu0
  %4345 = vdwg.mxu0
  %4346 = vmatprep.subr.bf16.mxu0 %v857
  %4347 = vmatpush1.bf16.msra.mxu0 %v856
  %4348 = vmatprep.subr.bf16.mxu0 %v865
  %4349 = vmatpush1.bf16.msra.mxu0 %v864
  %4350 = vmatprep.subr.bf16.mxu0 %v873
  %4351 = vmatpush1.bf16.msra.mxu0 %v872
  %4352 = vmatprep.subr.bf16.mxu0 %v881
  %4353 = vmatpush1.bf16.msra.mxu0 %v880
  %4354 = vmatprep.subr.bf16.mxu0 %v889
  %4355 = vmatpush1.bf16.msra.mxu0 %v888
  %4356 = vmatprep.subr.bf16.mxu0 %v897
  %4357 = vmatpush1.bf16.msra.mxu0 %v896
  %4358 = vmatprep.subr.bf16.mxu0 %v905
  %4359 = vmatpush1.bf16.msra.mxu0 %v904
  %4360 = vmatprep.subr.bf16.mxu0 %v913
  %4361 = vmatpush1.bf16.msra.mxu0 %v912
  %4362 = vmatprep.subr.bf16.mxu0 %v921
  %4363 = vmatpush1.bf16.msra.mxu0 %v920
  %4364 = vmatprep.subr.bf16.mxu0 %v929
  %4365 = vmatpush1.bf16.msra.mxu0 %v928
  %4366 = vmatprep.subr.bf16.mxu0 %v937
  %4367 = vmatpush1.bf16.msra.mxu0 %v936
  %4368 = vmatprep.subr.bf16.mxu0 %v945
  %4369 = vmatpush1.bf16.msra.mxu0 %v944
  %4370 = vmatprep.subr.bf16.mxu0 %v953
  %4371 = vmatpush1.bf16.msra.mxu0 %v952
  %4372 = vmatprep.subr.bf16.mxu0 %v961
  %4373 = vmatpush1.bf16.msra.mxu0 %v960
  %4374 = vmatprep.subr.bf16.mxu0 %v969
  %4375 = vmatpush1.bf16.msra.mxu0 %v968
  %4376 = vmatprep.subr.bf16.mxu0 %v977
  %4377 = vmatpush1.bf16.msra.mxu0 %v976
  %4378 = vmatprep.mubr.bf16.mxu0 %v4263
  %4379 = vmatmul.mubr.bf16.gmra.mrb[0].mxu0 %v4262
  %v4380 = vpop.f32.mrb[0].mxu0
  %v4381 = vadd.f32 0.0, %v4380
  %v4382 = vpop.f32.mrb[0].mxu0
  %v4383 = vadd.f32 0.0, %v4382
  %v4384 = vpop.f32.mrb[0].mxu0
  %v4385 = vpop.f32.mrb[0].mxu0
  %4386 = vdwg.mxu0
  %4387 = vmatprep.subr.bf16.mxu0 %v859
  %4388 = vmatpush1.bf16.msra.mxu0 %v858
  %4389 = vmatprep.subr.bf16.mxu0 %v867
  %4390 = vmatpush1.bf16.msra.mxu0 %v866
  %4391 = vmatprep.subr.bf16.mxu0 %v875
  %4392 = vmatpush1.bf16.msra.mxu0 %v874
  %4393 = vmatprep.subr.bf16.mxu0 %v883
  %4394 = vmatpush1.bf16.msra.mxu0 %v882
  %4395 = vmatprep.subr.bf16.mxu0 %v891
  %4396 = vmatpush1.bf16.msra.mxu0 %v890
  %4397 = vmatprep.subr.bf16.mxu0 %v899
  %4398 = vmatpush1.bf16.msra.mxu0 %v898
  %4399 = vmatprep.subr.bf16.mxu0 %v907
  %4400 = vmatpush1.bf16.msra.mxu0 %v906
  %4401 = vmatprep.subr.bf16.mxu0 %v915
  %4402 = vmatpush1.bf16.msra.mxu0 %v914
  %4403 = vmatprep.subr.bf16.mxu0 %v923
  %4404 = vmatpush1.bf16.msra.mxu0 %v922
  %4405 = vmatprep.subr.bf16.mxu0 %v931
  %4406 = vmatpush1.bf16.msra.mxu0 %v930
  %4407 = vmatprep.subr.bf16.mxu0 %v939
  %4408 = vmatpush1.bf16.msra.mxu0 %v938
  %4409 = vmatprep.subr.bf16.mxu0 %v947
  %4410 = vmatpush1.bf16.msra.mxu0 %v946
  %4411 = vmatprep.subr.bf16.mxu0 %v955
  %4412 = vmatpush1.bf16.msra.mxu0 %v954
  %4413 = vmatprep.subr.bf16.mxu0 %v963
  %4414 = vmatpush1.bf16.msra.mxu0 %v962
  %4415 = vmatprep.subr.bf16.mxu0 %v971
  %4416 = vmatpush1.bf16.msra.mxu0 %v970
  %4417 = vmatprep.subr.bf16.mxu0 %v979
  %4418 = vmatpush1.bf16.msra.mxu0 %v978
  %4419 = vmatprep.mubr.bf16.mxu0 %v4263
  %4420 = vmatmul.mubr.bf16.gmra.mrb[0].mxu0 %v4262
  %v4421 = vpop.f32.mrb[0].mxu0
  %v4422 = vadd.f32 0.0, %v4421
  %v4423 = vpop.f32.mrb[0].mxu0
  %v4424 = vadd.f32 0.0, %v4423
  %v4425 = vpop.f32.mrb[0].mxu0
  %v4426 = vpop.f32.mrb[0].mxu0
  %4427 = vdwg.mxu0
  %v4428 = vadd.f32 %v4254, %v4299
  %v4429 = vadd.f32 %v4255, %v4301
  %v4430 = vadd.f32 %v4256, %v4340
  %v4431 = vadd.f32 %v4257, %v4342
  %v4432 = vadd.f32 %v4258, %v4381
  %v4433 = vadd.f32 %v4259, %v4383
  %v4434 = vadd.f32 %v4260, %v4422
  %v4435 = vadd.f32 %v4261, %v4424
  %v4436 = vxor.u32 %v4428, 2147483648
  %v4437 = vxor.u32 %v4429, 2147483648
  %v4438 = vmul.f32 %v4436, 1.442695
  %v4439 = vpow.pop %v4438
  %v4440 = vmul.f32 %v4437, 1.442695
  %v4441 = vpow.pop %v4440
  %v4442 = vadd.f32 %v4439, 1.0
  %v4443 = vadd.f32 %v4441, 1.0
  %v4444 = vrcp.pop %v4442
  %v4445 = vmul.f32 1.0, %v4444
  %v4446 = vrcp.pop %v4443
  %v4447 = vmul.f32 1.0, %v4446
  %v4448 = vxor.u32 %v4430, 2147483648
  %v4449 = vxor.u32 %v4431, 2147483648
  %v4450 = vmul.f32 %v4448, 1.442695
  %v4451 = vpow.pop %v4450
  %v4452 = vmul.f32 %v4449, 1.442695
  %v4453 = vpow.pop %v4452
  %v4454 = vadd.f32 %v4451, 1.0
  %v4455 = vadd.f32 %v4453, 1.0
  %v4456 = vrcp.pop %v4454
  %v4457 = vmul.f32 1.0, %v4456
  %v4458 = vrcp.pop %v4455
  %v4459 = vmul.f32 1.0, %v4458
  %v4460 = vtanh.pop %v4432
  %v4461 = vtanh.pop %v4433
  %v4462 = vxor.u32 %v4434, 2147483648
  %v4463 = vxor.u32 %v4435, 2147483648
  %v4464 = vmul.f32 %v4462, 1.442695
  %v4465 = vpow.pop %v4464
  %v4466 = vmul.f32 %v4463, 1.442695
  %v4467 = vpow.pop %v4466
  %v4468 = vadd.f32 %v4465, 1.0
  %v4469 = vadd.f32 %v4467, 1.0
  %v4470 = vrcp.pop %v4468
  %v4471 = vmul.f32 1.0, %v4470
  %v4472 = vrcp.pop %v4469
  %v4473 = vmul.f32 1.0, %v4472
  %v4474 = vmul.f32 %v4457, %v3852
  %v4475 = vmul.f32 %v4459, %v3853
  %v4476 = vmul.f32 %v4445, %v4460
  %v4477 = vmul.f32 %v4447, %v4461
  %v4478 = vadd.f32 %v4474, %v4476
  %v4479 = vadd.f32 %v4475, %v4477
  %v4480 = vtanh.pop %v4478
  %v4481 = vtanh.pop %v4479
  %v4482 = vmul.f32 %v4471, %v4480
  %v4483 = vmul.f32 %v4473, %v4481
  %vm4484 = vcmp.gt.s32.totalorder %v459, 3
  %v4485 = vsel %vm4484, 1, 0
  %v4486 = vcvt.s32.f32 %v4485
  %4488 = vset.pattern.permute.xlu0 0
  %4489 = vperm.xlu0 %4488, %v4486
  %v4490 = vpop.permute.xlu0 %4489
  %v4492 = vmul.f32 %v4482, %v4490
  %v4493 = vmul.f32 %v4483, %v4490
  %v4494 = vpack.c.bf16 %v4492, %v4492
  %v4495 = vpack.c.bf16 %v4493, %v4493
  %v4496 = vpack.c.bf16 %v4246, %v4246
  %v4497 = vpack.c.bf16 %v4247, %v4247
  %4498 = vmatprep.subr.bf16.mxu0 %v2110
  %4499 = vmatpush1.bf16.msra.mxu0 %v2109
  %4500 = vmatprep.subr.bf16.mxu0 %v2118
  %4501 = vmatpush1.bf16.msra.mxu0 %v2117
  %4502 = vmatprep.subr.bf16.mxu0 %v2126
  %4503 = vmatpush1.bf16.msra.mxu0 %v2125
  %4504 = vmatprep.subr.bf16.mxu0 %v2134
  %4505 = vmatpush1.bf16.msra.mxu0 %v2133
  %4506 = vmatprep.subr.bf16.mxu0 %v2142
  %4507 = vmatpush1.bf16.msra.mxu0 %v2141
  %4508 = vmatprep.subr.bf16.mxu0 %v2150
  %4509 = vmatpush1.bf16.msra.mxu0 %v2149
  %4510 = vmatprep.subr.bf16.mxu0 %v2158
  %4511 = vmatpush1.bf16.msra.mxu0 %v2157
  %4512 = vmatprep.subr.bf16.mxu0 %v2166
  %4513 = vmatpush1.bf16.msra.mxu0 %v2165
  %4514 = vmatprep.subr.bf16.mxu0 %v2174
  %4515 = vmatpush1.bf16.msra.mxu0 %v2173
  %4516 = vmatprep.subr.bf16.mxu0 %v2182
  %4517 = vmatpush1.bf16.msra.mxu0 %v2181
  %4518 = vmatprep.subr.bf16.mxu0 %v2190
  %4519 = vmatpush1.bf16.msra.mxu0 %v2189
  %4520 = vmatprep.subr.bf16.mxu0 %v2198
  %4521 = vmatpush1.bf16.msra.mxu0 %v2197
  %4522 = vmatprep.subr.bf16.mxu0 %v2206
  %4523 = vmatpush1.bf16.msra.mxu0 %v2205
  %4524 = vmatprep.subr.bf16.mxu0 %v2214
  %4525 = vmatpush1.bf16.msra.mxu0 %v2213
  %4526 = vmatprep.subr.bf16.mxu0 %v2222
  %4527 = vmatpush1.bf16.msra.mxu0 %v2221
  %4528 = vmatprep.subr.bf16.mxu0 %v2230
  %4529 = vmatpush1.bf16.msra.mxu0 %v2229
  %4530 = vmatprep.mubr.bf16.mxu0 %v4495
  %4531 = vmatmul.mubr.bf16.gmra.mrb[0].mxu0 %v4494
  %v4532 = vpop.f32.mrb[0].mxu0
  %v4533 = vadd.f32 %v422, %v4532
  %v4534 = vpop.f32.mrb[0].mxu0
  %v4535 = vadd.f32 %v426, %v4534
  %v4536 = vpop.f32.mrb[0].mxu0
  %v4537 = vpop.f32.mrb[0].mxu0
  %4538 = vdwg.mxu0
  %4539 = vmatprep.subr.bf16.mxu0 %v2238
  %4540 = vmatpush1.bf16.msra.mxu0 %v2237
  %4541 = vmatprep.subr.bf16.mxu0 %v2246
  %4542 = vmatpush1.bf16.msra.mxu0 %v2245
  %4543 = vmatprep.subr.bf16.mxu0 %v2254
  %4544 = vmatpush1.bf16.msra.mxu0 %v2253
  %4545 = vmatprep.subr.bf16.mxu0 %v2262
  %4546 = vmatpush1.bf16.msra.mxu0 %v2261
  %4547 = vmatprep.subr.bf16.mxu0 %v2270
  %4548 = vmatpush1.bf16.msra.mxu0 %v2269
  %4549 = vmatprep.subr.bf16.mxu0 %v2278
  %4550 = vmatpush1.bf16.msra.mxu0 %v2277
  %4551 = vmatprep.subr.bf16.mxu0 %v2286
  %4552 = vmatpush1.bf16.msra.mxu0 %v2285
  %4553 = vmatprep.subr.bf16.mxu0 %v2294
  %4554 = vmatpush1.bf16.msra.mxu0 %v2293
  %4555 = vmatprep.subr.bf16.mxu0 %v2302
  %4556 = vmatpush1.bf16.msra.mxu0 %v2301
  %4557 = vmatprep.subr.bf16.mxu0 %v2310
  %4558 = vmatpush1.bf16.msra.mxu0 %v2309
  %4559 = vmatprep.subr.bf16.mxu0 %v2318
  %4560 = vmatpush1.bf16.msra.mxu0 %v2317
  %4561 = vmatprep.subr.bf16.mxu0 %v2326
  %4562 = vmatpush1.bf16.msra.mxu0 %v2325
  %4563 = vmatprep.subr.bf16.mxu0 %v2334
  %4564 = vmatpush1.bf16.msra.mxu0 %v2333
  %4565 = vmatprep.subr.bf16.mxu0 %v2342
  %4566 = vmatpush1.bf16.msra.mxu0 %v2341
  %4567 = vmatprep.subr.bf16.mxu0 %v2350
  %4568 = vmatpush1.bf16.msra.mxu0 %v2349
  %4569 = vmatprep.subr.bf16.mxu0 %v2358
  %4570 = vmatpush1.bf16.msra.mxu0 %v2357
  %4571 = vmatprep.mubr.bf16.mxu0 %v4497
  %4572 = vmatmul.mubr.bf16.gmra.mrb[0].mxu0 %v4496
  %v4573 = vpop.f32.mrb[0].mxu0
  %v4574 = vadd.f32 %v4533, %v4573
  %v4575 = vpop.f32.mrb[0].mxu0
  %v4576 = vadd.f32 %v4535, %v4575
  %v4577 = vpop.f32.mrb[0].mxu0
  %v4578 = vpop.f32.mrb[0].mxu0
  %4579 = vdwg.mxu0
  %4580 = vmatprep.subr.bf16.mxu0 %v2112
  %4581 = vmatpush1.bf16.msra.mxu0 %v2111
  %4582 = vmatprep.subr.bf16.mxu0 %v2120
  %4583 = vmatpush1.bf16.msra.mxu0 %v2119
  %4584 = vmatprep.subr.bf16.mxu0 %v2128
  %4585 = vmatpush1.bf16.msra.mxu0 %v2127
  %4586 = vmatprep.subr.bf16.mxu0 %v2136
  %4587 = vmatpush1.bf16.msra.mxu0 %v2135
  %4588 = vmatprep.subr.bf16.mxu0 %v2144
  %4589 = vmatpush1.bf16.msra.mxu0 %v2143
  %4590 = vmatprep.subr.bf16.mxu0 %v2152
  %4591 = vmatpush1.bf16.msra.mxu0 %v2151
  %4592 = vmatprep.subr.bf16.mxu0 %v2160
  %4593 = vmatpush1.bf16.msra.mxu0 %v2159
  %4594 = vmatprep.subr.bf16.mxu0 %v2168
  %4595 = vmatpush1.bf16.msra.mxu0 %v2167
  %4596 = vmatprep.subr.bf16.mxu0 %v2176
  %4597 = vmatpush1.bf16.msra.mxu0 %v2175
  %4598 = vmatprep.subr.bf16.mxu0 %v2184
  %4599 = vmatpush1.bf16.msra.mxu0 %v2183
  %4600 = vmatprep.subr.bf16.mxu0 %v2192
  %4601 = vmatpush1.bf16.msra.mxu0 %v2191
  %4602 = vmatprep.subr.bf16.mxu0 %v2200
  %4603 = vmatpush1.bf16.msra.mxu0 %v2199
  %4604 = vmatprep.subr.bf16.mxu0 %v2208
  %4605 = vmatpush1.bf16.msra.mxu0 %v2207
  %4606 = vmatprep.subr.bf16.mxu0 %v2216
  %4607 = vmatpush1.bf16.msra.mxu0 %v2215
  %4608 = vmatprep.subr.bf16.mxu0 %v2224
  %4609 = vmatpush1.bf16.msra.mxu0 %v2223
  %4610 = vmatprep.subr.bf16.mxu0 %v2232
  %4611 = vmatpush1.bf16.msra.mxu0 %v2231
  %4612 = vmatprep.mubr.bf16.mxu0 %v4495
  %4613 = vmatmul.mubr.bf16.gmra.mrb[0].mxu0 %v4494
  %v4614 = vpop.f32.mrb[0].mxu0
  %v4615 = vadd.f32 %v430, %v4614
  %v4616 = vpop.f32.mrb[0].mxu0
  %v4617 = vadd.f32 %v434, %v4616
  %v4618 = vpop.f32.mrb[0].mxu0
  %v4619 = vpop.f32.mrb[0].mxu0
  %4620 = vdwg.mxu0
  %4621 = vmatprep.subr.bf16.mxu0 %v2240
  %4622 = vmatpush1.bf16.msra.mxu0 %v2239
  %4623 = vmatprep.subr.bf16.mxu0 %v2248
  %4624 = vmatpush1.bf16.msra.mxu0 %v2247
  %4625 = vmatprep.subr.bf16.mxu0 %v2256
  %4626 = vmatpush1.bf16.msra.mxu0 %v2255
  %4627 = vmatprep.subr.bf16.mxu0 %v2264
  %4628 = vmatpush1.bf16.msra.mxu0 %v2263
  %4629 = vmatprep.subr.bf16.mxu0 %v2272
  %4630 = vmatpush1.bf16.msra.mxu0 %v2271
  %4631 = vmatprep.subr.bf16.mxu0 %v2280
  %4632 = vmatpush1.bf16.msra.mxu0 %v2279
  %4633 = vmatprep.subr.bf16.mxu0 %v2288
  %4634 = vmatpush1.bf16.msra.mxu0 %v2287
  %4635 = vmatprep.subr.bf16.mxu0 %v2296
  %4636 = vmatpush1.bf16.msra.mxu0 %v2295
  %4637 = vmatprep.subr.bf16.mxu0 %v2304
  %4638 = vmatpush1.bf16.msra.mxu0 %v2303
  %4639 = vmatprep.subr.bf16.mxu0 %v2312
  %4640 = vmatpush1.bf16.msra.mxu0 %v2311
  %4641 = vmatprep.subr.bf16.mxu0 %v2320
  %4642 = vmatpush1.bf16.msra.mxu0 %v2319
  %4643 = vmatprep.subr.bf16.mxu0 %v2328
  %4644 = vmatpush1.bf16.msra.mxu0 %v2327
  %4645 = vmatprep.subr.bf16.mxu0 %v2336
  %4646 = vmatpush1.bf16.msra.mxu0 %v2335
  %4647 = vmatprep.subr.bf16.mxu0 %v2344
  %4648 = vmatpush1.bf16.msra.mxu0 %v2343
  %4649 = vmatprep.subr.bf16.mxu0 %v2352
  %4650 = vmatpush1.bf16.msra.mxu0 %v2351
  %4651 = vmatprep.subr.bf16.mxu0 %v2360
  %4652 = vmatpush1.bf16.msra.mxu0 %v2359
  %4653 = vmatprep.mubr.bf16.mxu0 %v4497
  %4654 = vmatmul.mubr.bf16.gmra.mrb[0].mxu0 %v4496
  %v4655 = vpop.f32.mrb[0].mxu0
  %v4656 = vadd.f32 %v4615, %v4655
  %v4657 = vpop.f32.mrb[0].mxu0
  %v4658 = vadd.f32 %v4617, %v4657
  %v4659 = vpop.f32.mrb[0].mxu0
  %v4660 = vpop.f32.mrb[0].mxu0
  %4661 = vdwg.mxu0
  %4662 = vmatprep.subr.bf16.mxu0 %v2114
  %4663 = vmatpush1.bf16.msra.mxu0 %v2113
  %4664 = vmatprep.subr.bf16.mxu0 %v2122
  %4665 = vmatpush1.bf16.msra.mxu0 %v2121
  %4666 = vmatprep.subr.bf16.mxu0 %v2130
  %4667 = vmatpush1.bf16.msra.mxu0 %v2129
  %4668 = vmatprep.subr.bf16.mxu0 %v2138
  %4669 = vmatpush1.bf16.msra.mxu0 %v2137
  %4670 = vmatprep.subr.bf16.mxu0 %v2146
  %4671 = vmatpush1.bf16.msra.mxu0 %v2145
  %4672 = vmatprep.subr.bf16.mxu0 %v2154
  %4673 = vmatpush1.bf16.msra.mxu0 %v2153
  %4674 = vmatprep.subr.bf16.mxu0 %v2162
  %4675 = vmatpush1.bf16.msra.mxu0 %v2161
  %4676 = vmatprep.subr.bf16.mxu0 %v2170
  %4677 = vmatpush1.bf16.msra.mxu0 %v2169
  %4678 = vmatprep.subr.bf16.mxu0 %v2178
  %4679 = vmatpush1.bf16.msra.mxu0 %v2177
  %4680 = vmatprep.subr.bf16.mxu0 %v2186
  %4681 = vmatpush1.bf16.msra.mxu0 %v2185
  %4682 = vmatprep.subr.bf16.mxu0 %v2194
  %4683 = vmatpush1.bf16.msra.mxu0 %v2193
  %4684 = vmatprep.subr.bf16.mxu0 %v2202
  %4685 = vmatpush1.bf16.msra.mxu0 %v2201
  %4686 = vmatprep.subr.bf16.mxu0 %v2210
  %4687 = vmatpush1.bf16.msra.mxu0 %v2209
  %4688 = vmatprep.subr.bf16.mxu0 %v2218
  %4689 = vmatpush1.bf16.msra.mxu0 %v2217
  %4690 = vmatprep.subr.bf16.mxu0 %v2226
  %4691 = vmatpush1.bf16.msra.mxu0 %v2225
  %4692 = vmatprep.subr.bf16.mxu0 %v2234
  %4693 = vmatpush1.bf16.msra.mxu0 %v2233
  %4694 = vmatprep.mubr.bf16.mxu0 %v4495
  %4695 = vmatmul.mubr.bf16.gmra.mrb[0].mxu0 %v4494
  %v4696 = vpop.f32.mrb[0].mxu0
  %v4697 = vadd.f32 %v438, %v4696
  %v4698 = vpop.f32.mrb[0].mxu0
  %v4699 = vadd.f32 %v442, %v4698
  %v4700 = vpop.f32.mrb[0].mxu0
  %v4701 = vpop.f32.mrb[0].mxu0
  %4702 = vdwg.mxu0
  %4703 = vmatprep.subr.bf16.mxu0 %v2242
  %4704 = vmatpush1.bf16.msra.mxu0 %v2241
  %4705 = vmatprep.subr.bf16.mxu0 %v2250
  %4706 = vmatpush1.bf16.msra.mxu0 %v2249
  %4707 = vmatprep.subr.bf16.mxu0 %v2258
  %4708 = vmatpush1.bf16.msra.mxu0 %v2257
  %4709 = vmatprep.subr.bf16.mxu0 %v2266
  %4710 = vmatpush1.bf16.msra.mxu0 %v2265
  %4711 = vmatprep.subr.bf16.mxu0 %v2274
  %4712 = vmatpush1.bf16.msra.mxu0 %v2273
  %4713 = vmatprep.subr.bf16.mxu0 %v2282
  %4714 = vmatpush1.bf16.msra.mxu0 %v2281
  %4715 = vmatprep.subr.bf16.mxu0 %v2290
  %4716 = vmatpush1.bf16.msra.mxu0 %v2289
  %4717 = vmatprep.subr.bf16.mxu0 %v2298
  %4718 = vmatpush1.bf16.msra.mxu0 %v2297
  %4719 = vmatprep.subr.bf16.mxu0 %v2306
  %4720 = vmatpush1.bf16.msra.mxu0 %v2305
  %4721 = vmatprep.subr.bf16.mxu0 %v2314
  %4722 = vmatpush1.bf16.msra.mxu0 %v2313
  %4723 = vmatprep.subr.bf16.mxu0 %v2322
  %4724 = vmatpush1.bf16.msra.mxu0 %v2321
  %4725 = vmatprep.subr.bf16.mxu0 %v2330
  %4726 = vmatpush1.bf16.msra.mxu0 %v2329
  %4727 = vmatprep.subr.bf16.mxu0 %v2338
  %4728 = vmatpush1.bf16.msra.mxu0 %v2337
  %4729 = vmatprep.subr.bf16.mxu0 %v2346
  %4730 = vmatpush1.bf16.msra.mxu0 %v2345
  %4731 = vmatprep.subr.bf16.mxu0 %v2354
  %4732 = vmatpush1.bf16.msra.mxu0 %v2353
  %4733 = vmatprep.subr.bf16.mxu0 %v2362
  %4734 = vmatpush1.bf16.msra.mxu0 %v2361
  %4735 = vmatprep.mubr.bf16.mxu0 %v4497
  %4736 = vmatmul.mubr.bf16.gmra.mrb[0].mxu0 %v4496
  %v4737 = vpop.f32.mrb[0].mxu0
  %v4738 = vadd.f32 %v4697, %v4737
  %v4739 = vpop.f32.mrb[0].mxu0
  %v4740 = vadd.f32 %v4699, %v4739
  %v4741 = vpop.f32.mrb[0].mxu0
  %v4742 = vpop.f32.mrb[0].mxu0
  %4743 = vdwg.mxu0
  %4744 = vmatprep.subr.bf16.mxu0 %v2116
  %4745 = vmatpush1.bf16.msra.mxu0 %v2115
  %4746 = vmatprep.subr.bf16.mxu0 %v2124
  %4747 = vmatpush1.bf16.msra.mxu0 %v2123
  %4748 = vmatprep.subr.bf16.mxu0 %v2132
  %4749 = vmatpush1.bf16.msra.mxu0 %v2131
  %4750 = vmatprep.subr.bf16.mxu0 %v2140
  %4751 = vmatpush1.bf16.msra.mxu0 %v2139
  %4752 = vmatprep.subr.bf16.mxu0 %v2148
  %4753 = vmatpush1.bf16.msra.mxu0 %v2147
  %4754 = vmatprep.subr.bf16.mxu0 %v2156
  %4755 = vmatpush1.bf16.msra.mxu0 %v2155
  %4756 = vmatprep.subr.bf16.mxu0 %v2164
  %4757 = vmatpush1.bf16.msra.mxu0 %v2163
  %4758 = vmatprep.subr.bf16.mxu0 %v2172
  %4759 = vmatpush1.bf16.msra.mxu0 %v2171
  %4760 = vmatprep.subr.bf16.mxu0 %v2180
  %4761 = vmatpush1.bf16.msra.mxu0 %v2179
  %4762 = vmatprep.subr.bf16.mxu0 %v2188
  %4763 = vmatpush1.bf16.msra.mxu0 %v2187
  %4764 = vmatprep.subr.bf16.mxu0 %v2196
  %4765 = vmatpush1.bf16.msra.mxu0 %v2195
  %4766 = vmatprep.subr.bf16.mxu0 %v2204
  %4767 = vmatpush1.bf16.msra.mxu0 %v2203
  %4768 = vmatprep.subr.bf16.mxu0 %v2212
  %4769 = vmatpush1.bf16.msra.mxu0 %v2211
  %4770 = vmatprep.subr.bf16.mxu0 %v2220
  %4771 = vmatpush1.bf16.msra.mxu0 %v2219
  %4772 = vmatprep.subr.bf16.mxu0 %v2228
  %4773 = vmatpush1.bf16.msra.mxu0 %v2227
  %4774 = vmatprep.subr.bf16.mxu0 %v2236
  %4775 = vmatpush1.bf16.msra.mxu0 %v2235
  %4776 = vmatprep.mubr.bf16.mxu0 %v4495
  %4777 = vmatmul.mubr.bf16.gmra.mrb[0].mxu0 %v4494
  %v4778 = vpop.f32.mrb[0].mxu0
  %v4779 = vadd.f32 %v446, %v4778
  %v4780 = vpop.f32.mrb[0].mxu0
  %v4781 = vadd.f32 %v450, %v4780
  %v4782 = vpop.f32.mrb[0].mxu0
  %v4783 = vpop.f32.mrb[0].mxu0
  %4784 = vdwg.mxu0
  %4785 = vmatprep.subr.bf16.mxu0 %v2244
  %4786 = vmatpush1.bf16.msra.mxu0 %v2243
  %4787 = vmatprep.subr.bf16.mxu0 %v2252
  %4788 = vmatpush1.bf16.msra.mxu0 %v2251
  %4789 = vmatprep.subr.bf16.mxu0 %v2260
  %4790 = vmatpush1.bf16.msra.mxu0 %v2259
  %4791 = vmatprep.subr.bf16.mxu0 %v2268
  %4792 = vmatpush1.bf16.msra.mxu0 %v2267
  %4793 = vmatprep.subr.bf16.mxu0 %v2276
  %4794 = vmatpush1.bf16.msra.mxu0 %v2275
  %4795 = vmatprep.subr.bf16.mxu0 %v2284
  %4796 = vmatpush1.bf16.msra.mxu0 %v2283
  %4797 = vmatprep.subr.bf16.mxu0 %v2292
  %4798 = vmatpush1.bf16.msra.mxu0 %v2291
  %4799 = vmatprep.subr.bf16.mxu0 %v2300
  %4800 = vmatpush1.bf16.msra.mxu0 %v2299
  %4801 = vmatprep.subr.bf16.mxu0 %v2308
  %4802 = vmatpush1.bf16.msra.mxu0 %v2307
  %4803 = vmatprep.subr.bf16.mxu0 %v2316
  %4804 = vmatpush1.bf16.msra.mxu0 %v2315
  %4805 = vmatprep.subr.bf16.mxu0 %v2324
  %4806 = vmatpush1.bf16.msra.mxu0 %v2323
  %4807 = vmatprep.subr.bf16.mxu0 %v2332
  %4808 = vmatpush1.bf16.msra.mxu0 %v2331
  %4809 = vmatprep.subr.bf16.mxu0 %v2340
  %4810 = vmatpush1.bf16.msra.mxu0 %v2339
  %4811 = vmatprep.subr.bf16.mxu0 %v2348
  %4812 = vmatpush1.bf16.msra.mxu0 %v2347
  %4813 = vmatprep.subr.bf16.mxu0 %v2356
  %4814 = vmatpush1.bf16.msra.mxu0 %v2355
  %4815 = vmatprep.subr.bf16.mxu0 %v2364
  %4816 = vmatpush1.bf16.msra.mxu0 %v2363
  %4817 = vmatprep.mubr.bf16.mxu0 %v4497
  %4818 = vmatmul.mubr.bf16.gmra.mrb[0].mxu0 %v4496
  %v4819 = vpop.f32.mrb[0].mxu0
  %v4820 = vadd.f32 %v4779, %v4819
  %v4821 = vpop.f32.mrb[0].mxu0
  %v4822 = vadd.f32 %v4781, %v4821
  %v4823 = vpop.f32.mrb[0].mxu0
  %v4824 = vpop.f32.mrb[0].mxu0
  %4825 = vdwg.mxu0
  %v4826 = vxor.u32 %v4574, 2147483648
  %v4827 = vxor.u32 %v4576, 2147483648
  %v4828 = vmul.f32 %v4826, 1.442695
  %v4829 = vpow.pop %v4828
  %v4830 = vmul.f32 %v4827, 1.442695
  %v4831 = vpow.pop %v4830
  %v4832 = vadd.f32 %v4829, 1.0
  %v4833 = vadd.f32 %v4831, 1.0
  %v4834 = vrcp.pop %v4832
  %v4835 = vmul.f32 1.0, %v4834
  %v4836 = vrcp.pop %v4833
  %v4837 = vmul.f32 1.0, %v4836
  %v4838 = vxor.u32 %v4656, 2147483648
  %v4839 = vxor.u32 %v4658, 2147483648
  %v4840 = vmul.f32 %v4838, 1.442695
  %v4841 = vpow.pop %v4840
  %v4842 = vmul.f32 %v4839, 1.442695
  %v4843 = vpow.pop %v4842
  %v4844 = vadd.f32 %v4841, 1.0
  %v4845 = vadd.f32 %v4843, 1.0
  %v4846 = vrcp.pop %v4844
  %v4847 = vmul.f32 1.0, %v4846
  %v4848 = vrcp.pop %v4845
  %v4849 = vmul.f32 1.0, %v4848
  %v4850 = vtanh.pop %v4738
  %v4851 = vtanh.pop %v4740
  %v4852 = vxor.u32 %v4820, 2147483648
  %v4853 = vxor.u32 %v4822, 2147483648
  %v4854 = vmul.f32 %v4852, 1.442695
  %v4855 = vpow.pop %v4854
  %v4856 = vmul.f32 %v4853, 1.442695
  %v4857 = vpow.pop %v4856
  %v4858 = vadd.f32 %v4855, 1.0
  %v4859 = vadd.f32 %v4857, 1.0
  %v4860 = vrcp.pop %v4858
  %v4861 = vmul.f32 1.0, %v4860
  %v4862 = vrcp.pop %v4859
  %v4863 = vmul.f32 1.0, %v4862
  %v4864 = vmul.f32 %v4847, %v4242
  %v4865 = vmul.f32 %v4849, %v4243
  %v4866 = vmul.f32 %v4835, %v4850
  %v4867 = vmul.f32 %v4837, %v4851
  %v4868 = vadd.f32 %v4864, %v4866
  %v4869 = vadd.f32 %v4865, %v4867
  %v4870 = vtanh.pop %v4868
  %v4871 = vtanh.pop %v4869
  %v4872 = vmul.f32 %v4861, %v4870
  %v4873 = vmul.f32 %v4863, %v4871
  %v4874 = vmul.f32 %v4872, %v4490
  %v4875 = vmul.f32 %v4873, %v4490
  %s4876 = scalar_lea.vmem [#allocation2], 48
  %4877 = vst [vmem:[%s4876] sm:$0xff] %v4874
  %4878 = vst [vmem:[%s4876 + $0x8] sm:$0xff] %v4875
  %s4879 = scalar_lea.vmem %s0, 256
  %v4880 = vld [vmem:[%s4879] sm:$0xff]
  %v4881 = vld [vmem:[%s4879 + $0x8] sm:$0xff]
  %v4882 = vld [vmem:[%s4879 + $0x10] sm:$0xff]
  %v4883 = vld [vmem:[%s4879 + $0x18] sm:$0xff]
  %v4884 = vld [vmem:[%s4879 + $0x20] sm:$0xff]
  %v4885 = vld [vmem:[%s4879 + $0x28] sm:$0xff]
  %v4886 = vld [vmem:[%s4879 + $0x30] sm:$0xff]
  %v4887 = vld [vmem:[%s4879 + $0x38] sm:$0xff]
  %v4888 = vpack.c.bf16 %v4482, %v4482
  %v4889 = vpack.c.bf16 %v4483, %v4483
  %4890 = vmatprep.subr.bf16.mxu0 %v853
  %4891 = vmatpush1.bf16.msra.mxu0 %v852
  %4892 = vmatprep.subr.bf16.mxu0 %v861
  %4893 = vmatpush1.bf16.msra.mxu0 %v860
  %4894 = vmatprep.subr.bf16.mxu0 %v869
  %4895 = vmatpush1.bf16.msra.mxu0 %v868
  %4896 = vmatprep.subr.bf16.mxu0 %v877
  %4897 = vmatpush1.bf16.msra.mxu0 %v876
  %4898 = vmatprep.subr.bf16.mxu0 %v885
  %4899 = vmatpush1.bf16.msra.mxu0 %v884
  %4900 = vmatprep.subr.bf16.mxu0 %v893
  %4901 = vmatpush1.bf16.msra.mxu0 %v892
  %4902 = vmatprep.subr.bf16.mxu0 %v901
  %4903 = vmatpush1.bf16.msra.mxu0 %v900
  %4904 = vmatprep.subr.bf16.mxu0 %v909
  %4905 = vmatpush1.bf16.msra.mxu0 %v908
  %4906 = vmatprep.subr.bf16.mxu0 %v917
  %4907 = vmatpush1.bf16.msra.mxu0 %v916
  %4908 = vmatprep.subr.bf16.mxu0 %v925
  %4909 = vmatpush1.bf16.msra.mxu0 %v924
  %4910 = vmatprep.subr.bf16.mxu0 %v933
  %4911 = vmatpush1.bf16.msra.mxu0 %v932
  %4912 = vmatprep.subr.bf16.mxu0 %v941
  %4913 = vmatpush1.bf16.msra.mxu0 %v940
  %4914 = vmatprep.subr.bf16.mxu0 %v949
  %4915 = vmatpush1.bf16.msra.mxu0 %v948
  %4916 = vmatprep.subr.bf16.mxu0 %v957
  %4917 = vmatpush1.bf16.msra.mxu0 %v956
  %4918 = vmatprep.subr.bf16.mxu0 %v965
  %4919 = vmatpush1.bf16.msra.mxu0 %v964
  %4920 = vmatprep.subr.bf16.mxu0 %v973
  %4921 = vmatpush1.bf16.msra.mxu0 %v972
  %4922 = vmatprep.mubr.bf16.mxu0 %v4889
  %4923 = vmatmul.mubr.bf16.gmra.mrb[0].mxu0 %v4888
  %v4924 = vpop.f32.mrb[0].mxu0
  %v4925 = vadd.f32 0.0, %v4924
  %v4926 = vpop.f32.mrb[0].mxu0
  %v4927 = vadd.f32 0.0, %v4926
  %v4928 = vpop.f32.mrb[0].mxu0
  %v4929 = vpop.f32.mrb[0].mxu0
  %4930 = vdwg.mxu0
  %4931 = vmatprep.subr.bf16.mxu0 %v855
  %4932 = vmatpush1.bf16.msra.mxu0 %v854
  %4933 = vmatprep.subr.bf16.mxu0 %v863
  %4934 = vmatpush1.bf16.msra.mxu0 %v862
  %4935 = vmatprep.subr.bf16.mxu0 %v871
  %4936 = vmatpush1.bf16.msra.mxu0 %v870
  %4937 = vmatprep.subr.bf16.mxu0 %v879
  %4938 = vmatpush1.bf16.msra.mxu0 %v878
  %4939 = vmatprep.subr.bf16.mxu0 %v887
  %4940 = vmatpush1.bf16.msra.mxu0 %v886
  %4941 = vmatprep.subr.bf16.mxu0 %v895
  %4942 = vmatpush1.bf16.msra.mxu0 %v894
  %4943 = vmatprep.subr.bf16.mxu0 %v903
  %4944 = vmatpush1.bf16.msra.mxu0 %v902
  %4945 = vmatprep.subr.bf16.mxu0 %v911
  %4946 = vmatpush1.bf16.msra.mxu0 %v910
  %4947 = vmatprep.subr.bf16.mxu0 %v919
  %4948 = vmatpush1.bf16.msra.mxu0 %v918
  %4949 = vmatprep.subr.bf16.mxu0 %v927
  %4950 = vmatpush1.bf16.msra.mxu0 %v926
  %4951 = vmatprep.subr.bf16.mxu0 %v935
  %4952 = vmatpush1.bf16.msra.mxu0 %v934
  %4953 = vmatprep.subr.bf16.mxu0 %v943
  %4954 = vmatpush1.bf16.msra.mxu0 %v942
  %4955 = vmatprep.subr.bf16.mxu0 %v951
  %4956 = vmatpush1.bf16.msra.mxu0 %v950
  %4957 = vmatprep.subr.bf16.mxu0 %v959
  %4958 = vmatpush1.bf16.msra.mxu0 %v958
  %4959 = vmatprep.subr.bf16.mxu0 %v967
  %4960 = vmatpush1.bf16.msra.mxu0 %v966
  %4961 = vmatprep.subr.bf16.mxu0 %v975
  %4962 = vmatpush1.bf16.msra.mxu0 %v974
  %4963 = vmatprep.mubr.bf16.mxu0 %v4889
  %4964 = vmatmul.mubr.bf16.gmra.mrb[0].mxu0 %v4888
  %v4965 = vpop.f32.mrb[0].mxu0
  %v4966 = vadd.f32 0.0, %v4965
  %v4967 = vpop.f32.mrb[0].mxu0
  %v4968 = vadd.f32 0.0, %v4967
  %v4969 = vpop.f32.mrb[0].mxu0
  %v4970 = vpop.f32.mrb[0].mxu0
  %4971 = vdwg.mxu0
  %4972 = vmatprep.subr.bf16.mxu0 %v857
  %4973 = vmatpush1.bf16.msra.mxu0 %v856
  %4974 = vmatprep.subr.bf16.mxu0 %v865
  %4975 = vmatpush1.bf16.msra.mxu0 %v864
  %4976 = vmatprep.subr.bf16.mxu0 %v873
  %4977 = vmatpush1.bf16.msra.mxu0 %v872
  %4978 = vmatprep.subr.bf16.mxu0 %v881
  %4979 = vmatpush1.bf16.msra.mxu0 %v880
  %4980 = vmatprep.subr.bf16.mxu0 %v889
  %4981 = vmatpush1.bf16.msra.mxu0 %v888
  %4982 = vmatprep.subr.bf16.mxu0 %v897
  %4983 = vmatpush1.bf16.msra.mxu0 %v896
  %4984 = vmatprep.subr.bf16.mxu0 %v905
  %4985 = vmatpush1.bf16.msra.mxu0 %v904
  %4986 = vmatprep.subr.bf16.mxu0 %v913
  %4987 = vmatpush1.bf16.msra.mxu0 %v912
  %4988 = vmatprep.subr.bf16.mxu0 %v921
  %4989 = vmatpush1.bf16.msra.mxu0 %v920
  %4990 = vmatprep.subr.bf16.mxu0 %v929
  %4991 = vmatpush1.bf16.msra.mxu0 %v928
  %4992 = vmatprep.subr.bf16.mxu0 %v937
  %4993 = vmatpush1.bf16.msra.mxu0 %v936
  %4994 = vmatprep.subr.bf16.mxu0 %v945
  %4995 = vmatpush1.bf16.msra.mxu0 %v944
  %4996 = vmatprep.subr.bf16.mxu0 %v953
  %4997 = vmatpush1.bf16.msra.mxu0 %v952
  %4998 = vmatprep.subr.bf16.mxu0 %v961
  %4999 = vmatpush1.bf16.msra.mxu0 %v960
  %5000 = vmatprep.subr.bf16.mxu0 %v969
  %5001 = vmatpush1.bf16.msra.mxu0 %v968
  %5002 = vmatprep.subr.bf16.mxu0 %v977
  %5003 = vmatpush1.bf16.msra.mxu0 %v976
  %5004 = vmatprep.mubr.bf16.mxu0 %v4889
  %5005 = vmatmul.mubr.bf16.gmra.mrb[0].mxu0 %v4888
  %v5006 = vpop.f32.mrb[0].mxu0
  %v5007 = vadd.f32 0.0, %v5006
  %v5008 = vpop.f32.mrb[0].mxu0
  %v5009 = vadd.f32 0.0, %v5008
  %v5010 = vpop.f32.mrb[0].mxu0
  %v5011 = vpop.f32.mrb[0].mxu0
  %5012 = vdwg.mxu0
  %5013 = vmatprep.subr.bf16.mxu0 %v859
  %5014 = vmatpush1.bf16.msra.mxu0 %v858
  %5015 = vmatprep.subr.bf16.mxu0 %v867
  %5016 = vmatpush1.bf16.msra.mxu0 %v866
  %5017 = vmatprep.subr.bf16.mxu0 %v875
  %5018 = vmatpush1.bf16.msra.mxu0 %v874
  %5019 = vmatprep.subr.bf16.mxu0 %v883
  %5020 = vmatpush1.bf16.msra.mxu0 %v882
  %5021 = vmatprep.subr.bf16.mxu0 %v891
  %5022 = vmatpush1.bf16.msra.mxu0 %v890
  %5023 = vmatprep.subr.bf16.mxu0 %v899
  %5024 = vmatpush1.bf16.msra.mxu0 %v898
  %5025 = vmatprep.subr.bf16.mxu0 %v907
  %5026 = vmatpush1.bf16.msra.mxu0 %v906
  %5027 = vmatprep.subr.bf16.mxu0 %v915
  %5028 = vmatpush1.bf16.msra.mxu0 %v914
  %5029 = vmatprep.subr.bf16.mxu0 %v923
  %5030 = vmatpush1.bf16.msra.mxu0 %v922
  %5031 = vmatprep.subr.bf16.mxu0 %v931
  %5032 = vmatpush1.bf16.msra.mxu0 %v930
  %5033 = vmatprep.subr.bf16.mxu0 %v939
  %5034 = vmatpush1.bf16.msra.mxu0 %v938
  %5035 = vmatprep.subr.bf16.mxu0 %v947
  %5036 = vmatpush1.bf16.msra.mxu0 %v946
  %5037 = vmatprep.subr.bf16.mxu0 %v955
  %5038 = vmatpush1.bf16.msra.mxu0 %v954
  %5039 = vmatprep.subr.bf16.mxu0 %v963
  %5040 = vmatpush1.bf16.msra.mxu0 %v962
  %5041 = vmatprep.subr.bf16.mxu0 %v971
  %5042 = vmatpush1.bf16.msra.mxu0 %v970
  %5043 = vmatprep.subr.bf16.mxu0 %v979
  %5044 = vmatpush1.bf16.msra.mxu0 %v978
  %5045 = vmatprep.mubr.bf16.mxu0 %v4889
  %5046 = vmatmul.mubr.bf16.gmra.mrb[0].mxu0 %v4888
  %v5047 = vpop.f32.mrb[0].mxu0
  %v5048 = vadd.f32 0.0, %v5047
  %v5049 = vpop.f32.mrb[0].mxu0
  %v5050 = vadd.f32 0.0, %v5049
  %v5051 = vpop.f32.mrb[0].mxu0
  %v5052 = vpop.f32.mrb[0].mxu0
  %5053 = vdwg.mxu0
  %v5054 = vadd.f32 %v4880, %v4925
  %v5055 = vadd.f32 %v4881, %v4927
  %v5056 = vadd.f32 %v4882, %v4966
  %v5057 = vadd.f32 %v4883, %v4968
  %v5058 = vadd.f32 %v4884, %v5007
  %v5059 = vadd.f32 %v4885, %v5009
  %v5060 = vadd.f32 %v4886, %v5048
  %v5061 = vadd.f32 %v4887, %v5050
  %v5062 = vxor.u32 %v5054, 2147483648
  %v5063 = vxor.u32 %v5055, 2147483648
  %v5064 = vmul.f32 %v5062, 1.442695
  %v5065 = vpow.pop %v5064
  %v5066 = vmul.f32 %v5063, 1.442695
  %v5067 = vpow.pop %v5066
  %v5068 = vadd.f32 %v5065, 1.0
  %v5069 = vadd.f32 %v5067, 1.0
  %v5070 = vrcp.pop %v5068
  %v5071 = vmul.f32 1.0, %v5070
  %v5072 = vrcp.pop %v5069
  %v5073 = vmul.f32 1.0, %v5072
  %v5074 = vxor.u32 %v5056, 2147483648
  %v5075 = vxor.u32 %v5057, 2147483648
  %v5076 = vmul.f32 %v5074, 1.442695
  %v5077 = vpow.pop %v5076
  %v5078 = vmul.f32 %v5075, 1.442695
  %v5079 = vpow.pop %v5078
  %v5080 = vadd.f32 %v5077, 1.0
  %v5081 = vadd.f32 %v5079, 1.0
  %v5082 = vrcp.pop %v5080
  %v5083 = vmul.f32 1.0, %v5082
  %v5084 = vrcp.pop %v5081
  %v5085 = vmul.f32 1.0, %v5084
  %v5086 = vtanh.pop %v5058
  %v5087 = vtanh.pop %v5059
  %v5088 = vxor.u32 %v5060, 2147483648
  %v5089 = vxor.u32 %v5061, 2147483648
  %v5090 = vmul.f32 %v5088, 1.442695
  %v5091 = vpow.pop %v5090
  %v5092 = vmul.f32 %v5089, 1.442695
  %v5093 = vpow.pop %v5092
  %v5094 = vadd.f32 %v5091, 1.0
  %v5095 = vadd.f32 %v5093, 1.0
  %v5096 = vrcp.pop %v5094
  %v5097 = vmul.f32 1.0, %v5096
  %v5098 = vrcp.pop %v5095
  %v5099 = vmul.f32 1.0, %v5098
  %v5100 = vmul.f32 %v5083, %v4478
  %v5101 = vmul.f32 %v5085, %v4479
  %v5102 = vmul.f32 %v5071, %v5086
  %v5103 = vmul.f32 %v5073, %v5087
  %v5104 = vadd.f32 %v5100, %v5102
  %v5105 = vadd.f32 %v5101, %v5103
  %v5106 = vtanh.pop %v5104
  %v5107 = vtanh.pop %v5105
  %v5108 = vmul.f32 %v5097, %v5106
  %v5109 = vmul.f32 %v5099, %v5107
  %vm5110 = vcmp.gt.s32.totalorder %v459, 4
  %v5111 = vsel %vm5110, 1, 0
  %v5112 = vcvt.s32.f32 %v5111
  %5114 = vset.pattern.permute.xlu0 0
  %5115 = vperm.xlu0 %5114, %v5112
  %v5116 = vpop.permute.xlu0 %5115
  %v5118 = vmul.f32 %v5108, %v5116
  %v5119 = vmul.f32 %v5109, %v5116
  %v5120 = vpack.c.bf16 %v5118, %v5118
  %v5121 = vpack.c.bf16 %v5119, %v5119
  %v5122 = vpack.c.bf16 %v4872, %v4872
  %v5123 = vpack.c.bf16 %v4873, %v4873
  %5124 = vmatprep.subr.bf16.mxu0 %v2110
  %5125 = vmatpush1.bf16.msra.mxu0 %v2109
  %5126 = vmatprep.subr.bf16.mxu0 %v2118
  %5127 = vmatpush1.bf16.msra.mxu0 %v2117
  %5128 = vmatprep.subr.bf16.mxu0 %v2126
  %5129 = vmatpush1.bf16.msra.mxu0 %v2125
  %5130 = vmatprep.subr.bf16.mxu0 %v2134
  %5131 = vmatpush1.bf16.msra.mxu0 %v2133
  %5132 = vmatprep.subr.bf16.mxu0 %v2142
  %5133 = vmatpush1.bf16.msra.mxu0 %v2141
  %5134 = vmatprep.subr.bf16.mxu0 %v2150
  %5135 = vmatpush1.bf16.msra.mxu0 %v2149
  %5136 = vmatprep.subr.bf16.mxu0 %v2158
  %5137 = vmatpush1.bf16.msra.mxu0 %v2157
  %5138 = vmatprep.subr.bf16.mxu0 %v2166
  %5139 = vmatpush1.bf16.msra.mxu0 %v2165
  %5140 = vmatprep.subr.bf16.mxu0 %v2174
  %5141 = vmatpush1.bf16.msra.mxu0 %v2173
  %5142 = vmatprep.subr.bf16.mxu0 %v2182
  %5143 = vmatpush1.bf16.msra.mxu0 %v2181
  %5144 = vmatprep.subr.bf16.mxu0 %v2190
  %5145 = vmatpush1.bf16.msra.mxu0 %v2189
  %5146 = vmatprep.subr.bf16.mxu0 %v2198
  %5147 = vmatpush1.bf16.msra.mxu0 %v2197
  %5148 = vmatprep.subr.bf16.mxu0 %v2206
  %5149 = vmatpush1.bf16.msra.mxu0 %v2205
  %5150 = vmatprep.subr.bf16.mxu0 %v2214
  %5151 = vmatpush1.bf16.msra.mxu0 %v2213
  %5152 = vmatprep.subr.bf16.mxu0 %v2222
  %5153 = vmatpush1.bf16.msra.mxu0 %v2221
  %5154 = vmatprep.subr.bf16.mxu0 %v2230
  %5155 = vmatpush1.bf16.msra.mxu0 %v2229
  %5156 = vmatprep.mubr.bf16.mxu0 %v5121
  %5157 = vmatmul.mubr.bf16.gmra.mrb[0].mxu0 %v5120
  %v5158 = vpop.f32.mrb[0].mxu0
  %v5159 = vadd.f32 %v422, %v5158
  %v5160 = vpop.f32.mrb[0].mxu0
  %v5161 = vadd.f32 %v426, %v5160
  %v5162 = vpop.f32.mrb[0].mxu0
  %v5163 = vpop.f32.mrb[0].mxu0
  %5164 = vdwg.mxu0
  %5165 = vmatprep.subr.bf16.mxu0 %v2238
  %5166 = vmatpush1.bf16.msra.mxu0 %v2237
  %5167 = vmatprep.subr.bf16.mxu0 %v2246
  %5168 = vmatpush1.bf16.msra.mxu0 %v2245
  %5169 = vmatprep.subr.bf16.mxu0 %v2254
  %5170 = vmatpush1.bf16.msra.mxu0 %v2253
  %5171 = vmatprep.subr.bf16.mxu0 %v2262
  %5172 = vmatpush1.bf16.msra.mxu0 %v2261
  %5173 = vmatprep.subr.bf16.mxu0 %v2270
  %5174 = vmatpush1.bf16.msra.mxu0 %v2269
  %5175 = vmatprep.subr.bf16.mxu0 %v2278
  %5176 = vmatpush1.bf16.msra.mxu0 %v2277
  %5177 = vmatprep.subr.bf16.mxu0 %v2286
  %5178 = vmatpush1.bf16.msra.mxu0 %v2285
  %5179 = vmatprep.subr.bf16.mxu0 %v2294
  %5180 = vmatpush1.bf16.msra.mxu0 %v2293
  %5181 = vmatprep.subr.bf16.mxu0 %v2302
  %5182 = vmatpush1.bf16.msra.mxu0 %v2301
  %5183 = vmatprep.subr.bf16.mxu0 %v2310
  %5184 = vmatpush1.bf16.msra.mxu0 %v2309
  %5185 = vmatprep.subr.bf16.mxu0 %v2318
  %5186 = vmatpush1.bf16.msra.mxu0 %v2317
  %5187 = vmatprep.subr.bf16.mxu0 %v2326
  %5188 = vmatpush1.bf16.msra.mxu0 %v2325
  %5189 = vmatprep.subr.bf16.mxu0 %v2334
  %5190 = vmatpush1.bf16.msra.mxu0 %v2333
  %5191 = vmatprep.subr.bf16.mxu0 %v2342
  %5192 = vmatpush1.bf16.msra.mxu0 %v2341
  %5193 = vmatprep.subr.bf16.mxu0 %v2350
  %5194 = vmatpush1.bf16.msra.mxu0 %v2349
  %5195 = vmatprep.subr.bf16.mxu0 %v2358
  %5196 = vmatpush1.bf16.msra.mxu0 %v2357
  %5197 = vmatprep.mubr.bf16.mxu0 %v5123
  %5198 = vmatmul.mubr.bf16.gmra.mrb[0].mxu0 %v5122
  %v5199 = vpop.f32.mrb[0].mxu0
  %v5200 = vadd.f32 %v5159, %v5199
  %v5201 = vpop.f32.mrb[0].mxu0
  %v5202 = vadd.f32 %v5161, %v5201
  %v5203 = vpop.f32.mrb[0].mxu0
  %v5204 = vpop.f32.mrb[0].mxu0
  %5205 = vdwg.mxu0
  %5206 = vmatprep.subr.bf16.mxu0 %v2112
  %5207 = vmatpush1.bf16.msra.mxu0 %v2111
  %5208 = vmatprep.subr.bf16.mxu0 %v2120
  %5209 = vmatpush1.bf16.msra.mxu0 %v2119
  %5210 = vmatprep.subr.bf16.mxu0 %v2128
  %5211 = vmatpush1.bf16.msra.mxu0 %v2127
  %5212 = vmatprep.subr.bf16.mxu0 %v2136
  %5213 = vmatpush1.bf16.msra.mxu0 %v2135
  %5214 = vmatprep.subr.bf16.mxu0 %v2144
  %5215 = vmatpush1.bf16.msra.mxu0 %v2143
  %5216 = vmatprep.subr.bf16.mxu0 %v2152
  %5217 = vmatpush1.bf16.msra.mxu0 %v2151
  %5218 = vmatprep.subr.bf16.mxu0 %v2160
  %5219 = vmatpush1.bf16.msra.mxu0 %v2159
  %5220 = vmatprep.subr.bf16.mxu0 %v2168
  %5221 = vmatpush1.bf16.msra.mxu0 %v2167
  %5222 = vmatprep.subr.bf16.mxu0 %v2176
  %5223 = vmatpush1.bf16.msra.mxu0 %v2175
  %5224 = vmatprep.subr.bf16.mxu0 %v2184
  %5225 = vmatpush1.bf16.msra.mxu0 %v2183
  %5226 = vmatprep.subr.bf16.mxu0 %v2192
  %5227 = vmatpush1.bf16.msra.mxu0 %v2191
  %5228 = vmatprep.subr.bf16.mxu0 %v2200
  %5229 = vmatpush1.bf16.msra.mxu0 %v2199
  %5230 = vmatprep.subr.bf16.mxu0 %v2208
  %5231 = vmatpush1.bf16.msra.mxu0 %v2207
  %5232 = vmatprep.subr.bf16.mxu0 %v2216
  %5233 = vmatpush1.bf16.msra.mxu0 %v2215
  %5234 = vmatprep.subr.bf16.mxu0 %v2224
  %5235 = vmatpush1.bf16.msra.mxu0 %v2223
  %5236 = vmatprep.subr.bf16.mxu0 %v2232
  %5237 = vmatpush1.bf16.msra.mxu0 %v2231
  %5238 = vmatprep.mubr.bf16.mxu0 %v5121
  %5239 = vmatmul.mubr.bf16.gmra.mrb[0].mxu0 %v5120
  %v5240 = vpop.f32.mrb[0].mxu0
  %v5241 = vadd.f32 %v430, %v5240
  %v5242 = vpop.f32.mrb[0].mxu0
  %v5243 = vadd.f32 %v434, %v5242
  %v5244 = vpop.f32.mrb[0].mxu0
  %v5245 = vpop.f32.mrb[0].mxu0
  %5246 = vdwg.mxu0
  %5247 = vmatprep.subr.bf16.mxu0 %v2240
  %5248 = vmatpush1.bf16.msra.mxu0 %v2239
  %5249 = vmatprep.subr.bf16.mxu0 %v2248
  %5250 = vmatpush1.bf16.msra.mxu0 %v2247
  %5251 = vmatprep.subr.bf16.mxu0 %v2256
  %5252 = vmatpush1.bf16.msra.mxu0 %v2255
  %5253 = vmatprep.subr.bf16.mxu0 %v2264
  %5254 = vmatpush1.bf16.msra.mxu0 %v2263
  %5255 = vmatprep.subr.bf16.mxu0 %v2272
  %5256 = vmatpush1.bf16.msra.mxu0 %v2271
  %5257 = vmatprep.subr.bf16.mxu0 %v2280
  %5258 = vmatpush1.bf16.msra.mxu0 %v2279
  %5259 = vmatprep.subr.bf16.mxu0 %v2288
  %5260 = vmatpush1.bf16.msra.mxu0 %v2287
  %5261 = vmatprep.subr.bf16.mxu0 %v2296
  %5262 = vmatpush1.bf16.msra.mxu0 %v2295
  %5263 = vmatprep.subr.bf16.mxu0 %v2304
  %5264 = vmatpush1.bf16.msra.mxu0 %v2303
  %5265 = vmatprep.subr.bf16.mxu0 %v2312
  %5266 = vmatpush1.bf16.msra.mxu0 %v2311
  %5267 = vmatprep.subr.bf16.mxu0 %v2320
  %5268 = vmatpush1.bf16.msra.mxu0 %v2319
  %5269 = vmatprep.subr.bf16.mxu0 %v2328
  %5270 = vmatpush1.bf16.msra.mxu0 %v2327
  %5271 = vmatprep.subr.bf16.mxu0 %v2336
  %5272 = vmatpush1.bf16.msra.mxu0 %v2335
  %5273 = vmatprep.subr.bf16.mxu0 %v2344
  %5274 = vmatpush1.bf16.msra.mxu0 %v2343
  %5275 = vmatprep.subr.bf16.mxu0 %v2352
  %5276 = vmatpush1.bf16.msra.mxu0 %v2351
  %5277 = vmatprep.subr.bf16.mxu0 %v2360
  %5278 = vmatpush1.bf16.msra.mxu0 %v2359
  %5279 = vmatprep.mubr.bf16.mxu0 %v5123
  %5280 = vmatmul.mubr.bf16.gmra.mrb[0].mxu0 %v5122
  %v5281 = vpop.f32.mrb[0].mxu0
  %v5282 = vadd.f32 %v5241, %v5281
  %v5283 = vpop.f32.mrb[0].mxu0
  %v5284 = vadd.f32 %v5243, %v5283
  %v5285 = vpop.f32.mrb[0].mxu0
  %v5286 = vpop.f32.mrb[0].mxu0
  %5287 = vdwg.mxu0
  %5288 = vmatprep.subr.bf16.mxu0 %v2114
  %5289 = vmatpush1.bf16.msra.mxu0 %v2113
  %5290 = vmatprep.subr.bf16.mxu0 %v2122
  %5291 = vmatpush1.bf16.msra.mxu0 %v2121
  %5292 = vmatprep.subr.bf16.mxu0 %v2130
  %5293 = vmatpush1.bf16.msra.mxu0 %v2129
  %5294 = vmatprep.subr.bf16.mxu0 %v2138
  %5295 = vmatpush1.bf16.msra.mxu0 %v2137
  %5296 = vmatprep.subr.bf16.mxu0 %v2146
  %5297 = vmatpush1.bf16.msra.mxu0 %v2145
  %5298 = vmatprep.subr.bf16.mxu0 %v2154
  %5299 = vmatpush1.bf16.msra.mxu0 %v2153
  %5300 = vmatprep.subr.bf16.mxu0 %v2162
  %5301 = vmatpush1.bf16.msra.mxu0 %v2161
  %5302 = vmatprep.subr.bf16.mxu0 %v2170
  %5303 = vmatpush1.bf16.msra.mxu0 %v2169
  %5304 = vmatprep.subr.bf16.mxu0 %v2178
  %5305 = vmatpush1.bf16.msra.mxu0 %v2177
  %5306 = vmatprep.subr.bf16.mxu0 %v2186
  %5307 = vmatpush1.bf16.msra.mxu0 %v2185
  %5308 = vmatprep.subr.bf16.mxu0 %v2194
  %5309 = vmatpush1.bf16.msra.mxu0 %v2193
  %5310 = vmatprep.subr.bf16.mxu0 %v2202
  %5311 = vmatpush1.bf16.msra.mxu0 %v2201
  %5312 = vmatprep.subr.bf16.mxu0 %v2210
  %5313 = vmatpush1.bf16.msra.mxu0 %v2209
  %5314 = vmatprep.subr.bf16.mxu0 %v2218
  %5315 = vmatpush1.bf16.msra.mxu0 %v2217
  %5316 = vmatprep.subr.bf16.mxu0 %v2226
  %5317 = vmatpush1.bf16.msra.mxu0 %v2225
  %5318 = vmatprep.subr.bf16.mxu0 %v2234
  %5319 = vmatpush1.bf16.msra.mxu0 %v2233
  %5320 = vmatprep.mubr.bf16.mxu0 %v5121
  %5321 = vmatmul.mubr.bf16.gmra.mrb[0].mxu0 %v5120
  %v5322 = vpop.f32.mrb[0].mxu0
  %v5323 = vadd.f32 %v438, %v5322
  %v5324 = vpop.f32.mrb[0].mxu0
  %v5325 = vadd.f32 %v442, %v5324
  %v5326 = vpop.f32.mrb[0].mxu0
  %v5327 = vpop.f32.mrb[0].mxu0
  %5328 = vdwg.mxu0
  %5329 = vmatprep.subr.bf16.mxu0 %v2242
  %5330 = vmatpush1.bf16.msra.mxu0 %v2241
  %5331 = vmatprep.subr.bf16.mxu0 %v2250
  %5332 = vmatpush1.bf16.msra.mxu0 %v2249
  %5333 = vmatprep.subr.bf16.mxu0 %v2258
  %5334 = vmatpush1.bf16.msra.mxu0 %v2257
  %5335 = vmatprep.subr.bf16.mxu0 %v2266
  %5336 = vmatpush1.bf16.msra.mxu0 %v2265
  %5337 = vmatprep.subr.bf16.mxu0 %v2274
  %5338 = vmatpush1.bf16.msra.mxu0 %v2273
  %5339 = vmatprep.subr.bf16.mxu0 %v2282
  %5340 = vmatpush1.bf16.msra.mxu0 %v2281
  %5341 = vmatprep.subr.bf16.mxu0 %v2290
  %5342 = vmatpush1.bf16.msra.mxu0 %v2289
  %5343 = vmatprep.subr.bf16.mxu0 %v2298
  %5344 = vmatpush1.bf16.msra.mxu0 %v2297
  %5345 = vmatprep.subr.bf16.mxu0 %v2306
  %5346 = vmatpush1.bf16.msra.mxu0 %v2305
  %5347 = vmatprep.subr.bf16.mxu0 %v2314
  %5348 = vmatpush1.bf16.msra.mxu0 %v2313
  %5349 = vmatprep.subr.bf16.mxu0 %v2322
  %5350 = vmatpush1.bf16.msra.mxu0 %v2321
  %5351 = vmatprep.subr.bf16.mxu0 %v2330
  %5352 = vmatpush1.bf16.msra.mxu0 %v2329
  %5353 = vmatprep.subr.bf16.mxu0 %v2338
  %5354 = vmatpush1.bf16.msra.mxu0 %v2337
  %5355 = vmatprep.subr.bf16.mxu0 %v2346
  %5356 = vmatpush1.bf16.msra.mxu0 %v2345
  %5357 = vmatprep.subr.bf16.mxu0 %v2354
  %5358 = vmatpush1.bf16.msra.mxu0 %v2353
  %5359 = vmatprep.subr.bf16.mxu0 %v2362
  %5360 = vmatpush1.bf16.msra.mxu0 %v2361
  %5361 = vmatprep.mubr.bf16.mxu0 %v5123
  %5362 = vmatmul.mubr.bf16.gmra.mrb[0].mxu0 %v5122
  %v5363 = vpop.f32.mrb[0].mxu0
  %v5364 = vadd.f32 %v5323, %v5363
  %v5365 = vpop.f32.mrb[0].mxu0
  %v5366 = vadd.f32 %v5325, %v5365
  %v5367 = vpop.f32.mrb[0].mxu0
  %v5368 = vpop.f32.mrb[0].mxu0
  %5369 = vdwg.mxu0
  %5370 = vmatprep.subr.bf16.mxu0 %v2116
  %5371 = vmatpush1.bf16.msra.mxu0 %v2115
  %5372 = vmatprep.subr.bf16.mxu0 %v2124
  %5373 = vmatpush1.bf16.msra.mxu0 %v2123
  %5374 = vmatprep.subr.bf16.mxu0 %v2132
  %5375 = vmatpush1.bf16.msra.mxu0 %v2131
  %5376 = vmatprep.subr.bf16.mxu0 %v2140
  %5377 = vmatpush1.bf16.msra.mxu0 %v2139
  %5378 = vmatprep.subr.bf16.mxu0 %v2148
  %5379 = vmatpush1.bf16.msra.mxu0 %v2147
  %5380 = vmatprep.subr.bf16.mxu0 %v2156
  %5381 = vmatpush1.bf16.msra.mxu0 %v2155
  %5382 = vmatprep.subr.bf16.mxu0 %v2164
  %5383 = vmatpush1.bf16.msra.mxu0 %v2163
  %5384 = vmatprep.subr.bf16.mxu0 %v2172
  %5385 = vmatpush1.bf16.msra.mxu0 %v2171
  %5386 = vmatprep.subr.bf16.mxu0 %v2180
  %5387 = vmatpush1.bf16.msra.mxu0 %v2179
  %5388 = vmatprep.subr.bf16.mxu0 %v2188
  %5389 = vmatpush1.bf16.msra.mxu0 %v2187
  %5390 = vmatprep.subr.bf16.mxu0 %v2196
  %5391 = vmatpush1.bf16.msra.mxu0 %v2195
  %5392 = vmatprep.subr.bf16.mxu0 %v2204
  %5393 = vmatpush1.bf16.msra.mxu0 %v2203
  %5394 = vmatprep.subr.bf16.mxu0 %v2212
  %5395 = vmatpush1.bf16.msra.mxu0 %v2211
  %5396 = vmatprep.subr.bf16.mxu0 %v2220
  %5397 = vmatpush1.bf16.msra.mxu0 %v2219
  %5398 = vmatprep.subr.bf16.mxu0 %v2228
  %5399 = vmatpush1.bf16.msra.mxu0 %v2227
  %5400 = vmatprep.subr.bf16.mxu0 %v2236
  %5401 = vmatpush1.bf16.msra.mxu0 %v2235
  %5402 = vmatprep.mubr.bf16.mxu0 %v5121
  %5403 = vmatmul.mubr.bf16.gmra.mrb[0].mxu0 %v5120
  %v5404 = vpop.f32.mrb[0].mxu0
  %v5405 = vadd.f32 %v446, %v5404
  %v5406 = vpop.f32.mrb[0].mxu0
  %v5407 = vadd.f32 %v450, %v5406
  %v5408 = vpop.f32.mrb[0].mxu0
  %v5409 = vpop.f32.mrb[0].mxu0
  %5410 = vdwg.mxu0
  %5411 = vmatprep.subr.bf16.mxu0 %v2244
  %5412 = vmatpush1.bf16.msra.mxu0 %v2243
  %5413 = vmatprep.subr.bf16.mxu0 %v2252
  %5414 = vmatpush1.bf16.msra.mxu0 %v2251
  %5415 = vmatprep.subr.bf16.mxu0 %v2260
  %5416 = vmatpush1.bf16.msra.mxu0 %v2259
  %5417 = vmatprep.subr.bf16.mxu0 %v2268
  %5418 = vmatpush1.bf16.msra.mxu0 %v2267
  %5419 = vmatprep.subr.bf16.mxu0 %v2276
  %5420 = vmatpush1.bf16.msra.mxu0 %v2275
  %5421 = vmatprep.subr.bf16.mxu0 %v2284
  %5422 = vmatpush1.bf16.msra.mxu0 %v2283
  %5423 = vmatprep.subr.bf16.mxu0 %v2292
  %5424 = vmatpush1.bf16.msra.mxu0 %v2291
  %5425 = vmatprep.subr.bf16.mxu0 %v2300
  %5426 = vmatpush1.bf16.msra.mxu0 %v2299
  %5427 = vmatprep.subr.bf16.mxu0 %v2308
  %5428 = vmatpush1.bf16.msra.mxu0 %v2307
  %5429 = vmatprep.subr.bf16.mxu0 %v2316
  %5430 = vmatpush1.bf16.msra.mxu0 %v2315
  %5431 = vmatprep.subr.bf16.mxu0 %v2324
  %5432 = vmatpush1.bf16.msra.mxu0 %v2323
  %5433 = vmatprep.subr.bf16.mxu0 %v2332
  %5434 = vmatpush1.bf16.msra.mxu0 %v2331
  %5435 = vmatprep.subr.bf16.mxu0 %v2340
  %5436 = vmatpush1.bf16.msra.mxu0 %v2339
  %5437 = vmatprep.subr.bf16.mxu0 %v2348
  %5438 = vmatpush1.bf16.msra.mxu0 %v2347
  %5439 = vmatprep.subr.bf16.mxu0 %v2356
  %5440 = vmatpush1.bf16.msra.mxu0 %v2355
  %5441 = vmatprep.subr.bf16.mxu0 %v2364
  %5442 = vmatpush1.bf16.msra.mxu0 %v2363
  %5443 = vmatprep.mubr.bf16.mxu0 %v5123
  %5444 = vmatmul.mubr.bf16.gmra.mrb[0].mxu0 %v5122
  %v5445 = vpop.f32.mrb[0].mxu0
  %v5446 = vadd.f32 %v5405, %v5445
  %v5447 = vpop.f32.mrb[0].mxu0
  %v5448 = vadd.f32 %v5407, %v5447
  %v5449 = vpop.f32.mrb[0].mxu0
  %v5450 = vpop.f32.mrb[0].mxu0
  %5451 = vdwg.mxu0
  %v5452 = vxor.u32 %v5200, 2147483648
  %v5453 = vxor.u32 %v5202, 2147483648
  %v5454 = vmul.f32 %v5452, 1.442695
  %v5455 = vpow.pop %v5454
  %v5456 = vmul.f32 %v5453, 1.442695
  %v5457 = vpow.pop %v5456
  %v5458 = vadd.f32 %v5455, 1.0
  %v5459 = vadd.f32 %v5457, 1.0
  %v5460 = vrcp.pop %v5458
  %v5461 = vmul.f32 1.0, %v5460
  %v5462 = vrcp.pop %v5459
  %v5463 = vmul.f32 1.0, %v5462
  %v5464 = vxor.u32 %v5282, 2147483648
  %v5465 = vxor.u32 %v5284, 2147483648
  %v5466 = vmul.f32 %v5464, 1.442695
  %v5467 = vpow.pop %v5466
  %v5468 = vmul.f32 %v5465, 1.442695
  %v5469 = vpow.pop %v5468
  %v5470 = vadd.f32 %v5467, 1.0
  %v5471 = vadd.f32 %v5469, 1.0
  %v5472 = vrcp.pop %v5470
  %v5473 = vmul.f32 1.0, %v5472
  %v5474 = vrcp.pop %v5471
  %v5475 = vmul.f32 1.0, %v5474
  %v5476 = vtanh.pop %v5364
  %v5477 = vtanh.pop %v5366
  %v5478 = vxor.u32 %v5446, 2147483648
  %v5479 = vxor.u32 %v5448, 2147483648
  %v5480 = vmul.f32 %v5478, 1.442695
  %v5481 = vpow.pop %v5480
  %v5482 = vmul.f32 %v5479, 1.442695
  %v5483 = vpow.pop %v5482
  %v5484 = vadd.f32 %v5481, 1.0
  %v5485 = vadd.f32 %v5483, 1.0
  %v5486 = vrcp.pop %v5484
  %v5487 = vmul.f32 1.0, %v5486
  %v5488 = vrcp.pop %v5485
  %v5489 = vmul.f32 1.0, %v5488
  %v5490 = vmul.f32 %v5473, %v4868
  %v5491 = vmul.f32 %v5475, %v4869
  %v5492 = vmul.f32 %v5461, %v5476
  %v5493 = vmul.f32 %v5463, %v5477
  %v5494 = vadd.f32 %v5490, %v5492
  %v5495 = vadd.f32 %v5491, %v5493
  %v5496 = vtanh.pop %v5494
  %v5497 = vtanh.pop %v5495
  %v5498 = vmul.f32 %v5487, %v5496
  %v5499 = vmul.f32 %v5489, %v5497
  %v5500 = vmul.f32 %v5498, %v5116
  %v5501 = vmul.f32 %v5499, %v5116
  %s5502 = scalar_lea.vmem [#allocation2], 64
  %5503 = vst [vmem:[%s5502] sm:$0xff] %v5500
  %5504 = vst [vmem:[%s5502 + $0x8] sm:$0xff] %v5501
  %s5505 = scalar_lea.vmem %s0, 320
  %v5506 = vld [vmem:[%s5505] sm:$0xff]
  %v5507 = vld [vmem:[%s5505 + $0x8] sm:$0xff]
  %v5508 = vld [vmem:[%s5505 + $0x10] sm:$0xff]
  %v5509 = vld [vmem:[%s5505 + $0x18] sm:$0xff]
  %v5510 = vld [vmem:[%s5505 + $0x20] sm:$0xff]
  %v5511 = vld [vmem:[%s5505 + $0x28] sm:$0xff]
  %v5512 = vld [vmem:[%s5505 + $0x30] sm:$0xff]
  %v5513 = vld [vmem:[%s5505 + $0x38] sm:$0xff]
  %v5514 = vpack.c.bf16 %v5108, %v5108
  %v5515 = vpack.c.bf16 %v5109, %v5109
  %5516 = vmatprep.subr.bf16.mxu0 %v853
  %5517 = vmatpush1.bf16.msra.mxu0 %v852
  %5518 = vmatprep.subr.bf16.mxu0 %v861
  %5519 = vmatpush1.bf16.msra.mxu0 %v860
  %5520 = vmatprep.subr.bf16.mxu0 %v869
  %5521 = vmatpush1.bf16.msra.mxu0 %v868
  %5522 = vmatprep.subr.bf16.mxu0 %v877
  %5523 = vmatpush1.bf16.msra.mxu0 %v876
  %5524 = vmatprep.subr.bf16.mxu0 %v885
  %5525 = vmatpush1.bf16.msra.mxu0 %v884
  %5526 = vmatprep.subr.bf16.mxu0 %v893
  %5527 = vmatpush1.bf16.msra.mxu0 %v892
  %5528 = vmatprep.subr.bf16.mxu0 %v901
  %5529 = vmatpush1.bf16.msra.mxu0 %v900
  %5530 = vmatprep.subr.bf16.mxu0 %v909
  %5531 = vmatpush1.bf16.msra.mxu0 %v908
  %5532 = vmatprep.subr.bf16.mxu0 %v917
  %5533 = vmatpush1.bf16.msra.mxu0 %v916
  %5534 = vmatprep.subr.bf16.mxu0 %v925
  %5535 = vmatpush1.bf16.msra.mxu0 %v924
  %5536 = vmatprep.subr.bf16.mxu0 %v933
  %5537 = vmatpush1.bf16.msra.mxu0 %v932
  %5538 = vmatprep.subr.bf16.mxu0 %v941
  %5539 = vmatpush1.bf16.msra.mxu0 %v940
  %5540 = vmatprep.subr.bf16.mxu0 %v949
  %5541 = vmatpush1.bf16.msra.mxu0 %v948
  %5542 = vmatprep.subr.bf16.mxu0 %v957
  %5543 = vmatpush1.bf16.msra.mxu0 %v956
  %5544 = vmatprep.subr.bf16.mxu0 %v965
  %5545 = vmatpush1.bf16.msra.mxu0 %v964
  %5546 = vmatprep.subr.bf16.mxu0 %v973
  %5547 = vmatpush1.bf16.msra.mxu0 %v972
  %5548 = vmatprep.mubr.bf16.mxu0 %v5515
  %5549 = vmatmul.mubr.bf16.gmra.mrb[0].mxu0 %v5514
  %v5550 = vpop.f32.mrb[0].mxu0
  %v5551 = vadd.f32 0.0, %v5550
  %v5552 = vpop.f32.mrb[0].mxu0
  %v5553 = vadd.f32 0.0, %v5552
  %v5554 = vpop.f32.mrb[0].mxu0
  %v5555 = vpop.f32.mrb[0].mxu0
  %5556 = vdwg.mxu0
  %5557 = vmatprep.subr.bf16.mxu0 %v855
  %5558 = vmatpush1.bf16.msra.mxu0 %v854
  %5559 = vmatprep.subr.bf16.mxu0 %v863
  %5560 = vmatpush1.bf16.msra.mxu0 %v862
  %5561 = vmatprep.subr.bf16.mxu0 %v871
  %5562 = vmatpush1.bf16.msra.mxu0 %v870
  %5563 = vmatprep.subr.bf16.mxu0 %v879
  %5564 = vmatpush1.bf16.msra.mxu0 %v878
  %5565 = vmatprep.subr.bf16.mxu0 %v887
  %5566 = vmatpush1.bf16.msra.mxu0 %v886
  %5567 = vmatprep.subr.bf16.mxu0 %v895
  %5568 = vmatpush1.bf16.msra.mxu0 %v894
  %5569 = vmatprep.subr.bf16.mxu0 %v903
  %5570 = vmatpush1.bf16.msra.mxu0 %v902
  %5571 = vmatprep.subr.bf16.mxu0 %v911
  %5572 = vmatpush1.bf16.msra.mxu0 %v910
  %5573 = vmatprep.subr.bf16.mxu0 %v919
  %5574 = vmatpush1.bf16.msra.mxu0 %v918
  %5575 = vmatprep.subr.bf16.mxu0 %v927
  %5576 = vmatpush1.bf16.msra.mxu0 %v926
  %5577 = vmatprep.subr.bf16.mxu0 %v935
  %5578 = vmatpush1.bf16.msra.mxu0 %v934
  %5579 = vmatprep.subr.bf16.mxu0 %v943
  %5580 = vmatpush1.bf16.msra.mxu0 %v942
  %5581 = vmatprep.subr.bf16.mxu0 %v951
  %5582 = vmatpush1.bf16.msra.mxu0 %v950
  %5583 = vmatprep.subr.bf16.mxu0 %v959
  %5584 = vmatpush1.bf16.msra.mxu0 %v958
  %5585 = vmatprep.subr.bf16.mxu0 %v967
  %5586 = vmatpush1.bf16.msra.mxu0 %v966
  %5587 = vmatprep.subr.bf16.mxu0 %v975
  %5588 = vmatpush1.bf16.msra.mxu0 %v974
  %5589 = vmatprep.mubr.bf16.mxu0 %v5515
  %5590 = vmatmul.mubr.bf16.gmra.mrb[0].mxu0 %v5514
  %v5591 = vpop.f32.mrb[0].mxu0
  %v5592 = vadd.f32 0.0, %v5591
  %v5593 = vpop.f32.mrb[0].mxu0
  %v5594 = vadd.f32 0.0, %v5593
  %v5595 = vpop.f32.mrb[0].mxu0
  %v5596 = vpop.f32.mrb[0].mxu0
  %5597 = vdwg.mxu0
  %5598 = vmatprep.subr.bf16.mxu0 %v857
  %5599 = vmatpush1.bf16.msra.mxu0 %v856
  %5600 = vmatprep.subr.bf16.mxu0 %v865
  %5601 = vmatpush1.bf16.msra.mxu0 %v864
  %5602 = vmatprep.subr.bf16.mxu0 %v873
  %5603 = vmatpush1.bf16.msra.mxu0 %v872
  %5604 = vmatprep.subr.bf16.mxu0 %v881
  %5605 = vmatpush1.bf16.msra.mxu0 %v880
  %5606 = vmatprep.subr.bf16.mxu0 %v889
  %5607 = vmatpush1.bf16.msra.mxu0 %v888
  %5608 = vmatprep.subr.bf16.mxu0 %v897
  %5609 = vmatpush1.bf16.msra.mxu0 %v896
  %5610 = vmatprep.subr.bf16.mxu0 %v905
  %5611 = vmatpush1.bf16.msra.mxu0 %v904
  %5612 = vmatprep.subr.bf16.mxu0 %v913
  %5613 = vmatpush1.bf16.msra.mxu0 %v912
  %5614 = vmatprep.subr.bf16.mxu0 %v921
  %5615 = vmatpush1.bf16.msra.mxu0 %v920
  %5616 = vmatprep.subr.bf16.mxu0 %v929
  %5617 = vmatpush1.bf16.msra.mxu0 %v928
  %5618 = vmatprep.subr.bf16.mxu0 %v937
  %5619 = vmatpush1.bf16.msra.mxu0 %v936
  %5620 = vmatprep.subr.bf16.mxu0 %v945
  %5621 = vmatpush1.bf16.msra.mxu0 %v944
  %5622 = vmatprep.subr.bf16.mxu0 %v953
  %5623 = vmatpush1.bf16.msra.mxu0 %v952
  %5624 = vmatprep.subr.bf16.mxu0 %v961
  %5625 = vmatpush1.bf16.msra.mxu0 %v960
  %5626 = vmatprep.subr.bf16.mxu0 %v969
  %5627 = vmatpush1.bf16.msra.mxu0 %v968
  %5628 = vmatprep.subr.bf16.mxu0 %v977
  %5629 = vmatpush1.bf16.msra.mxu0 %v976
  %5630 = vmatprep.mubr.bf16.mxu0 %v5515
  %5631 = vmatmul.mubr.bf16.gmra.mrb[0].mxu0 %v5514
  %v5632 = vpop.f32.mrb[0].mxu0
  %v5633 = vadd.f32 0.0, %v5632
  %v5634 = vpop.f32.mrb[0].mxu0
  %v5635 = vadd.f32 0.0, %v5634
  %v5636 = vpop.f32.mrb[0].mxu0
  %v5637 = vpop.f32.mrb[0].mxu0
  %5638 = vdwg.mxu0
  %5639 = vmatprep.subr.bf16.mxu0 %v859
  %5640 = vmatpush1.bf16.msra.mxu0 %v858
  %5641 = vmatprep.subr.bf16.mxu0 %v867
  %5642 = vmatpush1.bf16.msra.mxu0 %v866
  %5643 = vmatprep.subr.bf16.mxu0 %v875
  %5644 = vmatpush1.bf16.msra.mxu0 %v874
  %5645 = vmatprep.subr.bf16.mxu0 %v883
  %5646 = vmatpush1.bf16.msra.mxu0 %v882
  %5647 = vmatprep.subr.bf16.mxu0 %v891
  %5648 = vmatpush1.bf16.msra.mxu0 %v890
  %5649 = vmatprep.subr.bf16.mxu0 %v899
  %5650 = vmatpush1.bf16.msra.mxu0 %v898
  %5651 = vmatprep.subr.bf16.mxu0 %v907
  %5652 = vmatpush1.bf16.msra.mxu0 %v906
  %5653 = vmatprep.subr.bf16.mxu0 %v915
  %5654 = vmatpush1.bf16.msra.mxu0 %v914
  %5655 = vmatprep.subr.bf16.mxu0 %v923
  %5656 = vmatpush1.bf16.msra.mxu0 %v922
  %5657 = vmatprep.subr.bf16.mxu0 %v931
  %5658 = vmatpush1.bf16.msra.mxu0 %v930
  %5659 = vmatprep.subr.bf16.mxu0 %v939
  %5660 = vmatpush1.bf16.msra.mxu0 %v938
  %5661 = vmatprep.subr.bf16.mxu0 %v947
  %5662 = vmatpush1.bf16.msra.mxu0 %v946
  %5663 = vmatprep.subr.bf16.mxu0 %v955
  %5664 = vmatpush1.bf16.msra.mxu0 %v954
  %5665 = vmatprep.subr.bf16.mxu0 %v963
  %5666 = vmatpush1.bf16.msra.mxu0 %v962
  %5667 = vmatprep.subr.bf16.mxu0 %v971
  %5668 = vmatpush1.bf16.msra.mxu0 %v970
  %5669 = vmatprep.subr.bf16.mxu0 %v979
  %5670 = vmatpush1.bf16.msra.mxu0 %v978
  %5671 = vmatprep.mubr.bf16.mxu0 %v5515
  %5672 = vmatmul.mubr.bf16.gmra.mrb[0].mxu0 %v5514
  %v5673 = vpop.f32.mrb[0].mxu0
  %v5674 = vadd.f32 0.0, %v5673
  %v5675 = vpop.f32.mrb[0].mxu0
  %v5676 = vadd.f32 0.0, %v5675
  %v5677 = vpop.f32.mrb[0].mxu0
  %v5678 = vpop.f32.mrb[0].mxu0
  %5679 = vdwg.mxu0
  %v5680 = vadd.f32 %v5506, %v5551
  %v5681 = vadd.f32 %v5507, %v5553
  %v5682 = vadd.f32 %v5508, %v5592
  %v5683 = vadd.f32 %v5509, %v5594
  %v5684 = vadd.f32 %v5510, %v5633
  %v5685 = vadd.f32 %v5511, %v5635
  %v5686 = vadd.f32 %v5512, %v5674
  %v5687 = vadd.f32 %v5513, %v5676
  %v5688 = vxor.u32 %v5680, 2147483648
  %v5689 = vxor.u32 %v5681, 2147483648
  %v5690 = vmul.f32 %v5688, 1.442695
  %v5691 = vpow.pop %v5690
  %v5692 = vmul.f32 %v5689, 1.442695
  %v5693 = vpow.pop %v5692
  %v5694 = vadd.f32 %v5691, 1.0
  %v5695 = vadd.f32 %v5693, 1.0
  %v5696 = vrcp.pop %v5694
  %v5697 = vmul.f32 1.0, %v5696
  %v5698 = vrcp.pop %v5695
  %v5699 = vmul.f32 1.0, %v5698
  %v5700 = vxor.u32 %v5682, 2147483648
  %v5701 = vxor.u32 %v5683, 2147483648
  %v5702 = vmul.f32 %v5700, 1.442695
  %v5703 = vpow.pop %v5702
  %v5704 = vmul.f32 %v5701, 1.442695
  %v5705 = vpow.pop %v5704
  %v5706 = vadd.f32 %v5703, 1.0
  %v5707 = vadd.f32 %v5705, 1.0
  %v5708 = vrcp.pop %v5706
  %v5709 = vmul.f32 1.0, %v5708
  %v5710 = vrcp.pop %v5707
  %v5711 = vmul.f32 1.0, %v5710
  %v5712 = vtanh.pop %v5684
  %v5713 = vtanh.pop %v5685
  %v5714 = vxor.u32 %v5686, 2147483648
  %v5715 = vxor.u32 %v5687, 2147483648
  %v5716 = vmul.f32 %v5714, 1.442695
  %v5717 = vpow.pop %v5716
  %v5718 = vmul.f32 %v5715, 1.442695
  %v5719 = vpow.pop %v5718
  %v5720 = vadd.f32 %v5717, 1.0
  %v5721 = vadd.f32 %v5719, 1.0
  %v5722 = vrcp.pop %v5720
  %v5723 = vmul.f32 1.0, %v5722
  %v5724 = vrcp.pop %v5721
  %v5725 = vmul.f32 1.0, %v5724
  %v5726 = vmul.f32 %v5709, %v5104
  %v5727 = vmul.f32 %v5711, %v5105
  %v5728 = vmul.f32 %v5697, %v5712
  %v5729 = vmul.f32 %v5699, %v5713
  %v5730 = vadd.f32 %v5726, %v5728
  %v5731 = vadd.f32 %v5727, %v5729
  %v5732 = vtanh.pop %v5730
  %v5733 = vtanh.pop %v5731
  %v5734 = vmul.f32 %v5723, %v5732
  %v5735 = vmul.f32 %v5725, %v5733
  %vm5736 = vcmp.gt.s32.totalorder %v459, 5
  %v5737 = vsel %vm5736, 1, 0
  %v5738 = vcvt.s32.f32 %v5737
  %5740 = vset.pattern.permute.xlu0 0
  %5741 = vperm.xlu0 %5740, %v5738
  %v5742 = vpop.permute.xlu0 %5741
  %v5744 = vmul.f32 %v5734, %v5742
  %v5745 = vmul.f32 %v5735, %v5742
  %v5746 = vpack.c.bf16 %v5744, %v5744
  %v5747 = vpack.c.bf16 %v5745, %v5745
  %v5748 = vpack.c.bf16 %v5498, %v5498
  %v5749 = vpack.c.bf16 %v5499, %v5499
  %5750 = vmatprep.subr.bf16.mxu0 %v2110
  %5751 = vmatpush1.bf16.msra.mxu0 %v2109
  %5752 = vmatprep.subr.bf16.mxu0 %v2118
  %5753 = vmatpush1.bf16.msra.mxu0 %v2117
  %5754 = vmatprep.subr.bf16.mxu0 %v2126
  %5755 = vmatpush1.bf16.msra.mxu0 %v2125
  %5756 = vmatprep.subr.bf16.mxu0 %v2134
  %5757 = vmatpush1.bf16.msra.mxu0 %v2133
  %5758 = vmatprep.subr.bf16.mxu0 %v2142
  %5759 = vmatpush1.bf16.msra.mxu0 %v2141
  %5760 = vmatprep.subr.bf16.mxu0 %v2150
  %5761 = vmatpush1.bf16.msra.mxu0 %v2149
  %5762 = vmatprep.subr.bf16.mxu0 %v2158
  %5763 = vmatpush1.bf16.msra.mxu0 %v2157
  %5764 = vmatprep.subr.bf16.mxu0 %v2166
  %5765 = vmatpush1.bf16.msra.mxu0 %v2165
  %5766 = vmatprep.subr.bf16.mxu0 %v2174
  %5767 = vmatpush1.bf16.msra.mxu0 %v2173
  %5768 = vmatprep.subr.bf16.mxu0 %v2182
  %5769 = vmatpush1.bf16.msra.mxu0 %v2181
  %5770 = vmatprep.subr.bf16.mxu0 %v2190
  %5771 = vmatpush1.bf16.msra.mxu0 %v2189
  %5772 = vmatprep.subr.bf16.mxu0 %v2198
  %5773 = vmatpush1.bf16.msra.mxu0 %v2197
  %5774 = vmatprep.subr.bf16.mxu0 %v2206
  %5775 = vmatpush1.bf16.msra.mxu0 %v2205
  %5776 = vmatprep.subr.bf16.mxu0 %v2214
  %5777 = vmatpush1.bf16.msra.mxu0 %v2213
  %5778 = vmatprep.subr.bf16.mxu0 %v2222
  %5779 = vmatpush1.bf16.msra.mxu0 %v2221
  %5780 = vmatprep.subr.bf16.mxu0 %v2230
  %5781 = vmatpush1.bf16.msra.mxu0 %v2229
  %5782 = vmatprep.mubr.bf16.mxu0 %v5747
  %5783 = vmatmul.mubr.bf16.gmra.mrb[0].mxu0 %v5746
  %v5784 = vpop.f32.mrb[0].mxu0
  %v5785 = vadd.f32 %v422, %v5784
  %v5786 = vpop.f32.mrb[0].mxu0
  %v5787 = vadd.f32 %v426, %v5786
  %v5788 = vpop.f32.mrb[0].mxu0
  %v5789 = vpop.f32.mrb[0].mxu0
  %5790 = vdwg.mxu0
  %5791 = vmatprep.subr.bf16.mxu0 %v2238
  %5792 = vmatpush1.bf16.msra.mxu0 %v2237
  %5793 = vmatprep.subr.bf16.mxu0 %v2246
  %5794 = vmatpush1.bf16.msra.mxu0 %v2245
  %5795 = vmatprep.subr.bf16.mxu0 %v2254
  %5796 = vmatpush1.bf16.msra.mxu0 %v2253
  %5797 = vmatprep.subr.bf16.mxu0 %v2262
  %5798 = vmatpush1.bf16.msra.mxu0 %v2261
  %5799 = vmatprep.subr.bf16.mxu0 %v2270
  %5800 = vmatpush1.bf16.msra.mxu0 %v2269
  %5801 = vmatprep.subr.bf16.mxu0 %v2278
  %5802 = vmatpush1.bf16.msra.mxu0 %v2277
  %5803 = vmatprep.subr.bf16.mxu0 %v2286
  %5804 = vmatpush1.bf16.msra.mxu0 %v2285
  %5805 = vmatprep.subr.bf16.mxu0 %v2294
  %5806 = vmatpush1.bf16.msra.mxu0 %v2293
  %5807 = vmatprep.subr.bf16.mxu0 %v2302
  %5808 = vmatpush1.bf16.msra.mxu0 %v2301
  %5809 = vmatprep.subr.bf16.mxu0 %v2310
  %5810 = vmatpush1.bf16.msra.mxu0 %v2309
  %5811 = vmatprep.subr.bf16.mxu0 %v2318
  %5812 = vmatpush1.bf16.msra.mxu0 %v2317
  %5813 = vmatprep.subr.bf16.mxu0 %v2326
  %5814 = vmatpush1.bf16.msra.mxu0 %v2325
  %5815 = vmatprep.subr.bf16.mxu0 %v2334
  %5816 = vmatpush1.bf16.msra.mxu0 %v2333
  %5817 = vmatprep.subr.bf16.mxu0 %v2342
  %5818 = vmatpush1.bf16.msra.mxu0 %v2341
  %5819 = vmatprep.subr.bf16.mxu0 %v2350
  %5820 = vmatpush1.bf16.msra.mxu0 %v2349
  %5821 = vmatprep.subr.bf16.mxu0 %v2358
  %5822 = vmatpush1.bf16.msra.mxu0 %v2357
  %5823 = vmatprep.mubr.bf16.mxu0 %v5749
  %5824 = vmatmul.mubr.bf16.gmra.mrb[0].mxu0 %v5748
  %v5825 = vpop.f32.mrb[0].mxu0
  %v5826 = vadd.f32 %v5785, %v5825
  %v5827 = vpop.f32.mrb[0].mxu0
  %v5828 = vadd.f32 %v5787, %v5827
  %v5829 = vpop.f32.mrb[0].mxu0
  %v5830 = vpop.f32.mrb[0].mxu0
  %5831 = vdwg.mxu0
  %5832 = vmatprep.subr.bf16.mxu0 %v2112
  %5833 = vmatpush1.bf16.msra.mxu0 %v2111
  %5834 = vmatprep.subr.bf16.mxu0 %v2120
  %5835 = vmatpush1.bf16.msra.mxu0 %v2119
  %5836 = vmatprep.subr.bf16.mxu0 %v2128
  %5837 = vmatpush1.bf16.msra.mxu0 %v2127
  %5838 = vmatprep.subr.bf16.mxu0 %v2136
  %5839 = vmatpush1.bf16.msra.mxu0 %v2135
  %5840 = vmatprep.subr.bf16.mxu0 %v2144
  %5841 = vmatpush1.bf16.msra.mxu0 %v2143
  %5842 = vmatprep.subr.bf16.mxu0 %v2152
  %5843 = vmatpush1.bf16.msra.mxu0 %v2151
  %5844 = vmatprep.subr.bf16.mxu0 %v2160
  %5845 = vmatpush1.bf16.msra.mxu0 %v2159
  %5846 = vmatprep.subr.bf16.mxu0 %v2168
  %5847 = vmatpush1.bf16.msra.mxu0 %v2167
  %5848 = vmatprep.subr.bf16.mxu0 %v2176
  %5849 = vmatpush1.bf16.msra.mxu0 %v2175
  %5850 = vmatprep.subr.bf16.mxu0 %v2184
  %5851 = vmatpush1.bf16.msra.mxu0 %v2183
  %5852 = vmatprep.subr.bf16.mxu0 %v2192
  %5853 = vmatpush1.bf16.msra.mxu0 %v2191
  %5854 = vmatprep.subr.bf16.mxu0 %v2200
  %5855 = vmatpush1.bf16.msra.mxu0 %v2199
  %5856 = vmatprep.subr.bf16.mxu0 %v2208
  %5857 = vmatpush1.bf16.msra.mxu0 %v2207
  %5858 = vmatprep.subr.bf16.mxu0 %v2216
  %5859 = vmatpush1.bf16.msra.mxu0 %v2215
  %5860 = vmatprep.subr.bf16.mxu0 %v2224
  %5861 = vmatpush1.bf16.msra.mxu0 %v2223
  %5862 = vmatprep.subr.bf16.mxu0 %v2232
  %5863 = vmatpush1.bf16.msra.mxu0 %v2231
  %5864 = vmatprep.mubr.bf16.mxu0 %v5747
  %5865 = vmatmul.mubr.bf16.gmra.mrb[0].mxu0 %v5746
  %v5866 = vpop.f32.mrb[0].mxu0
  %v5867 = vadd.f32 %v430, %v5866
  %v5868 = vpop.f32.mrb[0].mxu0
  %v5869 = vadd.f32 %v434, %v5868
  %v5870 = vpop.f32.mrb[0].mxu0
  %v5871 = vpop.f32.mrb[0].mxu0
  %5872 = vdwg.mxu0
  %5873 = vmatprep.subr.bf16.mxu0 %v2240
  %5874 = vmatpush1.bf16.msra.mxu0 %v2239
  %5875 = vmatprep.subr.bf16.mxu0 %v2248
  %5876 = vmatpush1.bf16.msra.mxu0 %v2247
  %5877 = vmatprep.subr.bf16.mxu0 %v2256
  %5878 = vmatpush1.bf16.msra.mxu0 %v2255
  %5879 = vmatprep.subr.bf16.mxu0 %v2264
  %5880 = vmatpush1.bf16.msra.mxu0 %v2263
  %5881 = vmatprep.subr.bf16.mxu0 %v2272
  %5882 = vmatpush1.bf16.msra.mxu0 %v2271
  %5883 = vmatprep.subr.bf16.mxu0 %v2280
  %5884 = vmatpush1.bf16.msra.mxu0 %v2279
  %5885 = vmatprep.subr.bf16.mxu0 %v2288
  %5886 = vmatpush1.bf16.msra.mxu0 %v2287
  %5887 = vmatprep.subr.bf16.mxu0 %v2296
  %5888 = vmatpush1.bf16.msra.mxu0 %v2295
  %5889 = vmatprep.subr.bf16.mxu0 %v2304
  %5890 = vmatpush1.bf16.msra.mxu0 %v2303
  %5891 = vmatprep.subr.bf16.mxu0 %v2312
  %5892 = vmatpush1.bf16.msra.mxu0 %v2311
  %5893 = vmatprep.subr.bf16.mxu0 %v2320
  %5894 = vmatpush1.bf16.msra.mxu0 %v2319
  %5895 = vmatprep.subr.bf16.mxu0 %v2328
  %5896 = vmatpush1.bf16.msra.mxu0 %v2327
  %5897 = vmatprep.subr.bf16.mxu0 %v2336
  %5898 = vmatpush1.bf16.msra.mxu0 %v2335
  %5899 = vmatprep.subr.bf16.mxu0 %v2344
  %5900 = vmatpush1.bf16.msra.mxu0 %v2343
  %5901 = vmatprep.subr.bf16.mxu0 %v2352
  %5902 = vmatpush1.bf16.msra.mxu0 %v2351
  %5903 = vmatprep.subr.bf16.mxu0 %v2360
  %5904 = vmatpush1.bf16.msra.mxu0 %v2359
  %5905 = vmatprep.mubr.bf16.mxu0 %v5749
  %5906 = vmatmul.mubr.bf16.gmra.mrb[0].mxu0 %v5748
  %v5907 = vpop.f32.mrb[0].mxu0
  %v5908 = vadd.f32 %v5867, %v5907
  %v5909 = vpop.f32.mrb[0].mxu0
  %v5910 = vadd.f32 %v5869, %v5909
  %v5911 = vpop.f32.mrb[0].mxu0
  %v5912 = vpop.f32.mrb[0].mxu0
  %5913 = vdwg.mxu0
  %5914 = vmatprep.subr.bf16.mxu0 %v2114
  %5915 = vmatpush1.bf16.msra.mxu0 %v2113
  %5916 = vmatprep.subr.bf16.mxu0 %v2122
  %5917 = vmatpush1.bf16.msra.mxu0 %v2121
  %5918 = vmatprep.subr.bf16.mxu0 %v2130
  %5919 = vmatpush1.bf16.msra.mxu0 %v2129
  %5920 = vmatprep.subr.bf16.mxu0 %v2138
  %5921 = vmatpush1.bf16.msra.mxu0 %v2137
  %5922 = vmatprep.subr.bf16.mxu0 %v2146
  %5923 = vmatpush1.bf16.msra.mxu0 %v2145
  %5924 = vmatprep.subr.bf16.mxu0 %v2154
  %5925 = vmatpush1.bf16.msra.mxu0 %v2153
  %5926 = vmatprep.subr.bf16.mxu0 %v2162
  %5927 = vmatpush1.bf16.msra.mxu0 %v2161
  %5928 = vmatprep.subr.bf16.mxu0 %v2170
  %5929 = vmatpush1.bf16.msra.mxu0 %v2169
  %5930 = vmatprep.subr.bf16.mxu0 %v2178
  %5931 = vmatpush1.bf16.msra.mxu0 %v2177
  %5932 = vmatprep.subr.bf16.mxu0 %v2186
  %5933 = vmatpush1.bf16.msra.mxu0 %v2185
  %5934 = vmatprep.subr.bf16.mxu0 %v2194
  %5935 = vmatpush1.bf16.msra.mxu0 %v2193
  %5936 = vmatprep.subr.bf16.mxu0 %v2202
  %5937 = vmatpush1.bf16.msra.mxu0 %v2201
  %5938 = vmatprep.subr.bf16.mxu0 %v2210
  %5939 = vmatpush1.bf16.msra.mxu0 %v2209
  %5940 = vmatprep.subr.bf16.mxu0 %v2218
  %5941 = vmatpush1.bf16.msra.mxu0 %v2217
  %5942 = vmatprep.subr.bf16.mxu0 %v2226
  %5943 = vmatpush1.bf16.msra.mxu0 %v2225
  %5944 = vmatprep.subr.bf16.mxu0 %v2234
  %5945 = vmatpush1.bf16.msra.mxu0 %v2233
  %5946 = vmatprep.mubr.bf16.mxu0 %v5747
  %5947 = vmatmul.mubr.bf16.gmra.mrb[0].mxu0 %v5746
  %v5948 = vpop.f32.mrb[0].mxu0
  %v5949 = vadd.f32 %v438, %v5948
  %v5950 = vpop.f32.mrb[0].mxu0
  %v5951 = vadd.f32 %v442, %v5950
  %v5952 = vpop.f32.mrb[0].mxu0
  %v5953 = vpop.f32.mrb[0].mxu0
  %5954 = vdwg.mxu0
  %5955 = vmatprep.subr.bf16.mxu0 %v2242
  %5956 = vmatpush1.bf16.msra.mxu0 %v2241
  %5957 = vmatprep.subr.bf16.mxu0 %v2250
  %5958 = vmatpush1.bf16.msra.mxu0 %v2249
  %5959 = vmatprep.subr.bf16.mxu0 %v2258
  %5960 = vmatpush1.bf16.msra.mxu0 %v2257
  %5961 = vmatprep.subr.bf16.mxu0 %v2266
  %5962 = vmatpush1.bf16.msra.mxu0 %v2265
  %5963 = vmatprep.subr.bf16.mxu0 %v2274
  %5964 = vmatpush1.bf16.msra.mxu0 %v2273
  %5965 = vmatprep.subr.bf16.mxu0 %v2282
  %5966 = vmatpush1.bf16.msra.mxu0 %v2281
  %5967 = vmatprep.subr.bf16.mxu0 %v2290
  %5968 = vmatpush1.bf16.msra.mxu0 %v2289
  %5969 = vmatprep.subr.bf16.mxu0 %v2298
  %5970 = vmatpush1.bf16.msra.mxu0 %v2297
  %5971 = vmatprep.subr.bf16.mxu0 %v2306
  %5972 = vmatpush1.bf16.msra.mxu0 %v2305
  %5973 = vmatprep.subr.bf16.mxu0 %v2314
  %5974 = vmatpush1.bf16.msra.mxu0 %v2313
  %5975 = vmatprep.subr.bf16.mxu0 %v2322
  %5976 = vmatpush1.bf16.msra.mxu0 %v2321
  %5977 = vmatprep.subr.bf16.mxu0 %v2330
  %5978 = vmatpush1.bf16.msra.mxu0 %v2329
  %5979 = vmatprep.subr.bf16.mxu0 %v2338
  %5980 = vmatpush1.bf16.msra.mxu0 %v2337
  %5981 = vmatprep.subr.bf16.mxu0 %v2346
  %5982 = vmatpush1.bf16.msra.mxu0 %v2345
  %5983 = vmatprep.subr.bf16.mxu0 %v2354
  %5984 = vmatpush1.bf16.msra.mxu0 %v2353
  %5985 = vmatprep.subr.bf16.mxu0 %v2362
  %5986 = vmatpush1.bf16.msra.mxu0 %v2361
  %5987 = vmatprep.mubr.bf16.mxu0 %v5749
  %5988 = vmatmul.mubr.bf16.gmra.mrb[0].mxu0 %v5748
  %v5989 = vpop.f32.mrb[0].mxu0
  %v5990 = vadd.f32 %v5949, %v5989
  %v5991 = vpop.f32.mrb[0].mxu0
  %v5992 = vadd.f32 %v5951, %v5991
  %v5993 = vpop.f32.mrb[0].mxu0
  %v5994 = vpop.f32.mrb[0].mxu0
  %5995 = vdwg.mxu0
  %5996 = vmatprep.subr.bf16.mxu0 %v2116
  %5997 = vmatpush1.bf16.msra.mxu0 %v2115
  %5998 = vmatprep.subr.bf16.mxu0 %v2124
  %5999 = vmatpush1.bf16.msra.mxu0 %v2123
  %6000 = vmatprep.subr.bf16.mxu0 %v2132
  %6001 = vmatpush1.bf16.msra.mxu0 %v2131
  %6002 = vmatprep.subr.bf16.mxu0 %v2140
  %6003 = vmatpush1.bf16.msra.mxu0 %v2139
  %6004 = vmatprep.subr.bf16.mxu0 %v2148
  %6005 = vmatpush1.bf16.msra.mxu0 %v2147
  %6006 = vmatprep.subr.bf16.mxu0 %v2156
  %6007 = vmatpush1.bf16.msra.mxu0 %v2155
  %6008 = vmatprep.subr.bf16.mxu0 %v2164
  %6009 = vmatpush1.bf16.msra.mxu0 %v2163
  %6010 = vmatprep.subr.bf16.mxu0 %v2172
  %6011 = vmatpush1.bf16.msra.mxu0 %v2171
  %6012 = vmatprep.subr.bf16.mxu0 %v2180
  %6013 = vmatpush1.bf16.msra.mxu0 %v2179
  %6014 = vmatprep.subr.bf16.mxu0 %v2188
  %6015 = vmatpush1.bf16.msra.mxu0 %v2187
  %6016 = vmatprep.subr.bf16.mxu0 %v2196
  %6017 = vmatpush1.bf16.msra.mxu0 %v2195
  %6018 = vmatprep.subr.bf16.mxu0 %v2204
  %6019 = vmatpush1.bf16.msra.mxu0 %v2203
  %6020 = vmatprep.subr.bf16.mxu0 %v2212
  %6021 = vmatpush1.bf16.msra.mxu0 %v2211
  %6022 = vmatprep.subr.bf16.mxu0 %v2220
  %6023 = vmatpush1.bf16.msra.mxu0 %v2219
  %6024 = vmatprep.subr.bf16.mxu0 %v2228
  %6025 = vmatpush1.bf16.msra.mxu0 %v2227
  %6026 = vmatprep.subr.bf16.mxu0 %v2236
  %6027 = vmatpush1.bf16.msra.mxu0 %v2235
  %6028 = vmatprep.mubr.bf16.mxu0 %v5747
  %6029 = vmatmul.mubr.bf16.gmra.mrb[0].mxu0 %v5746
  %v6030 = vpop.f32.mrb[0].mxu0
  %v6031 = vadd.f32 %v446, %v6030
  %v6032 = vpop.f32.mrb[0].mxu0
  %v6033 = vadd.f32 %v450, %v6032
  %v6034 = vpop.f32.mrb[0].mxu0
  %v6035 = vpop.f32.mrb[0].mxu0
  %6036 = vdwg.mxu0
  %6037 = vmatprep.subr.bf16.mxu0 %v2244
  %6038 = vmatpush1.bf16.msra.mxu0 %v2243
  %6039 = vmatprep.subr.bf16.mxu0 %v2252
  %6040 = vmatpush1.bf16.msra.mxu0 %v2251
  %6041 = vmatprep.subr.bf16.mxu0 %v2260
  %6042 = vmatpush1.bf16.msra.mxu0 %v2259
  %6043 = vmatprep.subr.bf16.mxu0 %v2268
  %6044 = vmatpush1.bf16.msra.mxu0 %v2267
  %6045 = vmatprep.subr.bf16.mxu0 %v2276
  %6046 = vmatpush1.bf16.msra.mxu0 %v2275
  %6047 = vmatprep.subr.bf16.mxu0 %v2284
  %6048 = vmatpush1.bf16.msra.mxu0 %v2283
  %6049 = vmatprep.subr.bf16.mxu0 %v2292
  %6050 = vmatpush1.bf16.msra.mxu0 %v2291
  %6051 = vmatprep.subr.bf16.mxu0 %v2300
  %6052 = vmatpush1.bf16.msra.mxu0 %v2299
  %6053 = vmatprep.subr.bf16.mxu0 %v2308
  %6054 = vmatpush1.bf16.msra.mxu0 %v2307
  %6055 = vmatprep.subr.bf16.mxu0 %v2316
  %6056 = vmatpush1.bf16.msra.mxu0 %v2315
  %6057 = vmatprep.subr.bf16.mxu0 %v2324
  %6058 = vmatpush1.bf16.msra.mxu0 %v2323
  %6059 = vmatprep.subr.bf16.mxu0 %v2332
  %6060 = vmatpush1.bf16.msra.mxu0 %v2331
  %6061 = vmatprep.subr.bf16.mxu0 %v2340
  %6062 = vmatpush1.bf16.msra.mxu0 %v2339
  %6063 = vmatprep.subr.bf16.mxu0 %v2348
  %6064 = vmatpush1.bf16.msra.mxu0 %v2347
  %6065 = vmatprep.subr.bf16.mxu0 %v2356
  %6066 = vmatpush1.bf16.msra.mxu0 %v2355
  %6067 = vmatprep.subr.bf16.mxu0 %v2364
  %6068 = vmatpush1.bf16.msra.mxu0 %v2363
  %6069 = vmatprep.mubr.bf16.mxu0 %v5749
  %6070 = vmatmul.mubr.bf16.gmra.mrb[0].mxu0 %v5748
  %v6071 = vpop.f32.mrb[0].mxu0
  %v6072 = vadd.f32 %v6031, %v6071
  %v6073 = vpop.f32.mrb[0].mxu0
  %v6074 = vadd.f32 %v6033, %v6073
  %v6075 = vpop.f32.mrb[0].mxu0
  %v6076 = vpop.f32.mrb[0].mxu0
  %6077 = vdwg.mxu0
  %v6078 = vxor.u32 %v5826, 2147483648
  %v6079 = vxor.u32 %v5828, 2147483648
  %v6080 = vmul.f32 %v6078, 1.442695
  %v6081 = vpow.pop %v6080
  %v6082 = vmul.f32 %v6079, 1.442695
  %v6083 = vpow.pop %v6082
  %v6084 = vadd.f32 %v6081, 1.0
  %v6085 = vadd.f32 %v6083, 1.0
  %v6086 = vrcp.pop %v6084
  %v6087 = vmul.f32 1.0, %v6086
  %v6088 = vrcp.pop %v6085
  %v6089 = vmul.f32 1.0, %v6088
  %v6090 = vxor.u32 %v5908, 2147483648
  %v6091 = vxor.u32 %v5910, 2147483648
  %v6092 = vmul.f32 %v6090, 1.442695
  %v6093 = vpow.pop %v6092
  %v6094 = vmul.f32 %v6091, 1.442695
  %v6095 = vpow.pop %v6094
  %v6096 = vadd.f32 %v6093, 1.0
  %v6097 = vadd.f32 %v6095, 1.0
  %v6098 = vrcp.pop %v6096
  %v6099 = vmul.f32 1.0, %v6098
  %v6100 = vrcp.pop %v6097
  %v6101 = vmul.f32 1.0, %v6100
  %v6102 = vtanh.pop %v5990
  %v6103 = vtanh.pop %v5992
  %v6104 = vxor.u32 %v6072, 2147483648
  %v6105 = vxor.u32 %v6074, 2147483648
  %v6106 = vmul.f32 %v6104, 1.442695
  %v6107 = vpow.pop %v6106
  %v6108 = vmul.f32 %v6105, 1.442695
  %v6109 = vpow.pop %v6108
  %v6110 = vadd.f32 %v6107, 1.0
  %v6111 = vadd.f32 %v6109, 1.0
  %v6112 = vrcp.pop %v6110
  %v6113 = vmul.f32 1.0, %v6112
  %v6114 = vrcp.pop %v6111
  %v6115 = vmul.f32 1.0, %v6114
  %v6116 = vmul.f32 %v6099, %v5494
  %v6117 = vmul.f32 %v6101, %v5495
  %v6118 = vmul.f32 %v6087, %v6102
  %v6119 = vmul.f32 %v6089, %v6103
  %v6120 = vadd.f32 %v6116, %v6118
  %v6121 = vadd.f32 %v6117, %v6119
  %v6122 = vtanh.pop %v6120
  %v6123 = vtanh.pop %v6121
  %v6124 = vmul.f32 %v6113, %v6122
  %v6125 = vmul.f32 %v6115, %v6123
  %v6126 = vmul.f32 %v6124, %v5742
  %v6127 = vmul.f32 %v6125, %v5742
  %s6128 = scalar_lea.vmem [#allocation2], 80
  %6129 = vst [vmem:[%s6128] sm:$0xff] %v6126
  %6130 = vst [vmem:[%s6128 + $0x8] sm:$0xff] %v6127
  %s6131 = scalar_lea.vmem %s0, 384
  %v6132 = vld [vmem:[%s6131] sm:$0xff]
  %v6133 = vld [vmem:[%s6131 + $0x8] sm:$0xff]
  %v6134 = vld [vmem:[%s6131 + $0x10] sm:$0xff]
  %v6135 = vld [vmem:[%s6131 + $0x18] sm:$0xff]
  %v6136 = vld [vmem:[%s6131 + $0x20] sm:$0xff]
  %v6137 = vld [vmem:[%s6131 + $0x28] sm:$0xff]
  %v6138 = vld [vmem:[%s6131 + $0x30] sm:$0xff]
  %v6139 = vld [vmem:[%s6131 + $0x38] sm:$0xff]
  %v6140 = vpack.c.bf16 %v5734, %v5734
  %v6141 = vpack.c.bf16 %v5735, %v5735
  %6142 = vmatprep.subr.bf16.mxu0 %v853
  %6143 = vmatpush1.bf16.msra.mxu0 %v852
  %6144 = vmatprep.subr.bf16.mxu0 %v861
  %6145 = vmatpush1.bf16.msra.mxu0 %v860
  %6146 = vmatprep.subr.bf16.mxu0 %v869
  %6147 = vmatpush1.bf16.msra.mxu0 %v868
  %6148 = vmatprep.subr.bf16.mxu0 %v877
  %6149 = vmatpush1.bf16.msra.mxu0 %v876
  %6150 = vmatprep.subr.bf16.mxu0 %v885
  %6151 = vmatpush1.bf16.msra.mxu0 %v884
  %6152 = vmatprep.subr.bf16.mxu0 %v893
  %6153 = vmatpush1.bf16.msra.mxu0 %v892
  %6154 = vmatprep.subr.bf16.mxu0 %v901
  %6155 = vmatpush1.bf16.msra.mxu0 %v900
  %6156 = vmatprep.subr.bf16.mxu0 %v909
  %6157 = vmatpush1.bf16.msra.mxu0 %v908
  %6158 = vmatprep.subr.bf16.mxu0 %v917
  %6159 = vmatpush1.bf16.msra.mxu0 %v916
  %6160 = vmatprep.subr.bf16.mxu0 %v925
  %6161 = vmatpush1.bf16.msra.mxu0 %v924
  %6162 = vmatprep.subr.bf16.mxu0 %v933
  %6163 = vmatpush1.bf16.msra.mxu0 %v932
  %6164 = vmatprep.subr.bf16.mxu0 %v941
  %6165 = vmatpush1.bf16.msra.mxu0 %v940
  %6166 = vmatprep.subr.bf16.mxu0 %v949
  %6167 = vmatpush1.bf16.msra.mxu0 %v948
  %6168 = vmatprep.subr.bf16.mxu0 %v957
  %6169 = vmatpush1.bf16.msra.mxu0 %v956
  %6170 = vmatprep.subr.bf16.mxu0 %v965
  %6171 = vmatpush1.bf16.msra.mxu0 %v964
  %6172 = vmatprep.subr.bf16.mxu0 %v973
  %6173 = vmatpush1.bf16.msra.mxu0 %v972
  %6174 = vmatprep.mubr.bf16.mxu0 %v6141
  %6175 = vmatmul.mubr.bf16.gmra.mrb[0].mxu0 %v6140
  %v6176 = vpop.f32.mrb[0].mxu0
  %v6177 = vadd.f32 0.0, %v6176
  %v6178 = vpop.f32.mrb[0].mxu0
  %v6179 = vadd.f32 0.0, %v6178
  %v6180 = vpop.f32.mrb[0].mxu0
  %v6181 = vpop.f32.mrb[0].mxu0
  %6182 = vdwg.mxu0
  %6183 = vmatprep.subr.bf16.mxu0 %v855
  %6184 = vmatpush1.bf16.msra.mxu0 %v854
  %6185 = vmatprep.subr.bf16.mxu0 %v863
  %6186 = vmatpush1.bf16.msra.mxu0 %v862
  %6187 = vmatprep.subr.bf16.mxu0 %v871
  %6188 = vmatpush1.bf16.msra.mxu0 %v870
  %6189 = vmatprep.subr.bf16.mxu0 %v879
  %6190 = vmatpush1.bf16.msra.mxu0 %v878
  %6191 = vmatprep.subr.bf16.mxu0 %v887
  %6192 = vmatpush1.bf16.msra.mxu0 %v886
  %6193 = vmatprep.subr.bf16.mxu0 %v895
  %6194 = vmatpush1.bf16.msra.mxu0 %v894
  %6195 = vmatprep.subr.bf16.mxu0 %v903
  %6196 = vmatpush1.bf16.msra.mxu0 %v902
  %6197 = vmatprep.subr.bf16.mxu0 %v911
  %6198 = vmatpush1.bf16.msra.mxu0 %v910
  %6199 = vmatprep.subr.bf16.mxu0 %v919
  %6200 = vmatpush1.bf16.msra.mxu0 %v918
  %6201 = vmatprep.subr.bf16.mxu0 %v927
  %6202 = vmatpush1.bf16.msra.mxu0 %v926
  %6203 = vmatprep.subr.bf16.mxu0 %v935
  %6204 = vmatpush1.bf16.msra.mxu0 %v934
  %6205 = vmatprep.subr.bf16.mxu0 %v943
  %6206 = vmatpush1.bf16.msra.mxu0 %v942
  %6207 = vmatprep.subr.bf16.mxu0 %v951
  %6208 = vmatpush1.bf16.msra.mxu0 %v950
  %6209 = vmatprep.subr.bf16.mxu0 %v959
  %6210 = vmatpush1.bf16.msra.mxu0 %v958
  %6211 = vmatprep.subr.bf16.mxu0 %v967
  %6212 = vmatpush1.bf16.msra.mxu0 %v966
  %6213 = vmatprep.subr.bf16.mxu0 %v975
  %6214 = vmatpush1.bf16.msra.mxu0 %v974
  %6215 = vmatprep.mubr.bf16.mxu0 %v6141
  %6216 = vmatmul.mubr.bf16.gmra.mrb[0].mxu0 %v6140
  %v6217 = vpop.f32.mrb[0].mxu0
  %v6218 = vadd.f32 0.0, %v6217
  %v6219 = vpop.f32.mrb[0].mxu0
  %v6220 = vadd.f32 0.0, %v6219
  %v6221 = vpop.f32.mrb[0].mxu0
  %v6222 = vpop.f32.mrb[0].mxu0
  %6223 = vdwg.mxu0
  %6224 = vmatprep.subr.bf16.mxu0 %v857
  %6225 = vmatpush1.bf16.msra.mxu0 %v856
  %6226 = vmatprep.subr.bf16.mxu0 %v865
  %6227 = vmatpush1.bf16.msra.mxu0 %v864
  %6228 = vmatprep.subr.bf16.mxu0 %v873
  %6229 = vmatpush1.bf16.msra.mxu0 %v872
  %6230 = vmatprep.subr.bf16.mxu0 %v881
  %6231 = vmatpush1.bf16.msra.mxu0 %v880
  %6232 = vmatprep.subr.bf16.mxu0 %v889
  %6233 = vmatpush1.bf16.msra.mxu0 %v888
  %6234 = vmatprep.subr.bf16.mxu0 %v897
  %6235 = vmatpush1.bf16.msra.mxu0 %v896
  %6236 = vmatprep.subr.bf16.mxu0 %v905
  %6237 = vmatpush1.bf16.msra.mxu0 %v904
  %6238 = vmatprep.subr.bf16.mxu0 %v913
  %6239 = vmatpush1.bf16.msra.mxu0 %v912
  %6240 = vmatprep.subr.bf16.mxu0 %v921
  %6241 = vmatpush1.bf16.msra.mxu0 %v920
  %6242 = vmatprep.subr.bf16.mxu0 %v929
  %6243 = vmatpush1.bf16.msra.mxu0 %v928
  %6244 = vmatprep.subr.bf16.mxu0 %v937
  %6245 = vmatpush1.bf16.msra.mxu0 %v936
  %6246 = vmatprep.subr.bf16.mxu0 %v945
  %6247 = vmatpush1.bf16.msra.mxu0 %v944
  %6248 = vmatprep.subr.bf16.mxu0 %v953
  %6249 = vmatpush1.bf16.msra.mxu0 %v952
  %6250 = vmatprep.subr.bf16.mxu0 %v961
  %6251 = vmatpush1.bf16.msra.mxu0 %v960
  %6252 = vmatprep.subr.bf16.mxu0 %v969
  %6253 = vmatpush1.bf16.msra.mxu0 %v968
  %6254 = vmatprep.subr.bf16.mxu0 %v977
  %6255 = vmatpush1.bf16.msra.mxu0 %v976
  %6256 = vmatprep.mubr.bf16.mxu0 %v6141
  %6257 = vmatmul.mubr.bf16.gmra.mrb[0].mxu0 %v6140
  %v6258 = vpop.f32.mrb[0].mxu0
  %v6259 = vadd.f32 0.0, %v6258
  %v6260 = vpop.f32.mrb[0].mxu0
  %v6261 = vadd.f32 0.0, %v6260
  %v6262 = vpop.f32.mrb[0].mxu0
  %v6263 = vpop.f32.mrb[0].mxu0
  %6264 = vdwg.mxu0
  %6265 = vmatprep.subr.bf16.mxu0 %v859
  %6266 = vmatpush1.bf16.msra.mxu0 %v858
  %6267 = vmatprep.subr.bf16.mxu0 %v867
  %6268 = vmatpush1.bf16.msra.mxu0 %v866
  %6269 = vmatprep.subr.bf16.mxu0 %v875
  %6270 = vmatpush1.bf16.msra.mxu0 %v874
  %6271 = vmatprep.subr.bf16.mxu0 %v883
  %6272 = vmatpush1.bf16.msra.mxu0 %v882
  %6273 = vmatprep.subr.bf16.mxu0 %v891
  %6274 = vmatpush1.bf16.msra.mxu0 %v890
  %6275 = vmatprep.subr.bf16.mxu0 %v899
  %6276 = vmatpush1.bf16.msra.mxu0 %v898
  %6277 = vmatprep.subr.bf16.mxu0 %v907
  %6278 = vmatpush1.bf16.msra.mxu0 %v906
  %6279 = vmatprep.subr.bf16.mxu0 %v915
  %6280 = vmatpush1.bf16.msra.mxu0 %v914
  %6281 = vmatprep.subr.bf16.mxu0 %v923
  %6282 = vmatpush1.bf16.msra.mxu0 %v922
  %6283 = vmatprep.subr.bf16.mxu0 %v931
  %6284 = vmatpush1.bf16.msra.mxu0 %v930
  %6285 = vmatprep.subr.bf16.mxu0 %v939
  %6286 = vmatpush1.bf16.msra.mxu0 %v938
  %6287 = vmatprep.subr.bf16.mxu0 %v947
  %6288 = vmatpush1.bf16.msra.mxu0 %v946
  %6289 = vmatprep.subr.bf16.mxu0 %v955
  %6290 = vmatpush1.bf16.msra.mxu0 %v954
  %6291 = vmatprep.subr.bf16.mxu0 %v963
  %6292 = vmatpush1.bf16.msra.mxu0 %v962
  %6293 = vmatprep.subr.bf16.mxu0 %v971
  %6294 = vmatpush1.bf16.msra.mxu0 %v970
  %6295 = vmatprep.subr.bf16.mxu0 %v979
  %6296 = vmatpush1.bf16.msra.mxu0 %v978
  %6297 = vmatprep.mubr.bf16.mxu0 %v6141
  %6298 = vmatmul.mubr.bf16.gmra.mrb[0].mxu0 %v6140
  %v6299 = vpop.f32.mrb[0].mxu0
  %v6300 = vadd.f32 0.0, %v6299
  %v6301 = vpop.f32.mrb[0].mxu0
  %v6302 = vadd.f32 0.0, %v6301
  %v6303 = vpop.f32.mrb[0].mxu0
  %v6304 = vpop.f32.mrb[0].mxu0
  %6305 = vdwg.mxu0
  %v6306 = vadd.f32 %v6132, %v6177
  %v6307 = vadd.f32 %v6133, %v6179
  %v6308 = vadd.f32 %v6134, %v6218
  %v6309 = vadd.f32 %v6135, %v6220
  %v6310 = vadd.f32 %v6136, %v6259
  %v6311 = vadd.f32 %v6137, %v6261
  %v6312 = vadd.f32 %v6138, %v6300
  %v6313 = vadd.f32 %v6139, %v6302
  %v6314 = vxor.u32 %v6306, 2147483648
  %v6315 = vxor.u32 %v6307, 2147483648
  %v6316 = vmul.f32 %v6314, 1.442695
  %v6317 = vpow.pop %v6316
  %v6318 = vmul.f32 %v6315, 1.442695
  %v6319 = vpow.pop %v6318
  %v6320 = vadd.f32 %v6317, 1.0
  %v6321 = vadd.f32 %v6319, 1.0
  %v6322 = vrcp.pop %v6320
  %v6323 = vmul.f32 1.0, %v6322
  %v6324 = vrcp.pop %v6321
  %v6325 = vmul.f32 1.0, %v6324
  %v6326 = vxor.u32 %v6308, 2147483648
  %v6327 = vxor.u32 %v6309, 2147483648
  %v6328 = vmul.f32 %v6326, 1.442695
  %v6329 = vpow.pop %v6328
  %v6330 = vmul.f32 %v6327, 1.442695
  %v6331 = vpow.pop %v6330
  %v6332 = vadd.f32 %v6329, 1.0
  %v6333 = vadd.f32 %v6331, 1.0
  %v6334 = vrcp.pop %v6332
  %v6335 = vmul.f32 1.0, %v6334
  %v6336 = vrcp.pop %v6333
  %v6337 = vmul.f32 1.0, %v6336
  %v6338 = vtanh.pop %v6310
  %v6339 = vtanh.pop %v6311
  %v6340 = vxor.u32 %v6312, 2147483648
  %v6341 = vxor.u32 %v6313, 2147483648
  %v6342 = vmul.f32 %v6340, 1.442695
  %v6343 = vpow.pop %v6342
  %v6344 = vmul.f32 %v6341, 1.442695
  %v6345 = vpow.pop %v6344
  %v6346 = vadd.f32 %v6343, 1.0
  %v6347 = vadd.f32 %v6345, 1.0
  %v6348 = vrcp.pop %v6346
  %v6349 = vmul.f32 1.0, %v6348
  %v6350 = vrcp.pop %v6347
  %v6351 = vmul.f32 1.0, %v6350
  %v6352 = vmul.f32 %v6335, %v5730
  %v6353 = vmul.f32 %v6337, %v5731
  %v6354 = vmul.f32 %v6323, %v6338
  %v6355 = vmul.f32 %v6325, %v6339
  %v6356 = vadd.f32 %v6352, %v6354
  %v6357 = vadd.f32 %v6353, %v6355
  %v6358 = vtanh.pop %v6356
  %v6359 = vtanh.pop %v6357
  %v6360 = vmul.f32 %v6349, %v6358
  %v6361 = vmul.f32 %v6351, %v6359
  %vm6362 = vcmp.gt.s32.totalorder %v459, 6
  %v6363 = vsel %vm6362, 1, 0
  %v6364 = vcvt.s32.f32 %v6363
  %6366 = vset.pattern.permute.xlu0 0
  %6367 = vperm.xlu0 %6366, %v6364
  %v6368 = vpop.permute.xlu0 %6367
  %v6370 = vmul.f32 %v6360, %v6368
  %v6371 = vmul.f32 %v6361, %v6368
  %v6372 = vpack.c.bf16 %v6370, %v6370
  %v6373 = vpack.c.bf16 %v6371, %v6371
  %v6374 = vpack.c.bf16 %v6124, %v6124
  %v6375 = vpack.c.bf16 %v6125, %v6125
  %6376 = vmatprep.subr.bf16.mxu0 %v2110
  %6377 = vmatpush1.bf16.msra.mxu0 %v2109
  %6378 = vmatprep.subr.bf16.mxu0 %v2118
  %6379 = vmatpush1.bf16.msra.mxu0 %v2117
  %6380 = vmatprep.subr.bf16.mxu0 %v2126
  %6381 = vmatpush1.bf16.msra.mxu0 %v2125
  %6382 = vmatprep.subr.bf16.mxu0 %v2134
  %6383 = vmatpush1.bf16.msra.mxu0 %v2133
  %6384 = vmatprep.subr.bf16.mxu0 %v2142
  %6385 = vmatpush1.bf16.msra.mxu0 %v2141
  %6386 = vmatprep.subr.bf16.mxu0 %v2150
  %6387 = vmatpush1.bf16.msra.mxu0 %v2149
  %6388 = vmatprep.subr.bf16.mxu0 %v2158
  %6389 = vmatpush1.bf16.msra.mxu0 %v2157
  %6390 = vmatprep.subr.bf16.mxu0 %v2166
  %6391 = vmatpush1.bf16.msra.mxu0 %v2165
  %6392 = vmatprep.subr.bf16.mxu0 %v2174
  %6393 = vmatpush1.bf16.msra.mxu0 %v2173
  %6394 = vmatprep.subr.bf16.mxu0 %v2182
  %6395 = vmatpush1.bf16.msra.mxu0 %v2181
  %6396 = vmatprep.subr.bf16.mxu0 %v2190
  %6397 = vmatpush1.bf16.msra.mxu0 %v2189
  %6398 = vmatprep.subr.bf16.mxu0 %v2198
  %6399 = vmatpush1.bf16.msra.mxu0 %v2197
  %6400 = vmatprep.subr.bf16.mxu0 %v2206
  %6401 = vmatpush1.bf16.msra.mxu0 %v2205
  %6402 = vmatprep.subr.bf16.mxu0 %v2214
  %6403 = vmatpush1.bf16.msra.mxu0 %v2213
  %6404 = vmatprep.subr.bf16.mxu0 %v2222
  %6405 = vmatpush1.bf16.msra.mxu0 %v2221
  %6406 = vmatprep.subr.bf16.mxu0 %v2230
  %6407 = vmatpush1.bf16.msra.mxu0 %v2229
  %6408 = vmatprep.mubr.bf16.mxu0 %v6373
  %6409 = vmatmul.mubr.bf16.gmra.mrb[0].mxu0 %v6372
  %v6410 = vpop.f32.mrb[0].mxu0
  %v6411 = vadd.f32 %v422, %v6410
  %v6412 = vpop.f32.mrb[0].mxu0
  %v6413 = vadd.f32 %v426, %v6412
  %v6414 = vpop.f32.mrb[0].mxu0
  %v6415 = vpop.f32.mrb[0].mxu0
  %6416 = vdwg.mxu0
  %6417 = vmatprep.subr.bf16.mxu0 %v2238
  %6418 = vmatpush1.bf16.msra.mxu0 %v2237
  %6419 = vmatprep.subr.bf16.mxu0 %v2246
  %6420 = vmatpush1.bf16.msra.mxu0 %v2245
  %6421 = vmatprep.subr.bf16.mxu0 %v2254
  %6422 = vmatpush1.bf16.msra.mxu0 %v2253
  %6423 = vmatprep.subr.bf16.mxu0 %v2262
  %6424 = vmatpush1.bf16.msra.mxu0 %v2261
  %6425 = vmatprep.subr.bf16.mxu0 %v2270
  %6426 = vmatpush1.bf16.msra.mxu0 %v2269
  %6427 = vmatprep.subr.bf16.mxu0 %v2278
  %6428 = vmatpush1.bf16.msra.mxu0 %v2277
  %6429 = vmatprep.subr.bf16.mxu0 %v2286
  %6430 = vmatpush1.bf16.msra.mxu0 %v2285
  %6431 = vmatprep.subr.bf16.mxu0 %v2294
  %6432 = vmatpush1.bf16.msra.mxu0 %v2293
  %6433 = vmatprep.subr.bf16.mxu0 %v2302
  %6434 = vmatpush1.bf16.msra.mxu0 %v2301
  %6435 = vmatprep.subr.bf16.mxu0 %v2310
  %6436 = vmatpush1.bf16.msra.mxu0 %v2309
  %6437 = vmatprep.subr.bf16.mxu0 %v2318
  %6438 = vmatpush1.bf16.msra.mxu0 %v2317
  %6439 = vmatprep.subr.bf16.mxu0 %v2326
  %6440 = vmatpush1.bf16.msra.mxu0 %v2325
  %6441 = vmatprep.subr.bf16.mxu0 %v2334
  %6442 = vmatpush1.bf16.msra.mxu0 %v2333
  %6443 = vmatprep.subr.bf16.mxu0 %v2342
  %6444 = vmatpush1.bf16.msra.mxu0 %v2341
  %6445 = vmatprep.subr.bf16.mxu0 %v2350
  %6446 = vmatpush1.bf16.msra.mxu0 %v2349
  %6447 = vmatprep.subr.bf16.mxu0 %v2358
  %6448 = vmatpush1.bf16.msra.mxu0 %v2357
  %6449 = vmatprep.mubr.bf16.mxu0 %v6375
  %6450 = vmatmul.mubr.bf16.gmra.mrb[0].mxu0 %v6374
  %v6451 = vpop.f32.mrb[0].mxu0
  %v6452 = vadd.f32 %v6411, %v6451
  %v6453 = vpop.f32.mrb[0].mxu0
  %v6454 = vadd.f32 %v6413, %v6453
  %v6455 = vpop.f32.mrb[0].mxu0
  %v6456 = vpop.f32.mrb[0].mxu0
  %6457 = vdwg.mxu0
  %6458 = vmatprep.subr.bf16.mxu0 %v2112
  %6459 = vmatpush1.bf16.msra.mxu0 %v2111
  %6460 = vmatprep.subr.bf16.mxu0 %v2120
  %6461 = vmatpush1.bf16.msra.mxu0 %v2119
  %6462 = vmatprep.subr.bf16.mxu0 %v2128
  %6463 = vmatpush1.bf16.msra.mxu0 %v2127
  %6464 = vmatprep.subr.bf16.mxu0 %v2136
  %6465 = vmatpush1.bf16.msra.mxu0 %v2135
  %6466 = vmatprep.subr.bf16.mxu0 %v2144
  %6467 = vmatpush1.bf16.msra.mxu0 %v2143
  %6468 = vmatprep.subr.bf16.mxu0 %v2152
  %6469 = vmatpush1.bf16.msra.mxu0 %v2151
  %6470 = vmatprep.subr.bf16.mxu0 %v2160
  %6471 = vmatpush1.bf16.msra.mxu0 %v2159
  %6472 = vmatprep.subr.bf16.mxu0 %v2168
  %6473 = vmatpush1.bf16.msra.mxu0 %v2167
  %6474 = vmatprep.subr.bf16.mxu0 %v2176
  %6475 = vmatpush1.bf16.msra.mxu0 %v2175
  %6476 = vmatprep.subr.bf16.mxu0 %v2184
  %6477 = vmatpush1.bf16.msra.mxu0 %v2183
  %6478 = vmatprep.subr.bf16.mxu0 %v2192
  %6479 = vmatpush1.bf16.msra.mxu0 %v2191
  %6480 = vmatprep.subr.bf16.mxu0 %v2200
  %6481 = vmatpush1.bf16.msra.mxu0 %v2199
  %6482 = vmatprep.subr.bf16.mxu0 %v2208
  %6483 = vmatpush1.bf16.msra.mxu0 %v2207
  %6484 = vmatprep.subr.bf16.mxu0 %v2216
  %6485 = vmatpush1.bf16.msra.mxu0 %v2215
  %6486 = vmatprep.subr.bf16.mxu0 %v2224
  %6487 = vmatpush1.bf16.msra.mxu0 %v2223
  %6488 = vmatprep.subr.bf16.mxu0 %v2232
  %6489 = vmatpush1.bf16.msra.mxu0 %v2231
  %6490 = vmatprep.mubr.bf16.mxu0 %v6373
  %6491 = vmatmul.mubr.bf16.gmra.mrb[0].mxu0 %v6372
  %v6492 = vpop.f32.mrb[0].mxu0
  %v6493 = vadd.f32 %v430, %v6492
  %v6494 = vpop.f32.mrb[0].mxu0
  %v6495 = vadd.f32 %v434, %v6494
  %v6496 = vpop.f32.mrb[0].mxu0
  %v6497 = vpop.f32.mrb[0].mxu0
  %6498 = vdwg.mxu0
  %6499 = vmatprep.subr.bf16.mxu0 %v2240
  %6500 = vmatpush1.bf16.msra.mxu0 %v2239
  %6501 = vmatprep.subr.bf16.mxu0 %v2248
  %6502 = vmatpush1.bf16.msra.mxu0 %v2247
  %6503 = vmatprep.subr.bf16.mxu0 %v2256
  %6504 = vmatpush1.bf16.msra.mxu0 %v2255
  %6505 = vmatprep.subr.bf16.mxu0 %v2264
  %6506 = vmatpush1.bf16.msra.mxu0 %v2263
  %6507 = vmatprep.subr.bf16.mxu0 %v2272
  %6508 = vmatpush1.bf16.msra.mxu0 %v2271
  %6509 = vmatprep.subr.bf16.mxu0 %v2280
  %6510 = vmatpush1.bf16.msra.mxu0 %v2279
  %6511 = vmatprep.subr.bf16.mxu0 %v2288
  %6512 = vmatpush1.bf16.msra.mxu0 %v2287
  %6513 = vmatprep.subr.bf16.mxu0 %v2296
  %6514 = vmatpush1.bf16.msra.mxu0 %v2295
  %6515 = vmatprep.subr.bf16.mxu0 %v2304
  %6516 = vmatpush1.bf16.msra.mxu0 %v2303
  %6517 = vmatprep.subr.bf16.mxu0 %v2312
  %6518 = vmatpush1.bf16.msra.mxu0 %v2311
  %6519 = vmatprep.subr.bf16.mxu0 %v2320
  %6520 = vmatpush1.bf16.msra.mxu0 %v2319
  %6521 = vmatprep.subr.bf16.mxu0 %v2328
  %6522 = vmatpush1.bf16.msra.mxu0 %v2327
  %6523 = vmatprep.subr.bf16.mxu0 %v2336
  %6524 = vmatpush1.bf16.msra.mxu0 %v2335
  %6525 = vmatprep.subr.bf16.mxu0 %v2344
  %6526 = vmatpush1.bf16.msra.mxu0 %v2343
  %6527 = vmatprep.subr.bf16.mxu0 %v2352
  %6528 = vmatpush1.bf16.msra.mxu0 %v2351
  %6529 = vmatprep.subr.bf16.mxu0 %v2360
  %6530 = vmatpush1.bf16.msra.mxu0 %v2359
  %6531 = vmatprep.mubr.bf16.mxu0 %v6375
  %6532 = vmatmul.mubr.bf16.gmra.mrb[0].mxu0 %v6374
  %v6533 = vpop.f32.mrb[0].mxu0
  %v6534 = vadd.f32 %v6493, %v6533
  %v6535 = vpop.f32.mrb[0].mxu0
  %v6536 = vadd.f32 %v6495, %v6535
  %v6537 = vpop.f32.mrb[0].mxu0
  %v6538 = vpop.f32.mrb[0].mxu0
  %6539 = vdwg.mxu0
  %6540 = vmatprep.subr.bf16.mxu0 %v2114
  %6541 = vmatpush1.bf16.msra.mxu0 %v2113
  %6542 = vmatprep.subr.bf16.mxu0 %v2122
  %6543 = vmatpush1.bf16.msra.mxu0 %v2121
  %6544 = vmatprep.subr.bf16.mxu0 %v2130
  %6545 = vmatpush1.bf16.msra.mxu0 %v2129
  %6546 = vmatprep.subr.bf16.mxu0 %v2138
  %6547 = vmatpush1.bf16.msra.mxu0 %v2137
  %6548 = vmatprep.subr.bf16.mxu0 %v2146
  %6549 = vmatpush1.bf16.msra.mxu0 %v2145
  %6550 = vmatprep.subr.bf16.mxu0 %v2154
  %6551 = vmatpush1.bf16.msra.mxu0 %v2153
  %6552 = vmatprep.subr.bf16.mxu0 %v2162
  %6553 = vmatpush1.bf16.msra.mxu0 %v2161
  %6554 = vmatprep.subr.bf16.mxu0 %v2170
  %6555 = vmatpush1.bf16.msra.mxu0 %v2169
  %6556 = vmatprep.subr.bf16.mxu0 %v2178
  %6557 = vmatpush1.bf16.msra.mxu0 %v2177
  %6558 = vmatprep.subr.bf16.mxu0 %v2186
  %6559 = vmatpush1.bf16.msra.mxu0 %v2185
  %6560 = vmatprep.subr.bf16.mxu0 %v2194
  %6561 = vmatpush1.bf16.msra.mxu0 %v2193
  %6562 = vmatprep.subr.bf16.mxu0 %v2202
  %6563 = vmatpush1.bf16.msra.mxu0 %v2201
  %6564 = vmatprep.subr.bf16.mxu0 %v2210
  %6565 = vmatpush1.bf16.msra.mxu0 %v2209
  %6566 = vmatprep.subr.bf16.mxu0 %v2218
  %6567 = vmatpush1.bf16.msra.mxu0 %v2217
  %6568 = vmatprep.subr.bf16.mxu0 %v2226
  %6569 = vmatpush1.bf16.msra.mxu0 %v2225
  %6570 = vmatprep.subr.bf16.mxu0 %v2234
  %6571 = vmatpush1.bf16.msra.mxu0 %v2233
  %6572 = vmatprep.mubr.bf16.mxu0 %v6373
  %6573 = vmatmul.mubr.bf16.gmra.mrb[0].mxu0 %v6372
  %v6574 = vpop.f32.mrb[0].mxu0
  %v6575 = vadd.f32 %v438, %v6574
  %v6576 = vpop.f32.mrb[0].mxu0
  %v6577 = vadd.f32 %v442, %v6576
  %v6578 = vpop.f32.mrb[0].mxu0
  %v6579 = vpop.f32.mrb[0].mxu0
  %6580 = vdwg.mxu0
  %6581 = vmatprep.subr.bf16.mxu0 %v2242
  %6582 = vmatpush1.bf16.msra.mxu0 %v2241
  %6583 = vmatprep.subr.bf16.mxu0 %v2250
  %6584 = vmatpush1.bf16.msra.mxu0 %v2249
  %6585 = vmatprep.subr.bf16.mxu0 %v2258
  %6586 = vmatpush1.bf16.msra.mxu0 %v2257
  %6587 = vmatprep.subr.bf16.mxu0 %v2266
  %6588 = vmatpush1.bf16.msra.mxu0 %v2265
  %6589 = vmatprep.subr.bf16.mxu0 %v2274
  %6590 = vmatpush1.bf16.msra.mxu0 %v2273
  %6591 = vmatprep.subr.bf16.mxu0 %v2282
  %6592 = vmatpush1.bf16.msra.mxu0 %v2281
  %6593 = vmatprep.subr.bf16.mxu0 %v2290
  %6594 = vmatpush1.bf16.msra.mxu0 %v2289
  %6595 = vmatprep.subr.bf16.mxu0 %v2298
  %6596 = vmatpush1.bf16.msra.mxu0 %v2297
  %6597 = vmatprep.subr.bf16.mxu0 %v2306
  %6598 = vmatpush1.bf16.msra.mxu0 %v2305
  %6599 = vmatprep.subr.bf16.mxu0 %v2314
  %6600 = vmatpush1.bf16.msra.mxu0 %v2313
  %6601 = vmatprep.subr.bf16.mxu0 %v2322
  %6602 = vmatpush1.bf16.msra.mxu0 %v2321
  %6603 = vmatprep.subr.bf16.mxu0 %v2330
  %6604 = vmatpush1.bf16.msra.mxu0 %v2329
  %6605 = vmatprep.subr.bf16.mxu0 %v2338
  %6606 = vmatpush1.bf16.msra.mxu0 %v2337
  %6607 = vmatprep.subr.bf16.mxu0 %v2346
  %6608 = vmatpush1.bf16.msra.mxu0 %v2345
  %6609 = vmatprep.subr.bf16.mxu0 %v2354
  %6610 = vmatpush1.bf16.msra.mxu0 %v2353
  %6611 = vmatprep.subr.bf16.mxu0 %v2362
  %6612 = vmatpush1.bf16.msra.mxu0 %v2361
  %6613 = vmatprep.mubr.bf16.mxu0 %v6375
  %6614 = vmatmul.mubr.bf16.gmra.mrb[0].mxu0 %v6374
  %v6615 = vpop.f32.mrb[0].mxu0
  %v6616 = vadd.f32 %v6575, %v6615
  %v6617 = vpop.f32.mrb[0].mxu0
  %v6618 = vadd.f32 %v6577, %v6617
  %v6619 = vpop.f32.mrb[0].mxu0
  %v6620 = vpop.f32.mrb[0].mxu0
  %6621 = vdwg.mxu0
  %6622 = vmatprep.subr.bf16.mxu0 %v2116
  %6623 = vmatpush1.bf16.msra.mxu0 %v2115
  %6624 = vmatprep.subr.bf16.mxu0 %v2124
  %6625 = vmatpush1.bf16.msra.mxu0 %v2123
  %6626 = vmatprep.subr.bf16.mxu0 %v2132
  %6627 = vmatpush1.bf16.msra.mxu0 %v2131
  %6628 = vmatprep.subr.bf16.mxu0 %v2140
  %6629 = vmatpush1.bf16.msra.mxu0 %v2139
  %6630 = vmatprep.subr.bf16.mxu0 %v2148
  %6631 = vmatpush1.bf16.msra.mxu0 %v2147
  %6632 = vmatprep.subr.bf16.mxu0 %v2156
  %6633 = vmatpush1.bf16.msra.mxu0 %v2155
  %6634 = vmatprep.subr.bf16.mxu0 %v2164
  %6635 = vmatpush1.bf16.msra.mxu0 %v2163
  %6636 = vmatprep.subr.bf16.mxu0 %v2172
  %6637 = vmatpush1.bf16.msra.mxu0 %v2171
  %6638 = vmatprep.subr.bf16.mxu0 %v2180
  %6639 = vmatpush1.bf16.msra.mxu0 %v2179
  %6640 = vmatprep.subr.bf16.mxu0 %v2188
  %6641 = vmatpush1.bf16.msra.mxu0 %v2187
  %6642 = vmatprep.subr.bf16.mxu0 %v2196
  %6643 = vmatpush1.bf16.msra.mxu0 %v2195
  %6644 = vmatprep.subr.bf16.mxu0 %v2204
  %6645 = vmatpush1.bf16.msra.mxu0 %v2203
  %6646 = vmatprep.subr.bf16.mxu0 %v2212
  %6647 = vmatpush1.bf16.msra.mxu0 %v2211
  %6648 = vmatprep.subr.bf16.mxu0 %v2220
  %6649 = vmatpush1.bf16.msra.mxu0 %v2219
  %6650 = vmatprep.subr.bf16.mxu0 %v2228
  %6651 = vmatpush1.bf16.msra.mxu0 %v2227
  %6652 = vmatprep.subr.bf16.mxu0 %v2236
  %6653 = vmatpush1.bf16.msra.mxu0 %v2235
  %6654 = vmatprep.mubr.bf16.mxu0 %v6373
  %6655 = vmatmul.mubr.bf16.gmra.mrb[0].mxu0 %v6372
  %v6656 = vpop.f32.mrb[0].mxu0
  %v6657 = vadd.f32 %v446, %v6656
  %v6658 = vpop.f32.mrb[0].mxu0
  %v6659 = vadd.f32 %v450, %v6658
  %v6660 = vpop.f32.mrb[0].mxu0
  %v6661 = vpop.f32.mrb[0].mxu0
  %6662 = vdwg.mxu0
  %6663 = vmatprep.subr.bf16.mxu0 %v2244
  %6664 = vmatpush1.bf16.msra.mxu0 %v2243
  %6665 = vmatprep.subr.bf16.mxu0 %v2252
  %6666 = vmatpush1.bf16.msra.mxu0 %v2251
  %6667 = vmatprep.subr.bf16.mxu0 %v2260
  %6668 = vmatpush1.bf16.msra.mxu0 %v2259
  %6669 = vmatprep.subr.bf16.mxu0 %v2268
  %6670 = vmatpush1.bf16.msra.mxu0 %v2267
  %6671 = vmatprep.subr.bf16.mxu0 %v2276
  %6672 = vmatpush1.bf16.msra.mxu0 %v2275
  %6673 = vmatprep.subr.bf16.mxu0 %v2284
  %6674 = vmatpush1.bf16.msra.mxu0 %v2283
  %6675 = vmatprep.subr.bf16.mxu0 %v2292
  %6676 = vmatpush1.bf16.msra.mxu0 %v2291
  %6677 = vmatprep.subr.bf16.mxu0 %v2300
  %6678 = vmatpush1.bf16.msra.mxu0 %v2299
  %6679 = vmatprep.subr.bf16.mxu0 %v2308
  %6680 = vmatpush1.bf16.msra.mxu0 %v2307
  %6681 = vmatprep.subr.bf16.mxu0 %v2316
  %6682 = vmatpush1.bf16.msra.mxu0 %v2315
  %6683 = vmatprep.subr.bf16.mxu0 %v2324
  %6684 = vmatpush1.bf16.msra.mxu0 %v2323
  %6685 = vmatprep.subr.bf16.mxu0 %v2332
  %6686 = vmatpush1.bf16.msra.mxu0 %v2331
  %6687 = vmatprep.subr.bf16.mxu0 %v2340
  %6688 = vmatpush1.bf16.msra.mxu0 %v2339
  %6689 = vmatprep.subr.bf16.mxu0 %v2348
  %6690 = vmatpush1.bf16.msra.mxu0 %v2347
  %6691 = vmatprep.subr.bf16.mxu0 %v2356
  %6692 = vmatpush1.bf16.msra.mxu0 %v2355
  %6693 = vmatprep.subr.bf16.mxu0 %v2364
  %6694 = vmatpush1.bf16.msra.mxu0 %v2363
  %6695 = vmatprep.mubr.bf16.mxu0 %v6375
  %6696 = vmatmul.mubr.bf16.gmra.mrb[0].mxu0 %v6374
  %v6697 = vpop.f32.mrb[0].mxu0
  %v6698 = vadd.f32 %v6657, %v6697
  %v6699 = vpop.f32.mrb[0].mxu0
  %v6700 = vadd.f32 %v6659, %v6699
  %v6701 = vpop.f32.mrb[0].mxu0
  %v6702 = vpop.f32.mrb[0].mxu0
  %6703 = vdwg.mxu0
  %v6704 = vxor.u32 %v6452, 2147483648
  %v6705 = vxor.u32 %v6454, 2147483648
  %v6706 = vmul.f32 %v6704, 1.442695
  %v6707 = vpow.pop %v6706
  %v6708 = vmul.f32 %v6705, 1.442695
  %v6709 = vpow.pop %v6708
  %v6710 = vadd.f32 %v6707, 1.0
  %v6711 = vadd.f32 %v6709, 1.0
  %v6712 = vrcp.pop %v6710
  %v6713 = vmul.f32 1.0, %v6712
  %v6714 = vrcp.pop %v6711
  %v6715 = vmul.f32 1.0, %v6714
  %v6716 = vxor.u32 %v6534, 2147483648
  %v6717 = vxor.u32 %v6536, 2147483648
  %v6718 = vmul.f32 %v6716, 1.442695
  %v6719 = vpow.pop %v6718
  %v6720 = vmul.f32 %v6717, 1.442695
  %v6721 = vpow.pop %v6720
  %v6722 = vadd.f32 %v6719, 1.0
  %v6723 = vadd.f32 %v6721, 1.0
  %v6724 = vrcp.pop %v6722
  %v6725 = vmul.f32 1.0, %v6724
  %v6726 = vrcp.pop %v6723
  %v6727 = vmul.f32 1.0, %v6726
  %v6728 = vtanh.pop %v6616
  %v6729 = vtanh.pop %v6618
  %v6730 = vxor.u32 %v6698, 2147483648
  %v6731 = vxor.u32 %v6700, 2147483648
  %v6732 = vmul.f32 %v6730, 1.442695
  %v6733 = vpow.pop %v6732
  %v6734 = vmul.f32 %v6731, 1.442695
  %v6735 = vpow.pop %v6734
  %v6736 = vadd.f32 %v6733, 1.0
  %v6737 = vadd.f32 %v6735, 1.0
  %v6738 = vrcp.pop %v6736
  %v6739 = vmul.f32 1.0, %v6738
  %v6740 = vrcp.pop %v6737
  %v6741 = vmul.f32 1.0, %v6740
  %v6742 = vmul.f32 %v6725, %v6120
  %v6743 = vmul.f32 %v6727, %v6121
  %v6744 = vmul.f32 %v6713, %v6728
  %v6745 = vmul.f32 %v6715, %v6729
  %v6746 = vadd.f32 %v6742, %v6744
  %v6747 = vadd.f32 %v6743, %v6745
  %v6748 = vtanh.pop %v6746
  %v6749 = vtanh.pop %v6747
  %v6750 = vmul.f32 %v6739, %v6748
  %v6751 = vmul.f32 %v6741, %v6749
  %v6752 = vmul.f32 %v6750, %v6368
  %v6753 = vmul.f32 %v6751, %v6368
  %s6754 = scalar_lea.vmem [#allocation2], 96
  %6755 = vst [vmem:[%s6754] sm:$0xff] %v6752
  %6756 = vst [vmem:[%s6754 + $0x8] sm:$0xff] %v6753
  %s6757 = scalar_lea.vmem %s0, 448
  %v6758 = vld [vmem:[%s6757] sm:$0xff]
  %v6759 = vld [vmem:[%s6757 + $0x8] sm:$0xff]
  %v6760 = vld [vmem:[%s6757 + $0x10] sm:$0xff]
  %v6761 = vld [vmem:[%s6757 + $0x18] sm:$0xff]
  %v6762 = vld [vmem:[%s6757 + $0x20] sm:$0xff]
  %v6763 = vld [vmem:[%s6757 + $0x28] sm:$0xff]
  %v6764 = vld [vmem:[%s6757 + $0x30] sm:$0xff]
  %v6765 = vld [vmem:[%s6757 + $0x38] sm:$0xff]
  %v6766 = vpack.c.bf16 %v6360, %v6360
  %v6767 = vpack.c.bf16 %v6361, %v6361
  %6768 = vmatprep.subr.bf16.mxu0 %v853
  %6769 = vmatpush1.bf16.msra.mxu0 %v852
  %6770 = vmatprep.subr.bf16.mxu0 %v861
  %6771 = vmatpush1.bf16.msra.mxu0 %v860
  %6772 = vmatprep.subr.bf16.mxu0 %v869
  %6773 = vmatpush1.bf16.msra.mxu0 %v868
  %6774 = vmatprep.subr.bf16.mxu0 %v877
  %6775 = vmatpush1.bf16.msra.mxu0 %v876
  %6776 = vmatprep.subr.bf16.mxu0 %v885
  %6777 = vmatpush1.bf16.msra.mxu0 %v884
  %6778 = vmatprep.subr.bf16.mxu0 %v893
  %6779 = vmatpush1.bf16.msra.mxu0 %v892
  %6780 = vmatprep.subr.bf16.mxu0 %v901
  %6781 = vmatpush1.bf16.msra.mxu0 %v900
  %6782 = vmatprep.subr.bf16.mxu0 %v909
  %6783 = vmatpush1.bf16.msra.mxu0 %v908
  %6784 = vmatprep.subr.bf16.mxu0 %v917
  %6785 = vmatpush1.bf16.msra.mxu0 %v916
  %6786 = vmatprep.subr.bf16.mxu0 %v925
  %6787 = vmatpush1.bf16.msra.mxu0 %v924
  %6788 = vmatprep.subr.bf16.mxu0 %v933
  %6789 = vmatpush1.bf16.msra.mxu0 %v932
  %6790 = vmatprep.subr.bf16.mxu0 %v941
  %6791 = vmatpush1.bf16.msra.mxu0 %v940
  %6792 = vmatprep.subr.bf16.mxu0 %v949
  %6793 = vmatpush1.bf16.msra.mxu0 %v948
  %6794 = vmatprep.subr.bf16.mxu0 %v957
  %6795 = vmatpush1.bf16.msra.mxu0 %v956
  %6796 = vmatprep.subr.bf16.mxu0 %v965
  %6797 = vmatpush1.bf16.msra.mxu0 %v964
  %6798 = vmatprep.subr.bf16.mxu0 %v973
  %6799 = vmatpush1.bf16.msra.mxu0 %v972
  %6800 = vmatprep.mubr.bf16.mxu0 %v6767
  %6801 = vmatmul.mubr.bf16.gmra.mrb[0].mxu0 %v6766
  %v6802 = vpop.f32.mrb[0].mxu0
  %v6803 = vadd.f32 0.0, %v6802
  %v6804 = vpop.f32.mrb[0].mxu0
  %v6805 = vadd.f32 0.0, %v6804
  %v6806 = vpop.f32.mrb[0].mxu0
  %v6807 = vpop.f32.mrb[0].mxu0
  %6808 = vdwg.mxu0
  %6809 = vmatprep.subr.bf16.mxu0 %v855
  %6810 = vmatpush1.bf16.msra.mxu0 %v854
  %6811 = vmatprep.subr.bf16.mxu0 %v863
  %6812 = vmatpush1.bf16.msra.mxu0 %v862
  %6813 = vmatprep.subr.bf16.mxu0 %v871
  %6814 = vmatpush1.bf16.msra.mxu0 %v870
  %6815 = vmatprep.subr.bf16.mxu0 %v879
  %6816 = vmatpush1.bf16.msra.mxu0 %v878
  %6817 = vmatprep.subr.bf16.mxu0 %v887
  %6818 = vmatpush1.bf16.msra.mxu0 %v886
  %6819 = vmatprep.subr.bf16.mxu0 %v895
  %6820 = vmatpush1.bf16.msra.mxu0 %v894
  %6821 = vmatprep.subr.bf16.mxu0 %v903
  %6822 = vmatpush1.bf16.msra.mxu0 %v902
  %6823 = vmatprep.subr.bf16.mxu0 %v911
  %6824 = vmatpush1.bf16.msra.mxu0 %v910
  %6825 = vmatprep.subr.bf16.mxu0 %v919
  %6826 = vmatpush1.bf16.msra.mxu0 %v918
  %6827 = vmatprep.subr.bf16.mxu0 %v927
  %6828 = vmatpush1.bf16.msra.mxu0 %v926
  %6829 = vmatprep.subr.bf16.mxu0 %v935
  %6830 = vmatpush1.bf16.msra.mxu0 %v934
  %6831 = vmatprep.subr.bf16.mxu0 %v943
  %6832 = vmatpush1.bf16.msra.mxu0 %v942
  %6833 = vmatprep.subr.bf16.mxu0 %v951
  %6834 = vmatpush1.bf16.msra.mxu0 %v950
  %6835 = vmatprep.subr.bf16.mxu0 %v959
  %6836 = vmatpush1.bf16.msra.mxu0 %v958
  %6837 = vmatprep.subr.bf16.mxu0 %v967
  %6838 = vmatpush1.bf16.msra.mxu0 %v966
  %6839 = vmatprep.subr.bf16.mxu0 %v975
  %6840 = vmatpush1.bf16.msra.mxu0 %v974
  %6841 = vmatprep.mubr.bf16.mxu0 %v6767
  %6842 = vmatmul.mubr.bf16.gmra.mrb[0].mxu0 %v6766
  %v6843 = vpop.f32.mrb[0].mxu0
  %v6844 = vadd.f32 0.0, %v6843
  %v6845 = vpop.f32.mrb[0].mxu0
  %v6846 = vadd.f32 0.0, %v6845
  %v6847 = vpop.f32.mrb[0].mxu0
  %v6848 = vpop.f32.mrb[0].mxu0
  %6849 = vdwg.mxu0
  %6850 = vmatprep.subr.bf16.mxu0 %v857
  %6851 = vmatpush1.bf16.msra.mxu0 %v856
  %6852 = vmatprep.subr.bf16.mxu0 %v865
  %6853 = vmatpush1.bf16.msra.mxu0 %v864
  %6854 = vmatprep.subr.bf16.mxu0 %v873
  %6855 = vmatpush1.bf16.msra.mxu0 %v872
  %6856 = vmatprep.subr.bf16.mxu0 %v881
  %6857 = vmatpush1.bf16.msra.mxu0 %v880
  %6858 = vmatprep.subr.bf16.mxu0 %v889
  %6859 = vmatpush1.bf16.msra.mxu0 %v888
  %6860 = vmatprep.subr.bf16.mxu0 %v897
  %6861 = vmatpush1.bf16.msra.mxu0 %v896
  %6862 = vmatprep.subr.bf16.mxu0 %v905
  %6863 = vmatpush1.bf16.msra.mxu0 %v904
  %6864 = vmatprep.subr.bf16.mxu0 %v913
  %6865 = vmatpush1.bf16.msra.mxu0 %v912
  %6866 = vmatprep.subr.bf16.mxu0 %v921
  %6867 = vmatpush1.bf16.msra.mxu0 %v920
  %6868 = vmatprep.subr.bf16.mxu0 %v929
  %6869 = vmatpush1.bf16.msra.mxu0 %v928
  %6870 = vmatprep.subr.bf16.mxu0 %v937
  %6871 = vmatpush1.bf16.msra.mxu0 %v936
  %6872 = vmatprep.subr.bf16.mxu0 %v945
  %6873 = vmatpush1.bf16.msra.mxu0 %v944
  %6874 = vmatprep.subr.bf16.mxu0 %v953
  %6875 = vmatpush1.bf16.msra.mxu0 %v952
  %6876 = vmatprep.subr.bf16.mxu0 %v961
  %6877 = vmatpush1.bf16.msra.mxu0 %v960
  %6878 = vmatprep.subr.bf16.mxu0 %v969
  %6879 = vmatpush1.bf16.msra.mxu0 %v968
  %6880 = vmatprep.subr.bf16.mxu0 %v977
  %6881 = vmatpush1.bf16.msra.mxu0 %v976
  %6882 = vmatprep.mubr.bf16.mxu0 %v6767
  %6883 = vmatmul.mubr.bf16.gmra.mrb[0].mxu0 %v6766
  %v6884 = vpop.f32.mrb[0].mxu0
  %v6885 = vadd.f32 0.0, %v6884
  %v6886 = vpop.f32.mrb[0].mxu0
  %v6887 = vadd.f32 0.0, %v6886
  %v6888 = vpop.f32.mrb[0].mxu0
  %v6889 = vpop.f32.mrb[0].mxu0
  %6890 = vdwg.mxu0
  %6891 = vmatprep.subr.bf16.mxu0 %v859
  %6892 = vmatpush1.bf16.msra.mxu0 %v858
  %6893 = vmatprep.subr.bf16.mxu0 %v867
  %6894 = vmatpush1.bf16.msra.mxu0 %v866
  %6895 = vmatprep.subr.bf16.mxu0 %v875
  %6896 = vmatpush1.bf16.msra.mxu0 %v874
  %6897 = vmatprep.subr.bf16.mxu0 %v883
  %6898 = vmatpush1.bf16.msra.mxu0 %v882
  %6899 = vmatprep.subr.bf16.mxu0 %v891
  %6900 = vmatpush1.bf16.msra.mxu0 %v890
  %6901 = vmatprep.subr.bf16.mxu0 %v899
  %6902 = vmatpush1.bf16.msra.mxu0 %v898
  %6903 = vmatprep.subr.bf16.mxu0 %v907
  %6904 = vmatpush1.bf16.msra.mxu0 %v906
  %6905 = vmatprep.subr.bf16.mxu0 %v915
  %6906 = vmatpush1.bf16.msra.mxu0 %v914
  %6907 = vmatprep.subr.bf16.mxu0 %v923
  %6908 = vmatpush1.bf16.msra.mxu0 %v922
  %6909 = vmatprep.subr.bf16.mxu0 %v931
  %6910 = vmatpush1.bf16.msra.mxu0 %v930
  %6911 = vmatprep.subr.bf16.mxu0 %v939
  %6912 = vmatpush1.bf16.msra.mxu0 %v938
  %6913 = vmatprep.subr.bf16.mxu0 %v947
  %6914 = vmatpush1.bf16.msra.mxu0 %v946
  %6915 = vmatprep.subr.bf16.mxu0 %v955
  %6916 = vmatpush1.bf16.msra.mxu0 %v954
  %6917 = vmatprep.subr.bf16.mxu0 %v963
  %6918 = vmatpush1.bf16.msra.mxu0 %v962
  %6919 = vmatprep.subr.bf16.mxu0 %v971
  %6920 = vmatpush1.bf16.msra.mxu0 %v970
  %6921 = vmatprep.subr.bf16.mxu0 %v979
  %6922 = vmatpush1.bf16.msra.mxu0 %v978
  %6923 = vmatprep.mubr.bf16.mxu0 %v6767
  %6924 = vmatmul.mubr.bf16.gmra.mrb[0].mxu0 %v6766
  %v6925 = vpop.f32.mrb[0].mxu0
  %v6926 = vadd.f32 0.0, %v6925
  %v6927 = vpop.f32.mrb[0].mxu0
  %v6928 = vadd.f32 0.0, %v6927
  %v6929 = vpop.f32.mrb[0].mxu0
  %v6930 = vpop.f32.mrb[0].mxu0
  %6931 = vdwg.mxu0
  %v6932 = vadd.f32 %v6758, %v6803
  %v6933 = vadd.f32 %v6759, %v6805
  %v6934 = vadd.f32 %v6760, %v6844
  %v6935 = vadd.f32 %v6761, %v6846
  %v6936 = vadd.f32 %v6762, %v6885
  %v6937 = vadd.f32 %v6763, %v6887
  %v6938 = vadd.f32 %v6764, %v6926
  %v6939 = vadd.f32 %v6765, %v6928
  %v6940 = vxor.u32 %v6932, 2147483648
  %v6941 = vxor.u32 %v6933, 2147483648
  %v6942 = vmul.f32 %v6940, 1.442695
  %v6943 = vpow.pop %v6942
  %v6944 = vmul.f32 %v6941, 1.442695
  %v6945 = vpow.pop %v6944
  %v6946 = vadd.f32 %v6943, 1.0
  %v6947 = vadd.f32 %v6945, 1.0
  %v6948 = vrcp.pop %v6946
  %v6949 = vmul.f32 1.0, %v6948
  %v6950 = vrcp.pop %v6947
  %v6951 = vmul.f32 1.0, %v6950
  %v6952 = vxor.u32 %v6934, 2147483648
  %v6953 = vxor.u32 %v6935, 2147483648
  %v6954 = vmul.f32 %v6952, 1.442695
  %v6955 = vpow.pop %v6954
  %v6956 = vmul.f32 %v6953, 1.442695
  %v6957 = vpow.pop %v6956
  %v6958 = vadd.f32 %v6955, 1.0
  %v6959 = vadd.f32 %v6957, 1.0
  %v6960 = vrcp.pop %v6958
  %v6961 = vmul.f32 1.0, %v6960
  %v6962 = vrcp.pop %v6959
  %v6963 = vmul.f32 1.0, %v6962
  %v6964 = vtanh.pop %v6936
  %v6965 = vtanh.pop %v6937
  %v6966 = vxor.u32 %v6938, 2147483648
  %v6967 = vxor.u32 %v6939, 2147483648
  %v6968 = vmul.f32 %v6966, 1.442695
  %v6969 = vpow.pop %v6968
  %v6970 = vmul.f32 %v6967, 1.442695
  %v6971 = vpow.pop %v6970
  %v6972 = vadd.f32 %v6969, 1.0
  %v6973 = vadd.f32 %v6971, 1.0
  %v6974 = vrcp.pop %v6972
  %v6975 = vmul.f32 1.0, %v6974
  %v6976 = vrcp.pop %v6973
  %v6977 = vmul.f32 1.0, %v6976
  %v6978 = vmul.f32 %v6961, %v6356
  %v6979 = vmul.f32 %v6963, %v6357
  %v6980 = vmul.f32 %v6949, %v6964
  %v6981 = vmul.f32 %v6951, %v6965
  %v6982 = vadd.f32 %v6978, %v6980
  %v6983 = vadd.f32 %v6979, %v6981
  %v6984 = vtanh.pop %v6982
  %v6985 = vtanh.pop %v6983
  %v6986 = vmul.f32 %v6975, %v6984
  %v6987 = vmul.f32 %v6977, %v6985
  %vm6988 = vcmp.gt.s32.totalorder %v459, 7
  %v6989 = vsel %vm6988, 1, 0
  %v6990 = vcvt.s32.f32 %v6989
  %6992 = vset.pattern.permute.xlu0 0
  %6993 = vperm.xlu0 %6992, %v6990
  %v6994 = vpop.permute.xlu0 %6993
  %v6996 = vmul.f32 %v6986, %v6994
  %v6997 = vmul.f32 %v6987, %v6994
  %v6998 = vpack.c.bf16 %v6996, %v6996
  %v6999 = vpack.c.bf16 %v6997, %v6997
  %v7000 = vpack.c.bf16 %v6750, %v6750
  %v7001 = vpack.c.bf16 %v6751, %v6751
  %7002 = vmatprep.subr.bf16.mxu0 %v2110
  %7003 = vmatpush1.bf16.msra.mxu0 %v2109
  %7004 = vmatprep.subr.bf16.mxu0 %v2118
  %7005 = vmatpush1.bf16.msra.mxu0 %v2117
  %7006 = vmatprep.subr.bf16.mxu0 %v2126
  %7007 = vmatpush1.bf16.msra.mxu0 %v2125
  %7008 = vmatprep.subr.bf16.mxu0 %v2134
  %7009 = vmatpush1.bf16.msra.mxu0 %v2133
  %7010 = vmatprep.subr.bf16.mxu0 %v2142
  %7011 = vmatpush1.bf16.msra.mxu0 %v2141
  %7012 = vmatprep.subr.bf16.mxu0 %v2150
  %7013 = vmatpush1.bf16.msra.mxu0 %v2149
  %7014 = vmatprep.subr.bf16.mxu0 %v2158
  %7015 = vmatpush1.bf16.msra.mxu0 %v2157
  %7016 = vmatprep.subr.bf16.mxu0 %v2166
  %7017 = vmatpush1.bf16.msra.mxu0 %v2165
  %7018 = vmatprep.subr.bf16.mxu0 %v2174
  %7019 = vmatpush1.bf16.msra.mxu0 %v2173
  %7020 = vmatprep.subr.bf16.mxu0 %v2182
  %7021 = vmatpush1.bf16.msra.mxu0 %v2181
  %7022 = vmatprep.subr.bf16.mxu0 %v2190
  %7023 = vmatpush1.bf16.msra.mxu0 %v2189
  %7024 = vmatprep.subr.bf16.mxu0 %v2198
  %7025 = vmatpush1.bf16.msra.mxu0 %v2197
  %7026 = vmatprep.subr.bf16.mxu0 %v2206
  %7027 = vmatpush1.bf16.msra.mxu0 %v2205
  %7028 = vmatprep.subr.bf16.mxu0 %v2214
  %7029 = vmatpush1.bf16.msra.mxu0 %v2213
  %7030 = vmatprep.subr.bf16.mxu0 %v2222
  %7031 = vmatpush1.bf16.msra.mxu0 %v2221
  %7032 = vmatprep.subr.bf16.mxu0 %v2230
  %7033 = vmatpush1.bf16.msra.mxu0 %v2229
  %7034 = vmatprep.mubr.bf16.mxu0 %v6999
  %7035 = vmatmul.mubr.bf16.gmra.mrb[0].mxu0 %v6998
  %v7036 = vpop.f32.mrb[0].mxu0
  %v7037 = vadd.f32 %v422, %v7036
  %v7038 = vpop.f32.mrb[0].mxu0
  %v7039 = vadd.f32 %v426, %v7038
  %v7040 = vpop.f32.mrb[0].mxu0
  %v7041 = vpop.f32.mrb[0].mxu0
  %7042 = vdwg.mxu0
  %7043 = vmatprep.subr.bf16.mxu0 %v2238
  %7044 = vmatpush1.bf16.msra.mxu0 %v2237
  %7045 = vmatprep.subr.bf16.mxu0 %v2246
  %7046 = vmatpush1.bf16.msra.mxu0 %v2245
  %7047 = vmatprep.subr.bf16.mxu0 %v2254
  %7048 = vmatpush1.bf16.msra.mxu0 %v2253
  %7049 = vmatprep.subr.bf16.mxu0 %v2262
  %7050 = vmatpush1.bf16.msra.mxu0 %v2261
  %7051 = vmatprep.subr.bf16.mxu0 %v2270
  %7052 = vmatpush1.bf16.msra.mxu0 %v2269
  %7053 = vmatprep.subr.bf16.mxu0 %v2278
  %7054 = vmatpush1.bf16.msra.mxu0 %v2277
  %7055 = vmatprep.subr.bf16.mxu0 %v2286
  %7056 = vmatpush1.bf16.msra.mxu0 %v2285
  %7057 = vmatprep.subr.bf16.mxu0 %v2294
  %7058 = vmatpush1.bf16.msra.mxu0 %v2293
  %7059 = vmatprep.subr.bf16.mxu0 %v2302
  %7060 = vmatpush1.bf16.msra.mxu0 %v2301
  %7061 = vmatprep.subr.bf16.mxu0 %v2310
  %7062 = vmatpush1.bf16.msra.mxu0 %v2309
  %7063 = vmatprep.subr.bf16.mxu0 %v2318
  %7064 = vmatpush1.bf16.msra.mxu0 %v2317
  %7065 = vmatprep.subr.bf16.mxu0 %v2326
  %7066 = vmatpush1.bf16.msra.mxu0 %v2325
  %7067 = vmatprep.subr.bf16.mxu0 %v2334
  %7068 = vmatpush1.bf16.msra.mxu0 %v2333
  %7069 = vmatprep.subr.bf16.mxu0 %v2342
  %7070 = vmatpush1.bf16.msra.mxu0 %v2341
  %7071 = vmatprep.subr.bf16.mxu0 %v2350
  %7072 = vmatpush1.bf16.msra.mxu0 %v2349
  %7073 = vmatprep.subr.bf16.mxu0 %v2358
  %7074 = vmatpush1.bf16.msra.mxu0 %v2357
  %7075 = vmatprep.mubr.bf16.mxu0 %v7001
  %7076 = vmatmul.mubr.bf16.gmra.mrb[0].mxu0 %v7000
  %v7077 = vpop.f32.mrb[0].mxu0
  %v7078 = vadd.f32 %v7037, %v7077
  %v7079 = vpop.f32.mrb[0].mxu0
  %v7080 = vadd.f32 %v7039, %v7079
  %v7081 = vpop.f32.mrb[0].mxu0
  %v7082 = vpop.f32.mrb[0].mxu0
  %7083 = vdwg.mxu0
  %7084 = vmatprep.subr.bf16.mxu0 %v2112
  %7085 = vmatpush1.bf16.msra.mxu0 %v2111
  %7086 = vmatprep.subr.bf16.mxu0 %v2120
  %7087 = vmatpush1.bf16.msra.mxu0 %v2119
  %7088 = vmatprep.subr.bf16.mxu0 %v2128
  %7089 = vmatpush1.bf16.msra.mxu0 %v2127
  %7090 = vmatprep.subr.bf16.mxu0 %v2136
  %7091 = vmatpush1.bf16.msra.mxu0 %v2135
  %7092 = vmatprep.subr.bf16.mxu0 %v2144
  %7093 = vmatpush1.bf16.msra.mxu0 %v2143
  %7094 = vmatprep.subr.bf16.mxu0 %v2152
  %7095 = vmatpush1.bf16.msra.mxu0 %v2151
  %7096 = vmatprep.subr.bf16.mxu0 %v2160
  %7097 = vmatpush1.bf16.msra.mxu0 %v2159
  %7098 = vmatprep.subr.bf16.mxu0 %v2168
  %7099 = vmatpush1.bf16.msra.mxu0 %v2167
  %7100 = vmatprep.subr.bf16.mxu0 %v2176
  %7101 = vmatpush1.bf16.msra.mxu0 %v2175
  %7102 = vmatprep.subr.bf16.mxu0 %v2184
  %7103 = vmatpush1.bf16.msra.mxu0 %v2183
  %7104 = vmatprep.subr.bf16.mxu0 %v2192
  %7105 = vmatpush1.bf16.msra.mxu0 %v2191
  %7106 = vmatprep.subr.bf16.mxu0 %v2200
  %7107 = vmatpush1.bf16.msra.mxu0 %v2199
  %7108 = vmatprep.subr.bf16.mxu0 %v2208
  %7109 = vmatpush1.bf16.msra.mxu0 %v2207
  %7110 = vmatprep.subr.bf16.mxu0 %v2216
  %7111 = vmatpush1.bf16.msra.mxu0 %v2215
  %7112 = vmatprep.subr.bf16.mxu0 %v2224
  %7113 = vmatpush1.bf16.msra.mxu0 %v2223
  %7114 = vmatprep.subr.bf16.mxu0 %v2232
  %7115 = vmatpush1.bf16.msra.mxu0 %v2231
  %7116 = vmatprep.mubr.bf16.mxu0 %v6999
  %7117 = vmatmul.mubr.bf16.gmra.mrb[0].mxu0 %v6998
  %v7118 = vpop.f32.mrb[0].mxu0
  %v7119 = vadd.f32 %v430, %v7118
  %v7120 = vpop.f32.mrb[0].mxu0
  %v7121 = vadd.f32 %v434, %v7120
  %v7122 = vpop.f32.mrb[0].mxu0
  %v7123 = vpop.f32.mrb[0].mxu0
  %7124 = vdwg.mxu0
  %7125 = vmatprep.subr.bf16.mxu0 %v2240
  %7126 = vmatpush1.bf16.msra.mxu0 %v2239
  %7127 = vmatprep.subr.bf16.mxu0 %v2248
  %7128 = vmatpush1.bf16.msra.mxu0 %v2247
  %7129 = vmatprep.subr.bf16.mxu0 %v2256
  %7130 = vmatpush1.bf16.msra.mxu0 %v2255
  %7131 = vmatprep.subr.bf16.mxu0 %v2264
  %7132 = vmatpush1.bf16.msra.mxu0 %v2263
  %7133 = vmatprep.subr.bf16.mxu0 %v2272
  %7134 = vmatpush1.bf16.msra.mxu0 %v2271
  %7135 = vmatprep.subr.bf16.mxu0 %v2280
  %7136 = vmatpush1.bf16.msra.mxu0 %v2279
  %7137 = vmatprep.subr.bf16.mxu0 %v2288
  %7138 = vmatpush1.bf16.msra.mxu0 %v2287
  %7139 = vmatprep.subr.bf16.mxu0 %v2296
  %7140 = vmatpush1.bf16.msra.mxu0 %v2295
  %7141 = vmatprep.subr.bf16.mxu0 %v2304
  %7142 = vmatpush1.bf16.msra.mxu0 %v2303
  %7143 = vmatprep.subr.bf16.mxu0 %v2312
  %7144 = vmatpush1.bf16.msra.mxu0 %v2311
  %7145 = vmatprep.subr.bf16.mxu0 %v2320
  %7146 = vmatpush1.bf16.msra.mxu0 %v2319
  %7147 = vmatprep.subr.bf16.mxu0 %v2328
  %7148 = vmatpush1.bf16.msra.mxu0 %v2327
  %7149 = vmatprep.subr.bf16.mxu0 %v2336
  %7150 = vmatpush1.bf16.msra.mxu0 %v2335
  %7151 = vmatprep.subr.bf16.mxu0 %v2344
  %7152 = vmatpush1.bf16.msra.mxu0 %v2343
  %7153 = vmatprep.subr.bf16.mxu0 %v2352
  %7154 = vmatpush1.bf16.msra.mxu0 %v2351
  %7155 = vmatprep.subr.bf16.mxu0 %v2360
  %7156 = vmatpush1.bf16.msra.mxu0 %v2359
  %7157 = vmatprep.mubr.bf16.mxu0 %v7001
  %7158 = vmatmul.mubr.bf16.gmra.mrb[0].mxu0 %v7000
  %v7159 = vpop.f32.mrb[0].mxu0
  %v7160 = vadd.f32 %v7119, %v7159
  %v7161 = vpop.f32.mrb[0].mxu0
  %v7162 = vadd.f32 %v7121, %v7161
  %v7163 = vpop.f32.mrb[0].mxu0
  %v7164 = vpop.f32.mrb[0].mxu0
  %7165 = vdwg.mxu0
  %7166 = vmatprep.subr.bf16.mxu0 %v2114
  %7167 = vmatpush1.bf16.msra.mxu0 %v2113
  %7168 = vmatprep.subr.bf16.mxu0 %v2122
  %7169 = vmatpush1.bf16.msra.mxu0 %v2121
  %7170 = vmatprep.subr.bf16.mxu0 %v2130
  %7171 = vmatpush1.bf16.msra.mxu0 %v2129
  %7172 = vmatprep.subr.bf16.mxu0 %v2138
  %7173 = vmatpush1.bf16.msra.mxu0 %v2137
  %7174 = vmatprep.subr.bf16.mxu0 %v2146
  %7175 = vmatpush1.bf16.msra.mxu0 %v2145
  %7176 = vmatprep.subr.bf16.mxu0 %v2154
  %7177 = vmatpush1.bf16.msra.mxu0 %v2153
  %7178 = vmatprep.subr.bf16.mxu0 %v2162
  %7179 = vmatpush1.bf16.msra.mxu0 %v2161
  %7180 = vmatprep.subr.bf16.mxu0 %v2170
  %7181 = vmatpush1.bf16.msra.mxu0 %v2169
  %7182 = vmatprep.subr.bf16.mxu0 %v2178
  %7183 = vmatpush1.bf16.msra.mxu0 %v2177
  %7184 = vmatprep.subr.bf16.mxu0 %v2186
  %7185 = vmatpush1.bf16.msra.mxu0 %v2185
  %7186 = vmatprep.subr.bf16.mxu0 %v2194
  %7187 = vmatpush1.bf16.msra.mxu0 %v2193
  %7188 = vmatprep.subr.bf16.mxu0 %v2202
  %7189 = vmatpush1.bf16.msra.mxu0 %v2201
  %7190 = vmatprep.subr.bf16.mxu0 %v2210
  %7191 = vmatpush1.bf16.msra.mxu0 %v2209
  %7192 = vmatprep.subr.bf16.mxu0 %v2218
  %7193 = vmatpush1.bf16.msra.mxu0 %v2217
  %7194 = vmatprep.subr.bf16.mxu0 %v2226
  %7195 = vmatpush1.bf16.msra.mxu0 %v2225
  %7196 = vmatprep.subr.bf16.mxu0 %v2234
  %7197 = vmatpush1.bf16.msra.mxu0 %v2233
  %7198 = vmatprep.mubr.bf16.mxu0 %v6999
  %7199 = vmatmul.mubr.bf16.gmra.mrb[0].mxu0 %v6998
  %v7200 = vpop.f32.mrb[0].mxu0
  %v7201 = vadd.f32 %v438, %v7200
  %v7202 = vpop.f32.mrb[0].mxu0
  %v7203 = vadd.f32 %v442, %v7202
  %v7204 = vpop.f32.mrb[0].mxu0
  %v7205 = vpop.f32.mrb[0].mxu0
  %7206 = vdwg.mxu0
  %7207 = vmatprep.subr.bf16.mxu0 %v2242
  %7208 = vmatpush1.bf16.msra.mxu0 %v2241
  %7209 = vmatprep.subr.bf16.mxu0 %v2250
  %7210 = vmatpush1.bf16.msra.mxu0 %v2249
  %7211 = vmatprep.subr.bf16.mxu0 %v2258
  %7212 = vmatpush1.bf16.msra.mxu0 %v2257
  %7213 = vmatprep.subr.bf16.mxu0 %v2266
  %7214 = vmatpush1.bf16.msra.mxu0 %v2265
  %7215 = vmatprep.subr.bf16.mxu0 %v2274
  %7216 = vmatpush1.bf16.msra.mxu0 %v2273
  %7217 = vmatprep.subr.bf16.mxu0 %v2282
  %7218 = vmatpush1.bf16.msra.mxu0 %v2281
  %7219 = vmatprep.subr.bf16.mxu0 %v2290
  %7220 = vmatpush1.bf16.msra.mxu0 %v2289
  %7221 = vmatprep.subr.bf16.mxu0 %v2298
  %7222 = vmatpush1.bf16.msra.mxu0 %v2297
  %7223 = vmatprep.subr.bf16.mxu0 %v2306
  %7224 = vmatpush1.bf16.msra.mxu0 %v2305
  %7225 = vmatprep.subr.bf16.mxu0 %v2314
  %7226 = vmatpush1.bf16.msra.mxu0 %v2313
  %7227 = vmatprep.subr.bf16.mxu0 %v2322
  %7228 = vmatpush1.bf16.msra.mxu0 %v2321
  %7229 = vmatprep.subr.bf16.mxu0 %v2330
  %7230 = vmatpush1.bf16.msra.mxu0 %v2329
  %7231 = vmatprep.subr.bf16.mxu0 %v2338
  %7232 = vmatpush1.bf16.msra.mxu0 %v2337
  %7233 = vmatprep.subr.bf16.mxu0 %v2346
  %7234 = vmatpush1.bf16.msra.mxu0 %v2345
  %7235 = vmatprep.subr.bf16.mxu0 %v2354
  %7236 = vmatpush1.bf16.msra.mxu0 %v2353
  %7237 = vmatprep.subr.bf16.mxu0 %v2362
  %7238 = vmatpush1.bf16.msra.mxu0 %v2361
  %7239 = vmatprep.mubr.bf16.mxu0 %v7001
  %7240 = vmatmul.mubr.bf16.gmra.mrb[0].mxu0 %v7000
  %v7241 = vpop.f32.mrb[0].mxu0
  %v7242 = vadd.f32 %v7201, %v7241
  %v7243 = vpop.f32.mrb[0].mxu0
  %v7244 = vadd.f32 %v7203, %v7243
  %v7245 = vpop.f32.mrb[0].mxu0
  %v7246 = vpop.f32.mrb[0].mxu0
  %7247 = vdwg.mxu0
  %7248 = vmatprep.subr.bf16.mxu0 %v2116
  %7249 = vmatpush1.bf16.msra.mxu0 %v2115
  %7250 = vmatprep.subr.bf16.mxu0 %v2124
  %7251 = vmatpush1.bf16.msra.mxu0 %v2123
  %7252 = vmatprep.subr.bf16.mxu0 %v2132
  %7253 = vmatpush1.bf16.msra.mxu0 %v2131
  %7254 = vmatprep.subr.bf16.mxu0 %v2140
  %7255 = vmatpush1.bf16.msra.mxu0 %v2139
  %7256 = vmatprep.subr.bf16.mxu0 %v2148
  %7257 = vmatpush1.bf16.msra.mxu0 %v2147
  %7258 = vmatprep.subr.bf16.mxu0 %v2156
  %7259 = vmatpush1.bf16.msra.mxu0 %v2155
  %7260 = vmatprep.subr.bf16.mxu0 %v2164
  %7261 = vmatpush1.bf16.msra.mxu0 %v2163
  %7262 = vmatprep.subr.bf16.mxu0 %v2172
  %7263 = vmatpush1.bf16.msra.mxu0 %v2171
  %7264 = vmatprep.subr.bf16.mxu0 %v2180
  %7265 = vmatpush1.bf16.msra.mxu0 %v2179
  %7266 = vmatprep.subr.bf16.mxu0 %v2188
  %7267 = vmatpush1.bf16.msra.mxu0 %v2187
  %7268 = vmatprep.subr.bf16.mxu0 %v2196
  %7269 = vmatpush1.bf16.msra.mxu0 %v2195
  %7270 = vmatprep.subr.bf16.mxu0 %v2204
  %7271 = vmatpush1.bf16.msra.mxu0 %v2203
  %7272 = vmatprep.subr.bf16.mxu0 %v2212
  %7273 = vmatpush1.bf16.msra.mxu0 %v2211
  %7274 = vmatprep.subr.bf16.mxu0 %v2220
  %7275 = vmatpush1.bf16.msra.mxu0 %v2219
  %7276 = vmatprep.subr.bf16.mxu0 %v2228
  %7277 = vmatpush1.bf16.msra.mxu0 %v2227
  %7278 = vmatprep.subr.bf16.mxu0 %v2236
  %7279 = vmatpush1.bf16.msra.mxu0 %v2235
  %7280 = vmatprep.mubr.bf16.mxu0 %v6999
  %7281 = vmatmul.mubr.bf16.gmra.mrb[0].mxu0 %v6998
  %v7282 = vpop.f32.mrb[0].mxu0
  %v7283 = vadd.f32 %v446, %v7282
  %v7284 = vpop.f32.mrb[0].mxu0
  %v7285 = vadd.f32 %v450, %v7284
  %v7286 = vpop.f32.mrb[0].mxu0
  %v7287 = vpop.f32.mrb[0].mxu0
  %7288 = vdwg.mxu0
  %7289 = vmatprep.subr.bf16.mxu0 %v2244
  %7290 = vmatpush1.bf16.msra.mxu0 %v2243
  %7291 = vmatprep.subr.bf16.mxu0 %v2252
  %7292 = vmatpush1.bf16.msra.mxu0 %v2251
  %7293 = vmatprep.subr.bf16.mxu0 %v2260
  %7294 = vmatpush1.bf16.msra.mxu0 %v2259
  %7295 = vmatprep.subr.bf16.mxu0 %v2268
  %7296 = vmatpush1.bf16.msra.mxu0 %v2267
  %7297 = vmatprep.subr.bf16.mxu0 %v2276
  %7298 = vmatpush1.bf16.msra.mxu0 %v2275
  %7299 = vmatprep.subr.bf16.mxu0 %v2284
  %7300 = vmatpush1.bf16.msra.mxu0 %v2283
  %7301 = vmatprep.subr.bf16.mxu0 %v2292
  %7302 = vmatpush1.bf16.msra.mxu0 %v2291
  %7303 = vmatprep.subr.bf16.mxu0 %v2300
  %7304 = vmatpush1.bf16.msra.mxu0 %v2299
  %7305 = vmatprep.subr.bf16.mxu0 %v2308
  %7306 = vmatpush1.bf16.msra.mxu0 %v2307
  %7307 = vmatprep.subr.bf16.mxu0 %v2316
  %7308 = vmatpush1.bf16.msra.mxu0 %v2315
  %7309 = vmatprep.subr.bf16.mxu0 %v2324
  %7310 = vmatpush1.bf16.msra.mxu0 %v2323
  %7311 = vmatprep.subr.bf16.mxu0 %v2332
  %7312 = vmatpush1.bf16.msra.mxu0 %v2331
  %7313 = vmatprep.subr.bf16.mxu0 %v2340
  %7314 = vmatpush1.bf16.msra.mxu0 %v2339
  %7315 = vmatprep.subr.bf16.mxu0 %v2348
  %7316 = vmatpush1.bf16.msra.mxu0 %v2347
  %7317 = vmatprep.subr.bf16.mxu0 %v2356
  %7318 = vmatpush1.bf16.msra.mxu0 %v2355
  %7319 = vmatprep.subr.bf16.mxu0 %v2364
  %7320 = vmatpush1.bf16.msra.mxu0 %v2363
  %7321 = vmatprep.mubr.bf16.mxu0 %v7001
  %7322 = vmatmul.mubr.bf16.gmra.mrb[0].mxu0 %v7000
  %v7323 = vpop.f32.mrb[0].mxu0
  %v7324 = vadd.f32 %v7283, %v7323
  %v7325 = vpop.f32.mrb[0].mxu0
  %v7326 = vadd.f32 %v7285, %v7325
  %v7327 = vpop.f32.mrb[0].mxu0
  %v7328 = vpop.f32.mrb[0].mxu0
  %7329 = vdwg.mxu0
  %v7330 = vxor.u32 %v7078, 2147483648
  %v7331 = vxor.u32 %v7080, 2147483648
  %v7332 = vmul.f32 %v7330, 1.442695
  %v7333 = vpow.pop %v7332
  %v7334 = vmul.f32 %v7331, 1.442695
  %v7335 = vpow.pop %v7334
  %v7336 = vadd.f32 %v7333, 1.0
  %v7337 = vadd.f32 %v7335, 1.0
  %v7338 = vrcp.pop %v7336
  %v7339 = vmul.f32 1.0, %v7338
  %v7340 = vrcp.pop %v7337
  %v7341 = vmul.f32 1.0, %v7340
  %v7342 = vxor.u32 %v7160, 2147483648
  %v7343 = vxor.u32 %v7162, 2147483648
  %v7344 = vmul.f32 %v7342, 1.442695
  %v7345 = vpow.pop %v7344
  %v7346 = vmul.f32 %v7343, 1.442695
  %v7347 = vpow.pop %v7346
  %v7348 = vadd.f32 %v7345, 1.0
  %v7349 = vadd.f32 %v7347, 1.0
  %v7350 = vrcp.pop %v7348
  %v7351 = vmul.f32 1.0, %v7350
  %v7352 = vrcp.pop %v7349
  %v7353 = vmul.f32 1.0, %v7352
  %v7354 = vtanh.pop %v7242
  %v7355 = vtanh.pop %v7244
  %v7356 = vxor.u32 %v7324, 2147483648
  %v7357 = vxor.u32 %v7326, 2147483648
  %v7358 = vmul.f32 %v7356, 1.442695
  %v7359 = vpow.pop %v7358
  %v7360 = vmul.f32 %v7357, 1.442695
  %v7361 = vpow.pop %v7360
  %v7362 = vadd.f32 %v7359, 1.0
  %v7363 = vadd.f32 %v7361, 1.0
  %v7364 = vrcp.pop %v7362
  %v7365 = vmul.f32 1.0, %v7364
  %v7366 = vrcp.pop %v7363
  %v7367 = vmul.f32 1.0, %v7366
  %v7368 = vmul.f32 %v7351, %v6746
  %v7369 = vmul.f32 %v7353, %v6747
  %v7370 = vmul.f32 %v7339, %v7354
  %v7371 = vmul.f32 %v7341, %v7355
  %v7372 = vadd.f32 %v7368, %v7370
  %v7373 = vadd.f32 %v7369, %v7371
  %v7374 = vtanh.pop %v7372
  %v7375 = vtanh.pop %v7373
  %v7376 = vmul.f32 %v7365, %v7374
  %v7377 = vmul.f32 %v7367, %v7375
  %v7378 = vmul.f32 %v7376, %v6994
  %v7379 = vmul.f32 %v7377, %v6994
  %s7380 = scalar_lea.vmem [#allocation2], 112
  %7381 = vst [vmem:[%s7380] sm:$0xff] %v7378
  %7382 = vst [vmem:[%s7380 + $0x8] sm:$0xff] %v7379
  %v7383 = vld [vmem:[#allocation2] sm:$0xff]
  %v7384 = vld [vmem:[#allocation2 + $0x8] sm:$0xff]
  %v7385 = vld [vmem:[#allocation2 + $0x10] sm:$0xff]
  %v7386 = vld [vmem:[#allocation2 + $0x18] sm:$0xff]
  %v7387 = vld [vmem:[#allocation2 + $0x20] sm:$0xff]
  %v7388 = vld [vmem:[#allocation2 + $0x28] sm:$0xff]
  %v7389 = vld [vmem:[#allocation2 + $0x30] sm:$0xff]
  %v7390 = vld [vmem:[#allocation2 + $0x38] sm:$0xff]
  %v7391 = vld [vmem:[#allocation2 + $0x40] sm:$0xff]
  %v7392 = vld [vmem:[#allocation2 + $0x48] sm:$0xff]
  %v7393 = vld [vmem:[#allocation2 + $0x50] sm:$0xff]
  %v7394 = vld [vmem:[#allocation2 + $0x58] sm:$0xff]
  %v7395 = vld [vmem:[#allocation2 + $0x60] sm:$0xff]
  %v7396 = vld [vmem:[#allocation2 + $0x68] sm:$0xff]
  %v7397 = vld [vmem:[#allocation2 + $0x70] sm:$0xff]
  %v7398 = vld [vmem:[#allocation2 + $0x78] sm:$0xff]
  %v7399 = vpack.c.bf16 %v7385, %v7383
  %v7400 = vpack.c.bf16 %v7386, %v7384
  %v7401 = vpack.c.bf16 %v7389, %v7387
  %v7402 = vpack.c.bf16 %v7390, %v7388
  %v7403 = vpack.c.bf16 %v7393, %v7391
  %v7404 = vpack.c.bf16 %v7394, %v7392
  %v7405 = vpack.c.bf16 %v7397, %v7395
  %v7406 = vpack.c.bf16 %v7398, %v7396
  %v7407 = vld [vmem:[%s5] sm:$0xff]
  %v7408 = vld [vmem:[%s5 + $0x8] sm:$0xff]
  %v7409 = vld [vmem:[%s5 + $0x10] sm:$0xff]
  %v7410 = vld [vmem:[%s5 + $0x18] sm:$0xff]
  %v7411 = vld [vmem:[%s5 + $0x20] sm:$0xff]
  %v7412 = vld [vmem:[%s5 + $0x28] sm:$0xff]
  %v7413 = vld [vmem:[%s5 + $0x30] sm:$0xff]
  %v7414 = vld [vmem:[%s5 + $0x38] sm:$0xff]
  %v7415 = vld [vmem:[%s5 + $0x40] sm:$0xff]
  %v7416 = vld [vmem:[%s5 + $0x48] sm:$0xff]
  %v7417 = vld [vmem:[%s5 + $0x50] sm:$0xff]
  %v7418 = vld [vmem:[%s5 + $0x58] sm:$0xff]
  %v7419 = vld [vmem:[%s5 + $0x60] sm:$0xff]
  %v7420 = vld [vmem:[%s5 + $0x68] sm:$0xff]
  %v7421 = vld [vmem:[%s5 + $0x70] sm:$0xff]
  %v7422 = vld [vmem:[%s5 + $0x78] sm:$0xff]
  %v7423 = vld [vmem:[%s5 + $0x80] sm:$0xff]
  %v7424 = vld [vmem:[%s5 + $0x88] sm:$0xff]
  %v7425 = vld [vmem:[%s5 + $0x90] sm:$0xff]
  %v7426 = vld [vmem:[%s5 + $0x98] sm:$0xff]
  %v7427 = vld [vmem:[%s5 + $0xa0] sm:$0xff]
  %v7428 = vld [vmem:[%s5 + $0xa8] sm:$0xff]
  %v7429 = vld [vmem:[%s5 + $0xb0] sm:$0xff]
  %v7430 = vld [vmem:[%s5 + $0xb8] sm:$0xff]
  %v7431 = vld [vmem:[%s5 + $0xc0] sm:$0xff]
  %v7432 = vld [vmem:[%s5 + $0xc8] sm:$0xff]
  %v7433 = vld [vmem:[%s5 + $0xd0] sm:$0xff]
  %v7434 = vld [vmem:[%s5 + $0xd8] sm:$0xff]
  %v7435 = vld [vmem:[%s5 + $0xe0] sm:$0xff]
  %v7436 = vld [vmem:[%s5 + $0xe8] sm:$0xff]
  %v7437 = vld [vmem:[%s5 + $0xf0] sm:$0xff]
  %v7438 = vld [vmem:[%s5 + $0xf8] sm:$0xff]
  %v7439 = vld [vmem:[%s6] sm:$0x3]
  %v7441 = vlaneseq
  %v7442 = vshrl.u32 %v7441, 7
  %v7443 = vsub.s32 0, %v7442
  %v7444 = vrot.slane %v7439, %v7443
  %v7445 = vlaneseq
  %v7446 = vshrl.u32 %v7445, 7
  %v7447 = vsub.s32 1, %v7446
  %v7448 = vrot.slane %v7439, %v7447
  %v7483 = vunpack.c.l.b16 %v7407
  %v7484 = vunpack.c.h.b16 %v7407
  %v7485 = vunpack.c.l.b16 %v7408
  %v7486 = vunpack.c.h.b16 %v7408
  %v7487 = vunpack.c.l.b16 %v7409
  %v7488 = vunpack.c.h.b16 %v7409
  %v7489 = vunpack.c.l.b16 %v7410
  %v7490 = vunpack.c.h.b16 %v7410
  %v7491 = vunpack.c.l.b16 %v7411
  %v7492 = vunpack.c.h.b16 %v7411
  %v7493 = vunpack.c.l.b16 %v7412
  %v7494 = vunpack.c.h.b16 %v7412
  %v7495 = vunpack.c.l.b16 %v7413
  %v7496 = vunpack.c.h.b16 %v7413
  %v7497 = vunpack.c.l.b16 %v7414
  %v7498 = vunpack.c.h.b16 %v7414
  %v7499 = vunpack.c.l.b16 %v7415
  %v7500 = vunpack.c.h.b16 %v7415
  %v7501 = vunpack.c.l.b16 %v7416
  %v7502 = vunpack.c.h.b16 %v7416
  %v7503 = vunpack.c.l.b16 %v7417
  %v7504 = vunpack.c.h.b16 %v7417
  %v7505 = vunpack.c.l.b16 %v7418
  %v7506 = vunpack.c.h.b16 %v7418
  %v7507 = vunpack.c.l.b16 %v7419
  %v7508 = vunpack.c.h.b16 %v7419
  %v7509 = vunpack.c.l.b16 %v7420
  %v7510 = vunpack.c.h.b16 %v7420
  %v7511 = vunpack.c.l.b16 %v7421
  %v7512 = vunpack.c.h.b16 %v7421
  %v7513 = vunpack.c.l.b16 %v7422
  %v7514 = vunpack.c.h.b16 %v7422
  %v7515 = vunpack.c.l.b16 %v7423
  %v7516 = vunpack.c.h.b16 %v7423
  %v7517 = vunpack.c.l.b16 %v7424
  %v7518 = vunpack.c.h.b16 %v7424
  %v7519 = vunpack.c.l.b16 %v7425
  %v7520 = vunpack.c.h.b16 %v7425
  %v7521 = vunpack.c.l.b16 %v7426
  %v7522 = vunpack.c.h.b16 %v7426
  %v7523 = vunpack.c.l.b16 %v7427
  %v7524 = vunpack.c.h.b16 %v7427
  %v7525 = vunpack.c.l.b16 %v7428
  %v7526 = vunpack.c.h.b16 %v7428
  %v7527 = vunpack.c.l.b16 %v7429
  %v7528 = vunpack.c.h.b16 %v7429
  %v7529 = vunpack.c.l.b16 %v7430
  %v7530 = vunpack.c.h.b16 %v7430
  %v7531 = vunpack.c.l.b16 %v7431
  %v7532 = vunpack.c.h.b16 %v7431
  %v7533 = vunpack.c.l.b16 %v7432
  %v7534 = vunpack.c.h.b16 %v7432
  %v7535 = vunpack.c.l.b16 %v7433
  %v7536 = vunpack.c.h.b16 %v7433
  %v7537 = vunpack.c.l.b16 %v7434
  %v7538 = vunpack.c.h.b16 %v7434
  %v7539 = vunpack.c.l.b16 %v7435
  %v7540 = vunpack.c.h.b16 %v7435
  %v7541 = vunpack.c.l.b16 %v7436
  %v7542 = vunpack.c.h.b16 %v7436
  %v7543 = vunpack.c.l.b16 %v7437
  %v7544 = vunpack.c.h.b16 %v7437
  %v7545 = vunpack.c.l.b16 %v7438
  %v7546 = vunpack.c.h.b16 %v7438
  %v7547 = vpack.c.b16 %v7485, %v7483
  %v7548 = vpack.c.b16 %v7486, %v7484
  %v7549 = vpack.c.b16 %v7489, %v7487
  %v7550 = vpack.c.b16 %v7490, %v7488
  %v7551 = vpack.c.b16 %v7493, %v7491
  %v7552 = vpack.c.b16 %v7494, %v7492
  %v7553 = vpack.c.b16 %v7497, %v7495
  %v7554 = vpack.c.b16 %v7498, %v7496
  %v7555 = vpack.c.b16 %v7501, %v7499
  %v7556 = vpack.c.b16 %v7502, %v7500
  %v7557 = vpack.c.b16 %v7505, %v7503
  %v7558 = vpack.c.b16 %v7506, %v7504
  %v7559 = vpack.c.b16 %v7509, %v7507
  %v7560 = vpack.c.b16 %v7510, %v7508
  %v7561 = vpack.c.b16 %v7513, %v7511
  %v7562 = vpack.c.b16 %v7514, %v7512
  %v7563 = vpack.c.b16 %v7517, %v7515
  %v7564 = vpack.c.b16 %v7518, %v7516
  %v7565 = vpack.c.b16 %v7521, %v7519
  %v7566 = vpack.c.b16 %v7522, %v7520
  %v7567 = vpack.c.b16 %v7525, %v7523
  %v7568 = vpack.c.b16 %v7526, %v7524
  %v7569 = vpack.c.b16 %v7529, %v7527
  %v7570 = vpack.c.b16 %v7530, %v7528
  %v7571 = vpack.c.b16 %v7533, %v7531
  %v7572 = vpack.c.b16 %v7534, %v7532
  %v7573 = vpack.c.b16 %v7537, %v7535
  %v7574 = vpack.c.b16 %v7538, %v7536
  %v7575 = vpack.c.b16 %v7541, %v7539
  %v7576 = vpack.c.b16 %v7542, %v7540
  %v7577 = vpack.c.b16 %v7545, %v7543
  %v7578 = vpack.c.b16 %v7546, %v7544
  %7611 = vmatprep.subr.bf16.mxu0 %v7548
  %7612 = vmatpush1.bf16.msra.mxu0 %v7547
  %7613 = vmatprep.subr.bf16.mxu0 %v7550
  %7614 = vmatpush1.bf16.msra.mxu0 %v7549
  %7615 = vmatprep.subr.bf16.mxu0 %v7552
  %7616 = vmatpush1.bf16.msra.mxu0 %v7551
  %7617 = vmatprep.subr.bf16.mxu0 %v7554
  %7618 = vmatpush1.bf16.msra.mxu0 %v7553
  %7619 = vmatprep.subr.bf16.mxu0 %v7556
  %7620 = vmatpush1.bf16.msra.mxu0 %v7555
  %7621 = vmatprep.subr.bf16.mxu0 %v7558
  %7622 = vmatpush1.bf16.msra.mxu0 %v7557
  %7623 = vmatprep.subr.bf16.mxu0 %v7560
  %7624 = vmatpush1.bf16.msra.mxu0 %v7559
  %7625 = vmatprep.subr.bf16.mxu0 %v7562
  %7626 = vmatpush1.bf16.msra.mxu0 %v7561
  %7627 = vmatprep.subr.bf16.mxu0 %v7564
  %7628 = vmatpush1.bf16.msra.mxu0 %v7563
  %7629 = vmatprep.subr.bf16.mxu0 %v7566
  %7630 = vmatpush1.bf16.msra.mxu0 %v7565
  %7631 = vmatprep.subr.bf16.mxu0 %v7568
  %7632 = vmatpush1.bf16.msra.mxu0 %v7567
  %7633 = vmatprep.subr.bf16.mxu0 %v7570
  %7634 = vmatpush1.bf16.msra.mxu0 %v7569
  %7635 = vmatprep.subr.bf16.mxu0 %v7572
  %7636 = vmatpush1.bf16.msra.mxu0 %v7571
  %7637 = vmatprep.subr.bf16.mxu0 %v7574
  %7638 = vmatpush1.bf16.msra.mxu0 %v7573
  %7639 = vmatprep.subr.bf16.mxu0 %v7576
  %7640 = vmatpush1.bf16.msra.mxu0 %v7575
  %7641 = vmatprep.subr.bf16.mxu0 %v7578
  %7642 = vmatpush1.bf16.msra.mxu0 %v7577
  %7643 = vmatprep.mubr.bf16.mxu0 %v7400
  %7644 = vmatmul.mubr.bf16.gmra.mrb[0].mxu0 %v7399
  %v7645 = vpop.f32.mrb[0].mxu0
  %v7646 = vadd.f32 %v7444, %v7645
  %v7647 = vpop.f32.mrb[0].mxu0
  %v7648 = vadd.f32 %v7448, %v7647
  %v7649 = vpop.f32.mrb[0].mxu0
  %v7650 = vadd.f32 %v7444, %v7649
  %v7651 = vpop.f32.mrb[0].mxu0
  %v7652 = vadd.f32 %v7448, %v7651
  %7653 = vmatprep.mubr.bf16.mxu0 %v7402
  %7654 = vmatmul.mubr.bf16.gmra.mrb[0].mxu0 %v7401
  %v7655 = vpop.f32.mrb[0].mxu0
  %v7656 = vadd.f32 %v7444, %v7655
  %v7657 = vpop.f32.mrb[0].mxu0
  %v7658 = vadd.f32 %v7448, %v7657
  %v7659 = vpop.f32.mrb[0].mxu0
  %v7660 = vadd.f32 %v7444, %v7659
  %v7661 = vpop.f32.mrb[0].mxu0
  %v7662 = vadd.f32 %v7448, %v7661
  %7663 = vmatprep.mubr.bf16.mxu0 %v7404
  %7664 = vmatmul.mubr.bf16.gmra.mrb[0].mxu0 %v7403
  %v7665 = vpop.f32.mrb[0].mxu0
  %v7666 = vadd.f32 %v7444, %v7665
  %v7667 = vpop.f32.mrb[0].mxu0
  %v7668 = vadd.f32 %v7448, %v7667
  %v7669 = vpop.f32.mrb[0].mxu0
  %v7670 = vadd.f32 %v7444, %v7669
  %v7671 = vpop.f32.mrb[0].mxu0
  %v7672 = vadd.f32 %v7448, %v7671
  %7673 = vmatprep.mubr.bf16.mxu0 %v7406
  %7674 = vmatmul.mubr.bf16.gmra.mrb[0].mxu0 %v7405
  %v7675 = vpop.f32.mrb[0].mxu0
  %v7676 = vadd.f32 %v7444, %v7675
  %v7677 = vpop.f32.mrb[0].mxu0
  %v7678 = vadd.f32 %v7448, %v7677
  %v7679 = vpop.f32.mrb[0].mxu0
  %v7680 = vadd.f32 %v7444, %v7679
  %v7681 = vpop.f32.mrb[0].mxu0
  %v7682 = vadd.f32 %v7448, %v7681
  %7683 = vdwg.mxu0
  %v7684 = vmax.f32 %v7646, 0.0
  %v7685 = vmax.f32 %v7648, 0.0
  %v7686 = vmax.f32 %v7650, 0.0
  %v7687 = vmax.f32 %v7652, 0.0
  %v7688 = vmax.f32 %v7656, 0.0
  %v7689 = vmax.f32 %v7658, 0.0
  %v7690 = vmax.f32 %v7660, 0.0
  %v7691 = vmax.f32 %v7662, 0.0
  %v7692 = vmax.f32 %v7666, 0.0
  %v7693 = vmax.f32 %v7668, 0.0
  %v7694 = vmax.f32 %v7670, 0.0
  %v7695 = vmax.f32 %v7672, 0.0
  %v7696 = vmax.f32 %v7676, 0.0
  %v7697 = vmax.f32 %v7678, 0.0
  %v7698 = vmax.f32 %v7680, 0.0
  %v7699 = vmax.f32 %v7682, 0.0
  %v7700 = vpack.c.bf16 %v7686, %v7684
  %v7701 = vpack.c.bf16 %v7687, %v7685
  %v7702 = vpack.c.bf16 %v7690, %v7688
  %v7703 = vpack.c.bf16 %v7691, %v7689
  %v7704 = vpack.c.bf16 %v7694, %v7692
  %v7705 = vpack.c.bf16 %v7695, %v7693
  %v7706 = vpack.c.bf16 %v7698, %v7696
  %v7707 = vpack.c.bf16 %v7699, %v7697
  %v7708 = vld [vmem:[%s7] sm:$0xf]
  %v7709 = vld [vmem:[%s7 + $0x4] sm:$0xf]
  %v7710 = vld [vmem:[%s7 + $0x8] sm:$0xf]
  %v7711 = vld [vmem:[%s7 + $0xc] sm:$0xf]
  %v7712 = vld [vmem:[%s7 + $0x10] sm:$0xf]
  %v7713 = vld [vmem:[%s7 + $0x14] sm:$0xf]
  %v7714 = vld [vmem:[%s7 + $0x18] sm:$0xf]
  %v7715 = vld [vmem:[%s7 + $0x1c] sm:$0xf]
  %v7716 = vld [vmem:[%s7 + $0x20] sm:$0xf]
  %v7717 = vld [vmem:[%s7 + $0x24] sm:$0xf]
  %v7718 = vld [vmem:[%s7 + $0x28] sm:$0xf]
  %v7719 = vld [vmem:[%s7 + $0x2c] sm:$0xf]
  %v7720 = vld [vmem:[%s7 + $0x30] sm:$0xf]
  %v7721 = vld [vmem:[%s7 + $0x34] sm:$0xf]
  %v7722 = vld [vmem:[%s7 + $0x38] sm:$0xf]
  %v7723 = vld [vmem:[%s7 + $0x3c] sm:$0xf]
  %v7724 = vld [vmem:[%s7 + $0x40] sm:$0xf]
  %v7725 = vld [vmem:[%s7 + $0x44] sm:$0xf]
  %v7726 = vld [vmem:[%s7 + $0x48] sm:$0xf]
  %v7727 = vld [vmem:[%s7 + $0x4c] sm:$0xf]
  %v7728 = vld [vmem:[%s7 + $0x50] sm:$0xf]
  %v7729 = vld [vmem:[%s7 + $0x54] sm:$0xf]
  %v7730 = vld [vmem:[%s7 + $0x58] sm:$0xf]
  %v7731 = vld [vmem:[%s7 + $0x5c] sm:$0xf]
  %v7732 = vld [vmem:[%s7 + $0x60] sm:$0xf]
  %v7733 = vld [vmem:[%s7 + $0x64] sm:$0xf]
  %v7734 = vld [vmem:[%s7 + $0x68] sm:$0xf]
  %v7735 = vld [vmem:[%s7 + $0x6c] sm:$0xf]
  %v7736 = vld [vmem:[%s7 + $0x70] sm:$0xf]
  %v7737 = vld [vmem:[%s7 + $0x74] sm:$0xf]
  %v7738 = vld [vmem:[%s7 + $0x78] sm:$0xf]
  %v7739 = vld [vmem:[%s7 + $0x7c] sm:$0xf]
  %v7740 = vld [vmem:[%s8] sm:$0x1]
  %v7742 = vlaneseq
  %v7743 = vshrl.u32 %v7742, 7
  %v7744 = vsub.s32 0, %v7743
  %v7745 = vrot.slane %v7740, %v7744
  %v7779 = vunpack.c.l.b16 %v7708
  %v7780 = vunpack.c.l.b16 %v7709
  %v7781 = vunpack.c.l.b16 %v7710
  %v7782 = vunpack.c.l.b16 %v7711
  %v7783 = vunpack.c.l.b16 %v7712
  %v7784 = vunpack.c.l.b16 %v7713
  %v7785 = vunpack.c.l.b16 %v7714
  %v7786 = vunpack.c.l.b16 %v7715
  %v7787 = vunpack.c.l.b16 %v7716
  %v7788 = vunpack.c.l.b16 %v7717
  %v7789 = vunpack.c.l.b16 %v7718
  %v7790 = vunpack.c.l.b16 %v7719
  %v7791 = vunpack.c.l.b16 %v7720
  %v7792 = vunpack.c.l.b16 %v7721
  %v7793 = vunpack.c.l.b16 %v7722
  %v7794 = vunpack.c.l.b16 %v7723
  %v7795 = vunpack.c.l.b16 %v7724
  %v7796 = vunpack.c.l.b16 %v7725
  %v7797 = vunpack.c.l.b16 %v7726
  %v7798 = vunpack.c.l.b16 %v7727
  %v7799 = vunpack.c.l.b16 %v7728
  %v7800 = vunpack.c.l.b16 %v7729
  %v7801 = vunpack.c.l.b16 %v7730
  %v7802 = vunpack.c.l.b16 %v7731
  %v7803 = vunpack.c.l.b16 %v7732
  %v7804 = vunpack.c.l.b16 %v7733
  %v7805 = vunpack.c.l.b16 %v7734
  %v7806 = vunpack.c.l.b16 %v7735
  %v7807 = vunpack.c.l.b16 %v7736
  %v7808 = vunpack.c.l.b16 %v7737
  %v7809 = vunpack.c.l.b16 %v7738
  %v7810 = vunpack.c.l.b16 %v7739
  %v7811 = vpack.c.b16 %v7780, %v7779
  %v7812 = vpack.c.b16 %v7782, %v7781
  %v7813 = vpack.c.b16 %v7784, %v7783
  %v7814 = vpack.c.b16 %v7786, %v7785
  %v7815 = vpack.c.b16 %v7788, %v7787
  %v7816 = vpack.c.b16 %v7790, %v7789
  %v7817 = vpack.c.b16 %v7792, %v7791
  %v7818 = vpack.c.b16 %v7794, %v7793
  %v7819 = vpack.c.b16 %v7796, %v7795
  %v7820 = vpack.c.b16 %v7798, %v7797
  %v7821 = vpack.c.b16 %v7800, %v7799
  %v7822 = vpack.c.b16 %v7802, %v7801
  %v7823 = vpack.c.b16 %v7804, %v7803
  %v7824 = vpack.c.b16 %v7806, %v7805
  %v7825 = vpack.c.b16 %v7808, %v7807
  %v7826 = vpack.c.b16 %v7810, %v7809
  %7843 = vmatprep.subr.bf16.mxu0 0
  %7844 = vmatpush1.bf16.msra.mxu0 %v7811
  %7845 = vmatprep.subr.bf16.mxu0 0
  %7846 = vmatpush1.bf16.msra.mxu0 %v7812
  %7847 = vmatprep.subr.bf16.mxu0 0
  %7848 = vmatpush1.bf16.msra.mxu0 %v7813
  %7849 = vmatprep.subr.bf16.mxu0 0
  %7850 = vmatpush1.bf16.msra.mxu0 %v7814
  %7851 = vmatprep.subr.bf16.mxu0 0
  %7852 = vmatpush1.bf16.msra.mxu0 %v7815
  %7853 = vmatprep.subr.bf16.mxu0 0
  %7854 = vmatpush1.bf16.msra.mxu0 %v7816
  %7855 = vmatprep.subr.bf16.mxu0 0
  %7856 = vmatpush1.bf16.msra.mxu0 %v7817
  %7857 = vmatprep.subr.bf16.mxu0 0
  %7858 = vmatpush1.bf16.msra.mxu0 %v7818
  %7859 = vmatprep.subr.bf16.mxu0 0
  %7860 = vmatpush1.bf16.msra.mxu0 %v7819
  %7861 = vmatprep.subr.bf16.mxu0 0
  %7862 = vmatpush1.bf16.msra.mxu0 %v7820
  %7863 = vmatprep.subr.bf16.mxu0 0
  %7864 = vmatpush1.bf16.msra.mxu0 %v7821
  %7865 = vmatprep.subr.bf16.mxu0 0
  %7866 = vmatpush1.bf16.msra.mxu0 %v7822
  %7867 = vmatprep.subr.bf16.mxu0 0
  %7868 = vmatpush1.bf16.msra.mxu0 %v7823
  %7869 = vmatprep.subr.bf16.mxu0 0
  %7870 = vmatpush1.bf16.msra.mxu0 %v7824
  %7871 = vmatprep.subr.bf16.mxu0 0
  %7872 = vmatpush1.bf16.msra.mxu0 %v7825
  %7873 = vmatprep.subr.bf16.mxu0 0
  %7874 = vmatpush1.bf16.msra.mxu0 %v7826
  %7875 = vmatprep.mubr.bf16.mxu0 %v7701
  %7876 = vmatmul.mubr.bf16.gmra.mrb[0].mxu0 %v7700
  %v7877 = vpop.f32.mrb[0].mxu0
  %v7878 = vadd.f32 %v7745, %v7877
  %v7879 = vpop.f32.mrb[0].mxu0
  %v7880 = vpop.f32.mrb[0].mxu0
  %v7881 = vadd.f32 %v7745, %v7880
  %v7882 = vpop.f32.mrb[0].mxu0
  %7883 = vmatprep.mubr.bf16.mxu0 %v7703
  %7884 = vmatmul.mubr.bf16.gmra.mrb[0].mxu0 %v7702
  %v7885 = vpop.f32.mrb[0].mxu0
  %v7886 = vadd.f32 %v7745, %v7885
  %v7887 = vpop.f32.mrb[0].mxu0
  %v7888 = vpop.f32.mrb[0].mxu0
  %v7889 = vadd.f32 %v7745, %v7888
  %v7890 = vpop.f32.mrb[0].mxu0
  %7891 = vmatprep.mubr.bf16.mxu0 %v7705
  %7892 = vmatmul.mubr.bf16.gmra.mrb[0].mxu0 %v7704
  %v7893 = vpop.f32.mrb[0].mxu0
  %v7894 = vadd.f32 %v7745, %v7893
  %v7895 = vpop.f32.mrb[0].mxu0
  %v7896 = vpop.f32.mrb[0].mxu0
  %v7897 = vadd.f32 %v7745, %v7896
  %v7898 = vpop.f32.mrb[0].mxu0
  %7899 = vmatprep.mubr.bf16.mxu0 %v7707
  %7900 = vmatmul.mubr.bf16.gmra.mrb[0].mxu0 %v7706
  %v7901 = vpop.f32.mrb[0].mxu0
  %v7902 = vadd.f32 %v7745, %v7901
  %v7903 = vpop.f32.mrb[0].mxu0
  %v7904 = vpop.f32.mrb[0].mxu0
  %v7905 = vadd.f32 %v7745, %v7904
  %v7906 = vpop.f32.mrb[0].mxu0
  %7907 = vdwg.mxu0
  %7908 = vst [vmem:[%s9] sm:$0xff] %v7878
  %7909 = vst [vmem:[%s9 + $0x8] sm:$0xff] %v7881
  %7910 = vst [vmem:[%s9 + $0x10] sm:$0xff] %v7886
  %7911 = vst [vmem:[%s9 + $0x18] sm:$0xff] %v7889
  %7912 = vst [vmem:[%s9 + $0x20] sm:$0xff] %v7894
  %7913 = vst [vmem:[%s9 + $0x28] sm:$0xff] %v7897
  %7914 = vst [vmem:[%s9 + $0x30] sm:$0xff] %v7902
  %7915 = vst [vmem:[%s9 + $0x38] sm:$0xff] %v7905
  // Predicated region
  $region38: #{char_rnn_forward.1} parent=0 // pred_check
    _
  $region39: #{char_rnn_forward.1} parent=0 // pred_check_branch
    %7917 = sbr.rel (0) target = $region41
  $region40: #{char_rnn_forward.1} parent=0 // pred_region
    _
  $region41: #{char_rnn_forward.1} parent=0 // pred_fallthru
    _
  // Predicated region
  $region42: #{char_rnn_forward.1} parent=0 // pred_check
    _
  $region43: #{char_rnn_forward.1} parent=0 // pred_check_branch
    %7919 = sbr.rel (0) target = $region45
  $region44: #{char_rnn_forward.1} parent=0 // pred_region
    _
  $region45: #{char_rnn_forward.1} parent=0 // pred_fallthru
    _

</llo_original>
